<compile_context>
chip_gen: v6e
topology: v6e:2x2x1
jax: 0.10.0
libtpu: 0.0.40
codegen_flags: <defaults>
</compile_context>

<pallas_src>
from collections import OrderedDict

import numpy as np
import jax
import jax.numpy as jnp
from jax.experimental import pallas as pl
from jax.experimental.pallas import tpu as pltpu


PARAMS_SHAPES = OrderedDict(
    stage1=OrderedDict(
        conv1_1=(4, 10, 3, 3), conv1_2=(4, 4, 3, 3), conv1_3=(4, 4, 3, 3),
        conv1_4=(4, 4, 3, 3), conv1_5=(4, 4, 3, 3), conv1_6=(4, 4, 3, 3),
        conv1_7=(4, 4, 3, 3)),
    stage2=OrderedDict(
        conv2_1=(5, 14, 3, 3), conv2_2=(5, 5, 3, 3), conv2_3=(5, 5, 3, 3),
        conv2_4=(5, 5, 3, 3), conv2_5=(5, 5, 3, 3), conv2_6=(5, 5, 3, 3),
        conv2_7=(5, 5, 3, 3)),
    stage3=OrderedDict(
        conv3_1=(5, 15, 3, 3), conv3_2=(5, 5, 3, 3), conv3_3=(5, 5, 3, 3),
        conv3_4=(5, 5, 3, 3), conv3_5=(5, 5, 3, 3), conv3_6=(5, 5, 3, 3),
        conv3_7=(5, 5, 3, 3)),
    stage4=OrderedDict(conv_pred=(11, 15, 1, 1)),
)

BN_EPS = 1e-5

C1 = PARAMS_SHAPES["stage1"]["conv1_1"][0]     # 4  (stage1 width)
C2 = PARAMS_SHAPES["stage2"]["conv2_1"][0]     # 5  (stage2 width)
C3 = PARAMS_SHAPES["stage3"]["conv3_1"][0]     # 5  (stage3 width)
CP = PARAMS_SHAPES["stage4"]["conv_pred"][0]   # 11 (predictor output channels)
CX = PARAMS_SHAPES["stage1"]["conv1_1"][1]     # 10 (network input channels)

# Packed-slab geometry (all static).
SLOT_A = 8                     # sublane slot per tap for activation taps
SLOT_X = 16                    # sublane slot per tap for network-input taps
KA = 9 * SLOT_A + 8            # 80  = 9 act taps + [ones, 0, ...] tail
KX = 9 * SLOT_X + 8            # 152 = 9 x taps   + [ones, 0, ...] tail
BIAS_A = 9 * SLOT_A            # 72  = ones row in the act slab (BN shift)
BIAS_X = 9 * SLOT_X            # 144 = ones row in the x slab   (BN shift)
N_WA = 20                      # 18 within-stage convs + 2 entry act-parts


# ----------------------------------------------------------------------------
# Fused kernel
# ----------------------------------------------------------------------------
def _make_fused_kernel(H, W):
    HW = H * W
    # Flat-spatial-index shift for each 3x3 tap; tap order t = dy*3 + dx.
    tap_shifts = [(dy - 1) * W + (dx - 1) for dy in range(3) for dx in range(3)]

    def kernel(x_ref, maskA_ref, maskX_ref, wA_ref, wX_ref, wPa_ref, wPx_ref,
               o_ref, act_slab, x_slab):
        f32 = jnp.float32

        # Constant tail of both slabs: one ones row (hit by the packed bias
        # column) followed by zero rows.  Written once per sample; the tap
        # loops below never touch these rows, so the BN shift is never rolled
        # or border-masked.
        ones_row = (jax.lax.broadcasted_iota(jnp.int32, (8, HW), 0) == 0
                    ).astype(f32)
        act_slab[pl.ds(BIAS_A, 8), :] = ones_row
        x_slab[pl.ds(BIAS_X, 8), :] = ones_row

        # Stacked x taps, computed ONCE per sample and reused by the three
        # stage-entry convs (conv1_1, conv2_1, conv3_1).
        x = x_ref[0]                                  # (16, HW); rows>=10 are 0
        for t, s in enumerate(tap_shifts):
            if s == 0:
                v = x
            else:
                v = pltpu.roll(x, shift=(-s) % HW, axis=1) * maskX_ref[t]
            x_slab[pl.ds(SLOT_X * t, SLOT_X), :] = v

        def fill_act_slab(act):
            # Each tap is rolled, masked and stored immediately -> tiny live
            # ranges (no vreg spills at stage entries).
            for t, s in enumerate(tap_shifts):
                if s == 0:
                    v = act
                else:
                    v = pltpu.roll(act, shift=(-s) % HW, axis=1) * maskA_ref[t]
                act_slab[pl.ds(SLOT_A * t, SLOT_A), :] = v

        def conv_within(act, wa_idx):
            """3x3 conv + folded BN + ReLU as a single (8,KA)@(KA,HW) matmul."""
            fill_act_slab(act)
            z = jnp.dot(wA_ref[0, wa_idx], act_slab[...],
                        preferred_element_type=f32)
            return jnp.maximum(z, 0.0)

        def conv_entry(act, wa_idx, wx_idx):
            """Stage-entry 3x3 conv over concat(act, x) (+BN+ReLU), split into
            an x-slab matmul (carries the BN-shift bias) and, if act is given,
            an act-slab matmul.  The channel concat never materializes."""
            z = jnp.dot(wX_ref[0, wx_idx], x_slab[...],
                        preferred_element_type=f32)
            if act is not None:
                fill_act_slab(act)
                z = z + jnp.dot(wA_ref[0, wa_idx], act_slab[...],
                                preferred_element_type=f32)
            return jnp.maximum(z, 0.0)

        # ---- stage 1: conv1_1 (input = x only), then 6 convs ----
        act = conv_entry(None, None, 0)
        for l in range(6):
            act = conv_within(act, l)

        # ---- stage 2: conv2_1 over concat(act, x), then 6 convs ----
        act = conv_entry(act, 6, 1)
        for l in range(6):
            act = conv_within(act, 7 + l)

        # ---- stage 3: conv3_1 over concat(act, x), then 6 convs ----
        act = conv_entry(act, 13, 2)
        for l in range(6):
            act = conv_within(act, 14 + l)

        # ---- stage 4: 1x1 predictor over concat(act, x); no BN, no ReLU ----
        o_ref[0] = (jnp.dot(wPa_ref[0], act, preferred_element_type=f32) +
                    jnp.dot(wPx_ref[0], x_ref[0], preferred_element_type=f32))

    return kernel


# ----------------------------------------------------------------------------
# Host-side weight / BN / mask preparation
# ----------------------------------------------------------------------------
def make_bn_params():
    """Per-conv folded BN affine (eval mode, PyTorch default init)."""
    bn = {}
    for stage_key, stage_shapes in PARAMS_SHAPES.items():
        if stage_key == "stage4":
            continue
        bn[stage_key] = {}
        for conv_key, shp in stage_shapes.items():
            c = shp[0]
            gamma = jnp.ones((c,), jnp.float32)
            beta = jnp.zeros((c,), jnp.float32)
            running_mean = jnp.zeros((c,), jnp.float32)
            running_var = jnp.ones((c,), jnp.float32)
            scale = gamma / jnp.sqrt(running_var + BN_EPS)
            shift = beta - running_mean * scale
            bn[stage_key][conv_key] = (scale, shift)
    return bn


def _split_stage_weights(flat, stage_key):
    """(B, stage_total) flat weights -> {conv_key: (B, Cout, Cin, KH, KW)}."""
    res, off = {}, 0
    for conv_key, shp in PARAMS_SHAPES[stage_key].items():
        size = int(np.prod(shp))
        res[conv_key] = flat[:, off:off + size].reshape((-1,) + shp)
        off += size
    return res


def _pack_conv3x3(w, scale, shift, slot, k_total, bias_col):
    """(B, Cout, Cin, 3, 3) conv weight -> (B, 8, k_total) packed matrix.

    Column slot*t + i (tap t = dy*3+dx) holds w[:, o, i, dy, dx] * scale[o];
    column `bias_col` (if not None) holds the folded BN shift (hits the slab's
    constant ones row).  Rows Cout..7 and all unused columns are zero, so the
    matmul against the zero-padded slab is exact.
    """
    b, co, ci, kh, kw = w.shape
    assert kh == 3 and kw == 3 and ci <= slot and co <= 8
    wf = w * scale[None, :, None, None, None]                 # fold BN scale
    wt = jnp.transpose(wf, (0, 1, 3, 4, 2)).reshape(b, co, kh * kw, ci)
    wt = jnp.pad(wt, ((0, 0), (0, 0), (0, 0), (0, slot - ci)))
    wt = wt.reshape(b, co, kh * kw * slot)
    out = jnp.zeros((b, 8, k_total), jnp.float32)
    out = out.at[:, :co, :kh * kw * slot].set(wt)
    if bias_col is not None:
        out = out.at[:, :co, bias_col].set(shift[None, :])
    return out


def _make_tap_masks(H, W, rows):
    """(9, rows, H*W) f32 border masks, pre-broadcast along sublanes so no
    broadcast_in_dim is materialized inside the kernel."""
    yy, xx = np.meshgrid(np.arange(H), np.arange(W), indexing="ij")
    yy, xx = yy.reshape(-1), xx.reshape(-1)
    m = np.zeros((9, rows, H * W), np.float32)
    t = 0
    for dy in range(3):
        for dx in range(3):
            valid = ((yy + dy - 1 >= 0) & (yy + dy - 1 < H) &
                     (xx + dx - 1 >= 0) & (xx + dx - 1 < W))
            m[t] = valid.astype(np.float32)[None, :]
            t += 1
    return jnp.asarray(m)


def _prepare_kernel_inputs(flat_weights, bn_params, H, W):
    ws = {k: _split_stage_weights(flat_weights[k], k) for k in PARAMS_SHAPES}

    def bn(stage, conv):
        return bn_params[stage][conv]

    wA, wX = [], []

    # conv1_1: all 10 input channels come from x -> x slab; bias in x column.
    sc, sh = bn("stage1", "conv1_1")
    wX.append(_pack_conv3x3(ws["stage1"]["conv1_1"], sc, sh,
                            SLOT_X, KX, BIAS_X))
    for i in range(2, 8):
        sc, sh = bn("stage1", f"conv1_{i}")
        wA.append(_pack_conv3x3(ws["stage1"][f"conv1_{i}"], sc, sh,
                                SLOT_A, KA, BIAS_A))

    # conv2_1: channels [0:4] = previous activation, [4:14] = x.
    sc, sh = bn("stage2", "conv2_1")
    w = ws["stage2"]["conv2_1"]
    wA.append(_pack_conv3x3(w[:, :, :C1], sc, None, SLOT_A, KA, None))
    wX.append(_pack_conv3x3(w[:, :, C1:], sc, sh, SLOT_X, KX, BIAS_X))
    for i in range(2, 8):
        sc, sh = bn("stage2", f"conv2_{i}")
        wA.append(_pack_conv3x3(ws["stage2"][f"conv2_{i}"], sc, sh,
                                SLOT_A, KA, BIAS_A))

    # conv3_1: channels [0:5] = previous activation, [5:15] = x.
    sc, sh = bn("stage3", "conv3_1")
    w = ws["stage3"]["conv3_1"]
    wA.append(_pack_conv3x3(w[:, :, :C2], sc, None, SLOT_A, KA, None))
    wX.append(_pack_conv3x3(w[:, :, C2:], sc, sh, SLOT_X, KX, BIAS_X))
    for i in range(2, 8):
        sc, sh = bn("stage3", f"conv3_{i}")
        wA.append(_pack_conv3x3(ws["stage3"][f"conv3_{i}"], sc, sh,
                                SLOT_A, KA, BIAS_A))

    wA = jnp.stack(wA, axis=1)            # (B, 20, 8, KA)
    wX = jnp.stack(wX, axis=1)            # (B, 3, 8, KX)

    # 1x1 predictor (no BN): split into act-part / x-part, zero-padded to the
    # in-kernel activation widths (8 / 16 sublanes).
    w4 = ws["stage4"]["conv_pred"].reshape(-1, CP, C3 + CX)
    b = w4.shape[0]
    wPa = jnp.zeros((b, CP, SLOT_A), jnp.float32).at[:, :, :C3].set(w4[:, :, :C3])
    wPx = jnp.zeros((b, CP, SLOT_X), jnp.float32).at[:, :, :CX].set(w4[:, :, C3:])

    maskA = _make_tap_masks(H, W, SLOT_A)
    maskX = _make_tap_masks(H, W, SLOT_X)
    return maskA, maskX, wA, wX, wPa, wPx


# ----------------------------------------------------------------------------
# Public forward
# ----------------------------------------------------------------------------
def small_predictor_forward(x_nchw, flat_weights, bn_params):
    """x_nchw: (B, 10, H, W); flat_weights: {stage: (B, stage_total)}."""
    B, cx, H, W = x_nchw.shape
    assert cx == CX, (cx, CX)
    HW = H * W
    # NCHW with flattened spatial == in-kernel lane-dense (C, H*W) layout.
    x_flat = x_nchw.reshape(B, CX, HW).astype(jnp.float32)
    x_pad = jnp.pad(x_flat, ((0, 0), (0, SLOT_X - CX), (0, 0)))   # (B, 16, HW)

    maskA, maskX, wA, wX, wPa, wPx = _prepare_kernel_inputs(
        flat_weights, bn_params, H, W)

    out = pl.pallas_call(
        _make_fused_kernel(H, W),
        out_shape=jax.ShapeDtypeStruct((B, CP, HW), jnp.float32),
        grid_spec=pltpu.PrefetchScalarGridSpec(
            num_scalar_prefetch=0,
            grid=(B,),
            in_specs=[
                pl.BlockSpec((1, SLOT_X, HW), lambda b: (b, 0, 0)),      # x (padded)
                pl.BlockSpec((9, SLOT_A, HW), lambda b: (0, 0, 0)),      # act-tap masks
                pl.BlockSpec((9, SLOT_X, HW), lambda b: (0, 0, 0)),      # x-tap masks
                pl.BlockSpec((1, N_WA, 8, KA), lambda b: (b, 0, 0, 0)),  # packed conv weights
                pl.BlockSpec((1, 3, 8, KX), lambda b: (b, 0, 0, 0)),     # packed entry x-part weights
                pl.BlockSpec((1, CP, SLOT_A), lambda b: (b, 0, 0)),      # predictor act part
                pl.BlockSpec((1, CP, SLOT_X), lambda b: (b, 0, 0)),      # predictor x part
            ],
            out_specs=pl.BlockSpec((1, CP, HW), lambda b: (b, 0, 0)),
            scratch_shapes=[
                pltpu.VMEM((KA, HW), jnp.float32),   # stacked activation taps
                pltpu.VMEM((KX, HW), jnp.float32),   # stacked x taps (per sample)
            ],
        ),
        compiler_params=pltpu.CompilerParams(
            dimension_semantics=("parallel",)),      # batch -> both TCs on v7x
    )(x_pad, maskA, maskX, wA, wX, wPa, wPx)
    return out.reshape(B, CP, H, W)


# ----------------------------------------------------------------------------
# Pure-JAX reference (for correctness check)
# ----------------------------------------------------------------------------
def _reference_forward(x_nchw, flat_weights, bn_params):
    x = x_nchw.astype(jnp.float32)
    B = x.shape[0]

    def per_sample_conv(inp, w, pad):
        outs = []
        for b in range(B):
            outs.append(jax.lax.conv_general_dilated(
                inp[b:b + 1], w[b],
                window_strides=(1, 1),
                padding=((pad, pad), (pad, pad)),
                dimension_numbers=("NCHW", "OIHW", "NCHW"),
                precision=jax.lax.Precision.HIGHEST))
        return jnp.concatenate(outs, axis=0)

    cur = x
    for stage_key in ("stage1", "stage2", "stage3"):
        ws = _split_stage_weights(flat_weights[stage_key], stage_key)
        for conv_key, shp in PARAMS_SHAPES[stage_key].items():
            z = per_sample_conv(cur, ws[conv_key], shp[2] // 2)
            scale, shift = bn_params[stage_key][conv_key]
            z = z * scale[None, :, None, None] + shift[None, :, None, None]
            cur = jnp.maximum(z, 0.0)
        cur = jnp.concatenate([cur, x], axis=1)
    w4 = _split_stage_weights(flat_weights["stage4"], "stage4")["conv_pred"]
    return per_sample_conv(cur, w4, 0)


def _stage_total(stage_key):
    return sum(int(np.prod(s)) for s in PARAMS_SHAPES[stage_key].values())


if __name__ == "__main__":
    B, H, W = 2, 16, 16
    key = jax.random.PRNGKey(0)
    kx, k1, k2, k3, k4 = jax.random.split(key, 5)

    x = jax.random.normal(kx, (B, CX, H, W), dtype=jnp.float32)
    flat_weights = {
        "stage1": 0.1 * jax.random.normal(k1, (B, _stage_total("stage1")), jnp.float32),
        "stage2": 0.1 * jax.random.normal(k2, (B, _stage_total("stage2")), jnp.float32),
        "stage3": 0.1 * jax.random.normal(k3, (B, _stage_total("stage3")), jnp.float32),
        "stage4": 0.1 * jax.random.normal(k4, (B, _stage_total("stage4")), jnp.float32),
    }
    bn_params = make_bn_params()

    fwd = jax.jit(small_predictor_forward)
    out = jax.block_until_ready(fwd(x, flat_weights, bn_params))
    assert out.shape == (B, CP, H, W), out.shape
    assert out.dtype == jnp.float32

    # Correctness check against a plain-JAX per-sample conv reference.
    # Tolerance is loose because the MXU may run f32 matmuls via bf16 passes
    # at default precision, accumulated over 22 layers.
    ref = jax.block_until_ready(jax.jit(_reference_forward)(x, flat_weights, bn_params))
    if not np.allclose(np.asarray(out), np.asarray(ref), rtol=5e-2, atol=1e-2):
        max_err = float(np.max(np.abs(np.asarray(out) - np.asarray(ref))))
        raise AssertionError(f"kernel/reference mismatch, max abs err = {max_err}")

    print("KERNEL_OK")
</pallas_src>

<mosaic_0001>
module attributes {stable_mosaic.version = 11 : i64} {
  func.func @kernel(%arg0: i32, %arg1: memref<1x16x256xf32, #tpu.memory_space<vmem>>, %arg2: memref<9x8x256xf32, #tpu.memory_space<vmem>>, %arg3: memref<9x16x256xf32, #tpu.memory_space<vmem>>, %arg4: memref<1x20x8x80xf32, #tpu.memory_space<vmem>>, %arg5: memref<1x3x8x152xf32, #tpu.memory_space<vmem>>, %arg6: memref<1x11x8xf32, #tpu.memory_space<vmem>>, %arg7: memref<1x11x16xf32, #tpu.memory_space<vmem>>, %arg8: memref<1x11x256xf32, #tpu.memory_space<vmem>>, %arg9: memref<80x256xf32, #tpu.memory_space<vmem>>, %arg10: memref<152x256xf32, #tpu.memory_space<vmem>>) attributes {dimension_semantics = [#tpu.dimension_semantics<parallel>], iteration_bounds = array<i64: 2>, scalar_prefetch = 0 : i64, scratch_operands = 2 : i64, tpu.core_type = #tpu.core_type<tc>, window_params = [{transform_indices = @transform_0, window_bounds = array<i64: 1, 16, 256>}, {pipeline_mode = #tpu.pipeline_mode<synchronous>, transform_indices = @transform_1, window_bounds = array<i64: 9, 8, 256>}, {pipeline_mode = #tpu.pipeline_mode<synchronous>, transform_indices = @transform_2, window_bounds = array<i64: 9, 16, 256>}, {transform_indices = @transform_3, window_bounds = array<i64: 1, 20, 8, 80>}, {transform_indices = @transform_4, window_bounds = array<i64: 1, 3, 8, 152>}, {transform_indices = @transform_5, window_bounds = array<i64: 1, 11, 8>}, {transform_indices = @transform_6, window_bounds = array<i64: 1, 11, 16>}, {transform_indices = @transform_7, window_bounds = array<i64: 1, 11, 256>}]} {
    %0 = tpu.iota {dimensions = array<i32: 0>} : vector<8x256xi32>
    %c0_i32 = arith.constant 0 : i32
    %1 = vector.broadcast %c0_i32 : i32 to vector<8x256xi32>
    %2 = arith.cmpi eq, %0, %1 : vector<8x256xi32>
    %3 = arith.extui %2 : vector<8x256xi1> to vector<8x256xi32>
    %4 = arith.sitofp %3 : vector<8x256xi32> to vector<8x256xf32>
    %c72 = arith.constant 72 : index
    %c0 = arith.constant 0 : index
    %5 = vector.load %arg9[%c72, %c0] : memref<80x256xf32, #tpu.memory_space<vmem>>, vector<8x256xf32>
    tpu.vector_store %arg9[%c72, %c0], %4 {strides = array<i32>} : memref<80x256xf32, #tpu.memory_space<vmem>>, vector<8x256xf32>,
    %c144 = arith.constant 144 : index
    %c0_0 = arith.constant 0 : index
    %6 = vector.load %arg10[%c144, %c0_0] : memref<152x256xf32, #tpu.memory_space<vmem>>, vector<8x256xf32>
    tpu.vector_store %arg10[%c144, %c0_0], %4 {strides = array<i32>} : memref<152x256xf32, #tpu.memory_space<vmem>>, vector<8x256xf32>,
    %c0_1 = arith.constant 0 : index
    %c0_2 = arith.constant 0 : index
    %c0_3 = arith.constant 0 : index
    %7 = vector.load %arg1[%c0_1, %c0_2, %c0_3] : memref<1x16x256xf32, #tpu.memory_space<vmem>>, vector<1x16x256xf32>
    %8 = vector.shape_cast %7 : vector<1x16x256xf32> to vector<16x256xf32>
    %c17_i32 = arith.constant 17 : i32
    %9 = tpu.dynamic_rotate %8 by %c17_i32 dim 1 : vector<16x256xf32>, i32 -> vector<16x256xf32>
    %c0_4 = arith.constant 0 : index
    %c0_5 = arith.constant 0 : index
    %c0_6 = arith.constant 0 : index
    %10 = vector.load %arg3[%c0_4, %c0_5, %c0_6] : memref<9x16x256xf32, #tpu.memory_space<vmem>>, vector<1x16x256xf32>
    %11 = vector.shape_cast %10 : vector<1x16x256xf32> to vector<16x256xf32>
    %12 = arith.mulf %9, %11 : vector<16x256xf32>
    %c0_7 = arith.constant 0 : index
    %c0_8 = arith.constant 0 : index
    %13 = vector.load %arg10[%c0_7, %c0_8] : memref<152x256xf32, #tpu.memory_space<vmem>>, vector<16x256xf32>
    tpu.vector_store %arg10[%c0_7, %c0_8], %12 {strides = array<i32>} : memref<152x256xf32, #tpu.memory_space<vmem>>, vector<16x256xf32>,
    %c16_i32 = arith.constant 16 : i32
    %14 = tpu.dynamic_rotate %8 by %c16_i32 dim 1 : vector<16x256xf32>, i32 -> vector<16x256xf32>
    %c1 = arith.constant 1 : index
    %c0_9 = arith.constant 0 : index
    %c0_10 = arith.constant 0 : index
    %15 = vector.load %arg3[%c1, %c0_9, %c0_10] : memref<9x16x256xf32, #tpu.memory_space<vmem>>, vector<1x16x256xf32>
    %16 = vector.shape_cast %15 : vector<1x16x256xf32> to vector<16x256xf32>
    %17 = arith.mulf %14, %16 : vector<16x256xf32>
    %c16 = arith.constant 16 : index
    %c0_11 = arith.constant 0 : index
    %18 = vector.load %arg10[%c16, %c0_11] : memref<152x256xf32, #tpu.memory_space<vmem>>, vector<16x256xf32>
    tpu.vector_store %arg10[%c16, %c0_11], %17 {strides = array<i32>} : memref<152x256xf32, #tpu.memory_space<vmem>>, vector<16x256xf32>,
    %c15_i32 = arith.constant 15 : i32
    %19 = tpu.dynamic_rotate %8 by %c15_i32 dim 1 : vector<16x256xf32>, i32 -> vector<16x256xf32>
    %c2 = arith.constant 2 : index
    %c0_12 = arith.constant 0 : index
    %c0_13 = arith.constant 0 : index
    %20 = vector.load %arg3[%c2, %c0_12, %c0_13] : memref<9x16x256xf32, #tpu.memory_space<vmem>>, vector<1x16x256xf32>
    %21 = vector.shape_cast %20 : vector<1x16x256xf32> to vector<16x256xf32>
    %22 = arith.mulf %19, %21 : vector<16x256xf32>
    %c32 = arith.constant 32 : index
    %c0_14 = arith.constant 0 : index
    %23 = vector.load %arg10[%c32, %c0_14] : memref<152x256xf32, #tpu.memory_space<vmem>>, vector<16x256xf32>
    tpu.vector_store %arg10[%c32, %c0_14], %22 {strides = array<i32>} : memref<152x256xf32, #tpu.memory_space<vmem>>, vector<16x256xf32>,
    %c1_i32 = arith.constant 1 : i32
    %24 = tpu.dynamic_rotate %8 by %c1_i32 dim 1 : vector<16x256xf32>, i32 -> vector<16x256xf32>
    %c3 = arith.constant 3 : index
    %c0_15 = arith.constant 0 : index
    %c0_16 = arith.constant 0 : index
    %25 = vector.load %arg3[%c3, %c0_15, %c0_16] : memref<9x16x256xf32, #tpu.memory_space<vmem>>, vector<1x16x256xf32>
    %26 = vector.shape_cast %25 : vector<1x16x256xf32> to vector<16x256xf32>
    %27 = arith.mulf %24, %26 : vector<16x256xf32>
    %c48 = arith.constant 48 : index
    %c0_17 = arith.constant 0 : index
    %28 = vector.load %arg10[%c48, %c0_17] : memref<152x256xf32, #tpu.memory_space<vmem>>, vector<16x256xf32>
    tpu.vector_store %arg10[%c48, %c0_17], %27 {strides = array<i32>} : memref<152x256xf32, #tpu.memory_space<vmem>>, vector<16x256xf32>,
    %c64 = arith.constant 64 : index
    %c0_18 = arith.constant 0 : index
    %29 = vector.load %arg10[%c64, %c0_18] : memref<152x256xf32, #tpu.memory_space<vmem>>, vector<16x256xf32>
    tpu.vector_store %arg10[%c64, %c0_18], %8 {strides = array<i32>} : memref<152x256xf32, #tpu.memory_space<vmem>>, vector<16x256xf32>,
    %c255_i32 = arith.constant 255 : i32
    %30 = tpu.dynamic_rotate %8 by %c255_i32 dim 1 : vector<16x256xf32>, i32 -> vector<16x256xf32>
    %c5 = arith.constant 5 : index
    %c0_19 = arith.constant 0 : index
    %c0_20 = arith.constant 0 : index
    %31 = vector.load %arg3[%c5, %c0_19, %c0_20] : memref<9x16x256xf32, #tpu.memory_space<vmem>>, vector<1x16x256xf32>
    %32 = vector.shape_cast %31 : vector<1x16x256xf32> to vector<16x256xf32>
    %33 = arith.mulf %30, %32 : vector<16x256xf32>
    %c80 = arith.constant 80 : index
    %c0_21 = arith.constant 0 : index
    %34 = vector.load %arg10[%c80, %c0_21] : memref<152x256xf32, #tpu.memory_space<vmem>>, vector<16x256xf32>
    tpu.vector_store %arg10[%c80, %c0_21], %33 {strides = array<i32>} : memref<152x256xf32, #tpu.memory_space<vmem>>, vector<16x256xf32>,
    %c241_i32 = arith.constant 241 : i32
    %35 = tpu.dynamic_rotate %8 by %c241_i32 dim 1 : vector<16x256xf32>, i32 -> vector<16x256xf32>
    %c6 = arith.constant 6 : index
    %c0_22 = arith.constant 0 : index
    %c0_23 = arith.constant 0 : index
    %36 = vector.load %arg3[%c6, %c0_22, %c0_23] : memref<9x16x256xf32, #tpu.memory_space<vmem>>, vector<1x16x256xf32>
    %37 = vector.shape_cast %36 : vector<1x16x256xf32> to vector<16x256xf32>
    %38 = arith.mulf %35, %37 : vector<16x256xf32>
    %c96 = arith.constant 96 : index
    %c0_24 = arith.constant 0 : index
    %39 = vector.load %arg10[%c96, %c0_24] : memref<152x256xf32, #tpu.memory_space<vmem>>, vector<16x256xf32>
    tpu.vector_store %arg10[%c96, %c0_24], %38 {strides = array<i32>} : memref<152x256xf32, #tpu.memory_space<vmem>>, vector<16x256xf32>,
    %c240_i32 = arith.constant 240 : i32
    %40 = tpu.dynamic_rotate %8 by %c240_i32 dim 1 : vector<16x256xf32>, i32 -> vector<16x256xf32>
    %c7 = arith.constant 7 : index
    %c0_25 = arith.constant 0 : index
    %c0_26 = arith.constant 0 : index
    %41 = vector.load %arg3[%c7, %c0_25, %c0_26] : memref<9x16x256xf32, #tpu.memory_space<vmem>>, vector<1x16x256xf32>
    %42 = vector.shape_cast %41 : vector<1x16x256xf32> to vector<16x256xf32>
    %43 = arith.mulf %40, %42 : vector<16x256xf32>
    %c112 = arith.constant 112 : index
    %c0_27 = arith.constant 0 : index
    %44 = vector.load %arg10[%c112, %c0_27] : memref<152x256xf32, #tpu.memory_space<vmem>>, vector<16x256xf32>
    tpu.vector_store %arg10[%c112, %c0_27], %43 {strides = array<i32>} : memref<152x256xf32, #tpu.memory_space<vmem>>, vector<16x256xf32>,
    %c239_i32 = arith.constant 239 : i32
    %45 = tpu.dynamic_rotate %8 by %c239_i32 dim 1 : vector<16x256xf32>, i32 -> vector<16x256xf32>
    %c8 = arith.constant 8 : index
    %c0_28 = arith.constant 0 : index
    %c0_29 = arith.constant 0 : index
    %46 = vector.load %arg3[%c8, %c0_28, %c0_29] : memref<9x16x256xf32, #tpu.memory_space<vmem>>, vector<1x16x256xf32>
    %47 = vector.shape_cast %46 : vector<1x16x256xf32> to vector<16x256xf32>
    %48 = arith.mulf %45, %47 : vector<16x256xf32>
    %c128 = arith.constant 128 : index
    %c0_30 = arith.constant 0 : index
    %49 = vector.load %arg10[%c128, %c0_30] : memref<152x256xf32, #tpu.memory_space<vmem>>, vector<16x256xf32>
    tpu.vector_store %arg10[%c128, %c0_30], %48 {strides = array<i32>} : memref<152x256xf32, #tpu.memory_space<vmem>>, vector<16x256xf32>,
    %c0_31 = arith.constant 0 : index
    %c0_32 = arith.constant 0 : index
    %c0_33 = arith.constant 0 : index
    %c0_34 = arith.constant 0 : index
    %50 = vector.load %arg5[%c0_31, %c0_32, %c0_33, %c0_34] : memref<1x3x8x152xf32, #tpu.memory_space<vmem>>, vector<1x1x8x152xf32>
    %51 = vector.shape_cast %50 : vector<1x1x8x152xf32> to vector<8x152xf32>
    %c0_35 = arith.constant 0 : index
    %c0_36 = arith.constant 0 : index
    %52 = vector.load %arg10[%c0_35, %c0_36] : memref<152x256xf32, #tpu.memory_space<vmem>>, vector<152x256xf32>
    %cst = arith.constant dense<0.000000e+00> : vector<8x256xf32>
    %53 = tpu.matmul %51, %52, %cst {dimension_numbers = #tpu.dot_dimension_numbers<[1], [0], [0], [1], [0, 0, 1, 1], [], []>} : vector<8x152xf32>, vector<152x256xf32>, vector<8x256xf32> -> vector<8x256xf32>
    %cst_37 = arith.constant 0.000000e+00 : f32
    %54 = vector.broadcast %cst_37 : f32 to vector<8x256xf32>
    %55 = arith.maximumf %53, %54 : vector<8x256xf32>
    %c17_i32_38 = arith.constant 17 : i32
    %56 = tpu.dynamic_rotate %55 by %c17_i32_38 dim 1 : vector<8x256xf32>, i32 -> vector<8x256xf32>
    %c0_39 = arith.constant 0 : index
    %c0_40 = arith.constant 0 : index
    %c0_41 = arith.constant 0 : index
    %57 = vector.load %arg2[%c0_39, %c0_40, %c0_41] : memref<9x8x256xf32, #tpu.memory_space<vmem>>, vector<1x8x256xf32>
    %58 = vector.shape_cast %57 : vector<1x8x256xf32> to vector<8x256xf32>
    %59 = arith.mulf %56, %58 : vector<8x256xf32>
    %c0_42 = arith.constant 0 : index
    %c0_43 = arith.constant 0 : index
    %60 = vector.load %arg9[%c0_42, %c0_43] : memref<80x256xf32, #tpu.memory_space<vmem>>, vector<8x256xf32>
    tpu.vector_store %arg9[%c0_42, %c0_43], %59 {strides = array<i32>} : memref<80x256xf32, #tpu.memory_space<vmem>>, vector<8x256xf32>,
    %c16_i32_44 = arith.constant 16 : i32
    %61 = tpu.dynamic_rotate %55 by %c16_i32_44 dim 1 : vector<8x256xf32>, i32 -> vector<8x256xf32>
    %c1_45 = arith.constant 1 : index
    %c0_46 = arith.constant 0 : index
    %c0_47 = arith.constant 0 : index
    %62 = vector.load %arg2[%c1_45, %c0_46, %c0_47] : memref<9x8x256xf32, #tpu.memory_space<vmem>>, vector<1x8x256xf32>
    %63 = vector.shape_cast %62 : vector<1x8x256xf32> to vector<8x256xf32>
    %64 = arith.mulf %61, %63 : vector<8x256xf32>
    %c8_48 = arith.constant 8 : index
    %c0_49 = arith.constant 0 : index
    %65 = vector.load %arg9[%c8_48, %c0_49] : memref<80x256xf32, #tpu.memory_space<vmem>>, vector<8x256xf32>
    tpu.vector_store %arg9[%c8_48, %c0_49], %64 {strides = array<i32>} : memref<80x256xf32, #tpu.memory_space<vmem>>, vector<8x256xf32>,
    %c15_i32_50 = arith.constant 15 : i32
    %66 = tpu.dynamic_rotate %55 by %c15_i32_50 dim 1 : vector<8x256xf32>, i32 -> vector<8x256xf32>
    %c2_51 = arith.constant 2 : index
    %c0_52 = arith.constant 0 : index
    %c0_53 = arith.constant 0 : index
    %67 = vector.load %arg2[%c2_51, %c0_52, %c0_53] : memref<9x8x256xf32, #tpu.memory_space<vmem>>, vector<1x8x256xf32>
    %68 = vector.shape_cast %67 : vector<1x8x256xf32> to vector<8x256xf32>
    %69 = arith.mulf %66, %68 : vector<8x256xf32>
    %c16_54 = arith.constant 16 : index
    %c0_55 = arith.constant 0 : index
    %70 = vector.load %arg9[%c16_54, %c0_55] : memref<80x256xf32, #tpu.memory_space<vmem>>, vector<8x256xf32>
    tpu.vector_store %arg9[%c16_54, %c0_55], %69 {strides = array<i32>} : memref<80x256xf32, #tpu.memory_space<vmem>>, vector<8x256xf32>,
    %c1_i32_56 = arith.constant 1 : i32
    %71 = tpu.dynamic_rotate %55 by %c1_i32_56 dim 1 : vector<8x256xf32>, i32 -> vector<8x256xf32>
    %c3_57 = arith.constant 3 : index
    %c0_58 = arith.constant 0 : index
    %c0_59 = arith.constant 0 : index
    %72 = vector.load %arg2[%c3_57, %c0_58, %c0_59] : memref<9x8x256xf32, #tpu.memory_space<vmem>>, vector<1x8x256xf32>
    %73 = vector.shape_cast %72 : vector<1x8x256xf32> to vector<8x256xf32>
    %74 = arith.mulf %71, %73 : vector<8x256xf32>
    %c24 = arith.constant 24 : index
    %c0_60 = arith.constant 0 : index
    %75 = vector.load %arg9[%c24, %c0_60] : memref<80x256xf32, #tpu.memory_space<vmem>>, vector<8x256xf32>
    tpu.vector_store %arg9[%c24, %c0_60], %74 {strides = array<i32>} : memref<80x256xf32, #tpu.memory_space<vmem>>, vector<8x256xf32>,
    %c32_61 = arith.constant 32 : index
    %c0_62 = arith.constant 0 : index
    %76 = vector.load %arg9[%c32_61, %c0_62] : memref<80x256xf32, #tpu.memory_space<vmem>>, vector<8x256xf32>
    tpu.vector_store %arg9[%c32_61, %c0_62], %55 {strides = array<i32>} : memref<80x256xf32, #tpu.memory_space<vmem>>, vector<8x256xf32>,
    %c255_i32_63 = arith.constant 255 : i32
    %77 = tpu.dynamic_rotate %55 by %c255_i32_63 dim 1 : vector<8x256xf32>, i32 -> vector<8x256xf32>
    %c5_64 = arith.constant 5 : index
    %c0_65 = arith.constant 0 : index
    %c0_66 = arith.constant 0 : index
    %78 = vector.load %arg2[%c5_64, %c0_65, %c0_66] : memref<9x8x256xf32, #tpu.memory_space<vmem>>, vector<1x8x256xf32>
    %79 = vector.shape_cast %78 : vector<1x8x256xf32> to vector<8x256xf32>
    %80 = arith.mulf %77, %79 : vector<8x256xf32>
    %c40 = arith.constant 40 : index
    %c0_67 = arith.constant 0 : index
    %81 = vector.load %arg9[%c40, %c0_67] : memref<80x256xf32, #tpu.memory_space<vmem>>, vector<8x256xf32>
    tpu.vector_store %arg9[%c40, %c0_67], %80 {strides = array<i32>} : memref<80x256xf32, #tpu.memory_space<vmem>>, vector<8x256xf32>,
    %c241_i32_68 = arith.constant 241 : i32
    %82 = tpu.dynamic_rotate %55 by %c241_i32_68 dim 1 : vector<8x256xf32>, i32 -> vector<8x256xf32>
    %c6_69 = arith.constant 6 : index
    %c0_70 = arith.constant 0 : index
    %c0_71 = arith.constant 0 : index
    %83 = vector.load %arg2[%c6_69, %c0_70, %c0_71] : memref<9x8x256xf32, #tpu.memory_space<vmem>>, vector<1x8x256xf32>
    %84 = vector.shape_cast %83 : vector<1x8x256xf32> to vector<8x256xf32>
    %85 = arith.mulf %82, %84 : vector<8x256xf32>
    %c48_72 = arith.constant 48 : index
    %c0_73 = arith.constant 0 : index
    %86 = vector.load %arg9[%c48_72, %c0_73] : memref<80x256xf32, #tpu.memory_space<vmem>>, vector<8x256xf32>
    tpu.vector_store %arg9[%c48_72, %c0_73], %85 {strides = array<i32>} : memref<80x256xf32, #tpu.memory_space<vmem>>, vector<8x256xf32>,
    %c240_i32_74 = arith.constant 240 : i32
    %87 = tpu.dynamic_rotate %55 by %c240_i32_74 dim 1 : vector<8x256xf32>, i32 -> vector<8x256xf32>
    %c7_75 = arith.constant 7 : index
    %c0_76 = arith.constant 0 : index
    %c0_77 = arith.constant 0 : index
    %88 = vector.load %arg2[%c7_75, %c0_76, %c0_77] : memref<9x8x256xf32, #tpu.memory_space<vmem>>, vector<1x8x256xf32>
    %89 = vector.shape_cast %88 : vector<1x8x256xf32> to vector<8x256xf32>
    %90 = arith.mulf %87, %89 : vector<8x256xf32>
    %c56 = arith.constant 56 : index
    %c0_78 = arith.constant 0 : index
    %91 = vector.load %arg9[%c56, %c0_78] : memref<80x256xf32, #tpu.memory_space<vmem>>, vector<8x256xf32>
    tpu.vector_store %arg9[%c56, %c0_78], %90 {strides = array<i32>} : memref<80x256xf32, #tpu.memory_space<vmem>>, vector<8x256xf32>,
    %c239_i32_79 = arith.constant 239 : i32
    %92 = tpu.dynamic_rotate %55 by %c239_i32_79 dim 1 : vector<8x256xf32>, i32 -> vector<8x256xf32>
    %c8_80 = arith.constant 8 : index
    %c0_81 = arith.constant 0 : index
    %c0_82 = arith.constant 0 : index
    %93 = vector.load %arg2[%c8_80, %c0_81, %c0_82] : memref<9x8x256xf32, #tpu.memory_space<vmem>>, vector<1x8x256xf32>
    %94 = vector.shape_cast %93 : vector<1x8x256xf32> to vector<8x256xf32>
    %95 = arith.mulf %92, %94 : vector<8x256xf32>
    %c64_83 = arith.constant 64 : index
    %c0_84 = arith.constant 0 : index
    %96 = vector.load %arg9[%c64_83, %c0_84] : memref<80x256xf32, #tpu.memory_space<vmem>>, vector<8x256xf32>
    tpu.vector_store %arg9[%c64_83, %c0_84], %95 {strides = array<i32>} : memref<80x256xf32, #tpu.memory_space<vmem>>, vector<8x256xf32>,
    %c0_85 = arith.constant 0 : index
    %c0_86 = arith.constant 0 : index
    %c0_87 = arith.constant 0 : index
    %c0_88 = arith.constant 0 : index
    %97 = vector.load %arg4[%c0_85, %c0_86, %c0_87, %c0_88] : memref<1x20x8x80xf32, #tpu.memory_space<vmem>>, vector<1x1x8x80xf32>
    %98 = vector.shape_cast %97 : vector<1x1x8x80xf32> to vector<8x80xf32>
    %c0_89 = arith.constant 0 : index
    %c0_90 = arith.constant 0 : index
    %99 = vector.load %arg9[%c0_89, %c0_90] : memref<80x256xf32, #tpu.memory_space<vmem>>, vector<80x256xf32>
    %cst_91 = arith.constant dense<0.000000e+00> : vector<8x256xf32>
    %100 = tpu.matmul %98, %99, %cst_91 {dimension_numbers = #tpu.dot_dimension_numbers<[1], [0], [0], [1], [0, 0, 1, 1], [], []>} : vector<8x80xf32>, vector<80x256xf32>, vector<8x256xf32> -> vector<8x256xf32>
    %cst_92 = arith.constant 0.000000e+00 : f32
    %101 = vector.broadcast %cst_92 : f32 to vector<8x256xf32>
    %102 = arith.maximumf %100, %101 : vector<8x256xf32>
    %c17_i32_93 = arith.constant 17 : i32
    %103 = tpu.dynamic_rotate %102 by %c17_i32_93 dim 1 : vector<8x256xf32>, i32 -> vector<8x256xf32>
    %c0_94 = arith.constant 0 : index
    %c0_95 = arith.constant 0 : index
    %c0_96 = arith.constant 0 : index
    %104 = vector.load %arg2[%c0_94, %c0_95, %c0_96] : memref<9x8x256xf32, #tpu.memory_space<vmem>>, vector<1x8x256xf32>
    %105 = vector.shape_cast %104 : vector<1x8x256xf32> to vector<8x256xf32>
    %106 = arith.mulf %103, %105 : vector<8x256xf32>
    %c0_97 = arith.constant 0 : index
    %c0_98 = arith.constant 0 : index
    %107 = vector.load %arg9[%c0_97, %c0_98] : memref<80x256xf32, #tpu.memory_space<vmem>>, vector<8x256xf32>
    tpu.vector_store %arg9[%c0_97, %c0_98], %106 {strides = array<i32>} : memref<80x256xf32, #tpu.memory_space<vmem>>, vector<8x256xf32>,
    %c16_i32_99 = arith.constant 16 : i32
    %108 = tpu.dynamic_rotate %102 by %c16_i32_99 dim 1 : vector<8x256xf32>, i32 -> vector<8x256xf32>
    %c1_100 = arith.constant 1 : index
    %c0_101 = arith.constant 0 : index
    %c0_102 = arith.constant 0 : index
    %109 = vector.load %arg2[%c1_100, %c0_101, %c0_102] : memref<9x8x256xf32, #tpu.memory_space<vmem>>, vector<1x8x256xf32>
    %110 = vector.shape_cast %109 : vector<1x8x256xf32> to vector<8x256xf32>
    %111 = arith.mulf %108, %110 : vector<8x256xf32>
    %c8_103 = arith.constant 8 : index
    %c0_104 = arith.constant 0 : index
    %112 = vector.load %arg9[%c8_103, %c0_104] : memref<80x256xf32, #tpu.memory_space<vmem>>, vector<8x256xf32>
    tpu.vector_store %arg9[%c8_103, %c0_104], %111 {strides = array<i32>} : memref<80x256xf32, #tpu.memory_space<vmem>>, vector<8x256xf32>,
    %c15_i32_105 = arith.constant 15 : i32
    %113 = tpu.dynamic_rotate %102 by %c15_i32_105 dim 1 : vector<8x256xf32>, i32 -> vector<8x256xf32>
    %c2_106 = arith.constant 2 : index
    %c0_107 = arith.constant 0 : index
    %c0_108 = arith.constant 0 : index
    %114 = vector.load %arg2[%c2_106, %c0_107, %c0_108] : memref<9x8x256xf32, #tpu.memory_space<vmem>>, vector<1x8x256xf32>
    %115 = vector.shape_cast %114 : vector<1x8x256xf32> to vector<8x256xf32>
    %116 = arith.mulf %113, %115 : vector<8x256xf32>
    %c16_109 = arith.constant 16 : index
    %c0_110 = arith.constant 0 : index
    %117 = vector.load %arg9[%c16_109, %c0_110] : memref<80x256xf32, #tpu.memory_space<vmem>>, vector<8x256xf32>
    tpu.vector_store %arg9[%c16_109, %c0_110], %116 {strides = array<i32>} : memref<80x256xf32, #tpu.memory_space<vmem>>, vector<8x256xf32>,
    %c1_i32_111 = arith.constant 1 : i32
    %118 = tpu.dynamic_rotate %102 by %c1_i32_111 dim 1 : vector<8x256xf32>, i32 -> vector<8x256xf32>
    %c3_112 = arith.constant 3 : index
    %c0_113 = arith.constant 0 : index
    %c0_114 = arith.constant 0 : index
    %119 = vector.load %arg2[%c3_112, %c0_113, %c0_114] : memref<9x8x256xf32, #tpu.memory_space<vmem>>, vector<1x8x256xf32>
    %120 = vector.shape_cast %119 : vector<1x8x256xf32> to vector<8x256xf32>
    %121 = arith.mulf %118, %120 : vector<8x256xf32>
    %c24_115 = arith.constant 24 : index
    %c0_116 = arith.constant 0 : index
    %122 = vector.load %arg9[%c24_115, %c0_116] : memref<80x256xf32, #tpu.memory_space<vmem>>, vector<8x256xf32>
    tpu.vector_store %arg9[%c24_115, %c0_116], %121 {strides = array<i32>} : memref<80x256xf32, #tpu.memory_space<vmem>>, vector<8x256xf32>,
    %c32_117 = arith.constant 32 : index
    %c0_118 = arith.constant 0 : index
    %123 = vector.load %arg9[%c32_117, %c0_118] : memref<80x256xf32, #tpu.memory_space<vmem>>, vector<8x256xf32>
    tpu.vector_store %arg9[%c32_117, %c0_118], %102 {strides = array<i32>} : memref<80x256xf32, #tpu.memory_space<vmem>>, vector<8x256xf32>,
    %c255_i32_119 = arith.constant 255 : i32
    %124 = tpu.dynamic_rotate %102 by %c255_i32_119 dim 1 : vector<8x256xf32>, i32 -> vector<8x256xf32>
    %c5_120 = arith.constant 5 : index
    %c0_121 = arith.constant 0 : index
    %c0_122 = arith.constant 0 : index
    %125 = vector.load %arg2[%c5_120, %c0_121, %c0_122] : memref<9x8x256xf32, #tpu.memory_space<vmem>>, vector<1x8x256xf32>
    %126 = vector.shape_cast %125 : vector<1x8x256xf32> to vector<8x256xf32>
    %127 = arith.mulf %124, %126 : vector<8x256xf32>
    %c40_123 = arith.constant 40 : index
    %c0_124 = arith.constant 0 : index
    %128 = vector.load %arg9[%c40_123, %c0_124] : memref<80x256xf32, #tpu.memory_space<vmem>>, vector<8x256xf32>
    tpu.vector_store %arg9[%c40_123, %c0_124], %127 {strides = array<i32>} : memref<80x256xf32, #tpu.memory_space<vmem>>, vector<8x256xf32>,
    %c241_i32_125 = arith.constant 241 : i32
    %129 = tpu.dynamic_rotate %102 by %c241_i32_125 dim 1 : vector<8x256xf32>, i32 -> vector<8x256xf32>
    %c6_126 = arith.constant 6 : index
    %c0_127 = arith.constant 0 : index
    %c0_128 = arith.constant 0 : index
    %130 = vector.load %arg2[%c6_126, %c0_127, %c0_128] : memref<9x8x256xf32, #tpu.memory_space<vmem>>, vector<1x8x256xf32>
    %131 = vector.shape_cast %130 : vector<1x8x256xf32> to vector<8x256xf32>
    %132 = arith.mulf %129, %131 : vector<8x256xf32>
    %c48_129 = arith.constant 48 : index
    %c0_130 = arith.constant 0 : index
    %133 = vector.load %arg9[%c48_129, %c0_130] : memref<80x256xf32, #tpu.memory_space<vmem>>, vector<8x256xf32>
    tpu.vector_store %arg9[%c48_129, %c0_130], %132 {strides = array<i32>} : memref<80x256xf32, #tpu.memory_space<vmem>>, vector<8x256xf32>,
    %c240_i32_131 = arith.constant 240 : i32
    %134 = tpu.dynamic_rotate %102 by %c240_i32_131 dim 1 : vector<8x256xf32>, i32 -> vector<8x256xf32>
    %c7_132 = arith.constant 7 : index
    %c0_133 = arith.constant 0 : index
    %c0_134 = arith.constant 0 : index
    %135 = vector.load %arg2[%c7_132, %c0_133, %c0_134] : memref<9x8x256xf32, #tpu.memory_space<vmem>>, vector<1x8x256xf32>
    %136 = vector.shape_cast %135 : vector<1x8x256xf32> to vector<8x256xf32>
    %137 = arith.mulf %134, %136 : vector<8x256xf32>
    %c56_135 = arith.constant 56 : index
    %c0_136 = arith.constant 0 : index
    %138 = vector.load %arg9[%c56_135, %c0_136] : memref<80x256xf32, #tpu.memory_space<vmem>>, vector<8x256xf32>
    tpu.vector_store %arg9[%c56_135, %c0_136], %137 {strides = array<i32>} : memref<80x256xf32, #tpu.memory_space<vmem>>, vector<8x256xf32>,
    %c239_i32_137 = arith.constant 239 : i32
    %139 = tpu.dynamic_rotate %102 by %c239_i32_137 dim 1 : vector<8x256xf32>, i32 -> vector<8x256xf32>
    %c8_138 = arith.constant 8 : index
    %c0_139 = arith.constant 0 : index
    %c0_140 = arith.constant 0 : index
    %140 = vector.load %arg2[%c8_138, %c0_139, %c0_140] : memref<9x8x256xf32, #tpu.memory_space<vmem>>, vector<1x8x256xf32>
    %141 = vector.shape_cast %140 : vector<1x8x256xf32> to vector<8x256xf32>
    %142 = arith.mulf %139, %141 : vector<8x256xf32>
    %c64_141 = arith.constant 64 : index
    %c0_142 = arith.constant 0 : index
    %143 = vector.load %arg9[%c64_141, %c0_142] : memref<80x256xf32, #tpu.memory_space<vmem>>, vector<8x256xf32>
    tpu.vector_store %arg9[%c64_141, %c0_142], %142 {strides = array<i32>} : memref<80x256xf32, #tpu.memory_space<vmem>>, vector<8x256xf32>,
    %c0_143 = arith.constant 0 : index
    %c1_144 = arith.constant 1 : index
    %c0_145 = arith.constant 0 : index
    %c0_146 = arith.constant 0 : index
    %144 = vector.load %arg4[%c0_143, %c1_144, %c0_145, %c0_146] : memref<1x20x8x80xf32, #tpu.memory_space<vmem>>, vector<1x1x8x80xf32>
    %145 = vector.shape_cast %144 : vector<1x1x8x80xf32> to vector<8x80xf32>
    %c0_147 = arith.constant 0 : index
    %c0_148 = arith.constant 0 : index
    %146 = vector.load %arg9[%c0_147, %c0_148] : memref<80x256xf32, #tpu.memory_space<vmem>>, vector<80x256xf32>
    %cst_149 = arith.constant dense<0.000000e+00> : vector<8x256xf32>
    %147 = tpu.matmul %145, %146, %cst_149 {dimension_numbers = #tpu.dot_dimension_numbers<[1], [0], [0], [1], [0, 0, 1, 1], [], []>} : vector<8x80xf32>, vector<80x256xf32>, vector<8x256xf32> -> vector<8x256xf32>
    %cst_150 = arith.constant 0.000000e+00 : f32
    %148 = vector.broadcast %cst_150 : f32 to vector<8x256xf32>
    %149 = arith.maximumf %147, %148 : vector<8x256xf32>
    %c17_i32_151 = arith.constant 17 : i32
    %150 = tpu.dynamic_rotate %149 by %c17_i32_151 dim 1 : vector<8x256xf32>, i32 -> vector<8x256xf32>
    %c0_152 = arith.constant 0 : index
    %c0_153 = arith.constant 0 : index
    %c0_154 = arith.constant 0 : index
    %151 = vector.load %arg2[%c0_152, %c0_153, %c0_154] : memref<9x8x256xf32, #tpu.memory_space<vmem>>, vector<1x8x256xf32>
    %152 = vector.shape_cast %151 : vector<1x8x256xf32> to vector<8x256xf32>
    %153 = arith.mulf %150, %152 : vector<8x256xf32>
    %c0_155 = arith.constant 0 : index
    %c0_156 = arith.constant 0 : index
    %154 = vector.load %arg9[%c0_155, %c0_156] : memref<80x256xf32, #tpu.memory_space<vmem>>, vector<8x256xf32>
    tpu.vector_store %arg9[%c0_155, %c0_156], %153 {strides = array<i32>} : memref<80x256xf32, #tpu.memory_space<vmem>>, vector<8x256xf32>,
    %c16_i32_157 = arith.constant 16 : i32
    %155 = tpu.dynamic_rotate %149 by %c16_i32_157 dim 1 : vector<8x256xf32>, i32 -> vector<8x256xf32>
    %c1_158 = arith.constant 1 : index
    %c0_159 = arith.constant 0 : index
    %c0_160 = arith.constant 0 : index
    %156 = vector.load %arg2[%c1_158, %c0_159, %c0_160] : memref<9x8x256xf32, #tpu.memory_space<vmem>>, vector<1x8x256xf32>
    %157 = vector.shape_cast %156 : vector<1x8x256xf32> to vector<8x256xf32>
    %158 = arith.mulf %155, %157 : vector<8x256xf32>
    %c8_161 = arith.constant 8 : index
    %c0_162 = arith.constant 0 : index
    %159 = vector.load %arg9[%c8_161, %c0_162] : memref<80x256xf32, #tpu.memory_space<vmem>>, vector<8x256xf32>
    tpu.vector_store %arg9[%c8_161, %c0_162], %158 {strides = array<i32>} : memref<80x256xf32, #tpu.memory_space<vmem>>, vector<8x256xf32>,
    %c15_i32_163 = arith.constant 15 : i32
    %160 = tpu.dynamic_rotate %149 by %c15_i32_163 dim 1 : vector<8x256xf32>, i32 -> vector<8x256xf32>
    %c2_164 = arith.constant 2 : index
    %c0_165 = arith.constant 0 : index
    %c0_166 = arith.constant 0 : index
    %161 = vector.load %arg2[%c2_164, %c0_165, %c0_166] : memref<9x8x256xf32, #tpu.memory_space<vmem>>, vector<1x8x256xf32>
    %162 = vector.shape_cast %161 : vector<1x8x256xf32> to vector<8x256xf32>
    %163 = arith.mulf %160, %162 : vector<8x256xf32>
    %c16_167 = arith.constant 16 : index
    %c0_168 = arith.constant 0 : index
    %164 = vector.load %arg9[%c16_167, %c0_168] : memref<80x256xf32, #tpu.memory_space<vmem>>, vector<8x256xf32>
    tpu.vector_store %arg9[%c16_167, %c0_168], %163 {strides = array<i32>} : memref<80x256xf32, #tpu.memory_space<vmem>>, vector<8x256xf32>,
    %c1_i32_169 = arith.constant 1 : i32
    %165 = tpu.dynamic_rotate %149 by %c1_i32_169 dim 1 : vector<8x256xf32>, i32 -> vector<8x256xf32>
    %c3_170 = arith.constant 3 : index
    %c0_171 = arith.constant 0 : index
    %c0_172 = arith.constant 0 : index
    %166 = vector.load %arg2[%c3_170, %c0_171, %c0_172] : memref<9x8x256xf32, #tpu.memory_space<vmem>>, vector<1x8x256xf32>
    %167 = vector.shape_cast %166 : vector<1x8x256xf32> to vector<8x256xf32>
    %168 = arith.mulf %165, %167 : vector<8x256xf32>
    %c24_173 = arith.constant 24 : index
    %c0_174 = arith.constant 0 : index
    %169 = vector.load %arg9[%c24_173, %c0_174] : memref<80x256xf32, #tpu.memory_space<vmem>>, vector<8x256xf32>
    tpu.vector_store %arg9[%c24_173, %c0_174], %168 {strides = array<i32>} : memref<80x256xf32, #tpu.memory_space<vmem>>, vector<8x256xf32>,
    %c32_175 = arith.constant 32 : index
    %c0_176 = arith.constant 0 : index
    %170 = vector.load %arg9[%c32_175, %c0_176] : memref<80x256xf32, #tpu.memory_space<vmem>>, vector<8x256xf32>
    tpu.vector_store %arg9[%c32_175, %c0_176], %149 {strides = array<i32>} : memref<80x256xf32, #tpu.memory_space<vmem>>, vector<8x256xf32>,
    %c255_i32_177 = arith.constant 255 : i32
    %171 = tpu.dynamic_rotate %149 by %c255_i32_177 dim 1 : vector<8x256xf32>, i32 -> vector<8x256xf32>
    %c5_178 = arith.constant 5 : index
    %c0_179 = arith.constant 0 : index
    %c0_180 = arith.constant 0 : index
    %172 = vector.load %arg2[%c5_178, %c0_179, %c0_180] : memref<9x8x256xf32, #tpu.memory_space<vmem>>, vector<1x8x256xf32>
    %173 = vector.shape_cast %172 : vector<1x8x256xf32> to vector<8x256xf32>
    %174 = arith.mulf %171, %173 : vector<8x256xf32>
    %c40_181 = arith.constant 40 : index
    %c0_182 = arith.constant 0 : index
    %175 = vector.load %arg9[%c40_181, %c0_182] : memref<80x256xf32, #tpu.memory_space<vmem>>, vector<8x256xf32>
    tpu.vector_store %arg9[%c40_181, %c0_182], %174 {strides = array<i32>} : memref<80x256xf32, #tpu.memory_space<vmem>>, vector<8x256xf32>,
    %c241_i32_183 = arith.constant 241 : i32
    %176 = tpu.dynamic_rotate %149 by %c241_i32_183 dim 1 : vector<8x256xf32>, i32 -> vector<8x256xf32>
    %c6_184 = arith.constant 6 : index
    %c0_185 = arith.constant 0 : index
    %c0_186 = arith.constant 0 : index
    %177 = vector.load %arg2[%c6_184, %c0_185, %c0_186] : memref<9x8x256xf32, #tpu.memory_space<vmem>>, vector<1x8x256xf32>
    %178 = vector.shape_cast %177 : vector<1x8x256xf32> to vector<8x256xf32>
    %179 = arith.mulf %176, %178 : vector<8x256xf32>
    %c48_187 = arith.constant 48 : index
    %c0_188 = arith.constant 0 : index
    %180 = vector.load %arg9[%c48_187, %c0_188] : memref<80x256xf32, #tpu.memory_space<vmem>>, vector<8x256xf32>
    tpu.vector_store %arg9[%c48_187, %c0_188], %179 {strides = array<i32>} : memref<80x256xf32, #tpu.memory_space<vmem>>, vector<8x256xf32>,
    %c240_i32_189 = arith.constant 240 : i32
    %181 = tpu.dynamic_rotate %149 by %c240_i32_189 dim 1 : vector<8x256xf32>, i32 -> vector<8x256xf32>
    %c7_190 = arith.constant 7 : index
    %c0_191 = arith.constant 0 : index
    %c0_192 = arith.constant 0 : index
    %182 = vector.load %arg2[%c7_190, %c0_191, %c0_192] : memref<9x8x256xf32, #tpu.memory_space<vmem>>, vector<1x8x256xf32>
    %183 = vector.shape_cast %182 : vector<1x8x256xf32> to vector<8x256xf32>
    %184 = arith.mulf %181, %183 : vector<8x256xf32>
    %c56_193 = arith.constant 56 : index
    %c0_194 = arith.constant 0 : index
    %185 = vector.load %arg9[%c56_193, %c0_194] : memref<80x256xf32, #tpu.memory_space<vmem>>, vector<8x256xf32>
    tpu.vector_store %arg9[%c56_193, %c0_194], %184 {strides = array<i32>} : memref<80x256xf32, #tpu.memory_space<vmem>>, vector<8x256xf32>,
    %c239_i32_195 = arith.constant 239 : i32
    %186 = tpu.dynamic_rotate %149 by %c239_i32_195 dim 1 : vector<8x256xf32>, i32 -> vector<8x256xf32>
    %c8_196 = arith.constant 8 : index
    %c0_197 = arith.constant 0 : index
    %c0_198 = arith.constant 0 : index
    %187 = vector.load %arg2[%c8_196, %c0_197, %c0_198] : memref<9x8x256xf32, #tpu.memory_space<vmem>>, vector<1x8x256xf32>
    %188 = vector.shape_cast %187 : vector<1x8x256xf32> to vector<8x256xf32>
    %189 = arith.mulf %186, %188 : vector<8x256xf32>
    %c64_199 = arith.constant 64 : index
    %c0_200 = arith.constant 0 : index
    %190 = vector.load %arg9[%c64_199, %c0_200] : memref<80x256xf32, #tpu.memory_space<vmem>>, vector<8x256xf32>
    tpu.vector_store %arg9[%c64_199, %c0_200], %189 {strides = array<i32>} : memref<80x256xf32, #tpu.memory_space<vmem>>, vector<8x256xf32>,
    %c0_201 = arith.constant 0 : index
    %c2_202 = arith.constant 2 : index
    %c0_203 = arith.constant 0 : index
    %c0_204 = arith.constant 0 : index
    %191 = vector.load %arg4[%c0_201, %c2_202, %c0_203, %c0_204] : memref<1x20x8x80xf32, #tpu.memory_space<vmem>>, vector<1x1x8x80xf32>
    %192 = vector.shape_cast %191 : vector<1x1x8x80xf32> to vector<8x80xf32>
    %c0_205 = arith.constant 0 : index
    %c0_206 = arith.constant 0 : index
    %193 = vector.load %arg9[%c0_205, %c0_206] : memref<80x256xf32, #tpu.memory_space<vmem>>, vector<80x256xf32>
    %cst_207 = arith.constant dense<0.000000e+00> : vector<8x256xf32>
    %194 = tpu.matmul %192, %193, %cst_207 {dimension_numbers = #tpu.dot_dimension_numbers<[1], [0], [0], [1], [0, 0, 1, 1], [], []>} : vector<8x80xf32>, vector<80x256xf32>, vector<8x256xf32> -> vector<8x256xf32>
    %cst_208 = arith.constant 0.000000e+00 : f32
    %195 = vector.broadcast %cst_208 : f32 to vector<8x256xf32>
    %196 = arith.maximumf %194, %195 : vector<8x256xf32>
    %c17_i32_209 = arith.constant 17 : i32
    %197 = tpu.dynamic_rotate %196 by %c17_i32_209 dim 1 : vector<8x256xf32>, i32 -> vector<8x256xf32>
    %c0_210 = arith.constant 0 : index
    %c0_211 = arith.constant 0 : index
    %c0_212 = arith.constant 0 : index
    %198 = vector.load %arg2[%c0_210, %c0_211, %c0_212] : memref<9x8x256xf32, #tpu.memory_space<vmem>>, vector<1x8x256xf32>
    %199 = vector.shape_cast %198 : vector<1x8x256xf32> to vector<8x256xf32>
    %200 = arith.mulf %197, %199 : vector<8x256xf32>
    %c0_213 = arith.constant 0 : index
    %c0_214 = arith.constant 0 : index
    %201 = vector.load %arg9[%c0_213, %c0_214] : memref<80x256xf32, #tpu.memory_space<vmem>>, vector<8x256xf32>
    tpu.vector_store %arg9[%c0_213, %c0_214], %200 {strides = array<i32>} : memref<80x256xf32, #tpu.memory_space<vmem>>, vector<8x256xf32>,
    %c16_i32_215 = arith.constant 16 : i32
    %202 = tpu.dynamic_rotate %196 by %c16_i32_215 dim 1 : vector<8x256xf32>, i32 -> vector<8x256xf32>
    %c1_216 = arith.constant 1 : index
    %c0_217 = arith.constant 0 : index
    %c0_218 = arith.constant 0 : index
    %203 = vector.load %arg2[%c1_216, %c0_217, %c0_218] : memref<9x8x256xf32, #tpu.memory_space<vmem>>, vector<1x8x256xf32>
    %204 = vector.shape_cast %203 : vector<1x8x256xf32> to vector<8x256xf32>
    %205 = arith.mulf %202, %204 : vector<8x256xf32>
    %c8_219 = arith.constant 8 : index
    %c0_220 = arith.constant 0 : index
    %206 = vector.load %arg9[%c8_219, %c0_220] : memref<80x256xf32, #tpu.memory_space<vmem>>, vector<8x256xf32>
    tpu.vector_store %arg9[%c8_219, %c0_220], %205 {strides = array<i32>} : memref<80x256xf32, #tpu.memory_space<vmem>>, vector<8x256xf32>,
    %c15_i32_221 = arith.constant 15 : i32
    %207 = tpu.dynamic_rotate %196 by %c15_i32_221 dim 1 : vector<8x256xf32>, i32 -> vector<8x256xf32>
    %c2_222 = arith.constant 2 : index
    %c0_223 = arith.constant 0 : index
    %c0_224 = arith.constant 0 : index
    %208 = vector.load %arg2[%c2_222, %c0_223, %c0_224] : memref<9x8x256xf32, #tpu.memory_space<vmem>>, vector<1x8x256xf32>
    %209 = vector.shape_cast %208 : vector<1x8x256xf32> to vector<8x256xf32>
    %210 = arith.mulf %207, %209 : vector<8x256xf32>
    %c16_225 = arith.constant 16 : index
    %c0_226 = arith.constant 0 : index
    %211 = vector.load %arg9[%c16_225, %c0_226] : memref<80x256xf32, #tpu.memory_space<vmem>>, vector<8x256xf32>
    tpu.vector_store %arg9[%c16_225, %c0_226], %210 {strides = array<i32>} : memref<80x256xf32, #tpu.memory_space<vmem>>, vector<8x256xf32>,
    %c1_i32_227 = arith.constant 1 : i32
    %212 = tpu.dynamic_rotate %196 by %c1_i32_227 dim 1 : vector<8x256xf32>, i32 -> vector<8x256xf32>
    %c3_228 = arith.constant 3 : index
    %c0_229 = arith.constant 0 : index
    %c0_230 = arith.constant 0 : index
    %213 = vector.load %arg2[%c3_228, %c0_229, %c0_230] : memref<9x8x256xf32, #tpu.memory_space<vmem>>, vector<1x8x256xf32>
    %214 = vector.shape_cast %213 : vector<1x8x256xf32> to vector<8x256xf32>
    %215 = arith.mulf %212, %214 : vector<8x256xf32>
    %c24_231 = arith.constant 24 : index
    %c0_232 = arith.constant 0 : index
    %216 = vector.load %arg9[%c24_231, %c0_232] : memref<80x256xf32, #tpu.memory_space<vmem>>, vector<8x256xf32>
    tpu.vector_store %arg9[%c24_231, %c0_232], %215 {strides = array<i32>} : memref<80x256xf32, #tpu.memory_space<vmem>>, vector<8x256xf32>,
    %c32_233 = arith.constant 32 : index
    %c0_234 = arith.constant 0 : index
    %217 = vector.load %arg9[%c32_233, %c0_234] : memref<80x256xf32, #tpu.memory_space<vmem>>, vector<8x256xf32>
    tpu.vector_store %arg9[%c32_233, %c0_234], %196 {strides = array<i32>} : memref<80x256xf32, #tpu.memory_space<vmem>>, vector<8x256xf32>,
    %c255_i32_235 = arith.constant 255 : i32
    %218 = tpu.dynamic_rotate %196 by %c255_i32_235 dim 1 : vector<8x256xf32>, i32 -> vector<8x256xf32>
    %c5_236 = arith.constant 5 : index
    %c0_237 = arith.constant 0 : index
    %c0_238 = arith.constant 0 : index
    %219 = vector.load %arg2[%c5_236, %c0_237, %c0_238] : memref<9x8x256xf32, #tpu.memory_space<vmem>>, vector<1x8x256xf32>
    %220 = vector.shape_cast %219 : vector<1x8x256xf32> to vector<8x256xf32>
    %221 = arith.mulf %218, %220 : vector<8x256xf32>
    %c40_239 = arith.constant 40 : index
    %c0_240 = arith.constant 0 : index
    %222 = vector.load %arg9[%c40_239, %c0_240] : memref<80x256xf32, #tpu.memory_space<vmem>>, vector<8x256xf32>
    tpu.vector_store %arg9[%c40_239, %c0_240], %221 {strides = array<i32>} : memref<80x256xf32, #tpu.memory_space<vmem>>, vector<8x256xf32>,
    %c241_i32_241 = arith.constant 241 : i32
    %223 = tpu.dynamic_rotate %196 by %c241_i32_241 dim 1 : vector<8x256xf32>, i32 -> vector<8x256xf32>
    %c6_242 = arith.constant 6 : index
    %c0_243 = arith.constant 0 : index
    %c0_244 = arith.constant 0 : index
    %224 = vector.load %arg2[%c6_242, %c0_243, %c0_244] : memref<9x8x256xf32, #tpu.memory_space<vmem>>, vector<1x8x256xf32>
    %225 = vector.shape_cast %224 : vector<1x8x256xf32> to vector<8x256xf32>
    %226 = arith.mulf %223, %225 : vector<8x256xf32>
    %c48_245 = arith.constant 48 : index
    %c0_246 = arith.constant 0 : index
    %227 = vector.load %arg9[%c48_245, %c0_246] : memref<80x256xf32, #tpu.memory_space<vmem>>, vector<8x256xf32>
    tpu.vector_store %arg9[%c48_245, %c0_246], %226 {strides = array<i32>} : memref<80x256xf32, #tpu.memory_space<vmem>>, vector<8x256xf32>,
    %c240_i32_247 = arith.constant 240 : i32
    %228 = tpu.dynamic_rotate %196 by %c240_i32_247 dim 1 : vector<8x256xf32>, i32 -> vector<8x256xf32>
    %c7_248 = arith.constant 7 : index
    %c0_249 = arith.constant 0 : index
    %c0_250 = arith.constant 0 : index
    %229 = vector.load %arg2[%c7_248, %c0_249, %c0_250] : memref<9x8x256xf32, #tpu.memory_space<vmem>>, vector<1x8x256xf32>
    %230 = vector.shape_cast %229 : vector<1x8x256xf32> to vector<8x256xf32>
    %231 = arith.mulf %228, %230 : vector<8x256xf32>
    %c56_251 = arith.constant 56 : index
    %c0_252 = arith.constant 0 : index
    %232 = vector.load %arg9[%c56_251, %c0_252] : memref<80x256xf32, #tpu.memory_space<vmem>>, vector<8x256xf32>
    tpu.vector_store %arg9[%c56_251, %c0_252], %231 {strides = array<i32>} : memref<80x256xf32, #tpu.memory_space<vmem>>, vector<8x256xf32>,
    %c239_i32_253 = arith.constant 239 : i32
    %233 = tpu.dynamic_rotate %196 by %c239_i32_253 dim 1 : vector<8x256xf32>, i32 -> vector<8x256xf32>
    %c8_254 = arith.constant 8 : index
    %c0_255 = arith.constant 0 : index
    %c0_256 = arith.constant 0 : index
    %234 = vector.load %arg2[%c8_254, %c0_255, %c0_256] : memref<9x8x256xf32, #tpu.memory_space<vmem>>, vector<1x8x256xf32>
    %235 = vector.shape_cast %234 : vector<1x8x256xf32> to vector<8x256xf32>
    %236 = arith.mulf %233, %235 : vector<8x256xf32>
    %c64_257 = arith.constant 64 : index
    %c0_258 = arith.constant 0 : index
    %237 = vector.load %arg9[%c64_257, %c0_258] : memref<80x256xf32, #tpu.memory_space<vmem>>, vector<8x256xf32>
    tpu.vector_store %arg9[%c64_257, %c0_258], %236 {strides = array<i32>} : memref<80x256xf32, #tpu.memory_space<vmem>>, vector<8x256xf32>,
    %c0_259 = arith.constant 0 : index
    %c3_260 = arith.constant 3 : index
    %c0_261 = arith.constant 0 : index
    %c0_262 = arith.constant 0 : index
    %238 = vector.load %arg4[%c0_259, %c3_260, %c0_261, %c0_262] : memref<1x20x8x80xf32, #tpu.memory_space<vmem>>, vector<1x1x8x80xf32>
    %239 = vector.shape_cast %238 : vector<1x1x8x80xf32> to vector<8x80xf32>
    %c0_263 = arith.constant 0 : index
    %c0_264 = arith.constant 0 : index
    %240 = vector.load %arg9[%c0_263, %c0_264] : memref<80x256xf32, #tpu.memory_space<vmem>>, vector<80x256xf32>
    %cst_265 = arith.constant dense<0.000000e+00> : vector<8x256xf32>
    %241 = tpu.matmul %239, %240, %cst_265 {dimension_numbers = #tpu.dot_dimension_numbers<[1], [0], [0], [1], [0, 0, 1, 1], [], []>} : vector<8x80xf32>, vector<80x256xf32>, vector<8x256xf32> -> vector<8x256xf32>
    %cst_266 = arith.constant 0.000000e+00 : f32
    %242 = vector.broadcast %cst_266 : f32 to vector<8x256xf32>
    %243 = arith.maximumf %241, %242 : vector<8x256xf32>
    %c17_i32_267 = arith.constant 17 : i32
    %244 = tpu.dynamic_rotate %243 by %c17_i32_267 dim 1 : vector<8x256xf32>, i32 -> vector<8x256xf32>
    %c0_268 = arith.constant 0 : index
    %c0_269 = arith.constant 0 : index
    %c0_270 = arith.constant 0 : index
    %245 = vector.load %arg2[%c0_268, %c0_269, %c0_270] : memref<9x8x256xf32, #tpu.memory_space<vmem>>, vector<1x8x256xf32>
    %246 = vector.shape_cast %245 : vector<1x8x256xf32> to vector<8x256xf32>
    %247 = arith.mulf %244, %246 : vector<8x256xf32>
    %c0_271 = arith.constant 0 : index
    %c0_272 = arith.constant 0 : index
    %248 = vector.load %arg9[%c0_271, %c0_272] : memref<80x256xf32, #tpu.memory_space<vmem>>, vector<8x256xf32>
    tpu.vector_store %arg9[%c0_271, %c0_272], %247 {strides = array<i32>} : memref<80x256xf32, #tpu.memory_space<vmem>>, vector<8x256xf32>,
    %c16_i32_273 = arith.constant 16 : i32
    %249 = tpu.dynamic_rotate %243 by %c16_i32_273 dim 1 : vector<8x256xf32>, i32 -> vector<8x256xf32>
    %c1_274 = arith.constant 1 : index
    %c0_275 = arith.constant 0 : index
    %c0_276 = arith.constant 0 : index
    %250 = vector.load %arg2[%c1_274, %c0_275, %c0_276] : memref<9x8x256xf32, #tpu.memory_space<vmem>>, vector<1x8x256xf32>
    %251 = vector.shape_cast %250 : vector<1x8x256xf32> to vector<8x256xf32>
    %252 = arith.mulf %249, %251 : vector<8x256xf32>
    %c8_277 = arith.constant 8 : index
    %c0_278 = arith.constant 0 : index
    %253 = vector.load %arg9[%c8_277, %c0_278] : memref<80x256xf32, #tpu.memory_space<vmem>>, vector<8x256xf32>
    tpu.vector_store %arg9[%c8_277, %c0_278], %252 {strides = array<i32>} : memref<80x256xf32, #tpu.memory_space<vmem>>, vector<8x256xf32>,
    %c15_i32_279 = arith.constant 15 : i32
    %254 = tpu.dynamic_rotate %243 by %c15_i32_279 dim 1 : vector<8x256xf32>, i32 -> vector<8x256xf32>
    %c2_280 = arith.constant 2 : index
    %c0_281 = arith.constant 0 : index
    %c0_282 = arith.constant 0 : index
    %255 = vector.load %arg2[%c2_280, %c0_281, %c0_282] : memref<9x8x256xf32, #tpu.memory_space<vmem>>, vector<1x8x256xf32>
    %256 = vector.shape_cast %255 : vector<1x8x256xf32> to vector<8x256xf32>
    %257 = arith.mulf %254, %256 : vector<8x256xf32>
    %c16_283 = arith.constant 16 : index
    %c0_284 = arith.constant 0 : index
    %258 = vector.load %arg9[%c16_283, %c0_284] : memref<80x256xf32, #tpu.memory_space<vmem>>, vector<8x256xf32>
    tpu.vector_store %arg9[%c16_283, %c0_284], %257 {strides = array<i32>} : memref<80x256xf32, #tpu.memory_space<vmem>>, vector<8x256xf32>,
    %c1_i32_285 = arith.constant 1 : i32
    %259 = tpu.dynamic_rotate %243 by %c1_i32_285 dim 1 : vector<8x256xf32>, i32 -> vector<8x256xf32>
    %c3_286 = arith.constant 3 : index
    %c0_287 = arith.constant 0 : index
    %c0_288 = arith.constant 0 : index
    %260 = vector.load %arg2[%c3_286, %c0_287, %c0_288] : memref<9x8x256xf32, #tpu.memory_space<vmem>>, vector<1x8x256xf32>
    %261 = vector.shape_cast %260 : vector<1x8x256xf32> to vector<8x256xf32>
    %262 = arith.mulf %259, %261 : vector<8x256xf32>
    %c24_289 = arith.constant 24 : index
    %c0_290 = arith.constant 0 : index
    %263 = vector.load %arg9[%c24_289, %c0_290] : memref<80x256xf32, #tpu.memory_space<vmem>>, vector<8x256xf32>
    tpu.vector_store %arg9[%c24_289, %c0_290], %262 {strides = array<i32>} : memref<80x256xf32, #tpu.memory_space<vmem>>, vector<8x256xf32>,
    %c32_291 = arith.constant 32 : index
    %c0_292 = arith.constant 0 : index
    %264 = vector.load %arg9[%c32_291, %c0_292] : memref<80x256xf32, #tpu.memory_space<vmem>>, vector<8x256xf32>
    tpu.vector_store %arg9[%c32_291, %c0_292], %243 {strides = array<i32>} : memref<80x256xf32, #tpu.memory_space<vmem>>, vector<8x256xf32>,
    %c255_i32_293 = arith.constant 255 : i32
    %265 = tpu.dynamic_rotate %243 by %c255_i32_293 dim 1 : vector<8x256xf32>, i32 -> vector<8x256xf32>
    %c5_294 = arith.constant 5 : index
    %c0_295 = arith.constant 0 : index
    %c0_296 = arith.constant 0 : index
    %266 = vector.load %arg2[%c5_294, %c0_295, %c0_296] : memref<9x8x256xf32, #tpu.memory_space<vmem>>, vector<1x8x256xf32>
    %267 = vector.shape_cast %266 : vector<1x8x256xf32> to vector<8x256xf32>
    %268 = arith.mulf %265, %267 : vector<8x256xf32>
    %c40_297 = arith.constant 40 : index
    %c0_298 = arith.constant 0 : index
    %269 = vector.load %arg9[%c40_297, %c0_298] : memref<80x256xf32, #tpu.memory_space<vmem>>, vector<8x256xf32>
    tpu.vector_store %arg9[%c40_297, %c0_298], %268 {strides = array<i32>} : memref<80x256xf32, #tpu.memory_space<vmem>>, vector<8x256xf32>,
    %c241_i32_299 = arith.constant 241 : i32
    %270 = tpu.dynamic_rotate %243 by %c241_i32_299 dim 1 : vector<8x256xf32>, i32 -> vector<8x256xf32>
    %c6_300 = arith.constant 6 : index
    %c0_301 = arith.constant 0 : index
    %c0_302 = arith.constant 0 : index
    %271 = vector.load %arg2[%c6_300, %c0_301, %c0_302] : memref<9x8x256xf32, #tpu.memory_space<vmem>>, vector<1x8x256xf32>
    %272 = vector.shape_cast %271 : vector<1x8x256xf32> to vector<8x256xf32>
    %273 = arith.mulf %270, %272 : vector<8x256xf32>
    %c48_303 = arith.constant 48 : index
    %c0_304 = arith.constant 0 : index
    %274 = vector.load %arg9[%c48_303, %c0_304] : memref<80x256xf32, #tpu.memory_space<vmem>>, vector<8x256xf32>
    tpu.vector_store %arg9[%c48_303, %c0_304], %273 {strides = array<i32>} : memref<80x256xf32, #tpu.memory_space<vmem>>, vector<8x256xf32>,
    %c240_i32_305 = arith.constant 240 : i32
    %275 = tpu.dynamic_rotate %243 by %c240_i32_305 dim 1 : vector<8x256xf32>, i32 -> vector<8x256xf32>
    %c7_306 = arith.constant 7 : index
    %c0_307 = arith.constant 0 : index
    %c0_308 = arith.constant 0 : index
    %276 = vector.load %arg2[%c7_306, %c0_307, %c0_308] : memref<9x8x256xf32, #tpu.memory_space<vmem>>, vector<1x8x256xf32>
    %277 = vector.shape_cast %276 : vector<1x8x256xf32> to vector<8x256xf32>
    %278 = arith.mulf %275, %277 : vector<8x256xf32>
    %c56_309 = arith.constant 56 : index
    %c0_310 = arith.constant 0 : index
    %279 = vector.load %arg9[%c56_309, %c0_310] : memref<80x256xf32, #tpu.memory_space<vmem>>, vector<8x256xf32>
    tpu.vector_store %arg9[%c56_309, %c0_310], %278 {strides = array<i32>} : memref<80x256xf32, #tpu.memory_space<vmem>>, vector<8x256xf32>,
    %c239_i32_311 = arith.constant 239 : i32
    %280 = tpu.dynamic_rotate %243 by %c239_i32_311 dim 1 : vector<8x256xf32>, i32 -> vector<8x256xf32>
    %c8_312 = arith.constant 8 : index
    %c0_313 = arith.constant 0 : index
    %c0_314 = arith.constant 0 : index
    %281 = vector.load %arg2[%c8_312, %c0_313, %c0_314] : memref<9x8x256xf32, #tpu.memory_space<vmem>>, vector<1x8x256xf32>
    %282 = vector.shape_cast %281 : vector<1x8x256xf32> to vector<8x256xf32>
    %283 = arith.mulf %280, %282 : vector<8x256xf32>
    %c64_315 = arith.constant 64 : index
    %c0_316 = arith.constant 0 : index
    %284 = vector.load %arg9[%c64_315, %c0_316] : memref<80x256xf32, #tpu.memory_space<vmem>>, vector<8x256xf32>
    tpu.vector_store %arg9[%c64_315, %c0_316], %283 {strides = array<i32>} : memref<80x256xf32, #tpu.memory_space<vmem>>, vector<8x256xf32>,
    %c0_317 = arith.constant 0 : index
    %c4 = arith.constant 4 : index
    %c0_318 = arith.constant 0 : index
    %c0_319 = arith.constant 0 : index
    %285 = vector.load %arg4[%c0_317, %c4, %c0_318, %c0_319] : memref<1x20x8x80xf32, #tpu.memory_space<vmem>>, vector<1x1x8x80xf32>
    %286 = vector.shape_cast %285 : vector<1x1x8x80xf32> to vector<8x80xf32>
    %c0_320 = arith.constant 0 : index
    %c0_321 = arith.constant 0 : index
    %287 = vector.load %arg9[%c0_320, %c0_321] : memref<80x256xf32, #tpu.memory_space<vmem>>, vector<80x256xf32>
    %cst_322 = arith.constant dense<0.000000e+00> : vector<8x256xf32>
    %288 = tpu.matmul %286, %287, %cst_322 {dimension_numbers = #tpu.dot_dimension_numbers<[1], [0], [0], [1], [0, 0, 1, 1], [], []>} : vector<8x80xf32>, vector<80x256xf32>, vector<8x256xf32> -> vector<8x256xf32>
    %cst_323 = arith.constant 0.000000e+00 : f32
    %289 = vector.broadcast %cst_323 : f32 to vector<8x256xf32>
    %290 = arith.maximumf %288, %289 : vector<8x256xf32>
    %c17_i32_324 = arith.constant 17 : i32
    %291 = tpu.dynamic_rotate %290 by %c17_i32_324 dim 1 : vector<8x256xf32>, i32 -> vector<8x256xf32>
    %c0_325 = arith.constant 0 : index
    %c0_326 = arith.constant 0 : index
    %c0_327 = arith.constant 0 : index
    %292 = vector.load %arg2[%c0_325, %c0_326, %c0_327] : memref<9x8x256xf32, #tpu.memory_space<vmem>>, vector<1x8x256xf32>
    %293 = vector.shape_cast %292 : vector<1x8x256xf32> to vector<8x256xf32>
    %294 = arith.mulf %291, %293 : vector<8x256xf32>
    %c0_328 = arith.constant 0 : index
    %c0_329 = arith.constant 0 : index
    %295 = vector.load %arg9[%c0_328, %c0_329] : memref<80x256xf32, #tpu.memory_space<vmem>>, vector<8x256xf32>
    tpu.vector_store %arg9[%c0_328, %c0_329], %294 {strides = array<i32>} : memref<80x256xf32, #tpu.memory_space<vmem>>, vector<8x256xf32>,
    %c16_i32_330 = arith.constant 16 : i32
    %296 = tpu.dynamic_rotate %290 by %c16_i32_330 dim 1 : vector<8x256xf32>, i32 -> vector<8x256xf32>
    %c1_331 = arith.constant 1 : index
    %c0_332 = arith.constant 0 : index
    %c0_333 = arith.constant 0 : index
    %297 = vector.load %arg2[%c1_331, %c0_332, %c0_333] : memref<9x8x256xf32, #tpu.memory_space<vmem>>, vector<1x8x256xf32>
    %298 = vector.shape_cast %297 : vector<1x8x256xf32> to vector<8x256xf32>
    %299 = arith.mulf %296, %298 : vector<8x256xf32>
    %c8_334 = arith.constant 8 : index
    %c0_335 = arith.constant 0 : index
    %300 = vector.load %arg9[%c8_334, %c0_335] : memref<80x256xf32, #tpu.memory_space<vmem>>, vector<8x256xf32>
    tpu.vector_store %arg9[%c8_334, %c0_335], %299 {strides = array<i32>} : memref<80x256xf32, #tpu.memory_space<vmem>>, vector<8x256xf32>,
    %c15_i32_336 = arith.constant 15 : i32
    %301 = tpu.dynamic_rotate %290 by %c15_i32_336 dim 1 : vector<8x256xf32>, i32 -> vector<8x256xf32>
    %c2_337 = arith.constant 2 : index
    %c0_338 = arith.constant 0 : index
    %c0_339 = arith.constant 0 : index
    %302 = vector.load %arg2[%c2_337, %c0_338, %c0_339] : memref<9x8x256xf32, #tpu.memory_space<vmem>>, vector<1x8x256xf32>
    %303 = vector.shape_cast %302 : vector<1x8x256xf32> to vector<8x256xf32>
    %304 = arith.mulf %301, %303 : vector<8x256xf32>
    %c16_340 = arith.constant 16 : index
    %c0_341 = arith.constant 0 : index
    %305 = vector.load %arg9[%c16_340, %c0_341] : memref<80x256xf32, #tpu.memory_space<vmem>>, vector<8x256xf32>
    tpu.vector_store %arg9[%c16_340, %c0_341], %304 {strides = array<i32>} : memref<80x256xf32, #tpu.memory_space<vmem>>, vector<8x256xf32>,
    %c1_i32_342 = arith.constant 1 : i32
    %306 = tpu.dynamic_rotate %290 by %c1_i32_342 dim 1 : vector<8x256xf32>, i32 -> vector<8x256xf32>
    %c3_343 = arith.constant 3 : index
    %c0_344 = arith.constant 0 : index
    %c0_345 = arith.constant 0 : index
    %307 = vector.load %arg2[%c3_343, %c0_344, %c0_345] : memref<9x8x256xf32, #tpu.memory_space<vmem>>, vector<1x8x256xf32>
    %308 = vector.shape_cast %307 : vector<1x8x256xf32> to vector<8x256xf32>
    %309 = arith.mulf %306, %308 : vector<8x256xf32>
    %c24_346 = arith.constant 24 : index
    %c0_347 = arith.constant 0 : index
    %310 = vector.load %arg9[%c24_346, %c0_347] : memref<80x256xf32, #tpu.memory_space<vmem>>, vector<8x256xf32>
    tpu.vector_store %arg9[%c24_346, %c0_347], %309 {strides = array<i32>} : memref<80x256xf32, #tpu.memory_space<vmem>>, vector<8x256xf32>,
    %c32_348 = arith.constant 32 : index
    %c0_349 = arith.constant 0 : index
    %311 = vector.load %arg9[%c32_348, %c0_349] : memref<80x256xf32, #tpu.memory_space<vmem>>, vector<8x256xf32>
    tpu.vector_store %arg9[%c32_348, %c0_349], %290 {strides = array<i32>} : memref<80x256xf32, #tpu.memory_space<vmem>>, vector<8x256xf32>,
    %c255_i32_350 = arith.constant 255 : i32
    %312 = tpu.dynamic_rotate %290 by %c255_i32_350 dim 1 : vector<8x256xf32>, i32 -> vector<8x256xf32>
    %c5_351 = arith.constant 5 : index
    %c0_352 = arith.constant 0 : index
    %c0_353 = arith.constant 0 : index
    %313 = vector.load %arg2[%c5_351, %c0_352, %c0_353] : memref<9x8x256xf32, #tpu.memory_space<vmem>>, vector<1x8x256xf32>
    %314 = vector.shape_cast %313 : vector<1x8x256xf32> to vector<8x256xf32>
    %315 = arith.mulf %312, %314 : vector<8x256xf32>
    %c40_354 = arith.constant 40 : index
    %c0_355 = arith.constant 0 : index
    %316 = vector.load %arg9[%c40_354, %c0_355] : memref<80x256xf32, #tpu.memory_space<vmem>>, vector<8x256xf32>
    tpu.vector_store %arg9[%c40_354, %c0_355], %315 {strides = array<i32>} : memref<80x256xf32, #tpu.memory_space<vmem>>, vector<8x256xf32>,
    %c241_i32_356 = arith.constant 241 : i32
    %317 = tpu.dynamic_rotate %290 by %c241_i32_356 dim 1 : vector<8x256xf32>, i32 -> vector<8x256xf32>
    %c6_357 = arith.constant 6 : index
    %c0_358 = arith.constant 0 : index
    %c0_359 = arith.constant 0 : index
    %318 = vector.load %arg2[%c6_357, %c0_358, %c0_359] : memref<9x8x256xf32, #tpu.memory_space<vmem>>, vector<1x8x256xf32>
    %319 = vector.shape_cast %318 : vector<1x8x256xf32> to vector<8x256xf32>
    %320 = arith.mulf %317, %319 : vector<8x256xf32>
    %c48_360 = arith.constant 48 : index
    %c0_361 = arith.constant 0 : index
    %321 = vector.load %arg9[%c48_360, %c0_361] : memref<80x256xf32, #tpu.memory_space<vmem>>, vector<8x256xf32>
    tpu.vector_store %arg9[%c48_360, %c0_361], %320 {strides = array<i32>} : memref<80x256xf32, #tpu.memory_space<vmem>>, vector<8x256xf32>,
    %c240_i32_362 = arith.constant 240 : i32
    %322 = tpu.dynamic_rotate %290 by %c240_i32_362 dim 1 : vector<8x256xf32>, i32 -> vector<8x256xf32>
    %c7_363 = arith.constant 7 : index
    %c0_364 = arith.constant 0 : index
    %c0_365 = arith.constant 0 : index
    %323 = vector.load %arg2[%c7_363, %c0_364, %c0_365] : memref<9x8x256xf32, #tpu.memory_space<vmem>>, vector<1x8x256xf32>
    %324 = vector.shape_cast %323 : vector<1x8x256xf32> to vector<8x256xf32>
    %325 = arith.mulf %322, %324 : vector<8x256xf32>
    %c56_366 = arith.constant 56 : index
    %c0_367 = arith.constant 0 : index
    %326 = vector.load %arg9[%c56_366, %c0_367] : memref<80x256xf32, #tpu.memory_space<vmem>>, vector<8x256xf32>
    tpu.vector_store %arg9[%c56_366, %c0_367], %325 {strides = array<i32>} : memref<80x256xf32, #tpu.memory_space<vmem>>, vector<8x256xf32>,
    %c239_i32_368 = arith.constant 239 : i32
    %327 = tpu.dynamic_rotate %290 by %c239_i32_368 dim 1 : vector<8x256xf32>, i32 -> vector<8x256xf32>
    %c8_369 = arith.constant 8 : index
    %c0_370 = arith.constant 0 : index
    %c0_371 = arith.constant 0 : index
    %328 = vector.load %arg2[%c8_369, %c0_370, %c0_371] : memref<9x8x256xf32, #tpu.memory_space<vmem>>, vector<1x8x256xf32>
    %329 = vector.shape_cast %328 : vector<1x8x256xf32> to vector<8x256xf32>
    %330 = arith.mulf %327, %329 : vector<8x256xf32>
    %c64_372 = arith.constant 64 : index
    %c0_373 = arith.constant 0 : index
    %331 = vector.load %arg9[%c64_372, %c0_373] : memref<80x256xf32, #tpu.memory_space<vmem>>, vector<8x256xf32>
    tpu.vector_store %arg9[%c64_372, %c0_373], %330 {strides = array<i32>} : memref<80x256xf32, #tpu.memory_space<vmem>>, vector<8x256xf32>,
    %c0_374 = arith.constant 0 : index
    %c5_375 = arith.constant 5 : index
    %c0_376 = arith.constant 0 : index
    %c0_377 = arith.constant 0 : index
    %332 = vector.load %arg4[%c0_374, %c5_375, %c0_376, %c0_377] : memref<1x20x8x80xf32, #tpu.memory_space<vmem>>, vector<1x1x8x80xf32>
    %333 = vector.shape_cast %332 : vector<1x1x8x80xf32> to vector<8x80xf32>
    %c0_378 = arith.constant 0 : index
    %c0_379 = arith.constant 0 : index
    %334 = vector.load %arg9[%c0_378, %c0_379] : memref<80x256xf32, #tpu.memory_space<vmem>>, vector<80x256xf32>
    %cst_380 = arith.constant dense<0.000000e+00> : vector<8x256xf32>
    %335 = tpu.matmul %333, %334, %cst_380 {dimension_numbers = #tpu.dot_dimension_numbers<[1], [0], [0], [1], [0, 0, 1, 1], [], []>} : vector<8x80xf32>, vector<80x256xf32>, vector<8x256xf32> -> vector<8x256xf32>
    %cst_381 = arith.constant 0.000000e+00 : f32
    %336 = vector.broadcast %cst_381 : f32 to vector<8x256xf32>
    %337 = arith.maximumf %335, %336 : vector<8x256xf32>
    %c0_382 = arith.constant 0 : index
    %c1_383 = arith.constant 1 : index
    %c0_384 = arith.constant 0 : index
    %c0_385 = arith.constant 0 : index
    %338 = vector.load %arg5[%c0_382, %c1_383, %c0_384, %c0_385] : memref<1x3x8x152xf32, #tpu.memory_space<vmem>>, vector<1x1x8x152xf32>
    %339 = vector.shape_cast %338 : vector<1x1x8x152xf32> to vector<8x152xf32>
    %c0_386 = arith.constant 0 : index
    %c0_387 = arith.constant 0 : index
    %340 = vector.load %arg10[%c0_386, %c0_387] : memref<152x256xf32, #tpu.memory_space<vmem>>, vector<152x256xf32>
    %cst_388 = arith.constant dense<0.000000e+00> : vector<8x256xf32>
    %341 = tpu.matmul %339, %340, %cst_388 {dimension_numbers = #tpu.dot_dimension_numbers<[1], [0], [0], [1], [0, 0, 1, 1], [], []>} : vector<8x152xf32>, vector<152x256xf32>, vector<8x256xf32> -> vector<8x256xf32>
    %c17_i32_389 = arith.constant 17 : i32
    %342 = tpu.dynamic_rotate %337 by %c17_i32_389 dim 1 : vector<8x256xf32>, i32 -> vector<8x256xf32>
    %c0_390 = arith.constant 0 : index
    %c0_391 = arith.constant 0 : index
    %c0_392 = arith.constant 0 : index
    %343 = vector.load %arg2[%c0_390, %c0_391, %c0_392] : memref<9x8x256xf32, #tpu.memory_space<vmem>>, vector<1x8x256xf32>
    %344 = vector.shape_cast %343 : vector<1x8x256xf32> to vector<8x256xf32>
    %345 = arith.mulf %342, %344 : vector<8x256xf32>
    %c0_393 = arith.constant 0 : index
    %c0_394 = arith.constant 0 : index
    %346 = vector.load %arg9[%c0_393, %c0_394] : memref<80x256xf32, #tpu.memory_space<vmem>>, vector<8x256xf32>
    tpu.vector_store %arg9[%c0_393, %c0_394], %345 {strides = array<i32>} : memref<80x256xf32, #tpu.memory_space<vmem>>, vector<8x256xf32>,
    %c16_i32_395 = arith.constant 16 : i32
    %347 = tpu.dynamic_rotate %337 by %c16_i32_395 dim 1 : vector<8x256xf32>, i32 -> vector<8x256xf32>
    %c1_396 = arith.constant 1 : index
    %c0_397 = arith.constant 0 : index
    %c0_398 = arith.constant 0 : index
    %348 = vector.load %arg2[%c1_396, %c0_397, %c0_398] : memref<9x8x256xf32, #tpu.memory_space<vmem>>, vector<1x8x256xf32>
    %349 = vector.shape_cast %348 : vector<1x8x256xf32> to vector<8x256xf32>
    %350 = arith.mulf %347, %349 : vector<8x256xf32>
    %c8_399 = arith.constant 8 : index
    %c0_400 = arith.constant 0 : index
    %351 = vector.load %arg9[%c8_399, %c0_400] : memref<80x256xf32, #tpu.memory_space<vmem>>, vector<8x256xf32>
    tpu.vector_store %arg9[%c8_399, %c0_400], %350 {strides = array<i32>} : memref<80x256xf32, #tpu.memory_space<vmem>>, vector<8x256xf32>,
    %c15_i32_401 = arith.constant 15 : i32
    %352 = tpu.dynamic_rotate %337 by %c15_i32_401 dim 1 : vector<8x256xf32>, i32 -> vector<8x256xf32>
    %c2_402 = arith.constant 2 : index
    %c0_403 = arith.constant 0 : index
    %c0_404 = arith.constant 0 : index
    %353 = vector.load %arg2[%c2_402, %c0_403, %c0_404] : memref<9x8x256xf32, #tpu.memory_space<vmem>>, vector<1x8x256xf32>
    %354 = vector.shape_cast %353 : vector<1x8x256xf32> to vector<8x256xf32>
    %355 = arith.mulf %352, %354 : vector<8x256xf32>
    %c16_405 = arith.constant 16 : index
    %c0_406 = arith.constant 0 : index
    %356 = vector.load %arg9[%c16_405, %c0_406] : memref<80x256xf32, #tpu.memory_space<vmem>>, vector<8x256xf32>
    tpu.vector_store %arg9[%c16_405, %c0_406], %355 {strides = array<i32>} : memref<80x256xf32, #tpu.memory_space<vmem>>, vector<8x256xf32>,
    %c1_i32_407 = arith.constant 1 : i32
    %357 = tpu.dynamic_rotate %337 by %c1_i32_407 dim 1 : vector<8x256xf32>, i32 -> vector<8x256xf32>
    %c3_408 = arith.constant 3 : index
    %c0_409 = arith.constant 0 : index
    %c0_410 = arith.constant 0 : index
    %358 = vector.load %arg2[%c3_408, %c0_409, %c0_410] : memref<9x8x256xf32, #tpu.memory_space<vmem>>, vector<1x8x256xf32>
    %359 = vector.shape_cast %358 : vector<1x8x256xf32> to vector<8x256xf32>
    %360 = arith.mulf %357, %359 : vector<8x256xf32>
    %c24_411 = arith.constant 24 : index
    %c0_412 = arith.constant 0 : index
    %361 = vector.load %arg9[%c24_411, %c0_412] : memref<80x256xf32, #tpu.memory_space<vmem>>, vector<8x256xf32>
    tpu.vector_store %arg9[%c24_411, %c0_412], %360 {strides = array<i32>} : memref<80x256xf32, #tpu.memory_space<vmem>>, vector<8x256xf32>,
    %c32_413 = arith.constant 32 : index
    %c0_414 = arith.constant 0 : index
    %362 = vector.load %arg9[%c32_413, %c0_414] : memref<80x256xf32, #tpu.memory_space<vmem>>, vector<8x256xf32>
    tpu.vector_store %arg9[%c32_413, %c0_414], %337 {strides = array<i32>} : memref<80x256xf32, #tpu.memory_space<vmem>>, vector<8x256xf32>,
    %c255_i32_415 = arith.constant 255 : i32
    %363 = tpu.dynamic_rotate %337 by %c255_i32_415 dim 1 : vector<8x256xf32>, i32 -> vector<8x256xf32>
    %c5_416 = arith.constant 5 : index
    %c0_417 = arith.constant 0 : index
    %c0_418 = arith.constant 0 : index
    %364 = vector.load %arg2[%c5_416, %c0_417, %c0_418] : memref<9x8x256xf32, #tpu.memory_space<vmem>>, vector<1x8x256xf32>
    %365 = vector.shape_cast %364 : vector<1x8x256xf32> to vector<8x256xf32>
    %366 = arith.mulf %363, %365 : vector<8x256xf32>
    %c40_419 = arith.constant 40 : index
    %c0_420 = arith.constant 0 : index
    %367 = vector.load %arg9[%c40_419, %c0_420] : memref<80x256xf32, #tpu.memory_space<vmem>>, vector<8x256xf32>
    tpu.vector_store %arg9[%c40_419, %c0_420], %366 {strides = array<i32>} : memref<80x256xf32, #tpu.memory_space<vmem>>, vector<8x256xf32>,
    %c241_i32_421 = arith.constant 241 : i32
    %368 = tpu.dynamic_rotate %337 by %c241_i32_421 dim 1 : vector<8x256xf32>, i32 -> vector<8x256xf32>
    %c6_422 = arith.constant 6 : index
    %c0_423 = arith.constant 0 : index
    %c0_424 = arith.constant 0 : index
    %369 = vector.load %arg2[%c6_422, %c0_423, %c0_424] : memref<9x8x256xf32, #tpu.memory_space<vmem>>, vector<1x8x256xf32>
    %370 = vector.shape_cast %369 : vector<1x8x256xf32> to vector<8x256xf32>
    %371 = arith.mulf %368, %370 : vector<8x256xf32>
    %c48_425 = arith.constant 48 : index
    %c0_426 = arith.constant 0 : index
    %372 = vector.load %arg9[%c48_425, %c0_426] : memref<80x256xf32, #tpu.memory_space<vmem>>, vector<8x256xf32>
    tpu.vector_store %arg9[%c48_425, %c0_426], %371 {strides = array<i32>} : memref<80x256xf32, #tpu.memory_space<vmem>>, vector<8x256xf32>,
    %c240_i32_427 = arith.constant 240 : i32
    %373 = tpu.dynamic_rotate %337 by %c240_i32_427 dim 1 : vector<8x256xf32>, i32 -> vector<8x256xf32>
    %c7_428 = arith.constant 7 : index
    %c0_429 = arith.constant 0 : index
    %c0_430 = arith.constant 0 : index
    %374 = vector.load %arg2[%c7_428, %c0_429, %c0_430] : memref<9x8x256xf32, #tpu.memory_space<vmem>>, vector<1x8x256xf32>
    %375 = vector.shape_cast %374 : vector<1x8x256xf32> to vector<8x256xf32>
    %376 = arith.mulf %373, %375 : vector<8x256xf32>
    %c56_431 = arith.constant 56 : index
    %c0_432 = arith.constant 0 : index
    %377 = vector.load %arg9[%c56_431, %c0_432] : memref<80x256xf32, #tpu.memory_space<vmem>>, vector<8x256xf32>
    tpu.vector_store %arg9[%c56_431, %c0_432], %376 {strides = array<i32>} : memref<80x256xf32, #tpu.memory_space<vmem>>, vector<8x256xf32>,
    %c239_i32_433 = arith.constant 239 : i32
    %378 = tpu.dynamic_rotate %337 by %c239_i32_433 dim 1 : vector<8x256xf32>, i32 -> vector<8x256xf32>
    %c8_434 = arith.constant 8 : index
    %c0_435 = arith.constant 0 : index
    %c0_436 = arith.constant 0 : index
    %379 = vector.load %arg2[%c8_434, %c0_435, %c0_436] : memref<9x8x256xf32, #tpu.memory_space<vmem>>, vector<1x8x256xf32>
    %380 = vector.shape_cast %379 : vector<1x8x256xf32> to vector<8x256xf32>
    %381 = arith.mulf %378, %380 : vector<8x256xf32>
    %c64_437 = arith.constant 64 : index
    %c0_438 = arith.constant 0 : index
    %382 = vector.load %arg9[%c64_437, %c0_438] : memref<80x256xf32, #tpu.memory_space<vmem>>, vector<8x256xf32>
    tpu.vector_store %arg9[%c64_437, %c0_438], %381 {strides = array<i32>} : memref<80x256xf32, #tpu.memory_space<vmem>>, vector<8x256xf32>,
    %c0_439 = arith.constant 0 : index
    %c6_440 = arith.constant 6 : index
    %c0_441 = arith.constant 0 : index
    %c0_442 = arith.constant 0 : index
    %383 = vector.load %arg4[%c0_439, %c6_440, %c0_441, %c0_442] : memref<1x20x8x80xf32, #tpu.memory_space<vmem>>, vector<1x1x8x80xf32>
    %384 = vector.shape_cast %383 : vector<1x1x8x80xf32> to vector<8x80xf32>
    %c0_443 = arith.constant 0 : index
    %c0_444 = arith.constant 0 : index
    %385 = vector.load %arg9[%c0_443, %c0_444] : memref<80x256xf32, #tpu.memory_space<vmem>>, vector<80x256xf32>
    %cst_445 = arith.constant dense<0.000000e+00> : vector<8x256xf32>
    %386 = tpu.matmul %384, %385, %cst_445 {dimension_numbers = #tpu.dot_dimension_numbers<[1], [0], [0], [1], [0, 0, 1, 1], [], []>} : vector<8x80xf32>, vector<80x256xf32>, vector<8x256xf32> -> vector<8x256xf32>
    %387 = arith.addf %341, %386 : vector<8x256xf32>
    %cst_446 = arith.constant 0.000000e+00 : f32
    %388 = vector.broadcast %cst_446 : f32 to vector<8x256xf32>
    %389 = arith.maximumf %387, %388 : vector<8x256xf32>
    %c17_i32_447 = arith.constant 17 : i32
    %390 = tpu.dynamic_rotate %389 by %c17_i32_447 dim 1 : vector<8x256xf32>, i32 -> vector<8x256xf32>
    %c0_448 = arith.constant 0 : index
    %c0_449 = arith.constant 0 : index
    %c0_450 = arith.constant 0 : index
    %391 = vector.load %arg2[%c0_448, %c0_449, %c0_450] : memref<9x8x256xf32, #tpu.memory_space<vmem>>, vector<1x8x256xf32>
    %392 = vector.shape_cast %391 : vector<1x8x256xf32> to vector<8x256xf32>
    %393 = arith.mulf %390, %392 : vector<8x256xf32>
    %c0_451 = arith.constant 0 : index
    %c0_452 = arith.constant 0 : index
    %394 = vector.load %arg9[%c0_451, %c0_452] : memref<80x256xf32, #tpu.memory_space<vmem>>, vector<8x256xf32>
    tpu.vector_store %arg9[%c0_451, %c0_452], %393 {strides = array<i32>} : memref<80x256xf32, #tpu.memory_space<vmem>>, vector<8x256xf32>,
    %c16_i32_453 = arith.constant 16 : i32
    %395 = tpu.dynamic_rotate %389 by %c16_i32_453 dim 1 : vector<8x256xf32>, i32 -> vector<8x256xf32>
    %c1_454 = arith.constant 1 : index
    %c0_455 = arith.constant 0 : index
    %c0_456 = arith.constant 0 : index
    %396 = vector.load %arg2[%c1_454, %c0_455, %c0_456] : memref<9x8x256xf32, #tpu.memory_space<vmem>>, vector<1x8x256xf32>
    %397 = vector.shape_cast %396 : vector<1x8x256xf32> to vector<8x256xf32>
    %398 = arith.mulf %395, %397 : vector<8x256xf32>
    %c8_457 = arith.constant 8 : index
    %c0_458 = arith.constant 0 : index
    %399 = vector.load %arg9[%c8_457, %c0_458] : memref<80x256xf32, #tpu.memory_space<vmem>>, vector<8x256xf32>
    tpu.vector_store %arg9[%c8_457, %c0_458], %398 {strides = array<i32>} : memref<80x256xf32, #tpu.memory_space<vmem>>, vector<8x256xf32>,
    %c15_i32_459 = arith.constant 15 : i32
    %400 = tpu.dynamic_rotate %389 by %c15_i32_459 dim 1 : vector<8x256xf32>, i32 -> vector<8x256xf32>
    %c2_460 = arith.constant 2 : index
    %c0_461 = arith.constant 0 : index
    %c0_462 = arith.constant 0 : index
    %401 = vector.load %arg2[%c2_460, %c0_461, %c0_462] : memref<9x8x256xf32, #tpu.memory_space<vmem>>, vector<1x8x256xf32>
    %402 = vector.shape_cast %401 : vector<1x8x256xf32> to vector<8x256xf32>
    %403 = arith.mulf %400, %402 : vector<8x256xf32>
    %c16_463 = arith.constant 16 : index
    %c0_464 = arith.constant 0 : index
    %404 = vector.load %arg9[%c16_463, %c0_464] : memref<80x256xf32, #tpu.memory_space<vmem>>, vector<8x256xf32>
    tpu.vector_store %arg9[%c16_463, %c0_464], %403 {strides = array<i32>} : memref<80x256xf32, #tpu.memory_space<vmem>>, vector<8x256xf32>,
    %c1_i32_465 = arith.constant 1 : i32
    %405 = tpu.dynamic_rotate %389 by %c1_i32_465 dim 1 : vector<8x256xf32>, i32 -> vector<8x256xf32>
    %c3_466 = arith.constant 3 : index
    %c0_467 = arith.constant 0 : index
    %c0_468 = arith.constant 0 : index
    %406 = vector.load %arg2[%c3_466, %c0_467, %c0_468] : memref<9x8x256xf32, #tpu.memory_space<vmem>>, vector<1x8x256xf32>
    %407 = vector.shape_cast %406 : vector<1x8x256xf32> to vector<8x256xf32>
    %408 = arith.mulf %405, %407 : vector<8x256xf32>
    %c24_469 = arith.constant 24 : index
    %c0_470 = arith.constant 0 : index
    %409 = vector.load %arg9[%c24_469, %c0_470] : memref<80x256xf32, #tpu.memory_space<vmem>>, vector<8x256xf32>
    tpu.vector_store %arg9[%c24_469, %c0_470], %408 {strides = array<i32>} : memref<80x256xf32, #tpu.memory_space<vmem>>, vector<8x256xf32>,
    %c32_471 = arith.constant 32 : index
    %c0_472 = arith.constant 0 : index
    %410 = vector.load %arg9[%c32_471, %c0_472] : memref<80x256xf32, #tpu.memory_space<vmem>>, vector<8x256xf32>
    tpu.vector_store %arg9[%c32_471, %c0_472], %389 {strides = array<i32>} : memref<80x256xf32, #tpu.memory_space<vmem>>, vector<8x256xf32>,
    %c255_i32_473 = arith.constant 255 : i32
    %411 = tpu.dynamic_rotate %389 by %c255_i32_473 dim 1 : vector<8x256xf32>, i32 -> vector<8x256xf32>
    %c5_474 = arith.constant 5 : index
    %c0_475 = arith.constant 0 : index
    %c0_476 = arith.constant 0 : index
    %412 = vector.load %arg2[%c5_474, %c0_475, %c0_476] : memref<9x8x256xf32, #tpu.memory_space<vmem>>, vector<1x8x256xf32>
    %413 = vector.shape_cast %412 : vector<1x8x256xf32> to vector<8x256xf32>
    %414 = arith.mulf %411, %413 : vector<8x256xf32>
    %c40_477 = arith.constant 40 : index
    %c0_478 = arith.constant 0 : index
    %415 = vector.load %arg9[%c40_477, %c0_478] : memref<80x256xf32, #tpu.memory_space<vmem>>, vector<8x256xf32>
    tpu.vector_store %arg9[%c40_477, %c0_478], %414 {strides = array<i32>} : memref<80x256xf32, #tpu.memory_space<vmem>>, vector<8x256xf32>,
    %c241_i32_479 = arith.constant 241 : i32
    %416 = tpu.dynamic_rotate %389 by %c241_i32_479 dim 1 : vector<8x256xf32>, i32 -> vector<8x256xf32>
    %c6_480 = arith.constant 6 : index
    %c0_481 = arith.constant 0 : index
    %c0_482 = arith.constant 0 : index
    %417 = vector.load %arg2[%c6_480, %c0_481, %c0_482] : memref<9x8x256xf32, #tpu.memory_space<vmem>>, vector<1x8x256xf32>
    %418 = vector.shape_cast %417 : vector<1x8x256xf32> to vector<8x256xf32>
    %419 = arith.mulf %416, %418 : vector<8x256xf32>
    %c48_483 = arith.constant 48 : index
    %c0_484 = arith.constant 0 : index
    %420 = vector.load %arg9[%c48_483, %c0_484] : memref<80x256xf32, #tpu.memory_space<vmem>>, vector<8x256xf32>
    tpu.vector_store %arg9[%c48_483, %c0_484], %419 {strides = array<i32>} : memref<80x256xf32, #tpu.memory_space<vmem>>, vector<8x256xf32>,
    %c240_i32_485 = arith.constant 240 : i32
    %421 = tpu.dynamic_rotate %389 by %c240_i32_485 dim 1 : vector<8x256xf32>, i32 -> vector<8x256xf32>
    %c7_486 = arith.constant 7 : index
    %c0_487 = arith.constant 0 : index
    %c0_488 = arith.constant 0 : index
    %422 = vector.load %arg2[%c7_486, %c0_487, %c0_488] : memref<9x8x256xf32, #tpu.memory_space<vmem>>, vector<1x8x256xf32>
    %423 = vector.shape_cast %422 : vector<1x8x256xf32> to vector<8x256xf32>
    %424 = arith.mulf %421, %423 : vector<8x256xf32>
    %c56_489 = arith.constant 56 : index
    %c0_490 = arith.constant 0 : index
    %425 = vector.load %arg9[%c56_489, %c0_490] : memref<80x256xf32, #tpu.memory_space<vmem>>, vector<8x256xf32>
    tpu.vector_store %arg9[%c56_489, %c0_490], %424 {strides = array<i32>} : memref<80x256xf32, #tpu.memory_space<vmem>>, vector<8x256xf32>,
    %c239_i32_491 = arith.constant 239 : i32
    %426 = tpu.dynamic_rotate %389 by %c239_i32_491 dim 1 : vector<8x256xf32>, i32 -> vector<8x256xf32>
    %c8_492 = arith.constant 8 : index
    %c0_493 = arith.constant 0 : index
    %c0_494 = arith.constant 0 : index
    %427 = vector.load %arg2[%c8_492, %c0_493, %c0_494] : memref<9x8x256xf32, #tpu.memory_space<vmem>>, vector<1x8x256xf32>
    %428 = vector.shape_cast %427 : vector<1x8x256xf32> to vector<8x256xf32>
    %429 = arith.mulf %426, %428 : vector<8x256xf32>
    %c64_495 = arith.constant 64 : index
    %c0_496 = arith.constant 0 : index
    %430 = vector.load %arg9[%c64_495, %c0_496] : memref<80x256xf32, #tpu.memory_space<vmem>>, vector<8x256xf32>
    tpu.vector_store %arg9[%c64_495, %c0_496], %429 {strides = array<i32>} : memref<80x256xf32, #tpu.memory_space<vmem>>, vector<8x256xf32>,
    %c0_497 = arith.constant 0 : index
    %c7_498 = arith.constant 7 : index
    %c0_499 = arith.constant 0 : index
    %c0_500 = arith.constant 0 : index
    %431 = vector.load %arg4[%c0_497, %c7_498, %c0_499, %c0_500] : memref<1x20x8x80xf32, #tpu.memory_space<vmem>>, vector<1x1x8x80xf32>
    %432 = vector.shape_cast %431 : vector<1x1x8x80xf32> to vector<8x80xf32>
    %c0_501 = arith.constant 0 : index
    %c0_502 = arith.constant 0 : index
    %433 = vector.load %arg9[%c0_501, %c0_502] : memref<80x256xf32, #tpu.memory_space<vmem>>, vector<80x256xf32>
    %cst_503 = arith.constant dense<0.000000e+00> : vector<8x256xf32>
    %434 = tpu.matmul %432, %433, %cst_503 {dimension_numbers = #tpu.dot_dimension_numbers<[1], [0], [0], [1], [0, 0, 1, 1], [], []>} : vector<8x80xf32>, vector<80x256xf32>, vector<8x256xf32> -> vector<8x256xf32>
    %cst_504 = arith.constant 0.000000e+00 : f32
    %435 = vector.broadcast %cst_504 : f32 to vector<8x256xf32>
    %436 = arith.maximumf %434, %435 : vector<8x256xf32>
    %c17_i32_505 = arith.constant 17 : i32
    %437 = tpu.dynamic_rotate %436 by %c17_i32_505 dim 1 : vector<8x256xf32>, i32 -> vector<8x256xf32>
    %c0_506 = arith.constant 0 : index
    %c0_507 = arith.constant 0 : index
    %c0_508 = arith.constant 0 : index
    %438 = vector.load %arg2[%c0_506, %c0_507, %c0_508] : memref<9x8x256xf32, #tpu.memory_space<vmem>>, vector<1x8x256xf32>
    %439 = vector.shape_cast %438 : vector<1x8x256xf32> to vector<8x256xf32>
    %440 = arith.mulf %437, %439 : vector<8x256xf32>
    %c0_509 = arith.constant 0 : index
    %c0_510 = arith.constant 0 : index
    %441 = vector.load %arg9[%c0_509, %c0_510] : memref<80x256xf32, #tpu.memory_space<vmem>>, vector<8x256xf32>
    tpu.vector_store %arg9[%c0_509, %c0_510], %440 {strides = array<i32>} : memref<80x256xf32, #tpu.memory_space<vmem>>, vector<8x256xf32>,
    %c16_i32_511 = arith.constant 16 : i32
    %442 = tpu.dynamic_rotate %436 by %c16_i32_511 dim 1 : vector<8x256xf32>, i32 -> vector<8x256xf32>
    %c1_512 = arith.constant 1 : index
    %c0_513 = arith.constant 0 : index
    %c0_514 = arith.constant 0 : index
    %443 = vector.load %arg2[%c1_512, %c0_513, %c0_514] : memref<9x8x256xf32, #tpu.memory_space<vmem>>, vector<1x8x256xf32>
    %444 = vector.shape_cast %443 : vector<1x8x256xf32> to vector<8x256xf32>
    %445 = arith.mulf %442, %444 : vector<8x256xf32>
    %c8_515 = arith.constant 8 : index
    %c0_516 = arith.constant 0 : index
    %446 = vector.load %arg9[%c8_515, %c0_516] : memref<80x256xf32, #tpu.memory_space<vmem>>, vector<8x256xf32>
    tpu.vector_store %arg9[%c8_515, %c0_516], %445 {strides = array<i32>} : memref<80x256xf32, #tpu.memory_space<vmem>>, vector<8x256xf32>,
    %c15_i32_517 = arith.constant 15 : i32
    %447 = tpu.dynamic_rotate %436 by %c15_i32_517 dim 1 : vector<8x256xf32>, i32 -> vector<8x256xf32>
    %c2_518 = arith.constant 2 : index
    %c0_519 = arith.constant 0 : index
    %c0_520 = arith.constant 0 : index
    %448 = vector.load %arg2[%c2_518, %c0_519, %c0_520] : memref<9x8x256xf32, #tpu.memory_space<vmem>>, vector<1x8x256xf32>
    %449 = vector.shape_cast %448 : vector<1x8x256xf32> to vector<8x256xf32>
    %450 = arith.mulf %447, %449 : vector<8x256xf32>
    %c16_521 = arith.constant 16 : index
    %c0_522 = arith.constant 0 : index
    %451 = vector.load %arg9[%c16_521, %c0_522] : memref<80x256xf32, #tpu.memory_space<vmem>>, vector<8x256xf32>
    tpu.vector_store %arg9[%c16_521, %c0_522], %450 {strides = array<i32>} : memref<80x256xf32, #tpu.memory_space<vmem>>, vector<8x256xf32>,
    %c1_i32_523 = arith.constant 1 : i32
    %452 = tpu.dynamic_rotate %436 by %c1_i32_523 dim 1 : vector<8x256xf32>, i32 -> vector<8x256xf32>
    %c3_524 = arith.constant 3 : index
    %c0_525 = arith.constant 0 : index
    %c0_526 = arith.constant 0 : index
    %453 = vector.load %arg2[%c3_524, %c0_525, %c0_526] : memref<9x8x256xf32, #tpu.memory_space<vmem>>, vector<1x8x256xf32>
    %454 = vector.shape_cast %453 : vector<1x8x256xf32> to vector<8x256xf32>
    %455 = arith.mulf %452, %454 : vector<8x256xf32>
    %c24_527 = arith.constant 24 : index
    %c0_528 = arith.constant 0 : index
    %456 = vector.load %arg9[%c24_527, %c0_528] : memref<80x256xf32, #tpu.memory_space<vmem>>, vector<8x256xf32>
    tpu.vector_store %arg9[%c24_527, %c0_528], %455 {strides = array<i32>} : memref<80x256xf32, #tpu.memory_space<vmem>>, vector<8x256xf32>,
    %c32_529 = arith.constant 32 : index
    %c0_530 = arith.constant 0 : index
    %457 = vector.load %arg9[%c32_529, %c0_530] : memref<80x256xf32, #tpu.memory_space<vmem>>, vector<8x256xf32>
    tpu.vector_store %arg9[%c32_529, %c0_530], %436 {strides = array<i32>} : memref<80x256xf32, #tpu.memory_space<vmem>>, vector<8x256xf32>,
    %c255_i32_531 = arith.constant 255 : i32
    %458 = tpu.dynamic_rotate %436 by %c255_i32_531 dim 1 : vector<8x256xf32>, i32 -> vector<8x256xf32>
    %c5_532 = arith.constant 5 : index
    %c0_533 = arith.constant 0 : index
    %c0_534 = arith.constant 0 : index
    %459 = vector.load %arg2[%c5_532, %c0_533, %c0_534] : memref<9x8x256xf32, #tpu.memory_space<vmem>>, vector<1x8x256xf32>
    %460 = vector.shape_cast %459 : vector<1x8x256xf32> to vector<8x256xf32>
    %461 = arith.mulf %458, %460 : vector<8x256xf32>
    %c40_535 = arith.constant 40 : index
    %c0_536 = arith.constant 0 : index
    %462 = vector.load %arg9[%c40_535, %c0_536] : memref<80x256xf32, #tpu.memory_space<vmem>>, vector<8x256xf32>
    tpu.vector_store %arg9[%c40_535, %c0_536], %461 {strides = array<i32>} : memref<80x256xf32, #tpu.memory_space<vmem>>, vector<8x256xf32>,
    %c241_i32_537 = arith.constant 241 : i32
    %463 = tpu.dynamic_rotate %436 by %c241_i32_537 dim 1 : vector<8x256xf32>, i32 -> vector<8x256xf32>
    %c6_538 = arith.constant 6 : index
    %c0_539 = arith.constant 0 : index
    %c0_540 = arith.constant 0 : index
    %464 = vector.load %arg2[%c6_538, %c0_539, %c0_540] : memref<9x8x256xf32, #tpu.memory_space<vmem>>, vector<1x8x256xf32>
    %465 = vector.shape_cast %464 : vector<1x8x256xf32> to vector<8x256xf32>
    %466 = arith.mulf %463, %465 : vector<8x256xf32>
    %c48_541 = arith.constant 48 : index
    %c0_542 = arith.constant 0 : index
    %467 = vector.load %arg9[%c48_541, %c0_542] : memref<80x256xf32, #tpu.memory_space<vmem>>, vector<8x256xf32>
    tpu.vector_store %arg9[%c48_541, %c0_542], %466 {strides = array<i32>} : memref<80x256xf32, #tpu.memory_space<vmem>>, vector<8x256xf32>,
    %c240_i32_543 = arith.constant 240 : i32
    %468 = tpu.dynamic_rotate %436 by %c240_i32_543 dim 1 : vector<8x256xf32>, i32 -> vector<8x256xf32>
    %c7_544 = arith.constant 7 : index
    %c0_545 = arith.constant 0 : index
    %c0_546 = arith.constant 0 : index
    %469 = vector.load %arg2[%c7_544, %c0_545, %c0_546] : memref<9x8x256xf32, #tpu.memory_space<vmem>>, vector<1x8x256xf32>
    %470 = vector.shape_cast %469 : vector<1x8x256xf32> to vector<8x256xf32>
    %471 = arith.mulf %468, %470 : vector<8x256xf32>
    %c56_547 = arith.constant 56 : index
    %c0_548 = arith.constant 0 : index
    %472 = vector.load %arg9[%c56_547, %c0_548] : memref<80x256xf32, #tpu.memory_space<vmem>>, vector<8x256xf32>
    tpu.vector_store %arg9[%c56_547, %c0_548], %471 {strides = array<i32>} : memref<80x256xf32, #tpu.memory_space<vmem>>, vector<8x256xf32>,
    %c239_i32_549 = arith.constant 239 : i32
    %473 = tpu.dynamic_rotate %436 by %c239_i32_549 dim 1 : vector<8x256xf32>, i32 -> vector<8x256xf32>
    %c8_550 = arith.constant 8 : index
    %c0_551 = arith.constant 0 : index
    %c0_552 = arith.constant 0 : index
    %474 = vector.load %arg2[%c8_550, %c0_551, %c0_552] : memref<9x8x256xf32, #tpu.memory_space<vmem>>, vector<1x8x256xf32>
    %475 = vector.shape_cast %474 : vector<1x8x256xf32> to vector<8x256xf32>
    %476 = arith.mulf %473, %475 : vector<8x256xf32>
    %c64_553 = arith.constant 64 : index
    %c0_554 = arith.constant 0 : index
    %477 = vector.load %arg9[%c64_553, %c0_554] : memref<80x256xf32, #tpu.memory_space<vmem>>, vector<8x256xf32>
    tpu.vector_store %arg9[%c64_553, %c0_554], %476 {strides = array<i32>} : memref<80x256xf32, #tpu.memory_space<vmem>>, vector<8x256xf32>,
    %c0_555 = arith.constant 0 : index
    %c8_556 = arith.constant 8 : index
    %c0_557 = arith.constant 0 : index
    %c0_558 = arith.constant 0 : index
    %478 = vector.load %arg4[%c0_555, %c8_556, %c0_557, %c0_558] : memref<1x20x8x80xf32, #tpu.memory_space<vmem>>, vector<1x1x8x80xf32>
    %479 = vector.shape_cast %478 : vector<1x1x8x80xf32> to vector<8x80xf32>
    %c0_559 = arith.constant 0 : index
    %c0_560 = arith.constant 0 : index
    %480 = vector.load %arg9[%c0_559, %c0_560] : memref<80x256xf32, #tpu.memory_space<vmem>>, vector<80x256xf32>
    %cst_561 = arith.constant dense<0.000000e+00> : vector<8x256xf32>
    %481 = tpu.matmul %479, %480, %cst_561 {dimension_numbers = #tpu.dot_dimension_numbers<[1], [0], [0], [1], [0, 0, 1, 1], [], []>} : vector<8x80xf32>, vector<80x256xf32>, vector<8x256xf32> -> vector<8x256xf32>
    %cst_562 = arith.constant 0.000000e+00 : f32
    %482 = vector.broadcast %cst_562 : f32 to vector<8x256xf32>
    %483 = arith.maximumf %481, %482 : vector<8x256xf32>
    %c17_i32_563 = arith.constant 17 : i32
    %484 = tpu.dynamic_rotate %483 by %c17_i32_563 dim 1 : vector<8x256xf32>, i32 -> vector<8x256xf32>
    %c0_564 = arith.constant 0 : index
    %c0_565 = arith.constant 0 : index
    %c0_566 = arith.constant 0 : index
    %485 = vector.load %arg2[%c0_564, %c0_565, %c0_566] : memref<9x8x256xf32, #tpu.memory_space<vmem>>, vector<1x8x256xf32>
    %486 = vector.shape_cast %485 : vector<1x8x256xf32> to vector<8x256xf32>
    %487 = arith.mulf %484, %486 : vector<8x256xf32>
    %c0_567 = arith.constant 0 : index
    %c0_568 = arith.constant 0 : index
    %488 = vector.load %arg9[%c0_567, %c0_568] : memref<80x256xf32, #tpu.memory_space<vmem>>, vector<8x256xf32>
    tpu.vector_store %arg9[%c0_567, %c0_568], %487 {strides = array<i32>} : memref<80x256xf32, #tpu.memory_space<vmem>>, vector<8x256xf32>,
    %c16_i32_569 = arith.constant 16 : i32
    %489 = tpu.dynamic_rotate %483 by %c16_i32_569 dim 1 : vector<8x256xf32>, i32 -> vector<8x256xf32>
    %c1_570 = arith.constant 1 : index
    %c0_571 = arith.constant 0 : index
    %c0_572 = arith.constant 0 : index
    %490 = vector.load %arg2[%c1_570, %c0_571, %c0_572] : memref<9x8x256xf32, #tpu.memory_space<vmem>>, vector<1x8x256xf32>
    %491 = vector.shape_cast %490 : vector<1x8x256xf32> to vector<8x256xf32>
    %492 = arith.mulf %489, %491 : vector<8x256xf32>
    %c8_573 = arith.constant 8 : index
    %c0_574 = arith.constant 0 : index
    %493 = vector.load %arg9[%c8_573, %c0_574] : memref<80x256xf32, #tpu.memory_space<vmem>>, vector<8x256xf32>
    tpu.vector_store %arg9[%c8_573, %c0_574], %492 {strides = array<i32>} : memref<80x256xf32, #tpu.memory_space<vmem>>, vector<8x256xf32>,
    %c15_i32_575 = arith.constant 15 : i32
    %494 = tpu.dynamic_rotate %483 by %c15_i32_575 dim 1 : vector<8x256xf32>, i32 -> vector<8x256xf32>
    %c2_576 = arith.constant 2 : index
    %c0_577 = arith.constant 0 : index
    %c0_578 = arith.constant 0 : index
    %495 = vector.load %arg2[%c2_576, %c0_577, %c0_578] : memref<9x8x256xf32, #tpu.memory_space<vmem>>, vector<1x8x256xf32>
    %496 = vector.shape_cast %495 : vector<1x8x256xf32> to vector<8x256xf32>
    %497 = arith.mulf %494, %496 : vector<8x256xf32>
    %c16_579 = arith.constant 16 : index
    %c0_580 = arith.constant 0 : index
    %498 = vector.load %arg9[%c16_579, %c0_580] : memref<80x256xf32, #tpu.memory_space<vmem>>, vector<8x256xf32>
    tpu.vector_store %arg9[%c16_579, %c0_580], %497 {strides = array<i32>} : memref<80x256xf32, #tpu.memory_space<vmem>>, vector<8x256xf32>,
    %c1_i32_581 = arith.constant 1 : i32
    %499 = tpu.dynamic_rotate %483 by %c1_i32_581 dim 1 : vector<8x256xf32>, i32 -> vector<8x256xf32>
    %c3_582 = arith.constant 3 : index
    %c0_583 = arith.constant 0 : index
    %c0_584 = arith.constant 0 : index
    %500 = vector.load %arg2[%c3_582, %c0_583, %c0_584] : memref<9x8x256xf32, #tpu.memory_space<vmem>>, vector<1x8x256xf32>
    %501 = vector.shape_cast %500 : vector<1x8x256xf32> to vector<8x256xf32>
    %502 = arith.mulf %499, %501 : vector<8x256xf32>
    %c24_585 = arith.constant 24 : index
    %c0_586 = arith.constant 0 : index
    %503 = vector.load %arg9[%c24_585, %c0_586] : memref<80x256xf32, #tpu.memory_space<vmem>>, vector<8x256xf32>
    tpu.vector_store %arg9[%c24_585, %c0_586], %502 {strides = array<i32>} : memref<80x256xf32, #tpu.memory_space<vmem>>, vector<8x256xf32>,
    %c32_587 = arith.constant 32 : index
    %c0_588 = arith.constant 0 : index
    %504 = vector.load %arg9[%c32_587, %c0_588] : memref<80x256xf32, #tpu.memory_space<vmem>>, vector<8x256xf32>
    tpu.vector_store %arg9[%c32_587, %c0_588], %483 {strides = array<i32>} : memref<80x256xf32, #tpu.memory_space<vmem>>, vector<8x256xf32>,
    %c255_i32_589 = arith.constant 255 : i32
    %505 = tpu.dynamic_rotate %483 by %c255_i32_589 dim 1 : vector<8x256xf32>, i32 -> vector<8x256xf32>
    %c5_590 = arith.constant 5 : index
    %c0_591 = arith.constant 0 : index
    %c0_592 = arith.constant 0 : index
    %506 = vector.load %arg2[%c5_590, %c0_591, %c0_592] : memref<9x8x256xf32, #tpu.memory_space<vmem>>, vector<1x8x256xf32>
    %507 = vector.shape_cast %506 : vector<1x8x256xf32> to vector<8x256xf32>
    %508 = arith.mulf %505, %507 : vector<8x256xf32>
    %c40_593 = arith.constant 40 : index
    %c0_594 = arith.constant 0 : index
    %509 = vector.load %arg9[%c40_593, %c0_594] : memref<80x256xf32, #tpu.memory_space<vmem>>, vector<8x256xf32>
    tpu.vector_store %arg9[%c40_593, %c0_594], %508 {strides = array<i32>} : memref<80x256xf32, #tpu.memory_space<vmem>>, vector<8x256xf32>,
    %c241_i32_595 = arith.constant 241 : i32
    %510 = tpu.dynamic_rotate %483 by %c241_i32_595 dim 1 : vector<8x256xf32>, i32 -> vector<8x256xf32>
    %c6_596 = arith.constant 6 : index
    %c0_597 = arith.constant 0 : index
    %c0_598 = arith.constant 0 : index
    %511 = vector.load %arg2[%c6_596, %c0_597, %c0_598] : memref<9x8x256xf32, #tpu.memory_space<vmem>>, vector<1x8x256xf32>
    %512 = vector.shape_cast %511 : vector<1x8x256xf32> to vector<8x256xf32>
    %513 = arith.mulf %510, %512 : vector<8x256xf32>
    %c48_599 = arith.constant 48 : index
    %c0_600 = arith.constant 0 : index
    %514 = vector.load %arg9[%c48_599, %c0_600] : memref<80x256xf32, #tpu.memory_space<vmem>>, vector<8x256xf32>
    tpu.vector_store %arg9[%c48_599, %c0_600], %513 {strides = array<i32>} : memref<80x256xf32, #tpu.memory_space<vmem>>, vector<8x256xf32>,
    %c240_i32_601 = arith.constant 240 : i32
    %515 = tpu.dynamic_rotate %483 by %c240_i32_601 dim 1 : vector<8x256xf32>, i32 -> vector<8x256xf32>
    %c7_602 = arith.constant 7 : index
    %c0_603 = arith.constant 0 : index
    %c0_604 = arith.constant 0 : index
    %516 = vector.load %arg2[%c7_602, %c0_603, %c0_604] : memref<9x8x256xf32, #tpu.memory_space<vmem>>, vector<1x8x256xf32>
    %517 = vector.shape_cast %516 : vector<1x8x256xf32> to vector<8x256xf32>
    %518 = arith.mulf %515, %517 : vector<8x256xf32>
    %c56_605 = arith.constant 56 : index
    %c0_606 = arith.constant 0 : index
    %519 = vector.load %arg9[%c56_605, %c0_606] : memref<80x256xf32, #tpu.memory_space<vmem>>, vector<8x256xf32>
    tpu.vector_store %arg9[%c56_605, %c0_606], %518 {strides = array<i32>} : memref<80x256xf32, #tpu.memory_space<vmem>>, vector<8x256xf32>,
    %c239_i32_607 = arith.constant 239 : i32
    %520 = tpu.dynamic_rotate %483 by %c239_i32_607 dim 1 : vector<8x256xf32>, i32 -> vector<8x256xf32>
    %c8_608 = arith.constant 8 : index
    %c0_609 = arith.constant 0 : index
    %c0_610 = arith.constant 0 : index
    %521 = vector.load %arg2[%c8_608, %c0_609, %c0_610] : memref<9x8x256xf32, #tpu.memory_space<vmem>>, vector<1x8x256xf32>
    %522 = vector.shape_cast %521 : vector<1x8x256xf32> to vector<8x256xf32>
    %523 = arith.mulf %520, %522 : vector<8x256xf32>
    %c64_611 = arith.constant 64 : index
    %c0_612 = arith.constant 0 : index
    %524 = vector.load %arg9[%c64_611, %c0_612] : memref<80x256xf32, #tpu.memory_space<vmem>>, vector<8x256xf32>
    tpu.vector_store %arg9[%c64_611, %c0_612], %523 {strides = array<i32>} : memref<80x256xf32, #tpu.memory_space<vmem>>, vector<8x256xf32>,
    %c0_613 = arith.constant 0 : index
    %c9 = arith.constant 9 : index
    %c0_614 = arith.constant 0 : index
    %c0_615 = arith.constant 0 : index
    %525 = vector.load %arg4[%c0_613, %c9, %c0_614, %c0_615] : memref<1x20x8x80xf32, #tpu.memory_space<vmem>>, vector<1x1x8x80xf32>
    %526 = vector.shape_cast %525 : vector<1x1x8x80xf32> to vector<8x80xf32>
    %c0_616 = arith.constant 0 : index
    %c0_617 = arith.constant 0 : index
    %527 = vector.load %arg9[%c0_616, %c0_617] : memref<80x256xf32, #tpu.memory_space<vmem>>, vector<80x256xf32>
    %cst_618 = arith.constant dense<0.000000e+00> : vector<8x256xf32>
    %528 = tpu.matmul %526, %527, %cst_618 {dimension_numbers = #tpu.dot_dimension_numbers<[1], [0], [0], [1], [0, 0, 1, 1], [], []>} : vector<8x80xf32>, vector<80x256xf32>, vector<8x256xf32> -> vector<8x256xf32>
    %cst_619 = arith.constant 0.000000e+00 : f32
    %529 = vector.broadcast %cst_619 : f32 to vector<8x256xf32>
    %530 = arith.maximumf %528, %529 : vector<8x256xf32>
    %c17_i32_620 = arith.constant 17 : i32
    %531 = tpu.dynamic_rotate %530 by %c17_i32_620 dim 1 : vector<8x256xf32>, i32 -> vector<8x256xf32>
    %c0_621 = arith.constant 0 : index
    %c0_622 = arith.constant 0 : index
    %c0_623 = arith.constant 0 : index
    %532 = vector.load %arg2[%c0_621, %c0_622, %c0_623] : memref<9x8x256xf32, #tpu.memory_space<vmem>>, vector<1x8x256xf32>
    %533 = vector.shape_cast %532 : vector<1x8x256xf32> to vector<8x256xf32>
    %534 = arith.mulf %531, %533 : vector<8x256xf32>
    %c0_624 = arith.constant 0 : index
    %c0_625 = arith.constant 0 : index
    %535 = vector.load %arg9[%c0_624, %c0_625] : memref<80x256xf32, #tpu.memory_space<vmem>>, vector<8x256xf32>
    tpu.vector_store %arg9[%c0_624, %c0_625], %534 {strides = array<i32>} : memref<80x256xf32, #tpu.memory_space<vmem>>, vector<8x256xf32>,
    %c16_i32_626 = arith.constant 16 : i32
    %536 = tpu.dynamic_rotate %530 by %c16_i32_626 dim 1 : vector<8x256xf32>, i32 -> vector<8x256xf32>
    %c1_627 = arith.constant 1 : index
    %c0_628 = arith.constant 0 : index
    %c0_629 = arith.constant 0 : index
    %537 = vector.load %arg2[%c1_627, %c0_628, %c0_629] : memref<9x8x256xf32, #tpu.memory_space<vmem>>, vector<1x8x256xf32>
    %538 = vector.shape_cast %537 : vector<1x8x256xf32> to vector<8x256xf32>
    %539 = arith.mulf %536, %538 : vector<8x256xf32>
    %c8_630 = arith.constant 8 : index
    %c0_631 = arith.constant 0 : index
    %540 = vector.load %arg9[%c8_630, %c0_631] : memref<80x256xf32, #tpu.memory_space<vmem>>, vector<8x256xf32>
    tpu.vector_store %arg9[%c8_630, %c0_631], %539 {strides = array<i32>} : memref<80x256xf32, #tpu.memory_space<vmem>>, vector<8x256xf32>,
    %c15_i32_632 = arith.constant 15 : i32
    %541 = tpu.dynamic_rotate %530 by %c15_i32_632 dim 1 : vector<8x256xf32>, i32 -> vector<8x256xf32>
    %c2_633 = arith.constant 2 : index
    %c0_634 = arith.constant 0 : index
    %c0_635 = arith.constant 0 : index
    %542 = vector.load %arg2[%c2_633, %c0_634, %c0_635] : memref<9x8x256xf32, #tpu.memory_space<vmem>>, vector<1x8x256xf32>
    %543 = vector.shape_cast %542 : vector<1x8x256xf32> to vector<8x256xf32>
    %544 = arith.mulf %541, %543 : vector<8x256xf32>
    %c16_636 = arith.constant 16 : index
    %c0_637 = arith.constant 0 : index
    %545 = vector.load %arg9[%c16_636, %c0_637] : memref<80x256xf32, #tpu.memory_space<vmem>>, vector<8x256xf32>
    tpu.vector_store %arg9[%c16_636, %c0_637], %544 {strides = array<i32>} : memref<80x256xf32, #tpu.memory_space<vmem>>, vector<8x256xf32>,
    %c1_i32_638 = arith.constant 1 : i32
    %546 = tpu.dynamic_rotate %530 by %c1_i32_638 dim 1 : vector<8x256xf32>, i32 -> vector<8x256xf32>
    %c3_639 = arith.constant 3 : index
    %c0_640 = arith.constant 0 : index
    %c0_641 = arith.constant 0 : index
    %547 = vector.load %arg2[%c3_639, %c0_640, %c0_641] : memref<9x8x256xf32, #tpu.memory_space<vmem>>, vector<1x8x256xf32>
    %548 = vector.shape_cast %547 : vector<1x8x256xf32> to vector<8x256xf32>
    %549 = arith.mulf %546, %548 : vector<8x256xf32>
    %c24_642 = arith.constant 24 : index
    %c0_643 = arith.constant 0 : index
    %550 = vector.load %arg9[%c24_642, %c0_643] : memref<80x256xf32, #tpu.memory_space<vmem>>, vector<8x256xf32>
    tpu.vector_store %arg9[%c24_642, %c0_643], %549 {strides = array<i32>} : memref<80x256xf32, #tpu.memory_space<vmem>>, vector<8x256xf32>,
    %c32_644 = arith.constant 32 : index
    %c0_645 = arith.constant 0 : index
    %551 = vector.load %arg9[%c32_644, %c0_645] : memref<80x256xf32, #tpu.memory_space<vmem>>, vector<8x256xf32>
    tpu.vector_store %arg9[%c32_644, %c0_645], %530 {strides = array<i32>} : memref<80x256xf32, #tpu.memory_space<vmem>>, vector<8x256xf32>,
    %c255_i32_646 = arith.constant 255 : i32
    %552 = tpu.dynamic_rotate %530 by %c255_i32_646 dim 1 : vector<8x256xf32>, i32 -> vector<8x256xf32>
    %c5_647 = arith.constant 5 : index
    %c0_648 = arith.constant 0 : index
    %c0_649 = arith.constant 0 : index
    %553 = vector.load %arg2[%c5_647, %c0_648, %c0_649] : memref<9x8x256xf32, #tpu.memory_space<vmem>>, vector<1x8x256xf32>
    %554 = vector.shape_cast %553 : vector<1x8x256xf32> to vector<8x256xf32>
    %555 = arith.mulf %552, %554 : vector<8x256xf32>
    %c40_650 = arith.constant 40 : index
    %c0_651 = arith.constant 0 : index
    %556 = vector.load %arg9[%c40_650, %c0_651] : memref<80x256xf32, #tpu.memory_space<vmem>>, vector<8x256xf32>
    tpu.vector_store %arg9[%c40_650, %c0_651], %555 {strides = array<i32>} : memref<80x256xf32, #tpu.memory_space<vmem>>, vector<8x256xf32>,
    %c241_i32_652 = arith.constant 241 : i32
    %557 = tpu.dynamic_rotate %530 by %c241_i32_652 dim 1 : vector<8x256xf32>, i32 -> vector<8x256xf32>
    %c6_653 = arith.constant 6 : index
    %c0_654 = arith.constant 0 : index
    %c0_655 = arith.constant 0 : index
    %558 = vector.load %arg2[%c6_653, %c0_654, %c0_655] : memref<9x8x256xf32, #tpu.memory_space<vmem>>, vector<1x8x256xf32>
    %559 = vector.shape_cast %558 : vector<1x8x256xf32> to vector<8x256xf32>
    %560 = arith.mulf %557, %559 : vector<8x256xf32>
    %c48_656 = arith.constant 48 : index
    %c0_657 = arith.constant 0 : index
    %561 = vector.load %arg9[%c48_656, %c0_657] : memref<80x256xf32, #tpu.memory_space<vmem>>, vector<8x256xf32>
    tpu.vector_store %arg9[%c48_656, %c0_657], %560 {strides = array<i32>} : memref<80x256xf32, #tpu.memory_space<vmem>>, vector<8x256xf32>,
    %c240_i32_658 = arith.constant 240 : i32
    %562 = tpu.dynamic_rotate %530 by %c240_i32_658 dim 1 : vector<8x256xf32>, i32 -> vector<8x256xf32>
    %c7_659 = arith.constant 7 : index
    %c0_660 = arith.constant 0 : index
    %c0_661 = arith.constant 0 : index
    %563 = vector.load %arg2[%c7_659, %c0_660, %c0_661] : memref<9x8x256xf32, #tpu.memory_space<vmem>>, vector<1x8x256xf32>
    %564 = vector.shape_cast %563 : vector<1x8x256xf32> to vector<8x256xf32>
    %565 = arith.mulf %562, %564 : vector<8x256xf32>
    %c56_662 = arith.constant 56 : index
    %c0_663 = arith.constant 0 : index
    %566 = vector.load %arg9[%c56_662, %c0_663] : memref<80x256xf32, #tpu.memory_space<vmem>>, vector<8x256xf32>
    tpu.vector_store %arg9[%c56_662, %c0_663], %565 {strides = array<i32>} : memref<80x256xf32, #tpu.memory_space<vmem>>, vector<8x256xf32>,
    %c239_i32_664 = arith.constant 239 : i32
    %567 = tpu.dynamic_rotate %530 by %c239_i32_664 dim 1 : vector<8x256xf32>, i32 -> vector<8x256xf32>
    %c8_665 = arith.constant 8 : index
    %c0_666 = arith.constant 0 : index
    %c0_667 = arith.constant 0 : index
    %568 = vector.load %arg2[%c8_665, %c0_666, %c0_667] : memref<9x8x256xf32, #tpu.memory_space<vmem>>, vector<1x8x256xf32>
    %569 = vector.shape_cast %568 : vector<1x8x256xf32> to vector<8x256xf32>
    %570 = arith.mulf %567, %569 : vector<8x256xf32>
    %c64_668 = arith.constant 64 : index
    %c0_669 = arith.constant 0 : index
    %571 = vector.load %arg9[%c64_668, %c0_669] : memref<80x256xf32, #tpu.memory_space<vmem>>, vector<8x256xf32>
    tpu.vector_store %arg9[%c64_668, %c0_669], %570 {strides = array<i32>} : memref<80x256xf32, #tpu.memory_space<vmem>>, vector<8x256xf32>,
    %c0_670 = arith.constant 0 : index
    %c10 = arith.constant 10 : index
    %c0_671 = arith.constant 0 : index
    %c0_672 = arith.constant 0 : index
    %572 = vector.load %arg4[%c0_670, %c10, %c0_671, %c0_672] : memref<1x20x8x80xf32, #tpu.memory_space<vmem>>, vector<1x1x8x80xf32>
    %573 = vector.shape_cast %572 : vector<1x1x8x80xf32> to vector<8x80xf32>
    %c0_673 = arith.constant 0 : index
    %c0_674 = arith.constant 0 : index
    %574 = vector.load %arg9[%c0_673, %c0_674] : memref<80x256xf32, #tpu.memory_space<vmem>>, vector<80x256xf32>
    %cst_675 = arith.constant dense<0.000000e+00> : vector<8x256xf32>
    %575 = tpu.matmul %573, %574, %cst_675 {dimension_numbers = #tpu.dot_dimension_numbers<[1], [0], [0], [1], [0, 0, 1, 1], [], []>} : vector<8x80xf32>, vector<80x256xf32>, vector<8x256xf32> -> vector<8x256xf32>
    %cst_676 = arith.constant 0.000000e+00 : f32
    %576 = vector.broadcast %cst_676 : f32 to vector<8x256xf32>
    %577 = arith.maximumf %575, %576 : vector<8x256xf32>
    %c17_i32_677 = arith.constant 17 : i32
    %578 = tpu.dynamic_rotate %577 by %c17_i32_677 dim 1 : vector<8x256xf32>, i32 -> vector<8x256xf32>
    %c0_678 = arith.constant 0 : index
    %c0_679 = arith.constant 0 : index
    %c0_680 = arith.constant 0 : index
    %579 = vector.load %arg2[%c0_678, %c0_679, %c0_680] : memref<9x8x256xf32, #tpu.memory_space<vmem>>, vector<1x8x256xf32>
    %580 = vector.shape_cast %579 : vector<1x8x256xf32> to vector<8x256xf32>
    %581 = arith.mulf %578, %580 : vector<8x256xf32>
    %c0_681 = arith.constant 0 : index
    %c0_682 = arith.constant 0 : index
    %582 = vector.load %arg9[%c0_681, %c0_682] : memref<80x256xf32, #tpu.memory_space<vmem>>, vector<8x256xf32>
    tpu.vector_store %arg9[%c0_681, %c0_682], %581 {strides = array<i32>} : memref<80x256xf32, #tpu.memory_space<vmem>>, vector<8x256xf32>,
    %c16_i32_683 = arith.constant 16 : i32
    %583 = tpu.dynamic_rotate %577 by %c16_i32_683 dim 1 : vector<8x256xf32>, i32 -> vector<8x256xf32>
    %c1_684 = arith.constant 1 : index
    %c0_685 = arith.constant 0 : index
    %c0_686 = arith.constant 0 : index
    %584 = vector.load %arg2[%c1_684, %c0_685, %c0_686] : memref<9x8x256xf32, #tpu.memory_space<vmem>>, vector<1x8x256xf32>
    %585 = vector.shape_cast %584 : vector<1x8x256xf32> to vector<8x256xf32>
    %586 = arith.mulf %583, %585 : vector<8x256xf32>
    %c8_687 = arith.constant 8 : index
    %c0_688 = arith.constant 0 : index
    %587 = vector.load %arg9[%c8_687, %c0_688] : memref<80x256xf32, #tpu.memory_space<vmem>>, vector<8x256xf32>
    tpu.vector_store %arg9[%c8_687, %c0_688], %586 {strides = array<i32>} : memref<80x256xf32, #tpu.memory_space<vmem>>, vector<8x256xf32>,
    %c15_i32_689 = arith.constant 15 : i32
    %588 = tpu.dynamic_rotate %577 by %c15_i32_689 dim 1 : vector<8x256xf32>, i32 -> vector<8x256xf32>
    %c2_690 = arith.constant 2 : index
    %c0_691 = arith.constant 0 : index
    %c0_692 = arith.constant 0 : index
    %589 = vector.load %arg2[%c2_690, %c0_691, %c0_692] : memref<9x8x256xf32, #tpu.memory_space<vmem>>, vector<1x8x256xf32>
    %590 = vector.shape_cast %589 : vector<1x8x256xf32> to vector<8x256xf32>
    %591 = arith.mulf %588, %590 : vector<8x256xf32>
    %c16_693 = arith.constant 16 : index
    %c0_694 = arith.constant 0 : index
    %592 = vector.load %arg9[%c16_693, %c0_694] : memref<80x256xf32, #tpu.memory_space<vmem>>, vector<8x256xf32>
    tpu.vector_store %arg9[%c16_693, %c0_694], %591 {strides = array<i32>} : memref<80x256xf32, #tpu.memory_space<vmem>>, vector<8x256xf32>,
    %c1_i32_695 = arith.constant 1 : i32
    %593 = tpu.dynamic_rotate %577 by %c1_i32_695 dim 1 : vector<8x256xf32>, i32 -> vector<8x256xf32>
    %c3_696 = arith.constant 3 : index
    %c0_697 = arith.constant 0 : index
    %c0_698 = arith.constant 0 : index
    %594 = vector.load %arg2[%c3_696, %c0_697, %c0_698] : memref<9x8x256xf32, #tpu.memory_space<vmem>>, vector<1x8x256xf32>
    %595 = vector.shape_cast %594 : vector<1x8x256xf32> to vector<8x256xf32>
    %596 = arith.mulf %593, %595 : vector<8x256xf32>
    %c24_699 = arith.constant 24 : index
    %c0_700 = arith.constant 0 : index
    %597 = vector.load %arg9[%c24_699, %c0_700] : memref<80x256xf32, #tpu.memory_space<vmem>>, vector<8x256xf32>
    tpu.vector_store %arg9[%c24_699, %c0_700], %596 {strides = array<i32>} : memref<80x256xf32, #tpu.memory_space<vmem>>, vector<8x256xf32>,
    %c32_701 = arith.constant 32 : index
    %c0_702 = arith.constant 0 : index
    %598 = vector.load %arg9[%c32_701, %c0_702] : memref<80x256xf32, #tpu.memory_space<vmem>>, vector<8x256xf32>
    tpu.vector_store %arg9[%c32_701, %c0_702], %577 {strides = array<i32>} : memref<80x256xf32, #tpu.memory_space<vmem>>, vector<8x256xf32>,
    %c255_i32_703 = arith.constant 255 : i32
    %599 = tpu.dynamic_rotate %577 by %c255_i32_703 dim 1 : vector<8x256xf32>, i32 -> vector<8x256xf32>
    %c5_704 = arith.constant 5 : index
    %c0_705 = arith.constant 0 : index
    %c0_706 = arith.constant 0 : index
    %600 = vector.load %arg2[%c5_704, %c0_705, %c0_706] : memref<9x8x256xf32, #tpu.memory_space<vmem>>, vector<1x8x256xf32>
    %601 = vector.shape_cast %600 : vector<1x8x256xf32> to vector<8x256xf32>
    %602 = arith.mulf %599, %601 : vector<8x256xf32>
    %c40_707 = arith.constant 40 : index
    %c0_708 = arith.constant 0 : index
    %603 = vector.load %arg9[%c40_707, %c0_708] : memref<80x256xf32, #tpu.memory_space<vmem>>, vector<8x256xf32>
    tpu.vector_store %arg9[%c40_707, %c0_708], %602 {strides = array<i32>} : memref<80x256xf32, #tpu.memory_space<vmem>>, vector<8x256xf32>,
    %c241_i32_709 = arith.constant 241 : i32
    %604 = tpu.dynamic_rotate %577 by %c241_i32_709 dim 1 : vector<8x256xf32>, i32 -> vector<8x256xf32>
    %c6_710 = arith.constant 6 : index
    %c0_711 = arith.constant 0 : index
    %c0_712 = arith.constant 0 : index
    %605 = vector.load %arg2[%c6_710, %c0_711, %c0_712] : memref<9x8x256xf32, #tpu.memory_space<vmem>>, vector<1x8x256xf32>
    %606 = vector.shape_cast %605 : vector<1x8x256xf32> to vector<8x256xf32>
    %607 = arith.mulf %604, %606 : vector<8x256xf32>
    %c48_713 = arith.constant 48 : index
    %c0_714 = arith.constant 0 : index
    %608 = vector.load %arg9[%c48_713, %c0_714] : memref<80x256xf32, #tpu.memory_space<vmem>>, vector<8x256xf32>
    tpu.vector_store %arg9[%c48_713, %c0_714], %607 {strides = array<i32>} : memref<80x256xf32, #tpu.memory_space<vmem>>, vector<8x256xf32>,
    %c240_i32_715 = arith.constant 240 : i32
    %609 = tpu.dynamic_rotate %577 by %c240_i32_715 dim 1 : vector<8x256xf32>, i32 -> vector<8x256xf32>
    %c7_716 = arith.constant 7 : index
    %c0_717 = arith.constant 0 : index
    %c0_718 = arith.constant 0 : index
    %610 = vector.load %arg2[%c7_716, %c0_717, %c0_718] : memref<9x8x256xf32, #tpu.memory_space<vmem>>, vector<1x8x256xf32>
    %611 = vector.shape_cast %610 : vector<1x8x256xf32> to vector<8x256xf32>
    %612 = arith.mulf %609, %611 : vector<8x256xf32>
    %c56_719 = arith.constant 56 : index
    %c0_720 = arith.constant 0 : index
    %613 = vector.load %arg9[%c56_719, %c0_720] : memref<80x256xf32, #tpu.memory_space<vmem>>, vector<8x256xf32>
    tpu.vector_store %arg9[%c56_719, %c0_720], %612 {strides = array<i32>} : memref<80x256xf32, #tpu.memory_space<vmem>>, vector<8x256xf32>,
    %c239_i32_721 = arith.constant 239 : i32
    %614 = tpu.dynamic_rotate %577 by %c239_i32_721 dim 1 : vector<8x256xf32>, i32 -> vector<8x256xf32>
    %c8_722 = arith.constant 8 : index
    %c0_723 = arith.constant 0 : index
    %c0_724 = arith.constant 0 : index
    %615 = vector.load %arg2[%c8_722, %c0_723, %c0_724] : memref<9x8x256xf32, #tpu.memory_space<vmem>>, vector<1x8x256xf32>
    %616 = vector.shape_cast %615 : vector<1x8x256xf32> to vector<8x256xf32>
    %617 = arith.mulf %614, %616 : vector<8x256xf32>
    %c64_725 = arith.constant 64 : index
    %c0_726 = arith.constant 0 : index
    %618 = vector.load %arg9[%c64_725, %c0_726] : memref<80x256xf32, #tpu.memory_space<vmem>>, vector<8x256xf32>
    tpu.vector_store %arg9[%c64_725, %c0_726], %617 {strides = array<i32>} : memref<80x256xf32, #tpu.memory_space<vmem>>, vector<8x256xf32>,
    %c0_727 = arith.constant 0 : index
    %c11 = arith.constant 11 : index
    %c0_728 = arith.constant 0 : index
    %c0_729 = arith.constant 0 : index
    %619 = vector.load %arg4[%c0_727, %c11, %c0_728, %c0_729] : memref<1x20x8x80xf32, #tpu.memory_space<vmem>>, vector<1x1x8x80xf32>
    %620 = vector.shape_cast %619 : vector<1x1x8x80xf32> to vector<8x80xf32>
    %c0_730 = arith.constant 0 : index
    %c0_731 = arith.constant 0 : index
    %621 = vector.load %arg9[%c0_730, %c0_731] : memref<80x256xf32, #tpu.memory_space<vmem>>, vector<80x256xf32>
    %cst_732 = arith.constant dense<0.000000e+00> : vector<8x256xf32>
    %622 = tpu.matmul %620, %621, %cst_732 {dimension_numbers = #tpu.dot_dimension_numbers<[1], [0], [0], [1], [0, 0, 1, 1], [], []>} : vector<8x80xf32>, vector<80x256xf32>, vector<8x256xf32> -> vector<8x256xf32>
    %cst_733 = arith.constant 0.000000e+00 : f32
    %623 = vector.broadcast %cst_733 : f32 to vector<8x256xf32>
    %624 = arith.maximumf %622, %623 : vector<8x256xf32>
    %c17_i32_734 = arith.constant 17 : i32
    %625 = tpu.dynamic_rotate %624 by %c17_i32_734 dim 1 : vector<8x256xf32>, i32 -> vector<8x256xf32>
    %c0_735 = arith.constant 0 : index
    %c0_736 = arith.constant 0 : index
    %c0_737 = arith.constant 0 : index
    %626 = vector.load %arg2[%c0_735, %c0_736, %c0_737] : memref<9x8x256xf32, #tpu.memory_space<vmem>>, vector<1x8x256xf32>
    %627 = vector.shape_cast %626 : vector<1x8x256xf32> to vector<8x256xf32>
    %628 = arith.mulf %625, %627 : vector<8x256xf32>
    %c0_738 = arith.constant 0 : index
    %c0_739 = arith.constant 0 : index
    %629 = vector.load %arg9[%c0_738, %c0_739] : memref<80x256xf32, #tpu.memory_space<vmem>>, vector<8x256xf32>
    tpu.vector_store %arg9[%c0_738, %c0_739], %628 {strides = array<i32>} : memref<80x256xf32, #tpu.memory_space<vmem>>, vector<8x256xf32>,
    %c16_i32_740 = arith.constant 16 : i32
    %630 = tpu.dynamic_rotate %624 by %c16_i32_740 dim 1 : vector<8x256xf32>, i32 -> vector<8x256xf32>
    %c1_741 = arith.constant 1 : index
    %c0_742 = arith.constant 0 : index
    %c0_743 = arith.constant 0 : index
    %631 = vector.load %arg2[%c1_741, %c0_742, %c0_743] : memref<9x8x256xf32, #tpu.memory_space<vmem>>, vector<1x8x256xf32>
    %632 = vector.shape_cast %631 : vector<1x8x256xf32> to vector<8x256xf32>
    %633 = arith.mulf %630, %632 : vector<8x256xf32>
    %c8_744 = arith.constant 8 : index
    %c0_745 = arith.constant 0 : index
    %634 = vector.load %arg9[%c8_744, %c0_745] : memref<80x256xf32, #tpu.memory_space<vmem>>, vector<8x256xf32>
    tpu.vector_store %arg9[%c8_744, %c0_745], %633 {strides = array<i32>} : memref<80x256xf32, #tpu.memory_space<vmem>>, vector<8x256xf32>,
    %c15_i32_746 = arith.constant 15 : i32
    %635 = tpu.dynamic_rotate %624 by %c15_i32_746 dim 1 : vector<8x256xf32>, i32 -> vector<8x256xf32>
    %c2_747 = arith.constant 2 : index
    %c0_748 = arith.constant 0 : index
    %c0_749 = arith.constant 0 : index
    %636 = vector.load %arg2[%c2_747, %c0_748, %c0_749] : memref<9x8x256xf32, #tpu.memory_space<vmem>>, vector<1x8x256xf32>
    %637 = vector.shape_cast %636 : vector<1x8x256xf32> to vector<8x256xf32>
    %638 = arith.mulf %635, %637 : vector<8x256xf32>
    %c16_750 = arith.constant 16 : index
    %c0_751 = arith.constant 0 : index
    %639 = vector.load %arg9[%c16_750, %c0_751] : memref<80x256xf32, #tpu.memory_space<vmem>>, vector<8x256xf32>
    tpu.vector_store %arg9[%c16_750, %c0_751], %638 {strides = array<i32>} : memref<80x256xf32, #tpu.memory_space<vmem>>, vector<8x256xf32>,
    %c1_i32_752 = arith.constant 1 : i32
    %640 = tpu.dynamic_rotate %624 by %c1_i32_752 dim 1 : vector<8x256xf32>, i32 -> vector<8x256xf32>
    %c3_753 = arith.constant 3 : index
    %c0_754 = arith.constant 0 : index
    %c0_755 = arith.constant 0 : index
    %641 = vector.load %arg2[%c3_753, %c0_754, %c0_755] : memref<9x8x256xf32, #tpu.memory_space<vmem>>, vector<1x8x256xf32>
    %642 = vector.shape_cast %641 : vector<1x8x256xf32> to vector<8x256xf32>
    %643 = arith.mulf %640, %642 : vector<8x256xf32>
    %c24_756 = arith.constant 24 : index
    %c0_757 = arith.constant 0 : index
    %644 = vector.load %arg9[%c24_756, %c0_757] : memref<80x256xf32, #tpu.memory_space<vmem>>, vector<8x256xf32>
    tpu.vector_store %arg9[%c24_756, %c0_757], %643 {strides = array<i32>} : memref<80x256xf32, #tpu.memory_space<vmem>>, vector<8x256xf32>,
    %c32_758 = arith.constant 32 : index
    %c0_759 = arith.constant 0 : index
    %645 = vector.load %arg9[%c32_758, %c0_759] : memref<80x256xf32, #tpu.memory_space<vmem>>, vector<8x256xf32>
    tpu.vector_store %arg9[%c32_758, %c0_759], %624 {strides = array<i32>} : memref<80x256xf32, #tpu.memory_space<vmem>>, vector<8x256xf32>,
    %c255_i32_760 = arith.constant 255 : i32
    %646 = tpu.dynamic_rotate %624 by %c255_i32_760 dim 1 : vector<8x256xf32>, i32 -> vector<8x256xf32>
    %c5_761 = arith.constant 5 : index
    %c0_762 = arith.constant 0 : index
    %c0_763 = arith.constant 0 : index
    %647 = vector.load %arg2[%c5_761, %c0_762, %c0_763] : memref<9x8x256xf32, #tpu.memory_space<vmem>>, vector<1x8x256xf32>
    %648 = vector.shape_cast %647 : vector<1x8x256xf32> to vector<8x256xf32>
    %649 = arith.mulf %646, %648 : vector<8x256xf32>
    %c40_764 = arith.constant 40 : index
    %c0_765 = arith.constant 0 : index
    %650 = vector.load %arg9[%c40_764, %c0_765] : memref<80x256xf32, #tpu.memory_space<vmem>>, vector<8x256xf32>
    tpu.vector_store %arg9[%c40_764, %c0_765], %649 {strides = array<i32>} : memref<80x256xf32, #tpu.memory_space<vmem>>, vector<8x256xf32>,
    %c241_i32_766 = arith.constant 241 : i32
    %651 = tpu.dynamic_rotate %624 by %c241_i32_766 dim 1 : vector<8x256xf32>, i32 -> vector<8x256xf32>
    %c6_767 = arith.constant 6 : index
    %c0_768 = arith.constant 0 : index
    %c0_769 = arith.constant 0 : index
    %652 = vector.load %arg2[%c6_767, %c0_768, %c0_769] : memref<9x8x256xf32, #tpu.memory_space<vmem>>, vector<1x8x256xf32>
    %653 = vector.shape_cast %652 : vector<1x8x256xf32> to vector<8x256xf32>
    %654 = arith.mulf %651, %653 : vector<8x256xf32>
    %c48_770 = arith.constant 48 : index
    %c0_771 = arith.constant 0 : index
    %655 = vector.load %arg9[%c48_770, %c0_771] : memref<80x256xf32, #tpu.memory_space<vmem>>, vector<8x256xf32>
    tpu.vector_store %arg9[%c48_770, %c0_771], %654 {strides = array<i32>} : memref<80x256xf32, #tpu.memory_space<vmem>>, vector<8x256xf32>,
    %c240_i32_772 = arith.constant 240 : i32
    %656 = tpu.dynamic_rotate %624 by %c240_i32_772 dim 1 : vector<8x256xf32>, i32 -> vector<8x256xf32>
    %c7_773 = arith.constant 7 : index
    %c0_774 = arith.constant 0 : index
    %c0_775 = arith.constant 0 : index
    %657 = vector.load %arg2[%c7_773, %c0_774, %c0_775] : memref<9x8x256xf32, #tpu.memory_space<vmem>>, vector<1x8x256xf32>
    %658 = vector.shape_cast %657 : vector<1x8x256xf32> to vector<8x256xf32>
    %659 = arith.mulf %656, %658 : vector<8x256xf32>
    %c56_776 = arith.constant 56 : index
    %c0_777 = arith.constant 0 : index
    %660 = vector.load %arg9[%c56_776, %c0_777] : memref<80x256xf32, #tpu.memory_space<vmem>>, vector<8x256xf32>
    tpu.vector_store %arg9[%c56_776, %c0_777], %659 {strides = array<i32>} : memref<80x256xf32, #tpu.memory_space<vmem>>, vector<8x256xf32>,
    %c239_i32_778 = arith.constant 239 : i32
    %661 = tpu.dynamic_rotate %624 by %c239_i32_778 dim 1 : vector<8x256xf32>, i32 -> vector<8x256xf32>
    %c8_779 = arith.constant 8 : index
    %c0_780 = arith.constant 0 : index
    %c0_781 = arith.constant 0 : index
    %662 = vector.load %arg2[%c8_779, %c0_780, %c0_781] : memref<9x8x256xf32, #tpu.memory_space<vmem>>, vector<1x8x256xf32>
    %663 = vector.shape_cast %662 : vector<1x8x256xf32> to vector<8x256xf32>
    %664 = arith.mulf %661, %663 : vector<8x256xf32>
    %c64_782 = arith.constant 64 : index
    %c0_783 = arith.constant 0 : index
    %665 = vector.load %arg9[%c64_782, %c0_783] : memref<80x256xf32, #tpu.memory_space<vmem>>, vector<8x256xf32>
    tpu.vector_store %arg9[%c64_782, %c0_783], %664 {strides = array<i32>} : memref<80x256xf32, #tpu.memory_space<vmem>>, vector<8x256xf32>,
    %c0_784 = arith.constant 0 : index
    %c12 = arith.constant 12 : index
    %c0_785 = arith.constant 0 : index
    %c0_786 = arith.constant 0 : index
    %666 = vector.load %arg4[%c0_784, %c12, %c0_785, %c0_786] : memref<1x20x8x80xf32, #tpu.memory_space<vmem>>, vector<1x1x8x80xf32>
    %667 = vector.shape_cast %666 : vector<1x1x8x80xf32> to vector<8x80xf32>
    %c0_787 = arith.constant 0 : index
    %c0_788 = arith.constant 0 : index
    %668 = vector.load %arg9[%c0_787, %c0_788] : memref<80x256xf32, #tpu.memory_space<vmem>>, vector<80x256xf32>
    %cst_789 = arith.constant dense<0.000000e+00> : vector<8x256xf32>
    %669 = tpu.matmul %667, %668, %cst_789 {dimension_numbers = #tpu.dot_dimension_numbers<[1], [0], [0], [1], [0, 0, 1, 1], [], []>} : vector<8x80xf32>, vector<80x256xf32>, vector<8x256xf32> -> vector<8x256xf32>
    %cst_790 = arith.constant 0.000000e+00 : f32
    %670 = vector.broadcast %cst_790 : f32 to vector<8x256xf32>
    %671 = arith.maximumf %669, %670 : vector<8x256xf32>
    %c0_791 = arith.constant 0 : index
    %c2_792 = arith.constant 2 : index
    %c0_793 = arith.constant 0 : index
    %c0_794 = arith.constant 0 : index
    %672 = vector.load %arg5[%c0_791, %c2_792, %c0_793, %c0_794] : memref<1x3x8x152xf32, #tpu.memory_space<vmem>>, vector<1x1x8x152xf32>
    %673 = vector.shape_cast %672 : vector<1x1x8x152xf32> to vector<8x152xf32>
    %c0_795 = arith.constant 0 : index
    %c0_796 = arith.constant 0 : index
    %674 = vector.load %arg10[%c0_795, %c0_796] : memref<152x256xf32, #tpu.memory_space<vmem>>, vector<152x256xf32>
    %cst_797 = arith.constant dense<0.000000e+00> : vector<8x256xf32>
    %675 = tpu.matmul %673, %674, %cst_797 {dimension_numbers = #tpu.dot_dimension_numbers<[1], [0], [0], [1], [0, 0, 1, 1], [], []>} : vector<8x152xf32>, vector<152x256xf32>, vector<8x256xf32> -> vector<8x256xf32>
    %c17_i32_798 = arith.constant 17 : i32
    %676 = tpu.dynamic_rotate %671 by %c17_i32_798 dim 1 : vector<8x256xf32>, i32 -> vector<8x256xf32>
    %c0_799 = arith.constant 0 : index
    %c0_800 = arith.constant 0 : index
    %c0_801 = arith.constant 0 : index
    %677 = vector.load %arg2[%c0_799, %c0_800, %c0_801] : memref<9x8x256xf32, #tpu.memory_space<vmem>>, vector<1x8x256xf32>
    %678 = vector.shape_cast %677 : vector<1x8x256xf32> to vector<8x256xf32>
    %679 = arith.mulf %676, %678 : vector<8x256xf32>
    %c0_802 = arith.constant 0 : index
    %c0_803 = arith.constant 0 : index
    %680 = vector.load %arg9[%c0_802, %c0_803] : memref<80x256xf32, #tpu.memory_space<vmem>>, vector<8x256xf32>
    tpu.vector_store %arg9[%c0_802, %c0_803], %679 {strides = array<i32>} : memref<80x256xf32, #tpu.memory_space<vmem>>, vector<8x256xf32>,
    %c16_i32_804 = arith.constant 16 : i32
    %681 = tpu.dynamic_rotate %671 by %c16_i32_804 dim 1 : vector<8x256xf32>, i32 -> vector<8x256xf32>
    %c1_805 = arith.constant 1 : index
    %c0_806 = arith.constant 0 : index
    %c0_807 = arith.constant 0 : index
    %682 = vector.load %arg2[%c1_805, %c0_806, %c0_807] : memref<9x8x256xf32, #tpu.memory_space<vmem>>, vector<1x8x256xf32>
    %683 = vector.shape_cast %682 : vector<1x8x256xf32> to vector<8x256xf32>
    %684 = arith.mulf %681, %683 : vector<8x256xf32>
    %c8_808 = arith.constant 8 : index
    %c0_809 = arith.constant 0 : index
    %685 = vector.load %arg9[%c8_808, %c0_809] : memref<80x256xf32, #tpu.memory_space<vmem>>, vector<8x256xf32>
    tpu.vector_store %arg9[%c8_808, %c0_809], %684 {strides = array<i32>} : memref<80x256xf32, #tpu.memory_space<vmem>>, vector<8x256xf32>,
    %c15_i32_810 = arith.constant 15 : i32
    %686 = tpu.dynamic_rotate %671 by %c15_i32_810 dim 1 : vector<8x256xf32>, i32 -> vector<8x256xf32>
    %c2_811 = arith.constant 2 : index
    %c0_812 = arith.constant 0 : index
    %c0_813 = arith.constant 0 : index
    %687 = vector.load %arg2[%c2_811, %c0_812, %c0_813] : memref<9x8x256xf32, #tpu.memory_space<vmem>>, vector<1x8x256xf32>
    %688 = vector.shape_cast %687 : vector<1x8x256xf32> to vector<8x256xf32>
    %689 = arith.mulf %686, %688 : vector<8x256xf32>
    %c16_814 = arith.constant 16 : index
    %c0_815 = arith.constant 0 : index
    %690 = vector.load %arg9[%c16_814, %c0_815] : memref<80x256xf32, #tpu.memory_space<vmem>>, vector<8x256xf32>
    tpu.vector_store %arg9[%c16_814, %c0_815], %689 {strides = array<i32>} : memref<80x256xf32, #tpu.memory_space<vmem>>, vector<8x256xf32>,
    %c1_i32_816 = arith.constant 1 : i32
    %691 = tpu.dynamic_rotate %671 by %c1_i32_816 dim 1 : vector<8x256xf32>, i32 -> vector<8x256xf32>
    %c3_817 = arith.constant 3 : index
    %c0_818 = arith.constant 0 : index
    %c0_819 = arith.constant 0 : index
    %692 = vector.load %arg2[%c3_817, %c0_818, %c0_819] : memref<9x8x256xf32, #tpu.memory_space<vmem>>, vector<1x8x256xf32>
    %693 = vector.shape_cast %692 : vector<1x8x256xf32> to vector<8x256xf32>
    %694 = arith.mulf %691, %693 : vector<8x256xf32>
    %c24_820 = arith.constant 24 : index
    %c0_821 = arith.constant 0 : index
    %695 = vector.load %arg9[%c24_820, %c0_821] : memref<80x256xf32, #tpu.memory_space<vmem>>, vector<8x256xf32>
    tpu.vector_store %arg9[%c24_820, %c0_821], %694 {strides = array<i32>} : memref<80x256xf32, #tpu.memory_space<vmem>>, vector<8x256xf32>,
    %c32_822 = arith.constant 32 : index
    %c0_823 = arith.constant 0 : index
    %696 = vector.load %arg9[%c32_822, %c0_823] : memref<80x256xf32, #tpu.memory_space<vmem>>, vector<8x256xf32>
    tpu.vector_store %arg9[%c32_822, %c0_823], %671 {strides = array<i32>} : memref<80x256xf32, #tpu.memory_space<vmem>>, vector<8x256xf32>,
    %c255_i32_824 = arith.constant 255 : i32
    %697 = tpu.dynamic_rotate %671 by %c255_i32_824 dim 1 : vector<8x256xf32>, i32 -> vector<8x256xf32>
    %c5_825 = arith.constant 5 : index
    %c0_826 = arith.constant 0 : index
    %c0_827 = arith.constant 0 : index
    %698 = vector.load %arg2[%c5_825, %c0_826, %c0_827] : memref<9x8x256xf32, #tpu.memory_space<vmem>>, vector<1x8x256xf32>
    %699 = vector.shape_cast %698 : vector<1x8x256xf32> to vector<8x256xf32>
    %700 = arith.mulf %697, %699 : vector<8x256xf32>
    %c40_828 = arith.constant 40 : index
    %c0_829 = arith.constant 0 : index
    %701 = vector.load %arg9[%c40_828, %c0_829] : memref<80x256xf32, #tpu.memory_space<vmem>>, vector<8x256xf32>
    tpu.vector_store %arg9[%c40_828, %c0_829], %700 {strides = array<i32>} : memref<80x256xf32, #tpu.memory_space<vmem>>, vector<8x256xf32>,
    %c241_i32_830 = arith.constant 241 : i32
    %702 = tpu.dynamic_rotate %671 by %c241_i32_830 dim 1 : vector<8x256xf32>, i32 -> vector<8x256xf32>
    %c6_831 = arith.constant 6 : index
    %c0_832 = arith.constant 0 : index
    %c0_833 = arith.constant 0 : index
    %703 = vector.load %arg2[%c6_831, %c0_832, %c0_833] : memref<9x8x256xf32, #tpu.memory_space<vmem>>, vector<1x8x256xf32>
    %704 = vector.shape_cast %703 : vector<1x8x256xf32> to vector<8x256xf32>
    %705 = arith.mulf %702, %704 : vector<8x256xf32>
    %c48_834 = arith.constant 48 : index
    %c0_835 = arith.constant 0 : index
    %706 = vector.load %arg9[%c48_834, %c0_835] : memref<80x256xf32, #tpu.memory_space<vmem>>, vector<8x256xf32>
    tpu.vector_store %arg9[%c48_834, %c0_835], %705 {strides = array<i32>} : memref<80x256xf32, #tpu.memory_space<vmem>>, vector<8x256xf32>,
    %c240_i32_836 = arith.constant 240 : i32
    %707 = tpu.dynamic_rotate %671 by %c240_i32_836 dim 1 : vector<8x256xf32>, i32 -> vector<8x256xf32>
    %c7_837 = arith.constant 7 : index
    %c0_838 = arith.constant 0 : index
    %c0_839 = arith.constant 0 : index
    %708 = vector.load %arg2[%c7_837, %c0_838, %c0_839] : memref<9x8x256xf32, #tpu.memory_space<vmem>>, vector<1x8x256xf32>
    %709 = vector.shape_cast %708 : vector<1x8x256xf32> to vector<8x256xf32>
    %710 = arith.mulf %707, %709 : vector<8x256xf32>
    %c56_840 = arith.constant 56 : index
    %c0_841 = arith.constant 0 : index
    %711 = vector.load %arg9[%c56_840, %c0_841] : memref<80x256xf32, #tpu.memory_space<vmem>>, vector<8x256xf32>
    tpu.vector_store %arg9[%c56_840, %c0_841], %710 {strides = array<i32>} : memref<80x256xf32, #tpu.memory_space<vmem>>, vector<8x256xf32>,
    %c239_i32_842 = arith.constant 239 : i32
    %712 = tpu.dynamic_rotate %671 by %c239_i32_842 dim 1 : vector<8x256xf32>, i32 -> vector<8x256xf32>
    %c8_843 = arith.constant 8 : index
    %c0_844 = arith.constant 0 : index
    %c0_845 = arith.constant 0 : index
    %713 = vector.load %arg2[%c8_843, %c0_844, %c0_845] : memref<9x8x256xf32, #tpu.memory_space<vmem>>, vector<1x8x256xf32>
    %714 = vector.shape_cast %713 : vector<1x8x256xf32> to vector<8x256xf32>
    %715 = arith.mulf %712, %714 : vector<8x256xf32>
    %c64_846 = arith.constant 64 : index
    %c0_847 = arith.constant 0 : index
    %716 = vector.load %arg9[%c64_846, %c0_847] : memref<80x256xf32, #tpu.memory_space<vmem>>, vector<8x256xf32>
    tpu.vector_store %arg9[%c64_846, %c0_847], %715 {strides = array<i32>} : memref<80x256xf32, #tpu.memory_space<vmem>>, vector<8x256xf32>,
    %c0_848 = arith.constant 0 : index
    %c13 = arith.constant 13 : index
    %c0_849 = arith.constant 0 : index
    %c0_850 = arith.constant 0 : index
    %717 = vector.load %arg4[%c0_848, %c13, %c0_849, %c0_850] : memref<1x20x8x80xf32, #tpu.memory_space<vmem>>, vector<1x1x8x80xf32>
    %718 = vector.shape_cast %717 : vector<1x1x8x80xf32> to vector<8x80xf32>
    %c0_851 = arith.constant 0 : index
    %c0_852 = arith.constant 0 : index
    %719 = vector.load %arg9[%c0_851, %c0_852] : memref<80x256xf32, #tpu.memory_space<vmem>>, vector<80x256xf32>
    %cst_853 = arith.constant dense<0.000000e+00> : vector<8x256xf32>
    %720 = tpu.matmul %718, %719, %cst_853 {dimension_numbers = #tpu.dot_dimension_numbers<[1], [0], [0], [1], [0, 0, 1, 1], [], []>} : vector<8x80xf32>, vector<80x256xf32>, vector<8x256xf32> -> vector<8x256xf32>
    %721 = arith.addf %675, %720 : vector<8x256xf32>
    %cst_854 = arith.constant 0.000000e+00 : f32
    %722 = vector.broadcast %cst_854 : f32 to vector<8x256xf32>
    %723 = arith.maximumf %721, %722 : vector<8x256xf32>
    %c17_i32_855 = arith.constant 17 : i32
    %724 = tpu.dynamic_rotate %723 by %c17_i32_855 dim 1 : vector<8x256xf32>, i32 -> vector<8x256xf32>
    %c0_856 = arith.constant 0 : index
    %c0_857 = arith.constant 0 : index
    %c0_858 = arith.constant 0 : index
    %725 = vector.load %arg2[%c0_856, %c0_857, %c0_858] : memref<9x8x256xf32, #tpu.memory_space<vmem>>, vector<1x8x256xf32>
    %726 = vector.shape_cast %725 : vector<1x8x256xf32> to vector<8x256xf32>
    %727 = arith.mulf %724, %726 : vector<8x256xf32>
    %c0_859 = arith.constant 0 : index
    %c0_860 = arith.constant 0 : index
    %728 = vector.load %arg9[%c0_859, %c0_860] : memref<80x256xf32, #tpu.memory_space<vmem>>, vector<8x256xf32>
    tpu.vector_store %arg9[%c0_859, %c0_860], %727 {strides = array<i32>} : memref<80x256xf32, #tpu.memory_space<vmem>>, vector<8x256xf32>,
    %c16_i32_861 = arith.constant 16 : i32
    %729 = tpu.dynamic_rotate %723 by %c16_i32_861 dim 1 : vector<8x256xf32>, i32 -> vector<8x256xf32>
    %c1_862 = arith.constant 1 : index
    %c0_863 = arith.constant 0 : index
    %c0_864 = arith.constant 0 : index
    %730 = vector.load %arg2[%c1_862, %c0_863, %c0_864] : memref<9x8x256xf32, #tpu.memory_space<vmem>>, vector<1x8x256xf32>
    %731 = vector.shape_cast %730 : vector<1x8x256xf32> to vector<8x256xf32>
    %732 = arith.mulf %729, %731 : vector<8x256xf32>
    %c8_865 = arith.constant 8 : index
    %c0_866 = arith.constant 0 : index
    %733 = vector.load %arg9[%c8_865, %c0_866] : memref<80x256xf32, #tpu.memory_space<vmem>>, vector<8x256xf32>
    tpu.vector_store %arg9[%c8_865, %c0_866], %732 {strides = array<i32>} : memref<80x256xf32, #tpu.memory_space<vmem>>, vector<8x256xf32>,
    %c15_i32_867 = arith.constant 15 : i32
    %734 = tpu.dynamic_rotate %723 by %c15_i32_867 dim 1 : vector<8x256xf32>, i32 -> vector<8x256xf32>
    %c2_868 = arith.constant 2 : index
    %c0_869 = arith.constant 0 : index
    %c0_870 = arith.constant 0 : index
    %735 = vector.load %arg2[%c2_868, %c0_869, %c0_870] : memref<9x8x256xf32, #tpu.memory_space<vmem>>, vector<1x8x256xf32>
    %736 = vector.shape_cast %735 : vector<1x8x256xf32> to vector<8x256xf32>
    %737 = arith.mulf %734, %736 : vector<8x256xf32>
    %c16_871 = arith.constant 16 : index
    %c0_872 = arith.constant 0 : index
    %738 = vector.load %arg9[%c16_871, %c0_872] : memref<80x256xf32, #tpu.memory_space<vmem>>, vector<8x256xf32>
    tpu.vector_store %arg9[%c16_871, %c0_872], %737 {strides = array<i32>} : memref<80x256xf32, #tpu.memory_space<vmem>>, vector<8x256xf32>,
    %c1_i32_873 = arith.constant 1 : i32
    %739 = tpu.dynamic_rotate %723 by %c1_i32_873 dim 1 : vector<8x256xf32>, i32 -> vector<8x256xf32>
    %c3_874 = arith.constant 3 : index
    %c0_875 = arith.constant 0 : index
    %c0_876 = arith.constant 0 : index
    %740 = vector.load %arg2[%c3_874, %c0_875, %c0_876] : memref<9x8x256xf32, #tpu.memory_space<vmem>>, vector<1x8x256xf32>
    %741 = vector.shape_cast %740 : vector<1x8x256xf32> to vector<8x256xf32>
    %742 = arith.mulf %739, %741 : vector<8x256xf32>
    %c24_877 = arith.constant 24 : index
    %c0_878 = arith.constant 0 : index
    %743 = vector.load %arg9[%c24_877, %c0_878] : memref<80x256xf32, #tpu.memory_space<vmem>>, vector<8x256xf32>
    tpu.vector_store %arg9[%c24_877, %c0_878], %742 {strides = array<i32>} : memref<80x256xf32, #tpu.memory_space<vmem>>, vector<8x256xf32>,
    %c32_879 = arith.constant 32 : index
    %c0_880 = arith.constant 0 : index
    %744 = vector.load %arg9[%c32_879, %c0_880] : memref<80x256xf32, #tpu.memory_space<vmem>>, vector<8x256xf32>
    tpu.vector_store %arg9[%c32_879, %c0_880], %723 {strides = array<i32>} : memref<80x256xf32, #tpu.memory_space<vmem>>, vector<8x256xf32>,
    %c255_i32_881 = arith.constant 255 : i32
    %745 = tpu.dynamic_rotate %723 by %c255_i32_881 dim 1 : vector<8x256xf32>, i32 -> vector<8x256xf32>
    %c5_882 = arith.constant 5 : index
    %c0_883 = arith.constant 0 : index
    %c0_884 = arith.constant 0 : index
    %746 = vector.load %arg2[%c5_882, %c0_883, %c0_884] : memref<9x8x256xf32, #tpu.memory_space<vmem>>, vector<1x8x256xf32>
    %747 = vector.shape_cast %746 : vector<1x8x256xf32> to vector<8x256xf32>
    %748 = arith.mulf %745, %747 : vector<8x256xf32>
    %c40_885 = arith.constant 40 : index
    %c0_886 = arith.constant 0 : index
    %749 = vector.load %arg9[%c40_885, %c0_886] : memref<80x256xf32, #tpu.memory_space<vmem>>, vector<8x256xf32>
    tpu.vector_store %arg9[%c40_885, %c0_886], %748 {strides = array<i32>} : memref<80x256xf32, #tpu.memory_space<vmem>>, vector<8x256xf32>,
    %c241_i32_887 = arith.constant 241 : i32
    %750 = tpu.dynamic_rotate %723 by %c241_i32_887 dim 1 : vector<8x256xf32>, i32 -> vector<8x256xf32>
    %c6_888 = arith.constant 6 : index
    %c0_889 = arith.constant 0 : index
    %c0_890 = arith.constant 0 : index
    %751 = vector.load %arg2[%c6_888, %c0_889, %c0_890] : memref<9x8x256xf32, #tpu.memory_space<vmem>>, vector<1x8x256xf32>
    %752 = vector.shape_cast %751 : vector<1x8x256xf32> to vector<8x256xf32>
    %753 = arith.mulf %750, %752 : vector<8x256xf32>
    %c48_891 = arith.constant 48 : index
    %c0_892 = arith.constant 0 : index
    %754 = vector.load %arg9[%c48_891, %c0_892] : memref<80x256xf32, #tpu.memory_space<vmem>>, vector<8x256xf32>
    tpu.vector_store %arg9[%c48_891, %c0_892], %753 {strides = array<i32>} : memref<80x256xf32, #tpu.memory_space<vmem>>, vector<8x256xf32>,
    %c240_i32_893 = arith.constant 240 : i32
    %755 = tpu.dynamic_rotate %723 by %c240_i32_893 dim 1 : vector<8x256xf32>, i32 -> vector<8x256xf32>
    %c7_894 = arith.constant 7 : index
    %c0_895 = arith.constant 0 : index
    %c0_896 = arith.constant 0 : index
    %756 = vector.load %arg2[%c7_894, %c0_895, %c0_896] : memref<9x8x256xf32, #tpu.memory_space<vmem>>, vector<1x8x256xf32>
    %757 = vector.shape_cast %756 : vector<1x8x256xf32> to vector<8x256xf32>
    %758 = arith.mulf %755, %757 : vector<8x256xf32>
    %c56_897 = arith.constant 56 : index
    %c0_898 = arith.constant 0 : index
    %759 = vector.load %arg9[%c56_897, %c0_898] : memref<80x256xf32, #tpu.memory_space<vmem>>, vector<8x256xf32>
    tpu.vector_store %arg9[%c56_897, %c0_898], %758 {strides = array<i32>} : memref<80x256xf32, #tpu.memory_space<vmem>>, vector<8x256xf32>,
    %c239_i32_899 = arith.constant 239 : i32
    %760 = tpu.dynamic_rotate %723 by %c239_i32_899 dim 1 : vector<8x256xf32>, i32 -> vector<8x256xf32>
    %c8_900 = arith.constant 8 : index
    %c0_901 = arith.constant 0 : index
    %c0_902 = arith.constant 0 : index
    %761 = vector.load %arg2[%c8_900, %c0_901, %c0_902] : memref<9x8x256xf32, #tpu.memory_space<vmem>>, vector<1x8x256xf32>
    %762 = vector.shape_cast %761 : vector<1x8x256xf32> to vector<8x256xf32>
    %763 = arith.mulf %760, %762 : vector<8x256xf32>
    %c64_903 = arith.constant 64 : index
    %c0_904 = arith.constant 0 : index
    %764 = vector.load %arg9[%c64_903, %c0_904] : memref<80x256xf32, #tpu.memory_space<vmem>>, vector<8x256xf32>
    tpu.vector_store %arg9[%c64_903, %c0_904], %763 {strides = array<i32>} : memref<80x256xf32, #tpu.memory_space<vmem>>, vector<8x256xf32>,
    %c0_905 = arith.constant 0 : index
    %c14 = arith.constant 14 : index
    %c0_906 = arith.constant 0 : index
    %c0_907 = arith.constant 0 : index
    %765 = vector.load %arg4[%c0_905, %c14, %c0_906, %c0_907] : memref<1x20x8x80xf32, #tpu.memory_space<vmem>>, vector<1x1x8x80xf32>
    %766 = vector.shape_cast %765 : vector<1x1x8x80xf32> to vector<8x80xf32>
    %c0_908 = arith.constant 0 : index
    %c0_909 = arith.constant 0 : index
    %767 = vector.load %arg9[%c0_908, %c0_909] : memref<80x256xf32, #tpu.memory_space<vmem>>, vector<80x256xf32>
    %cst_910 = arith.constant dense<0.000000e+00> : vector<8x256xf32>
    %768 = tpu.matmul %766, %767, %cst_910 {dimension_numbers = #tpu.dot_dimension_numbers<[1], [0], [0], [1], [0, 0, 1, 1], [], []>} : vector<8x80xf32>, vector<80x256xf32>, vector<8x256xf32> -> vector<8x256xf32>
    %cst_911 = arith.constant 0.000000e+00 : f32
    %769 = vector.broadcast %cst_911 : f32 to vector<8x256xf32>
    %770 = arith.maximumf %768, %769 : vector<8x256xf32>
    %c17_i32_912 = arith.constant 17 : i32
    %771 = tpu.dynamic_rotate %770 by %c17_i32_912 dim 1 : vector<8x256xf32>, i32 -> vector<8x256xf32>
    %c0_913 = arith.constant 0 : index
    %c0_914 = arith.constant 0 : index
    %c0_915 = arith.constant 0 : index
    %772 = vector.load %arg2[%c0_913, %c0_914, %c0_915] : memref<9x8x256xf32, #tpu.memory_space<vmem>>, vector<1x8x256xf32>
    %773 = vector.shape_cast %772 : vector<1x8x256xf32> to vector<8x256xf32>
    %774 = arith.mulf %771, %773 : vector<8x256xf32>
    %c0_916 = arith.constant 0 : index
    %c0_917 = arith.constant 0 : index
    %775 = vector.load %arg9[%c0_916, %c0_917] : memref<80x256xf32, #tpu.memory_space<vmem>>, vector<8x256xf32>
    tpu.vector_store %arg9[%c0_916, %c0_917], %774 {strides = array<i32>} : memref<80x256xf32, #tpu.memory_space<vmem>>, vector<8x256xf32>,
    %c16_i32_918 = arith.constant 16 : i32
    %776 = tpu.dynamic_rotate %770 by %c16_i32_918 dim 1 : vector<8x256xf32>, i32 -> vector<8x256xf32>
    %c1_919 = arith.constant 1 : index
    %c0_920 = arith.constant 0 : index
    %c0_921 = arith.constant 0 : index
    %777 = vector.load %arg2[%c1_919, %c0_920, %c0_921] : memref<9x8x256xf32, #tpu.memory_space<vmem>>, vector<1x8x256xf32>
    %778 = vector.shape_cast %777 : vector<1x8x256xf32> to vector<8x256xf32>
    %779 = arith.mulf %776, %778 : vector<8x256xf32>
    %c8_922 = arith.constant 8 : index
    %c0_923 = arith.constant 0 : index
    %780 = vector.load %arg9[%c8_922, %c0_923] : memref<80x256xf32, #tpu.memory_space<vmem>>, vector<8x256xf32>
    tpu.vector_store %arg9[%c8_922, %c0_923], %779 {strides = array<i32>} : memref<80x256xf32, #tpu.memory_space<vmem>>, vector<8x256xf32>,
    %c15_i32_924 = arith.constant 15 : i32
    %781 = tpu.dynamic_rotate %770 by %c15_i32_924 dim 1 : vector<8x256xf32>, i32 -> vector<8x256xf32>
    %c2_925 = arith.constant 2 : index
    %c0_926 = arith.constant 0 : index
    %c0_927 = arith.constant 0 : index
    %782 = vector.load %arg2[%c2_925, %c0_926, %c0_927] : memref<9x8x256xf32, #tpu.memory_space<vmem>>, vector<1x8x256xf32>
    %783 = vector.shape_cast %782 : vector<1x8x256xf32> to vector<8x256xf32>
    %784 = arith.mulf %781, %783 : vector<8x256xf32>
    %c16_928 = arith.constant 16 : index
    %c0_929 = arith.constant 0 : index
    %785 = vector.load %arg9[%c16_928, %c0_929] : memref<80x256xf32, #tpu.memory_space<vmem>>, vector<8x256xf32>
    tpu.vector_store %arg9[%c16_928, %c0_929], %784 {strides = array<i32>} : memref<80x256xf32, #tpu.memory_space<vmem>>, vector<8x256xf32>,
    %c1_i32_930 = arith.constant 1 : i32
    %786 = tpu.dynamic_rotate %770 by %c1_i32_930 dim 1 : vector<8x256xf32>, i32 -> vector<8x256xf32>
    %c3_931 = arith.constant 3 : index
    %c0_932 = arith.constant 0 : index
    %c0_933 = arith.constant 0 : index
    %787 = vector.load %arg2[%c3_931, %c0_932, %c0_933] : memref<9x8x256xf32, #tpu.memory_space<vmem>>, vector<1x8x256xf32>
    %788 = vector.shape_cast %787 : vector<1x8x256xf32> to vector<8x256xf32>
    %789 = arith.mulf %786, %788 : vector<8x256xf32>
    %c24_934 = arith.constant 24 : index
    %c0_935 = arith.constant 0 : index
    %790 = vector.load %arg9[%c24_934, %c0_935] : memref<80x256xf32, #tpu.memory_space<vmem>>, vector<8x256xf32>
    tpu.vector_store %arg9[%c24_934, %c0_935], %789 {strides = array<i32>} : memref<80x256xf32, #tpu.memory_space<vmem>>, vector<8x256xf32>,
    %c32_936 = arith.constant 32 : index
    %c0_937 = arith.constant 0 : index
    %791 = vector.load %arg9[%c32_936, %c0_937] : memref<80x256xf32, #tpu.memory_space<vmem>>, vector<8x256xf32>
    tpu.vector_store %arg9[%c32_936, %c0_937], %770 {strides = array<i32>} : memref<80x256xf32, #tpu.memory_space<vmem>>, vector<8x256xf32>,
    %c255_i32_938 = arith.constant 255 : i32
    %792 = tpu.dynamic_rotate %770 by %c255_i32_938 dim 1 : vector<8x256xf32>, i32 -> vector<8x256xf32>
    %c5_939 = arith.constant 5 : index
    %c0_940 = arith.constant 0 : index
    %c0_941 = arith.constant 0 : index
    %793 = vector.load %arg2[%c5_939, %c0_940, %c0_941] : memref<9x8x256xf32, #tpu.memory_space<vmem>>, vector<1x8x256xf32>
    %794 = vector.shape_cast %793 : vector<1x8x256xf32> to vector<8x256xf32>
    %795 = arith.mulf %792, %794 : vector<8x256xf32>
    %c40_942 = arith.constant 40 : index
    %c0_943 = arith.constant 0 : index
    %796 = vector.load %arg9[%c40_942, %c0_943] : memref<80x256xf32, #tpu.memory_space<vmem>>, vector<8x256xf32>
    tpu.vector_store %arg9[%c40_942, %c0_943], %795 {strides = array<i32>} : memref<80x256xf32, #tpu.memory_space<vmem>>, vector<8x256xf32>,
    %c241_i32_944 = arith.constant 241 : i32
    %797 = tpu.dynamic_rotate %770 by %c241_i32_944 dim 1 : vector<8x256xf32>, i32 -> vector<8x256xf32>
    %c6_945 = arith.constant 6 : index
    %c0_946 = arith.constant 0 : index
    %c0_947 = arith.constant 0 : index
    %798 = vector.load %arg2[%c6_945, %c0_946, %c0_947] : memref<9x8x256xf32, #tpu.memory_space<vmem>>, vector<1x8x256xf32>
    %799 = vector.shape_cast %798 : vector<1x8x256xf32> to vector<8x256xf32>
    %800 = arith.mulf %797, %799 : vector<8x256xf32>
    %c48_948 = arith.constant 48 : index
    %c0_949 = arith.constant 0 : index
    %801 = vector.load %arg9[%c48_948, %c0_949] : memref<80x256xf32, #tpu.memory_space<vmem>>, vector<8x256xf32>
    tpu.vector_store %arg9[%c48_948, %c0_949], %800 {strides = array<i32>} : memref<80x256xf32, #tpu.memory_space<vmem>>, vector<8x256xf32>,
    %c240_i32_950 = arith.constant 240 : i32
    %802 = tpu.dynamic_rotate %770 by %c240_i32_950 dim 1 : vector<8x256xf32>, i32 -> vector<8x256xf32>
    %c7_951 = arith.constant 7 : index
    %c0_952 = arith.constant 0 : index
    %c0_953 = arith.constant 0 : index
    %803 = vector.load %arg2[%c7_951, %c0_952, %c0_953] : memref<9x8x256xf32, #tpu.memory_space<vmem>>, vector<1x8x256xf32>
    %804 = vector.shape_cast %803 : vector<1x8x256xf32> to vector<8x256xf32>
    %805 = arith.mulf %802, %804 : vector<8x256xf32>
    %c56_954 = arith.constant 56 : index
    %c0_955 = arith.constant 0 : index
    %806 = vector.load %arg9[%c56_954, %c0_955] : memref<80x256xf32, #tpu.memory_space<vmem>>, vector<8x256xf32>
    tpu.vector_store %arg9[%c56_954, %c0_955], %805 {strides = array<i32>} : memref<80x256xf32, #tpu.memory_space<vmem>>, vector<8x256xf32>,
    %c239_i32_956 = arith.constant 239 : i32
    %807 = tpu.dynamic_rotate %770 by %c239_i32_956 dim 1 : vector<8x256xf32>, i32 -> vector<8x256xf32>
    %c8_957 = arith.constant 8 : index
    %c0_958 = arith.constant 0 : index
    %c0_959 = arith.constant 0 : index
    %808 = vector.load %arg2[%c8_957, %c0_958, %c0_959] : memref<9x8x256xf32, #tpu.memory_space<vmem>>, vector<1x8x256xf32>
    %809 = vector.shape_cast %808 : vector<1x8x256xf32> to vector<8x256xf32>
    %810 = arith.mulf %807, %809 : vector<8x256xf32>
    %c64_960 = arith.constant 64 : index
    %c0_961 = arith.constant 0 : index
    %811 = vector.load %arg9[%c64_960, %c0_961] : memref<80x256xf32, #tpu.memory_space<vmem>>, vector<8x256xf32>
    tpu.vector_store %arg9[%c64_960, %c0_961], %810 {strides = array<i32>} : memref<80x256xf32, #tpu.memory_space<vmem>>, vector<8x256xf32>,
    %c0_962 = arith.constant 0 : index
    %c15 = arith.constant 15 : index
    %c0_963 = arith.constant 0 : index
    %c0_964 = arith.constant 0 : index
    %812 = vector.load %arg4[%c0_962, %c15, %c0_963, %c0_964] : memref<1x20x8x80xf32, #tpu.memory_space<vmem>>, vector<1x1x8x80xf32>
    %813 = vector.shape_cast %812 : vector<1x1x8x80xf32> to vector<8x80xf32>
    %c0_965 = arith.constant 0 : index
    %c0_966 = arith.constant 0 : index
    %814 = vector.load %arg9[%c0_965, %c0_966] : memref<80x256xf32, #tpu.memory_space<vmem>>, vector<80x256xf32>
    %cst_967 = arith.constant dense<0.000000e+00> : vector<8x256xf32>
    %815 = tpu.matmul %813, %814, %cst_967 {dimension_numbers = #tpu.dot_dimension_numbers<[1], [0], [0], [1], [0, 0, 1, 1], [], []>} : vector<8x80xf32>, vector<80x256xf32>, vector<8x256xf32> -> vector<8x256xf32>
    %cst_968 = arith.constant 0.000000e+00 : f32
    %816 = vector.broadcast %cst_968 : f32 to vector<8x256xf32>
    %817 = arith.maximumf %815, %816 : vector<8x256xf32>
    %c17_i32_969 = arith.constant 17 : i32
    %818 = tpu.dynamic_rotate %817 by %c17_i32_969 dim 1 : vector<8x256xf32>, i32 -> vector<8x256xf32>
    %c0_970 = arith.constant 0 : index
    %c0_971 = arith.constant 0 : index
    %c0_972 = arith.constant 0 : index
    %819 = vector.load %arg2[%c0_970, %c0_971, %c0_972] : memref<9x8x256xf32, #tpu.memory_space<vmem>>, vector<1x8x256xf32>
    %820 = vector.shape_cast %819 : vector<1x8x256xf32> to vector<8x256xf32>
    %821 = arith.mulf %818, %820 : vector<8x256xf32>
    %c0_973 = arith.constant 0 : index
    %c0_974 = arith.constant 0 : index
    %822 = vector.load %arg9[%c0_973, %c0_974] : memref<80x256xf32, #tpu.memory_space<vmem>>, vector<8x256xf32>
    tpu.vector_store %arg9[%c0_973, %c0_974], %821 {strides = array<i32>} : memref<80x256xf32, #tpu.memory_space<vmem>>, vector<8x256xf32>,
    %c16_i32_975 = arith.constant 16 : i32
    %823 = tpu.dynamic_rotate %817 by %c16_i32_975 dim 1 : vector<8x256xf32>, i32 -> vector<8x256xf32>
    %c1_976 = arith.constant 1 : index
    %c0_977 = arith.constant 0 : index
    %c0_978 = arith.constant 0 : index
    %824 = vector.load %arg2[%c1_976, %c0_977, %c0_978] : memref<9x8x256xf32, #tpu.memory_space<vmem>>, vector<1x8x256xf32>
    %825 = vector.shape_cast %824 : vector<1x8x256xf32> to vector<8x256xf32>
    %826 = arith.mulf %823, %825 : vector<8x256xf32>
    %c8_979 = arith.constant 8 : index
    %c0_980 = arith.constant 0 : index
    %827 = vector.load %arg9[%c8_979, %c0_980] : memref<80x256xf32, #tpu.memory_space<vmem>>, vector<8x256xf32>
    tpu.vector_store %arg9[%c8_979, %c0_980], %826 {strides = array<i32>} : memref<80x256xf32, #tpu.memory_space<vmem>>, vector<8x256xf32>,
    %c15_i32_981 = arith.constant 15 : i32
    %828 = tpu.dynamic_rotate %817 by %c15_i32_981 dim 1 : vector<8x256xf32>, i32 -> vector<8x256xf32>
    %c2_982 = arith.constant 2 : index
    %c0_983 = arith.constant 0 : index
    %c0_984 = arith.constant 0 : index
    %829 = vector.load %arg2[%c2_982, %c0_983, %c0_984] : memref<9x8x256xf32, #tpu.memory_space<vmem>>, vector<1x8x256xf32>
    %830 = vector.shape_cast %829 : vector<1x8x256xf32> to vector<8x256xf32>
    %831 = arith.mulf %828, %830 : vector<8x256xf32>
    %c16_985 = arith.constant 16 : index
    %c0_986 = arith.constant 0 : index
    %832 = vector.load %arg9[%c16_985, %c0_986] : memref<80x256xf32, #tpu.memory_space<vmem>>, vector<8x256xf32>
    tpu.vector_store %arg9[%c16_985, %c0_986], %831 {strides = array<i32>} : memref<80x256xf32, #tpu.memory_space<vmem>>, vector<8x256xf32>,
    %c1_i32_987 = arith.constant 1 : i32
    %833 = tpu.dynamic_rotate %817 by %c1_i32_987 dim 1 : vector<8x256xf32>, i32 -> vector<8x256xf32>
    %c3_988 = arith.constant 3 : index
    %c0_989 = arith.constant 0 : index
    %c0_990 = arith.constant 0 : index
    %834 = vector.load %arg2[%c3_988, %c0_989, %c0_990] : memref<9x8x256xf32, #tpu.memory_space<vmem>>, vector<1x8x256xf32>
    %835 = vector.shape_cast %834 : vector<1x8x256xf32> to vector<8x256xf32>
    %836 = arith.mulf %833, %835 : vector<8x256xf32>
    %c24_991 = arith.constant 24 : index
    %c0_992 = arith.constant 0 : index
    %837 = vector.load %arg9[%c24_991, %c0_992] : memref<80x256xf32, #tpu.memory_space<vmem>>, vector<8x256xf32>
    tpu.vector_store %arg9[%c24_991, %c0_992], %836 {strides = array<i32>} : memref<80x256xf32, #tpu.memory_space<vmem>>, vector<8x256xf32>,
    %c32_993 = arith.constant 32 : index
    %c0_994 = arith.constant 0 : index
    %838 = vector.load %arg9[%c32_993, %c0_994] : memref<80x256xf32, #tpu.memory_space<vmem>>, vector<8x256xf32>
    tpu.vector_store %arg9[%c32_993, %c0_994], %817 {strides = array<i32>} : memref<80x256xf32, #tpu.memory_space<vmem>>, vector<8x256xf32>,
    %c255_i32_995 = arith.constant 255 : i32
    %839 = tpu.dynamic_rotate %817 by %c255_i32_995 dim 1 : vector<8x256xf32>, i32 -> vector<8x256xf32>
    %c5_996 = arith.constant 5 : index
    %c0_997 = arith.constant 0 : index
    %c0_998 = arith.constant 0 : index
    %840 = vector.load %arg2[%c5_996, %c0_997, %c0_998] : memref<9x8x256xf32, #tpu.memory_space<vmem>>, vector<1x8x256xf32>
    %841 = vector.shape_cast %840 : vector<1x8x256xf32> to vector<8x256xf32>
    %842 = arith.mulf %839, %841 : vector<8x256xf32>
    %c40_999 = arith.constant 40 : index
    %c0_1000 = arith.constant 0 : index
    %843 = vector.load %arg9[%c40_999, %c0_1000] : memref<80x256xf32, #tpu.memory_space<vmem>>, vector<8x256xf32>
    tpu.vector_store %arg9[%c40_999, %c0_1000], %842 {strides = array<i32>} : memref<80x256xf32, #tpu.memory_space<vmem>>, vector<8x256xf32>,
    %c241_i32_1001 = arith.constant 241 : i32
    %844 = tpu.dynamic_rotate %817 by %c241_i32_1001 dim 1 : vector<8x256xf32>, i32 -> vector<8x256xf32>
    %c6_1002 = arith.constant 6 : index
    %c0_1003 = arith.constant 0 : index
    %c0_1004 = arith.constant 0 : index
    %845 = vector.load %arg2[%c6_1002, %c0_1003, %c0_1004] : memref<9x8x256xf32, #tpu.memory_space<vmem>>, vector<1x8x256xf32>
    %846 = vector.shape_cast %845 : vector<1x8x256xf32> to vector<8x256xf32>
    %847 = arith.mulf %844, %846 : vector<8x256xf32>
    %c48_1005 = arith.constant 48 : index
    %c0_1006 = arith.constant 0 : index
    %848 = vector.load %arg9[%c48_1005, %c0_1006] : memref<80x256xf32, #tpu.memory_space<vmem>>, vector<8x256xf32>
    tpu.vector_store %arg9[%c48_1005, %c0_1006], %847 {strides = array<i32>} : memref<80x256xf32, #tpu.memory_space<vmem>>, vector<8x256xf32>,
    %c240_i32_1007 = arith.constant 240 : i32
    %849 = tpu.dynamic_rotate %817 by %c240_i32_1007 dim 1 : vector<8x256xf32>, i32 -> vector<8x256xf32>
    %c7_1008 = arith.constant 7 : index
    %c0_1009 = arith.constant 0 : index
    %c0_1010 = arith.constant 0 : index
    %850 = vector.load %arg2[%c7_1008, %c0_1009, %c0_1010] : memref<9x8x256xf32, #tpu.memory_space<vmem>>, vector<1x8x256xf32>
    %851 = vector.shape_cast %850 : vector<1x8x256xf32> to vector<8x256xf32>
    %852 = arith.mulf %849, %851 : vector<8x256xf32>
    %c56_1011 = arith.constant 56 : index
    %c0_1012 = arith.constant 0 : index
    %853 = vector.load %arg9[%c56_1011, %c0_1012] : memref<80x256xf32, #tpu.memory_space<vmem>>, vector<8x256xf32>
    tpu.vector_store %arg9[%c56_1011, %c0_1012], %852 {strides = array<i32>} : memref<80x256xf32, #tpu.memory_space<vmem>>, vector<8x256xf32>,
    %c239_i32_1013 = arith.constant 239 : i32
    %854 = tpu.dynamic_rotate %817 by %c239_i32_1013 dim 1 : vector<8x256xf32>, i32 -> vector<8x256xf32>
    %c8_1014 = arith.constant 8 : index
    %c0_1015 = arith.constant 0 : index
    %c0_1016 = arith.constant 0 : index
    %855 = vector.load %arg2[%c8_1014, %c0_1015, %c0_1016] : memref<9x8x256xf32, #tpu.memory_space<vmem>>, vector<1x8x256xf32>
    %856 = vector.shape_cast %855 : vector<1x8x256xf32> to vector<8x256xf32>
    %857 = arith.mulf %854, %856 : vector<8x256xf32>
    %c64_1017 = arith.constant 64 : index
    %c0_1018 = arith.constant 0 : index
    %858 = vector.load %arg9[%c64_1017, %c0_1018] : memref<80x256xf32, #tpu.memory_space<vmem>>, vector<8x256xf32>
    tpu.vector_store %arg9[%c64_1017, %c0_1018], %857 {strides = array<i32>} : memref<80x256xf32, #tpu.memory_space<vmem>>, vector<8x256xf32>,
    %c0_1019 = arith.constant 0 : index
    %c16_1020 = arith.constant 16 : index
    %c0_1021 = arith.constant 0 : index
    %c0_1022 = arith.constant 0 : index
    %859 = vector.load %arg4[%c0_1019, %c16_1020, %c0_1021, %c0_1022] : memref<1x20x8x80xf32, #tpu.memory_space<vmem>>, vector<1x1x8x80xf32>
    %860 = vector.shape_cast %859 : vector<1x1x8x80xf32> to vector<8x80xf32>
    %c0_1023 = arith.constant 0 : index
    %c0_1024 = arith.constant 0 : index
    %861 = vector.load %arg9[%c0_1023, %c0_1024] : memref<80x256xf32, #tpu.memory_space<vmem>>, vector<80x256xf32>
    %cst_1025 = arith.constant dense<0.000000e+00> : vector<8x256xf32>
    %862 = tpu.matmul %860, %861, %cst_1025 {dimension_numbers = #tpu.dot_dimension_numbers<[1], [0], [0], [1], [0, 0, 1, 1], [], []>} : vector<8x80xf32>, vector<80x256xf32>, vector<8x256xf32> -> vector<8x256xf32>
    %cst_1026 = arith.constant 0.000000e+00 : f32
    %863 = vector.broadcast %cst_1026 : f32 to vector<8x256xf32>
    %864 = arith.maximumf %862, %863 : vector<8x256xf32>
    %c17_i32_1027 = arith.constant 17 : i32
    %865 = tpu.dynamic_rotate %864 by %c17_i32_1027 dim 1 : vector<8x256xf32>, i32 -> vector<8x256xf32>
    %c0_1028 = arith.constant 0 : index
    %c0_1029 = arith.constant 0 : index
    %c0_1030 = arith.constant 0 : index
    %866 = vector.load %arg2[%c0_1028, %c0_1029, %c0_1030] : memref<9x8x256xf32, #tpu.memory_space<vmem>>, vector<1x8x256xf32>
    %867 = vector.shape_cast %866 : vector<1x8x256xf32> to vector<8x256xf32>
    %868 = arith.mulf %865, %867 : vector<8x256xf32>
    %c0_1031 = arith.constant 0 : index
    %c0_1032 = arith.constant 0 : index
    %869 = vector.load %arg9[%c0_1031, %c0_1032] : memref<80x256xf32, #tpu.memory_space<vmem>>, vector<8x256xf32>
    tpu.vector_store %arg9[%c0_1031, %c0_1032], %868 {strides = array<i32>} : memref<80x256xf32, #tpu.memory_space<vmem>>, vector<8x256xf32>,
    %c16_i32_1033 = arith.constant 16 : i32
    %870 = tpu.dynamic_rotate %864 by %c16_i32_1033 dim 1 : vector<8x256xf32>, i32 -> vector<8x256xf32>
    %c1_1034 = arith.constant 1 : index
    %c0_1035 = arith.constant 0 : index
    %c0_1036 = arith.constant 0 : index
    %871 = vector.load %arg2[%c1_1034, %c0_1035, %c0_1036] : memref<9x8x256xf32, #tpu.memory_space<vmem>>, vector<1x8x256xf32>
    %872 = vector.shape_cast %871 : vector<1x8x256xf32> to vector<8x256xf32>
    %873 = arith.mulf %870, %872 : vector<8x256xf32>
    %c8_1037 = arith.constant 8 : index
    %c0_1038 = arith.constant 0 : index
    %874 = vector.load %arg9[%c8_1037, %c0_1038] : memref<80x256xf32, #tpu.memory_space<vmem>>, vector<8x256xf32>
    tpu.vector_store %arg9[%c8_1037, %c0_1038], %873 {strides = array<i32>} : memref<80x256xf32, #tpu.memory_space<vmem>>, vector<8x256xf32>,
    %c15_i32_1039 = arith.constant 15 : i32
    %875 = tpu.dynamic_rotate %864 by %c15_i32_1039 dim 1 : vector<8x256xf32>, i32 -> vector<8x256xf32>
    %c2_1040 = arith.constant 2 : index
    %c0_1041 = arith.constant 0 : index
    %c0_1042 = arith.constant 0 : index
    %876 = vector.load %arg2[%c2_1040, %c0_1041, %c0_1042] : memref<9x8x256xf32, #tpu.memory_space<vmem>>, vector<1x8x256xf32>
    %877 = vector.shape_cast %876 : vector<1x8x256xf32> to vector<8x256xf32>
    %878 = arith.mulf %875, %877 : vector<8x256xf32>
    %c16_1043 = arith.constant 16 : index
    %c0_1044 = arith.constant 0 : index
    %879 = vector.load %arg9[%c16_1043, %c0_1044] : memref<80x256xf32, #tpu.memory_space<vmem>>, vector<8x256xf32>
    tpu.vector_store %arg9[%c16_1043, %c0_1044], %878 {strides = array<i32>} : memref<80x256xf32, #tpu.memory_space<vmem>>, vector<8x256xf32>,
    %c1_i32_1045 = arith.constant 1 : i32
    %880 = tpu.dynamic_rotate %864 by %c1_i32_1045 dim 1 : vector<8x256xf32>, i32 -> vector<8x256xf32>
    %c3_1046 = arith.constant 3 : index
    %c0_1047 = arith.constant 0 : index
    %c0_1048 = arith.constant 0 : index
    %881 = vector.load %arg2[%c3_1046, %c0_1047, %c0_1048] : memref<9x8x256xf32, #tpu.memory_space<vmem>>, vector<1x8x256xf32>
    %882 = vector.shape_cast %881 : vector<1x8x256xf32> to vector<8x256xf32>
    %883 = arith.mulf %880, %882 : vector<8x256xf32>
    %c24_1049 = arith.constant 24 : index
    %c0_1050 = arith.constant 0 : index
    %884 = vector.load %arg9[%c24_1049, %c0_1050] : memref<80x256xf32, #tpu.memory_space<vmem>>, vector<8x256xf32>
    tpu.vector_store %arg9[%c24_1049, %c0_1050], %883 {strides = array<i32>} : memref<80x256xf32, #tpu.memory_space<vmem>>, vector<8x256xf32>,
    %c32_1051 = arith.constant 32 : index
    %c0_1052 = arith.constant 0 : index
    %885 = vector.load %arg9[%c32_1051, %c0_1052] : memref<80x256xf32, #tpu.memory_space<vmem>>, vector<8x256xf32>
    tpu.vector_store %arg9[%c32_1051, %c0_1052], %864 {strides = array<i32>} : memref<80x256xf32, #tpu.memory_space<vmem>>, vector<8x256xf32>,
    %c255_i32_1053 = arith.constant 255 : i32
    %886 = tpu.dynamic_rotate %864 by %c255_i32_1053 dim 1 : vector<8x256xf32>, i32 -> vector<8x256xf32>
    %c5_1054 = arith.constant 5 : index
    %c0_1055 = arith.constant 0 : index
    %c0_1056 = arith.constant 0 : index
    %887 = vector.load %arg2[%c5_1054, %c0_1055, %c0_1056] : memref<9x8x256xf32, #tpu.memory_space<vmem>>, vector<1x8x256xf32>
    %888 = vector.shape_cast %887 : vector<1x8x256xf32> to vector<8x256xf32>
    %889 = arith.mulf %886, %888 : vector<8x256xf32>
    %c40_1057 = arith.constant 40 : index
    %c0_1058 = arith.constant 0 : index
    %890 = vector.load %arg9[%c40_1057, %c0_1058] : memref<80x256xf32, #tpu.memory_space<vmem>>, vector<8x256xf32>
    tpu.vector_store %arg9[%c40_1057, %c0_1058], %889 {strides = array<i32>} : memref<80x256xf32, #tpu.memory_space<vmem>>, vector<8x256xf32>,
    %c241_i32_1059 = arith.constant 241 : i32
    %891 = tpu.dynamic_rotate %864 by %c241_i32_1059 dim 1 : vector<8x256xf32>, i32 -> vector<8x256xf32>
    %c6_1060 = arith.constant 6 : index
    %c0_1061 = arith.constant 0 : index
    %c0_1062 = arith.constant 0 : index
    %892 = vector.load %arg2[%c6_1060, %c0_1061, %c0_1062] : memref<9x8x256xf32, #tpu.memory_space<vmem>>, vector<1x8x256xf32>
    %893 = vector.shape_cast %892 : vector<1x8x256xf32> to vector<8x256xf32>
    %894 = arith.mulf %891, %893 : vector<8x256xf32>
    %c48_1063 = arith.constant 48 : index
    %c0_1064 = arith.constant 0 : index
    %895 = vector.load %arg9[%c48_1063, %c0_1064] : memref<80x256xf32, #tpu.memory_space<vmem>>, vector<8x256xf32>
    tpu.vector_store %arg9[%c48_1063, %c0_1064], %894 {strides = array<i32>} : memref<80x256xf32, #tpu.memory_space<vmem>>, vector<8x256xf32>,
    %c240_i32_1065 = arith.constant 240 : i32
    %896 = tpu.dynamic_rotate %864 by %c240_i32_1065 dim 1 : vector<8x256xf32>, i32 -> vector<8x256xf32>
    %c7_1066 = arith.constant 7 : index
    %c0_1067 = arith.constant 0 : index
    %c0_1068 = arith.constant 0 : index
    %897 = vector.load %arg2[%c7_1066, %c0_1067, %c0_1068] : memref<9x8x256xf32, #tpu.memory_space<vmem>>, vector<1x8x256xf32>
    %898 = vector.shape_cast %897 : vector<1x8x256xf32> to vector<8x256xf32>
    %899 = arith.mulf %896, %898 : vector<8x256xf32>
    %c56_1069 = arith.constant 56 : index
    %c0_1070 = arith.constant 0 : index
    %900 = vector.load %arg9[%c56_1069, %c0_1070] : memref<80x256xf32, #tpu.memory_space<vmem>>, vector<8x256xf32>
    tpu.vector_store %arg9[%c56_1069, %c0_1070], %899 {strides = array<i32>} : memref<80x256xf32, #tpu.memory_space<vmem>>, vector<8x256xf32>,
    %c239_i32_1071 = arith.constant 239 : i32
    %901 = tpu.dynamic_rotate %864 by %c239_i32_1071 dim 1 : vector<8x256xf32>, i32 -> vector<8x256xf32>
    %c8_1072 = arith.constant 8 : index
    %c0_1073 = arith.constant 0 : index
    %c0_1074 = arith.constant 0 : index
    %902 = vector.load %arg2[%c8_1072, %c0_1073, %c0_1074] : memref<9x8x256xf32, #tpu.memory_space<vmem>>, vector<1x8x256xf32>
    %903 = vector.shape_cast %902 : vector<1x8x256xf32> to vector<8x256xf32>
    %904 = arith.mulf %901, %903 : vector<8x256xf32>
    %c64_1075 = arith.constant 64 : index
    %c0_1076 = arith.constant 0 : index
    %905 = vector.load %arg9[%c64_1075, %c0_1076] : memref<80x256xf32, #tpu.memory_space<vmem>>, vector<8x256xf32>
    tpu.vector_store %arg9[%c64_1075, %c0_1076], %904 {strides = array<i32>} : memref<80x256xf32, #tpu.memory_space<vmem>>, vector<8x256xf32>,
    %c0_1077 = arith.constant 0 : index
    %c17 = arith.constant 17 : index
    %c0_1078 = arith.constant 0 : index
    %c0_1079 = arith.constant 0 : index
    %906 = vector.load %arg4[%c0_1077, %c17, %c0_1078, %c0_1079] : memref<1x20x8x80xf32, #tpu.memory_space<vmem>>, vector<1x1x8x80xf32>
    %907 = vector.shape_cast %906 : vector<1x1x8x80xf32> to vector<8x80xf32>
    %c0_1080 = arith.constant 0 : index
    %c0_1081 = arith.constant 0 : index
    %908 = vector.load %arg9[%c0_1080, %c0_1081] : memref<80x256xf32, #tpu.memory_space<vmem>>, vector<80x256xf32>
    %cst_1082 = arith.constant dense<0.000000e+00> : vector<8x256xf32>
    %909 = tpu.matmul %907, %908, %cst_1082 {dimension_numbers = #tpu.dot_dimension_numbers<[1], [0], [0], [1], [0, 0, 1, 1], [], []>} : vector<8x80xf32>, vector<80x256xf32>, vector<8x256xf32> -> vector<8x256xf32>
    %cst_1083 = arith.constant 0.000000e+00 : f32
    %910 = vector.broadcast %cst_1083 : f32 to vector<8x256xf32>
    %911 = arith.maximumf %909, %910 : vector<8x256xf32>
    %c17_i32_1084 = arith.constant 17 : i32
    %912 = tpu.dynamic_rotate %911 by %c17_i32_1084 dim 1 : vector<8x256xf32>, i32 -> vector<8x256xf32>
    %c0_1085 = arith.constant 0 : index
    %c0_1086 = arith.constant 0 : index
    %c0_1087 = arith.constant 0 : index
    %913 = vector.load %arg2[%c0_1085, %c0_1086, %c0_1087] : memref<9x8x256xf32, #tpu.memory_space<vmem>>, vector<1x8x256xf32>
    %914 = vector.shape_cast %913 : vector<1x8x256xf32> to vector<8x256xf32>
    %915 = arith.mulf %912, %914 : vector<8x256xf32>
    %c0_1088 = arith.constant 0 : index
    %c0_1089 = arith.constant 0 : index
    %916 = vector.load %arg9[%c0_1088, %c0_1089] : memref<80x256xf32, #tpu.memory_space<vmem>>, vector<8x256xf32>
    tpu.vector_store %arg9[%c0_1088, %c0_1089], %915 {strides = array<i32>} : memref<80x256xf32, #tpu.memory_space<vmem>>, vector<8x256xf32>,
    %c16_i32_1090 = arith.constant 16 : i32
    %917 = tpu.dynamic_rotate %911 by %c16_i32_1090 dim 1 : vector<8x256xf32>, i32 -> vector<8x256xf32>
    %c1_1091 = arith.constant 1 : index
    %c0_1092 = arith.constant 0 : index
    %c0_1093 = arith.constant 0 : index
    %918 = vector.load %arg2[%c1_1091, %c0_1092, %c0_1093] : memref<9x8x256xf32, #tpu.memory_space<vmem>>, vector<1x8x256xf32>
    %919 = vector.shape_cast %918 : vector<1x8x256xf32> to vector<8x256xf32>
    %920 = arith.mulf %917, %919 : vector<8x256xf32>
    %c8_1094 = arith.constant 8 : index
    %c0_1095 = arith.constant 0 : index
    %921 = vector.load %arg9[%c8_1094, %c0_1095] : memref<80x256xf32, #tpu.memory_space<vmem>>, vector<8x256xf32>
    tpu.vector_store %arg9[%c8_1094, %c0_1095], %920 {strides = array<i32>} : memref<80x256xf32, #tpu.memory_space<vmem>>, vector<8x256xf32>,
    %c15_i32_1096 = arith.constant 15 : i32
    %922 = tpu.dynamic_rotate %911 by %c15_i32_1096 dim 1 : vector<8x256xf32>, i32 -> vector<8x256xf32>
    %c2_1097 = arith.constant 2 : index
    %c0_1098 = arith.constant 0 : index
    %c0_1099 = arith.constant 0 : index
    %923 = vector.load %arg2[%c2_1097, %c0_1098, %c0_1099] : memref<9x8x256xf32, #tpu.memory_space<vmem>>, vector<1x8x256xf32>
    %924 = vector.shape_cast %923 : vector<1x8x256xf32> to vector<8x256xf32>
    %925 = arith.mulf %922, %924 : vector<8x256xf32>
    %c16_1100 = arith.constant 16 : index
    %c0_1101 = arith.constant 0 : index
    %926 = vector.load %arg9[%c16_1100, %c0_1101] : memref<80x256xf32, #tpu.memory_space<vmem>>, vector<8x256xf32>
    tpu.vector_store %arg9[%c16_1100, %c0_1101], %925 {strides = array<i32>} : memref<80x256xf32, #tpu.memory_space<vmem>>, vector<8x256xf32>,
    %c1_i32_1102 = arith.constant 1 : i32
    %927 = tpu.dynamic_rotate %911 by %c1_i32_1102 dim 1 : vector<8x256xf32>, i32 -> vector<8x256xf32>
    %c3_1103 = arith.constant 3 : index
    %c0_1104 = arith.constant 0 : index
    %c0_1105 = arith.constant 0 : index
    %928 = vector.load %arg2[%c3_1103, %c0_1104, %c0_1105] : memref<9x8x256xf32, #tpu.memory_space<vmem>>, vector<1x8x256xf32>
    %929 = vector.shape_cast %928 : vector<1x8x256xf32> to vector<8x256xf32>
    %930 = arith.mulf %927, %929 : vector<8x256xf32>
    %c24_1106 = arith.constant 24 : index
    %c0_1107 = arith.constant 0 : index
    %931 = vector.load %arg9[%c24_1106, %c0_1107] : memref<80x256xf32, #tpu.memory_space<vmem>>, vector<8x256xf32>
    tpu.vector_store %arg9[%c24_1106, %c0_1107], %930 {strides = array<i32>} : memref<80x256xf32, #tpu.memory_space<vmem>>, vector<8x256xf32>,
    %c32_1108 = arith.constant 32 : index
    %c0_1109 = arith.constant 0 : index
    %932 = vector.load %arg9[%c32_1108, %c0_1109] : memref<80x256xf32, #tpu.memory_space<vmem>>, vector<8x256xf32>
    tpu.vector_store %arg9[%c32_1108, %c0_1109], %911 {strides = array<i32>} : memref<80x256xf32, #tpu.memory_space<vmem>>, vector<8x256xf32>,
    %c255_i32_1110 = arith.constant 255 : i32
    %933 = tpu.dynamic_rotate %911 by %c255_i32_1110 dim 1 : vector<8x256xf32>, i32 -> vector<8x256xf32>
    %c5_1111 = arith.constant 5 : index
    %c0_1112 = arith.constant 0 : index
    %c0_1113 = arith.constant 0 : index
    %934 = vector.load %arg2[%c5_1111, %c0_1112, %c0_1113] : memref<9x8x256xf32, #tpu.memory_space<vmem>>, vector<1x8x256xf32>
    %935 = vector.shape_cast %934 : vector<1x8x256xf32> to vector<8x256xf32>
    %936 = arith.mulf %933, %935 : vector<8x256xf32>
    %c40_1114 = arith.constant 40 : index
    %c0_1115 = arith.constant 0 : index
    %937 = vector.load %arg9[%c40_1114, %c0_1115] : memref<80x256xf32, #tpu.memory_space<vmem>>, vector<8x256xf32>
    tpu.vector_store %arg9[%c40_1114, %c0_1115], %936 {strides = array<i32>} : memref<80x256xf32, #tpu.memory_space<vmem>>, vector<8x256xf32>,
    %c241_i32_1116 = arith.constant 241 : i32
    %938 = tpu.dynamic_rotate %911 by %c241_i32_1116 dim 1 : vector<8x256xf32>, i32 -> vector<8x256xf32>
    %c6_1117 = arith.constant 6 : index
    %c0_1118 = arith.constant 0 : index
    %c0_1119 = arith.constant 0 : index
    %939 = vector.load %arg2[%c6_1117, %c0_1118, %c0_1119] : memref<9x8x256xf32, #tpu.memory_space<vmem>>, vector<1x8x256xf32>
    %940 = vector.shape_cast %939 : vector<1x8x256xf32> to vector<8x256xf32>
    %941 = arith.mulf %938, %940 : vector<8x256xf32>
    %c48_1120 = arith.constant 48 : index
    %c0_1121 = arith.constant 0 : index
    %942 = vector.load %arg9[%c48_1120, %c0_1121] : memref<80x256xf32, #tpu.memory_space<vmem>>, vector<8x256xf32>
    tpu.vector_store %arg9[%c48_1120, %c0_1121], %941 {strides = array<i32>} : memref<80x256xf32, #tpu.memory_space<vmem>>, vector<8x256xf32>,
    %c240_i32_1122 = arith.constant 240 : i32
    %943 = tpu.dynamic_rotate %911 by %c240_i32_1122 dim 1 : vector<8x256xf32>, i32 -> vector<8x256xf32>
    %c7_1123 = arith.constant 7 : index
    %c0_1124 = arith.constant 0 : index
    %c0_1125 = arith.constant 0 : index
    %944 = vector.load %arg2[%c7_1123, %c0_1124, %c0_1125] : memref<9x8x256xf32, #tpu.memory_space<vmem>>, vector<1x8x256xf32>
    %945 = vector.shape_cast %944 : vector<1x8x256xf32> to vector<8x256xf32>
    %946 = arith.mulf %943, %945 : vector<8x256xf32>
    %c56_1126 = arith.constant 56 : index
    %c0_1127 = arith.constant 0 : index
    %947 = vector.load %arg9[%c56_1126, %c0_1127] : memref<80x256xf32, #tpu.memory_space<vmem>>, vector<8x256xf32>
    tpu.vector_store %arg9[%c56_1126, %c0_1127], %946 {strides = array<i32>} : memref<80x256xf32, #tpu.memory_space<vmem>>, vector<8x256xf32>,
    %c239_i32_1128 = arith.constant 239 : i32
    %948 = tpu.dynamic_rotate %911 by %c239_i32_1128 dim 1 : vector<8x256xf32>, i32 -> vector<8x256xf32>
    %c8_1129 = arith.constant 8 : index
    %c0_1130 = arith.constant 0 : index
    %c0_1131 = arith.constant 0 : index
    %949 = vector.load %arg2[%c8_1129, %c0_1130, %c0_1131] : memref<9x8x256xf32, #tpu.memory_space<vmem>>, vector<1x8x256xf32>
    %950 = vector.shape_cast %949 : vector<1x8x256xf32> to vector<8x256xf32>
    %951 = arith.mulf %948, %950 : vector<8x256xf32>
    %c64_1132 = arith.constant 64 : index
    %c0_1133 = arith.constant 0 : index
    %952 = vector.load %arg9[%c64_1132, %c0_1133] : memref<80x256xf32, #tpu.memory_space<vmem>>, vector<8x256xf32>
    tpu.vector_store %arg9[%c64_1132, %c0_1133], %951 {strides = array<i32>} : memref<80x256xf32, #tpu.memory_space<vmem>>, vector<8x256xf32>,
    %c0_1134 = arith.constant 0 : index
    %c18 = arith.constant 18 : index
    %c0_1135 = arith.constant 0 : index
    %c0_1136 = arith.constant 0 : index
    %953 = vector.load %arg4[%c0_1134, %c18, %c0_1135, %c0_1136] : memref<1x20x8x80xf32, #tpu.memory_space<vmem>>, vector<1x1x8x80xf32>
    %954 = vector.shape_cast %953 : vector<1x1x8x80xf32> to vector<8x80xf32>
    %c0_1137 = arith.constant 0 : index
    %c0_1138 = arith.constant 0 : index
    %955 = vector.load %arg9[%c0_1137, %c0_1138] : memref<80x256xf32, #tpu.memory_space<vmem>>, vector<80x256xf32>
    %cst_1139 = arith.constant dense<0.000000e+00> : vector<8x256xf32>
    %956 = tpu.matmul %954, %955, %cst_1139 {dimension_numbers = #tpu.dot_dimension_numbers<[1], [0], [0], [1], [0, 0, 1, 1], [], []>} : vector<8x80xf32>, vector<80x256xf32>, vector<8x256xf32> -> vector<8x256xf32>
    %cst_1140 = arith.constant 0.000000e+00 : f32
    %957 = vector.broadcast %cst_1140 : f32 to vector<8x256xf32>
    %958 = arith.maximumf %956, %957 : vector<8x256xf32>
    %c17_i32_1141 = arith.constant 17 : i32
    %959 = tpu.dynamic_rotate %958 by %c17_i32_1141 dim 1 : vector<8x256xf32>, i32 -> vector<8x256xf32>
    %c0_1142 = arith.constant 0 : index
    %c0_1143 = arith.constant 0 : index
    %c0_1144 = arith.constant 0 : index
    %960 = vector.load %arg2[%c0_1142, %c0_1143, %c0_1144] : memref<9x8x256xf32, #tpu.memory_space<vmem>>, vector<1x8x256xf32>
    %961 = vector.shape_cast %960 : vector<1x8x256xf32> to vector<8x256xf32>
    %962 = arith.mulf %959, %961 : vector<8x256xf32>
    %c0_1145 = arith.constant 0 : index
    %c0_1146 = arith.constant 0 : index
    %963 = vector.load %arg9[%c0_1145, %c0_1146] : memref<80x256xf32, #tpu.memory_space<vmem>>, vector<8x256xf32>
    tpu.vector_store %arg9[%c0_1145, %c0_1146], %962 {strides = array<i32>} : memref<80x256xf32, #tpu.memory_space<vmem>>, vector<8x256xf32>,
    %c16_i32_1147 = arith.constant 16 : i32
    %964 = tpu.dynamic_rotate %958 by %c16_i32_1147 dim 1 : vector<8x256xf32>, i32 -> vector<8x256xf32>
    %c1_1148 = arith.constant 1 : index
    %c0_1149 = arith.constant 0 : index
    %c0_1150 = arith.constant 0 : index
    %965 = vector.load %arg2[%c1_1148, %c0_1149, %c0_1150] : memref<9x8x256xf32, #tpu.memory_space<vmem>>, vector<1x8x256xf32>
    %966 = vector.shape_cast %965 : vector<1x8x256xf32> to vector<8x256xf32>
    %967 = arith.mulf %964, %966 : vector<8x256xf32>
    %c8_1151 = arith.constant 8 : index
    %c0_1152 = arith.constant 0 : index
    %968 = vector.load %arg9[%c8_1151, %c0_1152] : memref<80x256xf32, #tpu.memory_space<vmem>>, vector<8x256xf32>
    tpu.vector_store %arg9[%c8_1151, %c0_1152], %967 {strides = array<i32>} : memref<80x256xf32, #tpu.memory_space<vmem>>, vector<8x256xf32>,
    %c15_i32_1153 = arith.constant 15 : i32
    %969 = tpu.dynamic_rotate %958 by %c15_i32_1153 dim 1 : vector<8x256xf32>, i32 -> vector<8x256xf32>
    %c2_1154 = arith.constant 2 : index
    %c0_1155 = arith.constant 0 : index
    %c0_1156 = arith.constant 0 : index
    %970 = vector.load %arg2[%c2_1154, %c0_1155, %c0_1156] : memref<9x8x256xf32, #tpu.memory_space<vmem>>, vector<1x8x256xf32>
    %971 = vector.shape_cast %970 : vector<1x8x256xf32> to vector<8x256xf32>
    %972 = arith.mulf %969, %971 : vector<8x256xf32>
    %c16_1157 = arith.constant 16 : index
    %c0_1158 = arith.constant 0 : index
    %973 = vector.load %arg9[%c16_1157, %c0_1158] : memref<80x256xf32, #tpu.memory_space<vmem>>, vector<8x256xf32>
    tpu.vector_store %arg9[%c16_1157, %c0_1158], %972 {strides = array<i32>} : memref<80x256xf32, #tpu.memory_space<vmem>>, vector<8x256xf32>,
    %c1_i32_1159 = arith.constant 1 : i32
    %974 = tpu.dynamic_rotate %958 by %c1_i32_1159 dim 1 : vector<8x256xf32>, i32 -> vector<8x256xf32>
    %c3_1160 = arith.constant 3 : index
    %c0_1161 = arith.constant 0 : index
    %c0_1162 = arith.constant 0 : index
    %975 = vector.load %arg2[%c3_1160, %c0_1161, %c0_1162] : memref<9x8x256xf32, #tpu.memory_space<vmem>>, vector<1x8x256xf32>
    %976 = vector.shape_cast %975 : vector<1x8x256xf32> to vector<8x256xf32>
    %977 = arith.mulf %974, %976 : vector<8x256xf32>
    %c24_1163 = arith.constant 24 : index
    %c0_1164 = arith.constant 0 : index
    %978 = vector.load %arg9[%c24_1163, %c0_1164] : memref<80x256xf32, #tpu.memory_space<vmem>>, vector<8x256xf32>
    tpu.vector_store %arg9[%c24_1163, %c0_1164], %977 {strides = array<i32>} : memref<80x256xf32, #tpu.memory_space<vmem>>, vector<8x256xf32>,
    %c32_1165 = arith.constant 32 : index
    %c0_1166 = arith.constant 0 : index
    %979 = vector.load %arg9[%c32_1165, %c0_1166] : memref<80x256xf32, #tpu.memory_space<vmem>>, vector<8x256xf32>
    tpu.vector_store %arg9[%c32_1165, %c0_1166], %958 {strides = array<i32>} : memref<80x256xf32, #tpu.memory_space<vmem>>, vector<8x256xf32>,
    %c255_i32_1167 = arith.constant 255 : i32
    %980 = tpu.dynamic_rotate %958 by %c255_i32_1167 dim 1 : vector<8x256xf32>, i32 -> vector<8x256xf32>
    %c5_1168 = arith.constant 5 : index
    %c0_1169 = arith.constant 0 : index
    %c0_1170 = arith.constant 0 : index
    %981 = vector.load %arg2[%c5_1168, %c0_1169, %c0_1170] : memref<9x8x256xf32, #tpu.memory_space<vmem>>, vector<1x8x256xf32>
    %982 = vector.shape_cast %981 : vector<1x8x256xf32> to vector<8x256xf32>
    %983 = arith.mulf %980, %982 : vector<8x256xf32>
    %c40_1171 = arith.constant 40 : index
    %c0_1172 = arith.constant 0 : index
    %984 = vector.load %arg9[%c40_1171, %c0_1172] : memref<80x256xf32, #tpu.memory_space<vmem>>, vector<8x256xf32>
    tpu.vector_store %arg9[%c40_1171, %c0_1172], %983 {strides = array<i32>} : memref<80x256xf32, #tpu.memory_space<vmem>>, vector<8x256xf32>,
    %c241_i32_1173 = arith.constant 241 : i32
    %985 = tpu.dynamic_rotate %958 by %c241_i32_1173 dim 1 : vector<8x256xf32>, i32 -> vector<8x256xf32>
    %c6_1174 = arith.constant 6 : index
    %c0_1175 = arith.constant 0 : index
    %c0_1176 = arith.constant 0 : index
    %986 = vector.load %arg2[%c6_1174, %c0_1175, %c0_1176] : memref<9x8x256xf32, #tpu.memory_space<vmem>>, vector<1x8x256xf32>
    %987 = vector.shape_cast %986 : vector<1x8x256xf32> to vector<8x256xf32>
    %988 = arith.mulf %985, %987 : vector<8x256xf32>
    %c48_1177 = arith.constant 48 : index
    %c0_1178 = arith.constant 0 : index
    %989 = vector.load %arg9[%c48_1177, %c0_1178] : memref<80x256xf32, #tpu.memory_space<vmem>>, vector<8x256xf32>
    tpu.vector_store %arg9[%c48_1177, %c0_1178], %988 {strides = array<i32>} : memref<80x256xf32, #tpu.memory_space<vmem>>, vector<8x256xf32>,
    %c240_i32_1179 = arith.constant 240 : i32
    %990 = tpu.dynamic_rotate %958 by %c240_i32_1179 dim 1 : vector<8x256xf32>, i32 -> vector<8x256xf32>
    %c7_1180 = arith.constant 7 : index
    %c0_1181 = arith.constant 0 : index
    %c0_1182 = arith.constant 0 : index
    %991 = vector.load %arg2[%c7_1180, %c0_1181, %c0_1182] : memref<9x8x256xf32, #tpu.memory_space<vmem>>, vector<1x8x256xf32>
    %992 = vector.shape_cast %991 : vector<1x8x256xf32> to vector<8x256xf32>
    %993 = arith.mulf %990, %992 : vector<8x256xf32>
    %c56_1183 = arith.constant 56 : index
    %c0_1184 = arith.constant 0 : index
    %994 = vector.load %arg9[%c56_1183, %c0_1184] : memref<80x256xf32, #tpu.memory_space<vmem>>, vector<8x256xf32>
    tpu.vector_store %arg9[%c56_1183, %c0_1184], %993 {strides = array<i32>} : memref<80x256xf32, #tpu.memory_space<vmem>>, vector<8x256xf32>,
    %c239_i32_1185 = arith.constant 239 : i32
    %995 = tpu.dynamic_rotate %958 by %c239_i32_1185 dim 1 : vector<8x256xf32>, i32 -> vector<8x256xf32>
    %c8_1186 = arith.constant 8 : index
    %c0_1187 = arith.constant 0 : index
    %c0_1188 = arith.constant 0 : index
    %996 = vector.load %arg2[%c8_1186, %c0_1187, %c0_1188] : memref<9x8x256xf32, #tpu.memory_space<vmem>>, vector<1x8x256xf32>
    %997 = vector.shape_cast %996 : vector<1x8x256xf32> to vector<8x256xf32>
    %998 = arith.mulf %995, %997 : vector<8x256xf32>
    %c64_1189 = arith.constant 64 : index
    %c0_1190 = arith.constant 0 : index
    %999 = vector.load %arg9[%c64_1189, %c0_1190] : memref<80x256xf32, #tpu.memory_space<vmem>>, vector<8x256xf32>
    tpu.vector_store %arg9[%c64_1189, %c0_1190], %998 {strides = array<i32>} : memref<80x256xf32, #tpu.memory_space<vmem>>, vector<8x256xf32>,
    %c0_1191 = arith.constant 0 : index
    %c19 = arith.constant 19 : index
    %c0_1192 = arith.constant 0 : index
    %c0_1193 = arith.constant 0 : index
    %1000 = vector.load %arg4[%c0_1191, %c19, %c0_1192, %c0_1193] : memref<1x20x8x80xf32, #tpu.memory_space<vmem>>, vector<1x1x8x80xf32>
    %1001 = vector.shape_cast %1000 : vector<1x1x8x80xf32> to vector<8x80xf32>
    %c0_1194 = arith.constant 0 : index
    %c0_1195 = arith.constant 0 : index
    %1002 = vector.load %arg9[%c0_1194, %c0_1195] : memref<80x256xf32, #tpu.memory_space<vmem>>, vector<80x256xf32>
    %cst_1196 = arith.constant dense<0.000000e+00> : vector<8x256xf32>
    %1003 = tpu.matmul %1001, %1002, %cst_1196 {dimension_numbers = #tpu.dot_dimension_numbers<[1], [0], [0], [1], [0, 0, 1, 1], [], []>} : vector<8x80xf32>, vector<80x256xf32>, vector<8x256xf32> -> vector<8x256xf32>
    %cst_1197 = arith.constant 0.000000e+00 : f32
    %1004 = vector.broadcast %cst_1197 : f32 to vector<8x256xf32>
    %1005 = arith.maximumf %1003, %1004 : vector<8x256xf32>
    %c0_1198 = arith.constant 0 : index
    %c0_1199 = arith.constant 0 : index
    %c0_1200 = arith.constant 0 : index
    %1006 = vector.load %arg6[%c0_1198, %c0_1199, %c0_1200] : memref<1x11x8xf32, #tpu.memory_space<vmem>>, vector<1x11x8xf32>
    %1007 = vector.shape_cast %1006 : vector<1x11x8xf32> to vector<11x8xf32>
    %cst_1201 = arith.constant dense<0.000000e+00> : vector<11x256xf32>
    %1008 = tpu.matmul %1007, %1005, %cst_1201 {dimension_numbers = #tpu.dot_dimension_numbers<[1], [0], [0], [1], [0, 0, 1, 1], [], []>} : vector<11x8xf32>, vector<8x256xf32>, vector<11x256xf32> -> vector<11x256xf32>
    %c0_1202 = arith.constant 0 : index
    %c0_1203 = arith.constant 0 : index
    %c0_1204 = arith.constant 0 : index
    %1009 = vector.load %arg7[%c0_1202, %c0_1203, %c0_1204] : memref<1x11x16xf32, #tpu.memory_space<vmem>>, vector<1x11x16xf32>
    %1010 = vector.shape_cast %1009 : vector<1x11x16xf32> to vector<11x16xf32>
    %c0_1205 = arith.constant 0 : index
    %c0_1206 = arith.constant 0 : index
    %c0_1207 = arith.constant 0 : index
    %1011 = vector.load %arg1[%c0_1205, %c0_1206, %c0_1207] : memref<1x16x256xf32, #tpu.memory_space<vmem>>, vector<1x16x256xf32>
    %1012 = vector.shape_cast %1011 : vector<1x16x256xf32> to vector<16x256xf32>
    %cst_1208 = arith.constant dense<0.000000e+00> : vector<11x256xf32>
    %1013 = tpu.matmul %1010, %1012, %cst_1208 {dimension_numbers = #tpu.dot_dimension_numbers<[1], [0], [0], [1], [0, 0, 1, 1], [], []>} : vector<11x16xf32>, vector<16x256xf32>, vector<11x256xf32> -> vector<11x256xf32>
    %1014 = arith.addf %1008, %1013 : vector<11x256xf32>
    %c0_1209 = arith.constant 0 : index
    %c0_1210 = arith.constant 0 : index
    %c0_1211 = arith.constant 0 : index
    %1015 = vector.load %arg8[%c0_1209, %c0_1210, %c0_1211] : memref<1x11x256xf32, #tpu.memory_space<vmem>>, vector<1x11x256xf32>
    %1016 = vector.shape_cast %1015 : vector<1x11x256xf32> to vector<11x256xf32>
    %1017 = vector.shape_cast %1014 : vector<11x256xf32> to vector<1x11x256xf32>
    tpu.vector_store %arg8[%c0_1209, %c0_1210, %c0_1211], %1017 {strides = array<i32>} : memref<1x11x256xf32, #tpu.memory_space<vmem>>, vector<1x11x256xf32>,
    return
  }
  func.func @transform_0(%arg0: i32) -> (i32, i32, i32) {
    %c0_i32 = arith.constant 0 : i32
    %c0_i32_0 = arith.constant 0 : i32
    %c0_i32_1 = arith.constant 0 : i32
    return %arg0, %c0_i32, %c0_i32_0 : i32, i32, i32
  }
  func.func @transform_1(%arg0: i32) -> (i32, i32, i32) {
    %c0_i32 = arith.constant 0 : i32
    %c0_i32_0 = arith.constant 0 : i32
    %c0_i32_1 = arith.constant 0 : i32
    %c0_i32_2 = arith.constant 0 : i32
    return %c0_i32, %c0_i32_0, %c0_i32_1 : i32, i32, i32
  }
  func.func @transform_2(%arg0: i32) -> (i32, i32, i32) {
    %c0_i32 = arith.constant 0 : i32
    %c0_i32_0 = arith.constant 0 : i32
    %c0_i32_1 = arith.constant 0 : i32
    %c0_i32_2 = arith.constant 0 : i32
    return %c0_i32, %c0_i32_0, %c0_i32_1 : i32, i32, i32
  }
  func.func @transform_3(%arg0: i32) -> (i32, i32, i32, i32) {
    %c0_i32 = arith.constant 0 : i32
    %c0_i32_0 = arith.constant 0 : i32
    %c0_i32_1 = arith.constant 0 : i32
    %c0_i32_2 = arith.constant 0 : i32
    return %arg0, %c0_i32, %c0_i32_0, %c0_i32_1 : i32, i32, i32, i32
  }
  func.func @transform_4(%arg0: i32) -> (i32, i32, i32, i32) {
    %c0_i32 = arith.constant 0 : i32
    %c0_i32_0 = arith.constant 0 : i32
    %c0_i32_1 = arith.constant 0 : i32
    %c0_i32_2 = arith.constant 0 : i32
    return %arg0, %c0_i32, %c0_i32_0, %c0_i32_1 : i32, i32, i32, i32
  }
  func.func @transform_5(%arg0: i32) -> (i32, i32, i32) {
    %c0_i32 = arith.constant 0 : i32
    %c0_i32_0 = arith.constant 0 : i32
    %c0_i32_1 = arith.constant 0 : i32
    return %arg0, %c0_i32, %c0_i32_0 : i32, i32, i32
  }
  func.func @transform_6(%arg0: i32) -> (i32, i32, i32) {
    %c0_i32 = arith.constant 0 : i32
    %c0_i32_0 = arith.constant 0 : i32
    %c0_i32_1 = arith.constant 0 : i32
    return %arg0, %c0_i32, %c0_i32_0 : i32, i32, i32
  }
  func.func @transform_7(%arg0: i32) -> (i32, i32, i32) {
    %c0_i32 = arith.constant 0 : i32
    %c0_i32_0 = arith.constant 0 : i32
    %c0_i32_1 = arith.constant 0 : i32
    return %arg0, %c0_i32, %c0_i32_0 : i32, i32, i32
  }
}

</mosaic_0001>

<llo_original>
// kernel: small_predictor_forward.1
$region0: #{small_predictor_forward.1}
  #allocation0 [shape = 'u32[]', space=smem, size = 0x4, offset = 0x4, fixed_abs, tag = 'smem constant byte address 0x4 - core index']
  #allocation1 [shape = 'u32[144,128]{1,0:T(1,128)}', space=vmem, size = 0x12000, scoped, tag = 'internal scratch']
  #allocation2 [shape = 'f32[80,256]{1,0:T(8,128)}', space=vmem, size = 0x14000, scoped, tag = 'scratch operand']
  #allocation3 [shape = 'f32[152,256]{1,0:T(8,128)}', space=vmem, size = 0x26000, scoped, tag = 'scratch operand']
  %s0 = inlined_call_operand.vmem [shape: f32[2,16,256], index: 0, kind: input, shape index: {}]
  %s1 = inlined_call_operand.vmem [shape: f32[9,8,256], index: 1, kind: input, shape index: {}]
  %s2 = inlined_call_operand.vmem [shape: f32[9,16,256], index: 2, kind: input, shape index: {}]
  %s3 = inlined_call_operand.vmem [shape: f32[2,20,8,80], index: 3, kind: input, shape index: {}]
  %s4 = inlined_call_operand.vmem [shape: f32[2,3,8,152], index: 4, kind: input, shape index: {}]
  %s5 = inlined_call_operand.vmem [shape: f32[2,11,8], index: 5, kind: input, shape index: {}]
  %s6 = inlined_call_operand.vmem [shape: f32[2,11,16], index: 6, kind: input, shape index: {}]
  %s7 = inlined_call_operand.vmem [shape: f32[2,11,256], index: 7, kind: output, shape index: {}]
  %s8 = sld [smem:[#allocation0]]
  $region61: #{small_predictor_forward.1} parent=0
    _
  %s10 = ssub.s32 1, %s8
  %s11 = scalar_select 0, %s10, %s8
  loop: start=0, step=1, limit=4
  $region2: #{small_predictor_forward.1} parent=0 // loop_pre_header
    _
  $region3: #{small_predictor_forward.1} parent=0 // loop_header
    %s13 = sphi 0, %s17
    %p14 = scmp.ge.s32.totalorder %s13, 4
    %s23 = sphi 0, %s25
    %s26 = sphi 0, %s23
    %s27 = sphi 0, %s26
    %s43 = sphi 0, %s27
    %s47 = sphi 0, %s47
    %s49 = sphi 0, %s47
    %s50 = sphi 0, %s49
    %s64 = sphi 0, %s50
    %s68 = sphi 0, %s68
    %s70 = sphi 0, %s68
    %s71 = sphi 0, %s70
    %s85 = sphi 0, %s71
    %s91 = sphi 0, %s93
    %s94 = sphi 0, %s91
    %s95 = sphi 0, %s94
    %s111 = sphi 0, %s95
    %s117 = sphi 0, %s119
    %s120 = sphi 0, %s117
    %s121 = sphi 0, %s120
    %s137 = sphi 0, %s121
    %s143 = sphi 0, %s145
    %s146 = sphi 0, %s143
    %s147 = sphi 0, %s146
    %s163 = sphi 0, %s147
    %s169 = sphi 0, %s171
    %s172 = sphi 0, %s169
    %s173 = sphi 0, %s172
    %s189 = sphi 0, %s173
    %s195 = sphi 0, %s197
    %s198 = sphi 0, %s195
    %s199 = sphi 0, %s198
    %s215 = sphi 0, %s199
  $region4: #{small_predictor_forward.1} parent=0 // loop_header_branch
    %16 = sbr.rel (%p14) target = $region8
  $region5: #{small_predictor_forward.1} parent=0 // loop_body
    %s18 = ssub.s32 %s13, 1
    %s19 = ssub.s32 %s13, 2
    %s20 = sadd.s32 %s13, 1
    %s21 = ssub.s32 %s13, %s20
    %p22 = scmp.eq.s32.totalorder %s21, 0
    %s24 = sadd.s32 %s23, 1
    %s25 = scalar_select %p22, %s23, %s24
    %p28 = pneg %p22
    %p29 = scmp.eq.s32.totalorder %s13, 1
    %p30 = por %p28, %p29
    %p31 = scmp.ne.s32.totalorder %s23, %s26
    %p32 = scmp.eq.s32.totalorder %s13, 0
    %p33 = por %p31, %p32
    %p34 = scmp.ne.s32.totalorder %s23, %s26
    %p35 = scmp.eq.s32.totalorder %s18, 1
    %p36 = por %p34, %p35
    %p37 = scmp.ne.s32.totalorder %s26, %s27
    %p38 = scmp.eq.s32.totalorder %s18, 0
    %p39 = por %p37, %p38
    %p40 = scmp.ne.s32.totalorder %s26, %s27
    %p41 = scmp.eq.s32.totalorder %s19, 1
    %p42 = por %p40, %p41
    %p44 = scmp.ne.s32.totalorder %s27, %s43
    %p45 = scmp.eq.s32.totalorder %s19, 0
    %p46 = por %p44, %p45
    %s48 = sadd.s32 %s47, 1
    %p51 = scmp.eq.s32.totalorder %s13, 1
    %p52 = scmp.ne.s32.totalorder %s47, %s49
    %p53 = scmp.eq.s32.totalorder %s13, 0
    %p54 = por %p52, %p53
    %p55 = scmp.ne.s32.totalorder %s47, %s49
    %p56 = scmp.eq.s32.totalorder %s18, 1
    %p57 = por %p55, %p56
    %p58 = scmp.ne.s32.totalorder %s49, %s50
    %p59 = scmp.eq.s32.totalorder %s18, 0
    %p60 = por %p58, %p59
    %p61 = scmp.ne.s32.totalorder %s49, %s50
    %p62 = scmp.eq.s32.totalorder %s19, 1
    %p63 = por %p61, %p62
    %p65 = scmp.ne.s32.totalorder %s50, %s64
    %p66 = scmp.eq.s32.totalorder %s19, 0
    %p67 = por %p65, %p66
    %s69 = sadd.s32 %s68, 1
    %p72 = scmp.eq.s32.totalorder %s13, 1
    %p73 = scmp.ne.s32.totalorder %s68, %s70
    %p74 = scmp.eq.s32.totalorder %s13, 0
    %p75 = por %p73, %p74
    %p76 = scmp.ne.s32.totalorder %s68, %s70
    %p77 = scmp.eq.s32.totalorder %s18, 1
    %p78 = por %p76, %p77
    %p79 = scmp.ne.s32.totalorder %s70, %s71
    %p80 = scmp.eq.s32.totalorder %s18, 0
    %p81 = por %p79, %p80
    %p82 = scmp.ne.s32.totalorder %s70, %s71
    %p83 = scmp.eq.s32.totalorder %s19, 1
    %p84 = por %p82, %p83
    %p86 = scmp.ne.s32.totalorder %s71, %s85
    %p87 = scmp.eq.s32.totalorder %s19, 0
    %p88 = por %p86, %p87
    %s89 = ssub.s32 %s13, %s20
    %p90 = scmp.eq.s32.totalorder %s89, 0
    %s92 = sadd.s32 %s91, 1
    %s93 = scalar_select %p90, %s91, %s92
    %p96 = pneg %p90
    %p97 = scmp.eq.s32.totalorder %s13, 1
    %p98 = por %p96, %p97
    %p99 = scmp.ne.s32.totalorder %s91, %s94
    %p100 = scmp.eq.s32.totalorder %s13, 0
    %p101 = por %p99, %p100
    %p102 = scmp.ne.s32.totalorder %s91, %s94
    %p103 = scmp.eq.s32.totalorder %s18, 1
    %p104 = por %p102, %p103
    %p105 = scmp.ne.s32.totalorder %s94, %s95
    %p106 = scmp.eq.s32.totalorder %s18, 0
    %p107 = por %p105, %p106
    %p108 = scmp.ne.s32.totalorder %s94, %s95
    %p109 = scmp.eq.s32.totalorder %s19, 1
    %p110 = por %p108, %p109
    %p112 = scmp.ne.s32.totalorder %s95, %s111
    %p113 = scmp.eq.s32.totalorder %s19, 0
    %p114 = por %p112, %p113
    %s115 = ssub.s32 %s13, %s20
    %p116 = scmp.eq.s32.totalorder %s115, 0
    %s118 = sadd.s32 %s117, 1
    %s119 = scalar_select %p116, %s117, %s118
    %p122 = pneg %p116
    %p123 = scmp.eq.s32.totalorder %s13, 1
    %p124 = por %p122, %p123
    %p125 = scmp.ne.s32.totalorder %s117, %s120
    %p126 = scmp.eq.s32.totalorder %s13, 0
    %p127 = por %p125, %p126
    %p128 = scmp.ne.s32.totalorder %s117, %s120
    %p129 = scmp.eq.s32.totalorder %s18, 1
    %p130 = por %p128, %p129
    %p131 = scmp.ne.s32.totalorder %s120, %s121
    %p132 = scmp.eq.s32.totalorder %s18, 0
    %p133 = por %p131, %p132
    %p134 = scmp.ne.s32.totalorder %s120, %s121
    %p135 = scmp.eq.s32.totalorder %s19, 1
    %p136 = por %p134, %p135
    %p138 = scmp.ne.s32.totalorder %s121, %s137
    %p139 = scmp.eq.s32.totalorder %s19, 0
    %p140 = por %p138, %p139
    %s141 = ssub.s32 %s13, %s20
    %p142 = scmp.eq.s32.totalorder %s141, 0
    %s144 = sadd.s32 %s143, 1
    %s145 = scalar_select %p142, %s143, %s144
    %p148 = pneg %p142
    %p149 = scmp.eq.s32.totalorder %s13, 1
    %p150 = por %p148, %p149
    %p151 = scmp.ne.s32.totalorder %s143, %s146
    %p152 = scmp.eq.s32.totalorder %s13, 0
    %p153 = por %p151, %p152
    %p154 = scmp.ne.s32.totalorder %s143, %s146
    %p155 = scmp.eq.s32.totalorder %s18, 1
    %p156 = por %p154, %p155
    %p157 = scmp.ne.s32.totalorder %s146, %s147
    %p158 = scmp.eq.s32.totalorder %s18, 0
    %p159 = por %p157, %p158
    %p160 = scmp.ne.s32.totalorder %s146, %s147
    %p161 = scmp.eq.s32.totalorder %s19, 1
    %p162 = por %p160, %p161
    %p164 = scmp.ne.s32.totalorder %s147, %s163
    %p165 = scmp.eq.s32.totalorder %s19, 0
    %p166 = por %p164, %p165
    %s167 = ssub.s32 %s13, %s20
    %p168 = scmp.eq.s32.totalorder %s167, 0
    %s170 = sadd.s32 %s169, 1
    %s171 = scalar_select %p168, %s169, %s170
    %p174 = pneg %p168
    %p175 = scmp.eq.s32.totalorder %s13, 1
    %p176 = por %p174, %p175
    %p177 = scmp.ne.s32.totalorder %s169, %s172
    %p178 = scmp.eq.s32.totalorder %s13, 0
    %p179 = por %p177, %p178
    %p180 = scmp.ne.s32.totalorder %s169, %s172
    %p181 = scmp.eq.s32.totalorder %s18, 1
    %p182 = por %p180, %p181
    %p183 = scmp.ne.s32.totalorder %s172, %s173
    %p184 = scmp.eq.s32.totalorder %s18, 0
    %p185 = por %p183, %p184
    %p186 = scmp.ne.s32.totalorder %s172, %s173
    %p187 = scmp.eq.s32.totalorder %s19, 1
    %p188 = por %p186, %p187
    %p190 = scmp.ne.s32.totalorder %s173, %s189
    %p191 = scmp.eq.s32.totalorder %s19, 0
    %p192 = por %p190, %p191
    %s193 = ssub.s32 %s13, %s20
    %p194 = scmp.eq.s32.totalorder %s193, 0
    %s196 = sadd.s32 %s195, 1
    %s197 = scalar_select %p194, %s195, %s196
    %p200 = pneg %p194
    %p201 = scmp.eq.s32.totalorder %s13, 1
    %p202 = por %p200, %p201
    %p203 = scmp.ne.s32.totalorder %s195, %s198
    %p204 = scmp.eq.s32.totalorder %s13, 0
    %p205 = por %p203, %p204
    %p206 = scmp.ne.s32.totalorder %s195, %s198
    %p207 = scmp.eq.s32.totalorder %s18, 1
    %p208 = por %p206, %p207
    %p209 = scmp.ne.s32.totalorder %s198, %s199
    %p210 = scmp.eq.s32.totalorder %s18, 0
    %p211 = por %p209, %p210
    %p212 = scmp.ne.s32.totalorder %s198, %s199
    %p213 = scmp.eq.s32.totalorder %s19, 1
    %p214 = por %p212, %p213
    %p216 = scmp.ne.s32.totalorder %s199, %s215
    %p217 = scmp.eq.s32.totalorder %s19, 0
    %p218 = por %p216, %p217
    %p219 = scmp.le.s32.totalorder 1, %s13
    %p220 = scmp.lt.s32.totalorder %s13, 3
    %p221 = pnand %p219, %p220
    %p222 = pneg %p221
    // Predicated region
    $region9: #{small_predictor_forward.1} parent=5 // pred_check
      _
    $region10: #{small_predictor_forward.1} parent=5 // pred_check_branch
      %224 = sbr.rel (%p221) target = $region12
    $region11: #{small_predictor_forward.1} parent=5 // pred_region
      %s225 = ssub.s32 %s13, 1
      // Predicated region
      $region13: #{small_predictor_forward.1} parent=11 // pred_check
        %p226 = pneg %p60
      $region14: #{small_predictor_forward.1} parent=11 // pred_check_branch
        %228 = sbr.rel (%p226) target = $region16
      $region15: #{small_predictor_forward.1} parent=11 // pred_region
        _
      $region16: #{small_predictor_forward.1} parent=11 // pred_fallthru
        _
      // Predicated region
      $region17: #{small_predictor_forward.1} parent=11 // pred_check
        %p229 = pneg %p81
      $region18: #{small_predictor_forward.1} parent=11 // pred_check_branch
        %231 = sbr.rel (%p229) target = $region20
      $region19: #{small_predictor_forward.1} parent=11 // pred_region
        _
      $region20: #{small_predictor_forward.1} parent=11 // pred_fallthru
        _
    $region12: #{small_predictor_forward.1} parent=5 // pred_fallthru
      _
    %p232 = scmp.lt.s32.totalorder %s13, 2
    // Predicated region
    $region21: #{small_predictor_forward.1} parent=5 // pred_check
      %p233 = pneg %p232
    $region22: #{small_predictor_forward.1} parent=5 // pred_check_branch
      %235 = sbr.rel (%p233) target = $region24
    $region23: #{small_predictor_forward.1} parent=5 // pred_region
      // Predicated region
      $region25: #{small_predictor_forward.1} parent=23 // pred_check
        %p236 = pneg %p33
      $region26: #{small_predictor_forward.1} parent=23 // pred_check_branch
        %238 = sbr.rel (%p236) target = $region28
      $region27: #{small_predictor_forward.1} parent=23 // pred_region
        %p239 = scmp.lt.s32.totalorder %s13, 1
        %s240 = scalar_select %p239, %s13, 1
        %s241 = smul.addr %s240, 4
        %s242 = smul.addr %s241, 8
        %s243 = scalar_lea.vmem %s0, %s242
      $region28: #{small_predictor_forward.1} parent=23 // pred_fallthru
        _
      // Predicated region
      $region29: #{small_predictor_forward.1} parent=23 // pred_check
        %p244 = pneg %p101
      $region30: #{small_predictor_forward.1} parent=23 // pred_check_branch
        %246 = sbr.rel (%p244) target = $region32
      $region31: #{small_predictor_forward.1} parent=23 // pred_region
        %p247 = scmp.lt.s32.totalorder %s13, 1
        %s248 = scalar_select %p247, %s13, 1
        %s249 = smul.addr %s248, 20
        %s250 = smul.addr %s249, 8
        %s251 = scalar_lea.vmem %s3, %s250
      $region32: #{small_predictor_forward.1} parent=23 // pred_fallthru
        _
      // Predicated region
      $region33: #{small_predictor_forward.1} parent=23 // pred_check
        %p252 = pneg %p127
      $region34: #{small_predictor_forward.1} parent=23 // pred_check_branch
        %254 = sbr.rel (%p252) target = $region36
      $region35: #{small_predictor_forward.1} parent=23 // pred_region
        %p255 = scmp.lt.s32.totalorder %s13, 1
        %s256 = scalar_select %p255, %s13, 1
        %s257 = smul.addr %s256, 6
        %s258 = smul.addr %s257, 8
        %s259 = scalar_lea.vmem %s4, %s258
      $region36: #{small_predictor_forward.1} parent=23 // pred_fallthru
        _
      // Predicated region
      $region37: #{small_predictor_forward.1} parent=23 // pred_check
        %p260 = pneg %p153
      $region38: #{small_predictor_forward.1} parent=23 // pred_check_branch
        %262 = sbr.rel (%p260) target = $region40
      $region39: #{small_predictor_forward.1} parent=23 // pred_region
        %p263 = scmp.lt.s32.totalorder %s13, 1
        %s264 = scalar_select %p263, %s13, 1
        %s265 = smul.addr %s264, 2
        %s266 = smul.addr %s265, 8
        %s267 = scalar_lea.vmem %s5, %s266
      $region40: #{small_predictor_forward.1} parent=23 // pred_fallthru
        _
      // Predicated region
      $region41: #{small_predictor_forward.1} parent=23 // pred_check
        %p268 = pneg %p179
      $region42: #{small_predictor_forward.1} parent=23 // pred_check_branch
        %270 = sbr.rel (%p268) target = $region44
      $region43: #{small_predictor_forward.1} parent=23 // pred_region
        %p271 = scmp.lt.s32.totalorder %s13, 1
        %s272 = scalar_select %p271, %s13, 1
        %s273 = smul.addr %s272, 2
        %s274 = smul.addr %s273, 8
        %s275 = scalar_lea.vmem %s6, %s274
      $region44: #{small_predictor_forward.1} parent=23 // pred_fallthru
        _
    $region24: #{small_predictor_forward.1} parent=5 // pred_fallthru
      _
    %p276 = scmp.le.s32.totalorder 1, %s13
    %p277 = scmp.lt.s32.totalorder %s13, 3
    %p278 = pnand %p276, %p277
    %p279 = pneg %p278
    // Predicated region
    $region45: #{small_predictor_forward.1} parent=5 // pred_check
      _
    $region46: #{small_predictor_forward.1} parent=5 // pred_check_branch
      %281 = sbr.rel (%p278) target = $region48
    $region47: #{small_predictor_forward.1} parent=5 // pred_region
      %s282 = ssub.s32 %s13, 1
      %p283 = scmp.lt.s32.totalorder %s18, 1
      %s284 = scalar_select %p283, %s18, 1
      %s285 = smul.addr %s284, 4
      %s286 = smul.addr %s285, 8
      %s287 = scalar_lea.vmem %s0, %s286
      %p288 = pneg %p39
      %p289 = pneg %p36
      %p290 = pneg %p60
      %p291 = pneg %p57
      %p292 = pneg %p81
      %p293 = pneg %p78
      %p294 = scmp.lt.s32.totalorder %s18, 1
      %s295 = scalar_select %p294, %s18, 1
      %s296 = smul.addr %s295, 20
      %s297 = smul.addr %s296, 8
      %s298 = scalar_lea.vmem %s3, %s297
      %p299 = pneg %p107
      %p300 = pneg %p104
      %p301 = scmp.lt.s32.totalorder %s18, 1
      %s302 = scalar_select %p301, %s18, 1
      %s303 = smul.addr %s302, 6
      %s304 = smul.addr %s303, 8
      %s305 = scalar_lea.vmem %s4, %s304
      %p306 = pneg %p133
      %p307 = pneg %p130
      %p308 = scmp.lt.s32.totalorder %s18, 1
      %s309 = scalar_select %p308, %s18, 1
      %s310 = smul.addr %s309, 2
      %s311 = smul.addr %s310, 8
      %s312 = scalar_lea.vmem %s5, %s311
      %p313 = pneg %p159
      %p314 = pneg %p156
      %p315 = scmp.lt.s32.totalorder %s18, 1
      %s316 = scalar_select %p315, %s18, 1
      %s317 = smul.addr %s316, 2
      %s318 = smul.addr %s317, 8
      %s319 = scalar_lea.vmem %s6, %s318
      %p320 = pneg %p185
      %p321 = pneg %p182
      %p322 = pneg %p211
      %p323 = pneg %p208
      %p324 = scmp.lt.s32.totalorder %s18, 1
      %s325 = scalar_select %p324, %s18, 1
      %s326 = smul.addr %s325, 4
      %s327 = smul.addr %s326, 8
      %s328 = scalar_lea.vmem %s7, %s327
      %p329 = scmp.lt.s32.totalorder %s18, 1
      %s330 = scalar_select %p329, %s18, 1
      %s331 = smul.addr %s330, 4
      %s332 = smul.addr %s331, 8
      %s333 = scalar_lea.vmem %s0, %s332
      %p334 = scmp.lt.s32.totalorder %s18, 1
      %s335 = scalar_select %p334, %s18, 1
      %s336 = smul.addr %s335, 20
      %s337 = smul.addr %s336, 8
      %s338 = scalar_lea.vmem %s3, %s337
      %p339 = scmp.lt.s32.totalorder %s18, 1
      %s340 = scalar_select %p339, %s18, 1
      %s341 = smul.addr %s340, 6
      %s342 = smul.addr %s341, 8
      %s343 = scalar_lea.vmem %s4, %s342
      %p344 = scmp.lt.s32.totalorder %s18, 1
      %s345 = scalar_select %p344, %s18, 1
      %s346 = smul.addr %s345, 2
      %s347 = smul.addr %s346, 8
      %s348 = scalar_lea.vmem %s5, %s347
      %p349 = scmp.lt.s32.totalorder %s18, 1
      %s350 = scalar_select %p349, %s18, 1
      %s351 = smul.addr %s350, 2
      %s352 = smul.addr %s351, 8
      %s353 = scalar_lea.vmem %s6, %s352
      %p354 = scmp.lt.s32.totalorder %s18, 1
      %s355 = scalar_select %p354, %s18, 1
      %s356 = smul.addr %s355, 4
      %s357 = smul.addr %s356, 8
      %s358 = scalar_lea.vmem %s7, %s357
      %v359 = vlaneseq
      %v360 = vshrl.u32 %v359, 7
      %vm361 = vcmp.eq.s32.totalorder %v360, 0
      %v362 = vsel %vm361, 1, 0
      %v363 = vcvt.s32.f32 %v362
      %364 = vst [vmem:[#allocation2 + $0x90] sm:$0xff] %v363
      %365 = vst [vmem:[#allocation2 + $0x98] sm:$0xff] %v363
      %366 = vst [vmem:[#allocation3 + $0x120] sm:$0xff] %v363
      %367 = vst [vmem:[#allocation3 + $0x128] sm:$0xff] %v363
      %v368 = vld [vmem:[%s333] sm:$0xff]
      %v369 = vld [vmem:[%s333 + $0x8] sm:$0xff]
      %v370 = vld [vmem:[%s333 + $0x10] sm:$0xff]
      %v371 = vld [vmem:[%s333 + $0x18] sm:$0xff]
      %372 = vrot.lane.b32.xlu0 %v368, 17
      %v373 = vpop.permute.xlu0 %372
      %374 = vrot.lane.b32.xlu0 %v370, 17
      %v375 = vpop.permute.xlu0 %374
      %376 = vrot.lane.b32.xlu0 %v369, 17
      %v377 = vpop.permute.xlu0 %376
      %378 = vrot.lane.b32.xlu0 %v371, 17
      %v379 = vpop.permute.xlu0 %378
      %v380 = vlaneseq
      %v381 = vand.u32 %v380, 127
      %vm382 = vcmp.lt.s32.totalorder %v381, 17
      %v383 = vsel %vm382, %v373, %v377
      %v384 = vsel %vm382, %v375, %v379
      %v385 = vsel %vm382, %v377, %v373
      %v386 = vsel %vm382, %v379, %v375
      %v387 = vld [vmem:[%s2] sm:$0xff]
      %v388 = vld [vmem:[%s2 + $0x8] sm:$0xff]
      %v389 = vld [vmem:[%s2 + $0x10] sm:$0xff]
      %v390 = vld [vmem:[%s2 + $0x18] sm:$0xff]
      %v391 = vmul.f32 %v385, %v387
      %v392 = vmul.f32 %v383, %v388
      %v393 = vmul.f32 %v386, %v389
      %v394 = vmul.f32 %v384, %v390
      %395 = vst [vmem:[#allocation3] sm:$0xff] %v391
      %396 = vst [vmem:[#allocation3 + $0x8] sm:$0xff] %v392
      %397 = vst [vmem:[#allocation3 + $0x10] sm:$0xff] %v393
      %398 = vst [vmem:[#allocation3 + $0x18] sm:$0xff] %v394
      %399 = vrot.lane.b32.xlu0 %v368, 16
      %v400 = vpop.permute.xlu0 %399
      %401 = vrot.lane.b32.xlu0 %v370, 16
      %v402 = vpop.permute.xlu0 %401
      %403 = vrot.lane.b32.xlu0 %v369, 16
      %v404 = vpop.permute.xlu0 %403
      %405 = vrot.lane.b32.xlu0 %v371, 16
      %v406 = vpop.permute.xlu0 %405
      %vm407 = vcmp.lt.s32.totalorder %v381, 16
      %v408 = vsel %vm407, %v400, %v404
      %v409 = vsel %vm407, %v402, %v406
      %v410 = vsel %vm407, %v404, %v400
      %v411 = vsel %vm407, %v406, %v402
      %s412 = scalar_lea.vmem %s2, 32
      %v413 = vld [vmem:[%s412] sm:$0xff]
      %v414 = vld [vmem:[%s412 + $0x8] sm:$0xff]
      %v415 = vld [vmem:[%s412 + $0x10] sm:$0xff]
      %v416 = vld [vmem:[%s412 + $0x18] sm:$0xff]
      %v417 = vmul.f32 %v410, %v413
      %v418 = vmul.f32 %v408, %v414
      %v419 = vmul.f32 %v411, %v415
      %v420 = vmul.f32 %v409, %v416
      %421 = vst [vmem:[#allocation3 + $0x20] sm:$0xff] %v417
      %422 = vst [vmem:[#allocation3 + $0x28] sm:$0xff] %v418
      %423 = vst [vmem:[#allocation3 + $0x30] sm:$0xff] %v419
      %424 = vst [vmem:[#allocation3 + $0x38] sm:$0xff] %v420
      %425 = vrot.lane.b32.xlu0 %v368, 15
      %v426 = vpop.permute.xlu0 %425
      %427 = vrot.lane.b32.xlu0 %v370, 15
      %v428 = vpop.permute.xlu0 %427
      %429 = vrot.lane.b32.xlu0 %v369, 15
      %v430 = vpop.permute.xlu0 %429
      %431 = vrot.lane.b32.xlu0 %v371, 15
      %v432 = vpop.permute.xlu0 %431
      %vm433 = vcmp.lt.s32.totalorder %v381, 15
      %v434 = vsel %vm433, %v426, %v430
      %v435 = vsel %vm433, %v428, %v432
      %v436 = vsel %vm433, %v430, %v426
      %v437 = vsel %vm433, %v432, %v428
      %s438 = scalar_lea.vmem %s2, 64
      %v439 = vld [vmem:[%s438] sm:$0xff]
      %v440 = vld [vmem:[%s438 + $0x8] sm:$0xff]
      %v441 = vld [vmem:[%s438 + $0x10] sm:$0xff]
      %v442 = vld [vmem:[%s438 + $0x18] sm:$0xff]
      %v443 = vmul.f32 %v436, %v439
      %v444 = vmul.f32 %v434, %v440
      %v445 = vmul.f32 %v437, %v441
      %v446 = vmul.f32 %v435, %v442
      %447 = vst [vmem:[#allocation3 + $0x40] sm:$0xff] %v443
      %448 = vst [vmem:[#allocation3 + $0x48] sm:$0xff] %v444
      %449 = vst [vmem:[#allocation3 + $0x50] sm:$0xff] %v445
      %450 = vst [vmem:[#allocation3 + $0x58] sm:$0xff] %v446
      %451 = vrot.lane.b32.xlu0 %v368, 1
      %v452 = vpop.permute.xlu0 %451
      %453 = vrot.lane.b32.xlu0 %v370, 1
      %v454 = vpop.permute.xlu0 %453
      %455 = vrot.lane.b32.xlu0 %v369, 1
      %v456 = vpop.permute.xlu0 %455
      %457 = vrot.lane.b32.xlu0 %v371, 1
      %v458 = vpop.permute.xlu0 %457
      %vm459 = vcmp.lt.s32.totalorder %v381, 1
      %v460 = vsel %vm459, %v452, %v456
      %v461 = vsel %vm459, %v454, %v458
      %v462 = vsel %vm459, %v456, %v452
      %v463 = vsel %vm459, %v458, %v454
      %s464 = scalar_lea.vmem %s2, 96
      %v465 = vld [vmem:[%s464] sm:$0xff]
      %v466 = vld [vmem:[%s464 + $0x8] sm:$0xff]
      %v467 = vld [vmem:[%s464 + $0x10] sm:$0xff]
      %v468 = vld [vmem:[%s464 + $0x18] sm:$0xff]
      %v469 = vmul.f32 %v462, %v465
      %v470 = vmul.f32 %v460, %v466
      %v471 = vmul.f32 %v463, %v467
      %v472 = vmul.f32 %v461, %v468
      %473 = vst [vmem:[#allocation3 + $0x60] sm:$0xff] %v469
      %474 = vst [vmem:[#allocation3 + $0x68] sm:$0xff] %v470
      %475 = vst [vmem:[#allocation3 + $0x70] sm:$0xff] %v471
      %476 = vst [vmem:[#allocation3 + $0x78] sm:$0xff] %v472
      %477 = vst [vmem:[#allocation3 + $0x80] sm:$0xff] %v368
      %478 = vst [vmem:[#allocation3 + $0x88] sm:$0xff] %v369
      %479 = vst [vmem:[#allocation3 + $0x90] sm:$0xff] %v370
      %480 = vst [vmem:[#allocation3 + $0x98] sm:$0xff] %v371
      %481 = vrot.lane.b32.xlu0 %v368, 127
      %v482 = vpop.permute.xlu0 %481
      %483 = vrot.lane.b32.xlu0 %v370, 127
      %v484 = vpop.permute.xlu0 %483
      %485 = vrot.lane.b32.xlu0 %v369, 127
      %v486 = vpop.permute.xlu0 %485
      %487 = vrot.lane.b32.xlu0 %v371, 127
      %v488 = vpop.permute.xlu0 %487
      %vm489 = vcmp.lt.s32.totalorder %v381, 127
      %v490 = vsel %vm489, %v482, %v486
      %v491 = vsel %vm489, %v484, %v488
      %v492 = vsel %vm489, %v486, %v482
      %v493 = vsel %vm489, %v488, %v484
      %s494 = scalar_lea.vmem %s2, 160
      %v495 = vld [vmem:[%s494] sm:$0xff]
      %v496 = vld [vmem:[%s494 + $0x8] sm:$0xff]
      %v497 = vld [vmem:[%s494 + $0x10] sm:$0xff]
      %v498 = vld [vmem:[%s494 + $0x18] sm:$0xff]
      %v499 = vmul.f32 %v490, %v495
      %v500 = vmul.f32 %v492, %v496
      %v501 = vmul.f32 %v491, %v497
      %v502 = vmul.f32 %v493, %v498
      %503 = vst [vmem:[#allocation3 + $0xa0] sm:$0xff] %v499
      %504 = vst [vmem:[#allocation3 + $0xa8] sm:$0xff] %v500
      %505 = vst [vmem:[#allocation3 + $0xb0] sm:$0xff] %v501
      %506 = vst [vmem:[#allocation3 + $0xb8] sm:$0xff] %v502
      %507 = vrot.lane.b32.xlu0 %v368, 113
      %v508 = vpop.permute.xlu0 %507
      %509 = vrot.lane.b32.xlu0 %v370, 113
      %v510 = vpop.permute.xlu0 %509
      %511 = vrot.lane.b32.xlu0 %v369, 113
      %v512 = vpop.permute.xlu0 %511
      %513 = vrot.lane.b32.xlu0 %v371, 113
      %v514 = vpop.permute.xlu0 %513
      %vm515 = vcmp.lt.s32.totalorder %v381, 113
      %v516 = vsel %vm515, %v508, %v512
      %v517 = vsel %vm515, %v510, %v514
      %v518 = vsel %vm515, %v512, %v508
      %v519 = vsel %vm515, %v514, %v510
      %s520 = scalar_lea.vmem %s2, 192
      %v521 = vld [vmem:[%s520] sm:$0xff]
      %v522 = vld [vmem:[%s520 + $0x8] sm:$0xff]
      %v523 = vld [vmem:[%s520 + $0x10] sm:$0xff]
      %v524 = vld [vmem:[%s520 + $0x18] sm:$0xff]
      %v525 = vmul.f32 %v516, %v521
      %v526 = vmul.f32 %v518, %v522
      %v527 = vmul.f32 %v517, %v523
      %v528 = vmul.f32 %v519, %v524
      %529 = vst [vmem:[#allocation3 + $0xc0] sm:$0xff] %v525
      %530 = vst [vmem:[#allocation3 + $0xc8] sm:$0xff] %v526
      %531 = vst [vmem:[#allocation3 + $0xd0] sm:$0xff] %v527
      %532 = vst [vmem:[#allocation3 + $0xd8] sm:$0xff] %v528
      %533 = vrot.lane.b32.xlu0 %v368, 112
      %v534 = vpop.permute.xlu0 %533
      %535 = vrot.lane.b32.xlu0 %v370, 112
      %v536 = vpop.permute.xlu0 %535
      %537 = vrot.lane.b32.xlu0 %v369, 112
      %v538 = vpop.permute.xlu0 %537
      %539 = vrot.lane.b32.xlu0 %v371, 112
      %v540 = vpop.permute.xlu0 %539
      %vm541 = vcmp.lt.s32.totalorder %v381, 112
      %v542 = vsel %vm541, %v534, %v538
      %v543 = vsel %vm541, %v536, %v540
      %v544 = vsel %vm541, %v538, %v534
      %v545 = vsel %vm541, %v540, %v536
      %s546 = scalar_lea.vmem %s2, 224
      %v547 = vld [vmem:[%s546] sm:$0xff]
      %v548 = vld [vmem:[%s546 + $0x8] sm:$0xff]
      %v549 = vld [vmem:[%s546 + $0x10] sm:$0xff]
      %v550 = vld [vmem:[%s546 + $0x18] sm:$0xff]
      %v551 = vmul.f32 %v542, %v547
      %v552 = vmul.f32 %v544, %v548
      %v553 = vmul.f32 %v543, %v549
      %v554 = vmul.f32 %v545, %v550
      %555 = vst [vmem:[#allocation3 + $0xe0] sm:$0xff] %v551
      %556 = vst [vmem:[#allocation3 + $0xe8] sm:$0xff] %v552
      %557 = vst [vmem:[#allocation3 + $0xf0] sm:$0xff] %v553
      %558 = vst [vmem:[#allocation3 + $0xf8] sm:$0xff] %v554
      %559 = vrot.lane.b32.xlu0 %v368, 111
      %v560 = vpop.permute.xlu0 %559
      %561 = vrot.lane.b32.xlu0 %v370, 111
      %v562 = vpop.permute.xlu0 %561
      %563 = vrot.lane.b32.xlu0 %v369, 111
      %v564 = vpop.permute.xlu0 %563
      %565 = vrot.lane.b32.xlu0 %v371, 111
      %v566 = vpop.permute.xlu0 %565
      %vm567 = vcmp.lt.s32.totalorder %v381, 111
      %v568 = vsel %vm567, %v560, %v564
      %v569 = vsel %vm567, %v562, %v566
      %v570 = vsel %vm567, %v564, %v560
      %v571 = vsel %vm567, %v566, %v562
      %s572 = scalar_lea.vmem %s2, 256
      %v573 = vld [vmem:[%s572] sm:$0xff]
      %v574 = vld [vmem:[%s572 + $0x8] sm:$0xff]
      %v575 = vld [vmem:[%s572 + $0x10] sm:$0xff]
      %v576 = vld [vmem:[%s572 + $0x18] sm:$0xff]
      %v577 = vmul.f32 %v568, %v573
      %v578 = vmul.f32 %v570, %v574
      %v579 = vmul.f32 %v569, %v575
      %v580 = vmul.f32 %v571, %v576
      %581 = vst [vmem:[#allocation3 + $0x100] sm:$0xff] %v577
      %582 = vst [vmem:[#allocation3 + $0x108] sm:$0xff] %v578
      %583 = vst [vmem:[#allocation3 + $0x110] sm:$0xff] %v579
      %584 = vst [vmem:[#allocation3 + $0x118] sm:$0xff] %v580
      %v585 = vld [vmem:[%s343] sm:$0xff]
      %v586 = vld [vmem:[%s343 + $0x8] sm:$0xff]
      %v587 = vld [vmem:[#allocation3] sm:$0xff]
      %v588 = vld [vmem:[#allocation3 + $0x8] sm:$0xff]
      %v589 = vld [vmem:[#allocation3 + $0x10] sm:$0xff]
      %v590 = vld [vmem:[#allocation3 + $0x18] sm:$0xff]
      %v591 = vld [vmem:[#allocation3 + $0x20] sm:$0xff]
      %v592 = vld [vmem:[#allocation3 + $0x28] sm:$0xff]
      %v593 = vld [vmem:[#allocation3 + $0x30] sm:$0xff]
      %v594 = vld [vmem:[#allocation3 + $0x38] sm:$0xff]
      %v595 = vld [vmem:[#allocation3 + $0x40] sm:$0xff]
      %v596 = vld [vmem:[#allocation3 + $0x48] sm:$0xff]
      %v597 = vld [vmem:[#allocation3 + $0x50] sm:$0xff]
      %v598 = vld [vmem:[#allocation3 + $0x58] sm:$0xff]
      %v599 = vld [vmem:[#allocation3 + $0x60] sm:$0xff]
      %v600 = vld [vmem:[#allocation3 + $0x68] sm:$0xff]
      %v601 = vld [vmem:[#allocation3 + $0x70] sm:$0xff]
      %v602 = vld [vmem:[#allocation3 + $0x78] sm:$0xff]
      %v603 = vld [vmem:[#allocation3 + $0x80] sm:$0xff]
      %v604 = vld [vmem:[#allocation3 + $0x88] sm:$0xff]
      %v605 = vld [vmem:[#allocation3 + $0x90] sm:$0xff]
      %v606 = vld [vmem:[#allocation3 + $0x98] sm:$0xff]
      %v607 = vld [vmem:[#allocation3 + $0xa0] sm:$0xff]
      %v608 = vld [vmem:[#allocation3 + $0xa8] sm:$0xff]
      %v609 = vld [vmem:[#allocation3 + $0xb0] sm:$0xff]
      %v610 = vld [vmem:[#allocation3 + $0xb8] sm:$0xff]
      %v611 = vld [vmem:[#allocation3 + $0xc0] sm:$0xff]
      %v612 = vld [vmem:[#allocation3 + $0xc8] sm:$0xff]
      %v613 = vld [vmem:[#allocation3 + $0xd0] sm:$0xff]
      %v614 = vld [vmem:[#allocation3 + $0xd8] sm:$0xff]
      %v615 = vld [vmem:[#allocation3 + $0xe0] sm:$0xff]
      %v616 = vld [vmem:[#allocation3 + $0xe8] sm:$0xff]
      %v617 = vld [vmem:[#allocation3 + $0xf0] sm:$0xff]
      %v618 = vld [vmem:[#allocation3 + $0xf8] sm:$0xff]
      %v619 = vld [vmem:[#allocation3 + $0x100] sm:$0xff]
      %v620 = vld [vmem:[#allocation3 + $0x108] sm:$0xff]
      %v621 = vld [vmem:[#allocation3 + $0x110] sm:$0xff]
      %v622 = vld [vmem:[#allocation3 + $0x118] sm:$0xff]
      %v623 = vld [vmem:[#allocation3 + $0x120] sm:$0xff]
      %v624 = vld [vmem:[#allocation3 + $0x128] sm:$0xff]
      %vm625 = vcmask 195584
      %v627 = vsel %vm625, %v586, 0
      %629 = vmatprep.subr.mxu0 %v618
      %630 = vmatpush1.msra.mxu0 %v617
      %631 = vmatprep.subr.mxu0 %v616
      %632 = vmatpush1.msra.mxu0 %v615
      %633 = vmatprep.subr.mxu0 %v614
      %634 = vmatpush1.msra.mxu0 %v613
      %635 = vmatprep.subr.mxu0 %v612
      %636 = vmatpush1.msra.mxu0 %v611
      %637 = vmatprep.subr.mxu0 %v610
      %638 = vmatpush1.msra.mxu0 %v609
      %639 = vmatprep.subr.mxu0 %v608
      %640 = vmatpush1.msra.mxu0 %v607
      %641 = vmatprep.subr.mxu0 %v606
      %642 = vmatpush1.msra.mxu0 %v605
      %643 = vmatprep.subr.mxu0 %v604
      %644 = vmatpush1.msra.mxu0 %v603
      %645 = vmatprep.subr.mxu0 %v602
      %646 = vmatpush1.msra.mxu0 %v601
      %647 = vmatprep.subr.mxu0 %v600
      %648 = vmatpush1.msra.mxu0 %v599
      %649 = vmatprep.subr.mxu0 %v598
      %650 = vmatpush1.msra.mxu0 %v597
      %651 = vmatprep.subr.mxu0 %v596
      %652 = vmatpush1.msra.mxu0 %v595
      %653 = vmatprep.subr.mxu0 %v594
      %654 = vmatpush1.msra.mxu0 %v593
      %655 = vmatprep.subr.mxu0 %v592
      %656 = vmatpush1.msra.mxu0 %v591
      %657 = vmatprep.subr.mxu0 %v590
      %658 = vmatpush1.msra.mxu0 %v589
      %659 = vmatprep.subr.mxu0 %v588
      %660 = vmatpush1.msra.mxu0 %v587
      %661 = vmatprep.subr.mxu0 0.0
      %662 = vmatpush2.msra.mxu0 0.0
      %663 = vmatprep.subr.mxu0 0.0
      %664 = vmatpush2.msra.mxu0 0.0
      %665 = vmatprep.subr.mxu0 0.0
      %666 = vmatpush2.msra.mxu0 0.0
      %667 = vmatprep.subr.mxu0 0.0
      %668 = vmatpush2.msra.mxu0 0.0
      %669 = vmatprep.subr.mxu0 0.0
      %670 = vmatpush2.msra.mxu0 0.0
      %671 = vmatprep.subr.mxu0 0.0
      %672 = vmatpush2.msra.mxu0 0.0
      %673 = vmatprep.subr.mxu0 0.0
      %674 = vmatpush2.msra.mxu0 0.0
      %675 = vmatprep.subr.mxu0 0.0
      %676 = vmatpush2.msra.mxu0 0.0
      %677 = vmatprep.subr.mxu0 0.0
      %678 = vmatpush2.msra.mxu0 0.0
      %679 = vmatprep.subr.mxu0 0.0
      %680 = vmatpush2.msra.mxu0 0.0
      %681 = vmatprep.subr.mxu0 0.0
      %682 = vmatpush2.msra.mxu0 0.0
      %683 = vmatprep.subr.mxu0 0.0
      %684 = vmatpush2.msra.mxu0 0.0
      %685 = vmatprep.subr.mxu0 0.0
      %686 = vmatpush2.msra.mxu0 0.0
      %687 = vmatprep.subr.mxu0 %v624
      %688 = vmatpush2.msra.mxu0 %v623
      %689 = vmatprep.subr.mxu0 %v622
      %690 = vmatpush2.msra.mxu0 %v621
      %691 = vmatprep.subr.mxu0 %v620
      %692 = vmatpush2.msra.mxu0 %v619
      %693 = vmatprep.mubr.f32.mxu0 %v627
      %694 = vmatmul.mubr.f32.gmra.mxu0 %v585
      %v695 = vpop.f32.mrf.mxu0
      %v696 = vadd.f32 0.0, %v695
      %v697 = vpop.f32.mrf.mxu0
      %v698 = vadd.f32 0.0, %v697
      %699 = vdwg.mxu0
      %v700 = vmax.f32 %v696, 0.0
      %v701 = vmax.f32 %v698, 0.0
      %702 = vrot.lane.b32.xlu0 %v700, 17
      %v703 = vpop.permute.xlu0 %702
      %704 = vrot.lane.b32.xlu0 %v701, 17
      %v705 = vpop.permute.xlu0 %704
      %v706 = vsel %vm382, %v703, %v705
      %v707 = vsel %vm382, %v705, %v703
      %v708 = vld [vmem:[%s1] sm:$0xff]
      %v709 = vld [vmem:[%s1 + $0x8] sm:$0xff]
      %v710 = vmul.f32 %v707, %v708
      %v711 = vmul.f32 %v706, %v709
      %712 = vst [vmem:[#allocation2] sm:$0xff] %v710
      %713 = vst [vmem:[#allocation2 + $0x8] sm:$0xff] %v711
      %714 = vrot.lane.b32.xlu0 %v700, 16
      %v715 = vpop.permute.xlu0 %714
      %716 = vrot.lane.b32.xlu0 %v701, 16
      %v717 = vpop.permute.xlu0 %716
      %v718 = vsel %vm407, %v715, %v717
      %v719 = vsel %vm407, %v717, %v715
      %s720 = scalar_lea.vmem %s1, 16
      %v721 = vld [vmem:[%s720] sm:$0xff]
      %v722 = vld [vmem:[%s720 + $0x8] sm:$0xff]
      %v723 = vmul.f32 %v719, %v721
      %v724 = vmul.f32 %v718, %v722
      %725 = vst [vmem:[#allocation2 + $0x10] sm:$0xff] %v723
      %726 = vst [vmem:[#allocation2 + $0x18] sm:$0xff] %v724
      %727 = vrot.lane.b32.xlu0 %v700, 15
      %v728 = vpop.permute.xlu0 %727
      %729 = vrot.lane.b32.xlu0 %v701, 15
      %v730 = vpop.permute.xlu0 %729
      %v731 = vsel %vm433, %v728, %v730
      %v732 = vsel %vm433, %v730, %v728
      %s733 = scalar_lea.vmem %s1, 32
      %v734 = vld [vmem:[%s733] sm:$0xff]
      %v735 = vld [vmem:[%s733 + $0x8] sm:$0xff]
      %v736 = vmul.f32 %v732, %v734
      %v737 = vmul.f32 %v731, %v735
      %738 = vst [vmem:[#allocation2 + $0x20] sm:$0xff] %v736
      %739 = vst [vmem:[#allocation2 + $0x28] sm:$0xff] %v737
      %740 = vrot.lane.b32.xlu0 %v700, 1
      %v741 = vpop.permute.xlu0 %740
      %742 = vrot.lane.b32.xlu0 %v701, 1
      %v743 = vpop.permute.xlu0 %742
      %v744 = vsel %vm459, %v741, %v743
      %v745 = vsel %vm459, %v743, %v741
      %s746 = scalar_lea.vmem %s1, 48
      %v747 = vld [vmem:[%s746] sm:$0xff]
      %v748 = vld [vmem:[%s746 + $0x8] sm:$0xff]
      %v749 = vmul.f32 %v745, %v747
      %v750 = vmul.f32 %v744, %v748
      %751 = vst [vmem:[#allocation2 + $0x30] sm:$0xff] %v749
      %752 = vst [vmem:[#allocation2 + $0x38] sm:$0xff] %v750
      %753 = vst [vmem:[#allocation2 + $0x40] sm:$0xff] %v700
      %754 = vst [vmem:[#allocation2 + $0x48] sm:$0xff] %v701
      %755 = vrot.lane.b32.xlu0 %v700, 127
      %v756 = vpop.permute.xlu0 %755
      %757 = vrot.lane.b32.xlu0 %v701, 127
      %v758 = vpop.permute.xlu0 %757
      %v759 = vsel %vm489, %v756, %v758
      %v760 = vsel %vm489, %v758, %v756
      %s761 = scalar_lea.vmem %s1, 80
      %v762 = vld [vmem:[%s761] sm:$0xff]
      %v763 = vld [vmem:[%s761 + $0x8] sm:$0xff]
      %v764 = vmul.f32 %v759, %v762
      %v765 = vmul.f32 %v760, %v763
      %766 = vst [vmem:[#allocation2 + $0x50] sm:$0xff] %v764
      %767 = vst [vmem:[#allocation2 + $0x58] sm:$0xff] %v765
      %768 = vrot.lane.b32.xlu0 %v700, 113
      %v769 = vpop.permute.xlu0 %768
      %770 = vrot.lane.b32.xlu0 %v701, 113
      %v771 = vpop.permute.xlu0 %770
      %v772 = vsel %vm515, %v769, %v771
      %v773 = vsel %vm515, %v771, %v769
      %s774 = scalar_lea.vmem %s1, 96
      %v775 = vld [vmem:[%s774] sm:$0xff]
      %v776 = vld [vmem:[%s774 + $0x8] sm:$0xff]
      %v777 = vmul.f32 %v772, %v775
      %v778 = vmul.f32 %v773, %v776
      %779 = vst [vmem:[#allocation2 + $0x60] sm:$0xff] %v777
      %780 = vst [vmem:[#allocation2 + $0x68] sm:$0xff] %v778
      %781 = vrot.lane.b32.xlu0 %v700, 112
      %v782 = vpop.permute.xlu0 %781
      %783 = vrot.lane.b32.xlu0 %v701, 112
      %v784 = vpop.permute.xlu0 %783
      %v785 = vsel %vm541, %v782, %v784
      %v786 = vsel %vm541, %v784, %v782
      %s787 = scalar_lea.vmem %s1, 112
      %v788 = vld [vmem:[%s787] sm:$0xff]
      %v789 = vld [vmem:[%s787 + $0x8] sm:$0xff]
      %v790 = vmul.f32 %v785, %v788
      %v791 = vmul.f32 %v786, %v789
      %792 = vst [vmem:[#allocation2 + $0x70] sm:$0xff] %v790
      %793 = vst [vmem:[#allocation2 + $0x78] sm:$0xff] %v791
      %794 = vrot.lane.b32.xlu0 %v700, 111
      %v795 = vpop.permute.xlu0 %794
      %796 = vrot.lane.b32.xlu0 %v701, 111
      %v797 = vpop.permute.xlu0 %796
      %v798 = vsel %vm567, %v795, %v797
      %v799 = vsel %vm567, %v797, %v795
      %s800 = scalar_lea.vmem %s1, 128
      %v801 = vld [vmem:[%s800] sm:$0xff]
      %v802 = vld [vmem:[%s800 + $0x8] sm:$0xff]
      %v803 = vmul.f32 %v798, %v801
      %v804 = vmul.f32 %v799, %v802
      %805 = vst [vmem:[#allocation2 + $0x80] sm:$0xff] %v803
      %806 = vst [vmem:[#allocation2 + $0x88] sm:$0xff] %v804
      %v807 = vld [vmem:[%s338] sm:$0xff]
      %v808 = vld [vmem:[#allocation2] sm:$0xff]
      %v809 = vld [vmem:[#allocation2 + $0x8] sm:$0xff]
      %v810 = vld [vmem:[#allocation2 + $0x10] sm:$0xff]
      %v811 = vld [vmem:[#allocation2 + $0x18] sm:$0xff]
      %v812 = vld [vmem:[#allocation2 + $0x20] sm:$0xff]
      %v813 = vld [vmem:[#allocation2 + $0x28] sm:$0xff]
      %v814 = vld [vmem:[#allocation2 + $0x30] sm:$0xff]
      %v815 = vld [vmem:[#allocation2 + $0x38] sm:$0xff]
      %v816 = vld [vmem:[#allocation2 + $0x40] sm:$0xff]
      %v817 = vld [vmem:[#allocation2 + $0x48] sm:$0xff]
      %v818 = vld [vmem:[#allocation2 + $0x50] sm:$0xff]
      %v819 = vld [vmem:[#allocation2 + $0x58] sm:$0xff]
      %v820 = vld [vmem:[#allocation2 + $0x60] sm:$0xff]
      %v821 = vld [vmem:[#allocation2 + $0x68] sm:$0xff]
      %v822 = vld [vmem:[#allocation2 + $0x70] sm:$0xff]
      %v823 = vld [vmem:[#allocation2 + $0x78] sm:$0xff]
      %v824 = vld [vmem:[#allocation2 + $0x80] sm:$0xff]
      %v825 = vld [vmem:[#allocation2 + $0x88] sm:$0xff]
      %v826 = vld [vmem:[#allocation2 + $0x90] sm:$0xff]
      %v827 = vld [vmem:[#allocation2 + $0x98] sm:$0xff]
      %vm828 = vcmask 654336
      %v830 = vsel %vm828, %v807, 0
      %832 = vmatprep.subr.mxu0 0.0
      %833 = vmatpush1.msra.mxu0 0.0
      %834 = vmatprep.subr.mxu0 0.0
      %835 = vmatpush1.msra.mxu0 0.0
      %836 = vmatprep.subr.mxu0 0.0
      %837 = vmatpush1.msra.mxu0 0.0
      %838 = vmatprep.subr.mxu0 0.0
      %839 = vmatpush1.msra.mxu0 0.0
      %840 = vmatprep.subr.mxu0 0.0
      %841 = vmatpush1.msra.mxu0 0.0
      %842 = vmatprep.subr.mxu0 0.0
      %843 = vmatpush1.msra.mxu0 0.0
      %844 = vmatprep.subr.mxu0 %v827
      %845 = vmatpush1.msra.mxu0 %v826
      %846 = vmatprep.subr.mxu0 %v825
      %847 = vmatpush1.msra.mxu0 %v824
      %848 = vmatprep.subr.mxu0 %v823
      %849 = vmatpush1.msra.mxu0 %v822
      %850 = vmatprep.subr.mxu0 %v821
      %851 = vmatpush1.msra.mxu0 %v820
      %852 = vmatprep.subr.mxu0 %v819
      %853 = vmatpush1.msra.mxu0 %v818
      %854 = vmatprep.subr.mxu0 %v817
      %855 = vmatpush1.msra.mxu0 %v816
      %856 = vmatprep.subr.mxu0 %v815
      %857 = vmatpush1.msra.mxu0 %v814
      %858 = vmatprep.subr.mxu0 %v813
      %859 = vmatpush1.msra.mxu0 %v812
      %860 = vmatprep.subr.mxu0 %v811
      %861 = vmatpush1.msra.mxu0 %v810
      %862 = vmatprep.subr.mxu0 %v809
      %863 = vmatpush1.msra.mxu0 %v808
      %864 = vmatprep.subr.mxu0 0.0
      %865 = vmatpush2.msra.mxu0 0.0
      %866 = vmatprep.subr.mxu0 0.0
      %867 = vmatpush2.msra.mxu0 0.0
      %868 = vmatprep.subr.mxu0 0.0
      %869 = vmatpush2.msra.mxu0 0.0
      %870 = vmatprep.subr.mxu0 0.0
      %871 = vmatpush2.msra.mxu0 0.0
      %872 = vmatprep.subr.mxu0 0.0
      %873 = vmatpush2.msra.mxu0 0.0
      %874 = vmatprep.subr.mxu0 0.0
      %875 = vmatpush2.msra.mxu0 0.0
      %876 = vmatprep.subr.mxu0 0.0
      %877 = vmatpush2.msra.mxu0 0.0
      %878 = vmatprep.subr.mxu0 0.0
      %879 = vmatpush2.msra.mxu0 0.0
      %880 = vmatprep.subr.mxu0 0.0
      %881 = vmatpush2.msra.mxu0 0.0
      %882 = vmatprep.subr.mxu0 0.0
      %883 = vmatpush2.msra.mxu0 0.0
      %884 = vmatprep.subr.mxu0 0.0
      %885 = vmatpush2.msra.mxu0 0.0
      %886 = vmatprep.subr.mxu0 0.0
      %887 = vmatpush2.msra.mxu0 0.0
      %888 = vmatprep.subr.mxu0 0.0
      %889 = vmatpush2.msra.mxu0 0.0
      %890 = vmatprep.subr.mxu0 0.0
      %891 = vmatpush2.msra.mxu0 0.0
      %892 = vmatprep.subr.mxu0 0.0
      %893 = vmatpush2.msra.mxu0 0.0
      %894 = vmatprep.subr.mxu0 0.0
      %895 = vmatpush2.msra.mxu0 0.0
      %896 = vmatprep.mubr.f32.mxu0 0.0
      %897 = vmatmul.mubr.f32.gmra.mxu0 %v830
      %v898 = vpop.f32.mrf.mxu0
      %v899 = vadd.f32 0.0, %v898
      %v900 = vpop.f32.mrf.mxu0
      %v901 = vadd.f32 0.0, %v900
      %902 = vdwg.mxu0
      %v903 = vmax.f32 %v899, 0.0
      %v904 = vmax.f32 %v901, 0.0
      %905 = vrot.lane.b32.xlu0 %v903, 17
      %v906 = vpop.permute.xlu0 %905
      %907 = vrot.lane.b32.xlu0 %v904, 17
      %v908 = vpop.permute.xlu0 %907
      %v909 = vsel %vm382, %v906, %v908
      %v910 = vsel %vm382, %v908, %v906
      %v911 = vld [vmem:[%s1] sm:$0xff]
      %v912 = vld [vmem:[%s1 + $0x8] sm:$0xff]
      %v913 = vmul.f32 %v910, %v911
      %v914 = vmul.f32 %v909, %v912
      %915 = vst [vmem:[#allocation2] sm:$0xff] %v913
      %916 = vst [vmem:[#allocation2 + $0x8] sm:$0xff] %v914
      %917 = vrot.lane.b32.xlu0 %v903, 16
      %v918 = vpop.permute.xlu0 %917
      %919 = vrot.lane.b32.xlu0 %v904, 16
      %v920 = vpop.permute.xlu0 %919
      %v921 = vsel %vm407, %v918, %v920
      %v922 = vsel %vm407, %v920, %v918
      %v923 = vld [vmem:[%s720] sm:$0xff]
      %v924 = vld [vmem:[%s720 + $0x8] sm:$0xff]
      %v925 = vmul.f32 %v922, %v923
      %v926 = vmul.f32 %v921, %v924
      %927 = vst [vmem:[#allocation2 + $0x10] sm:$0xff] %v925
      %928 = vst [vmem:[#allocation2 + $0x18] sm:$0xff] %v926
      %929 = vrot.lane.b32.xlu0 %v903, 15
      %v930 = vpop.permute.xlu0 %929
      %931 = vrot.lane.b32.xlu0 %v904, 15
      %v932 = vpop.permute.xlu0 %931
      %v933 = vsel %vm433, %v930, %v932
      %v934 = vsel %vm433, %v932, %v930
      %v935 = vld [vmem:[%s733] sm:$0xff]
      %v936 = vld [vmem:[%s733 + $0x8] sm:$0xff]
      %v937 = vmul.f32 %v934, %v935
      %v938 = vmul.f32 %v933, %v936
      %939 = vst [vmem:[#allocation2 + $0x20] sm:$0xff] %v937
      %940 = vst [vmem:[#allocation2 + $0x28] sm:$0xff] %v938
      %941 = vrot.lane.b32.xlu0 %v903, 1
      %v942 = vpop.permute.xlu0 %941
      %943 = vrot.lane.b32.xlu0 %v904, 1
      %v944 = vpop.permute.xlu0 %943
      %v945 = vsel %vm459, %v942, %v944
      %v946 = vsel %vm459, %v944, %v942
      %v947 = vld [vmem:[%s746] sm:$0xff]
      %v948 = vld [vmem:[%s746 + $0x8] sm:$0xff]
      %v949 = vmul.f32 %v946, %v947
      %v950 = vmul.f32 %v945, %v948
      %951 = vst [vmem:[#allocation2 + $0x30] sm:$0xff] %v949
      %952 = vst [vmem:[#allocation2 + $0x38] sm:$0xff] %v950
      %953 = vst [vmem:[#allocation2 + $0x40] sm:$0xff] %v903
      %954 = vst [vmem:[#allocation2 + $0x48] sm:$0xff] %v904
      %955 = vrot.lane.b32.xlu0 %v903, 127
      %v956 = vpop.permute.xlu0 %955
      %957 = vrot.lane.b32.xlu0 %v904, 127
      %v958 = vpop.permute.xlu0 %957
      %v959 = vsel %vm489, %v956, %v958
      %v960 = vsel %vm489, %v958, %v956
      %v961 = vld [vmem:[%s761] sm:$0xff]
      %v962 = vld [vmem:[%s761 + $0x8] sm:$0xff]
      %v963 = vmul.f32 %v959, %v961
      %v964 = vmul.f32 %v960, %v962
      %965 = vst [vmem:[#allocation2 + $0x50] sm:$0xff] %v963
      %966 = vst [vmem:[#allocation2 + $0x58] sm:$0xff] %v964
      %967 = vrot.lane.b32.xlu0 %v903, 113
      %v968 = vpop.permute.xlu0 %967
      %969 = vrot.lane.b32.xlu0 %v904, 113
      %v970 = vpop.permute.xlu0 %969
      %v971 = vsel %vm515, %v968, %v970
      %v972 = vsel %vm515, %v970, %v968
      %v973 = vld [vmem:[%s774] sm:$0xff]
      %v974 = vld [vmem:[%s774 + $0x8] sm:$0xff]
      %v975 = vmul.f32 %v971, %v973
      %v976 = vmul.f32 %v972, %v974
      %977 = vst [vmem:[#allocation2 + $0x60] sm:$0xff] %v975
      %978 = vst [vmem:[#allocation2 + $0x68] sm:$0xff] %v976
      %979 = vrot.lane.b32.xlu0 %v903, 112
      %v980 = vpop.permute.xlu0 %979
      %981 = vrot.lane.b32.xlu0 %v904, 112
      %v982 = vpop.permute.xlu0 %981
      %v983 = vsel %vm541, %v980, %v982
      %v984 = vsel %vm541, %v982, %v980
      %v985 = vld [vmem:[%s787] sm:$0xff]
      %v986 = vld [vmem:[%s787 + $0x8] sm:$0xff]
      %v987 = vmul.f32 %v983, %v985
      %v988 = vmul.f32 %v984, %v986
      %989 = vst [vmem:[#allocation2 + $0x70] sm:$0xff] %v987
      %990 = vst [vmem:[#allocation2 + $0x78] sm:$0xff] %v988
      %991 = vrot.lane.b32.xlu0 %v903, 111
      %v992 = vpop.permute.xlu0 %991
      %993 = vrot.lane.b32.xlu0 %v904, 111
      %v994 = vpop.permute.xlu0 %993
      %v995 = vsel %vm567, %v992, %v994
      %v996 = vsel %vm567, %v994, %v992
      %v997 = vld [vmem:[%s800] sm:$0xff]
      %v998 = vld [vmem:[%s800 + $0x8] sm:$0xff]
      %v999 = vmul.f32 %v995, %v997
      %v1000 = vmul.f32 %v996, %v998
      %1001 = vst [vmem:[#allocation2 + $0x80] sm:$0xff] %v999
      %1002 = vst [vmem:[#allocation2 + $0x88] sm:$0xff] %v1000
      %s1003 = scalar_lea.vmem %s338, 8
      %v1004 = vld [vmem:[%s1003] sm:$0xff]
      %v1005 = vld [vmem:[#allocation2] sm:$0xff]
      %v1006 = vld [vmem:[#allocation2 + $0x8] sm:$0xff]
      %v1007 = vld [vmem:[#allocation2 + $0x10] sm:$0xff]
      %v1008 = vld [vmem:[#allocation2 + $0x18] sm:$0xff]
      %v1009 = vld [vmem:[#allocation2 + $0x20] sm:$0xff]
      %v1010 = vld [vmem:[#allocation2 + $0x28] sm:$0xff]
      %v1011 = vld [vmem:[#allocation2 + $0x30] sm:$0xff]
      %v1012 = vld [vmem:[#allocation2 + $0x38] sm:$0xff]
      %v1013 = vld [vmem:[#allocation2 + $0x40] sm:$0xff]
      %v1014 = vld [vmem:[#allocation2 + $0x48] sm:$0xff]
      %v1015 = vld [vmem:[#allocation2 + $0x50] sm:$0xff]
      %v1016 = vld [vmem:[#allocation2 + $0x58] sm:$0xff]
      %v1017 = vld [vmem:[#allocation2 + $0x60] sm:$0xff]
      %v1018 = vld [vmem:[#allocation2 + $0x68] sm:$0xff]
      %v1019 = vld [vmem:[#allocation2 + $0x70] sm:$0xff]
      %v1020 = vld [vmem:[#allocation2 + $0x78] sm:$0xff]
      %v1021 = vld [vmem:[#allocation2 + $0x80] sm:$0xff]
      %v1022 = vld [vmem:[#allocation2 + $0x88] sm:$0xff]
      %v1023 = vld [vmem:[#allocation2 + $0x90] sm:$0xff]
      %v1024 = vld [vmem:[#allocation2 + $0x98] sm:$0xff]
      %v1026 = vsel %vm828, %v1004, 0
      %1028 = vmatprep.subr.mxu0 0.0
      %1029 = vmatpush1.msra.mxu0 0.0
      %1030 = vmatprep.subr.mxu0 0.0
      %1031 = vmatpush1.msra.mxu0 0.0
      %1032 = vmatprep.subr.mxu0 0.0
      %1033 = vmatpush1.msra.mxu0 0.0
      %1034 = vmatprep.subr.mxu0 0.0
      %1035 = vmatpush1.msra.mxu0 0.0
      %1036 = vmatprep.subr.mxu0 0.0
      %1037 = vmatpush1.msra.mxu0 0.0
      %1038 = vmatprep.subr.mxu0 0.0
      %1039 = vmatpush1.msra.mxu0 0.0
      %1040 = vmatprep.subr.mxu0 %v1024
      %1041 = vmatpush1.msra.mxu0 %v1023
      %1042 = vmatprep.subr.mxu0 %v1022
      %1043 = vmatpush1.msra.mxu0 %v1021
      %1044 = vmatprep.subr.mxu0 %v1020
      %1045 = vmatpush1.msra.mxu0 %v1019
      %1046 = vmatprep.subr.mxu0 %v1018
      %1047 = vmatpush1.msra.mxu0 %v1017
      %1048 = vmatprep.subr.mxu0 %v1016
      %1049 = vmatpush1.msra.mxu0 %v1015
      %1050 = vmatprep.subr.mxu0 %v1014
      %1051 = vmatpush1.msra.mxu0 %v1013
      %1052 = vmatprep.subr.mxu0 %v1012
      %1053 = vmatpush1.msra.mxu0 %v1011
      %1054 = vmatprep.subr.mxu0 %v1010
      %1055 = vmatpush1.msra.mxu0 %v1009
      %1056 = vmatprep.subr.mxu0 %v1008
      %1057 = vmatpush1.msra.mxu0 %v1007
      %1058 = vmatprep.subr.mxu0 %v1006
      %1059 = vmatpush1.msra.mxu0 %v1005
      %1060 = vmatprep.subr.mxu0 0.0
      %1061 = vmatpush2.msra.mxu0 0.0
      %1062 = vmatprep.subr.mxu0 0.0
      %1063 = vmatpush2.msra.mxu0 0.0
      %1064 = vmatprep.subr.mxu0 0.0
      %1065 = vmatpush2.msra.mxu0 0.0
      %1066 = vmatprep.subr.mxu0 0.0
      %1067 = vmatpush2.msra.mxu0 0.0
      %1068 = vmatprep.subr.mxu0 0.0
      %1069 = vmatpush2.msra.mxu0 0.0
      %1070 = vmatprep.subr.mxu0 0.0
      %1071 = vmatpush2.msra.mxu0 0.0
      %1072 = vmatprep.subr.mxu0 0.0
      %1073 = vmatpush2.msra.mxu0 0.0
      %1074 = vmatprep.subr.mxu0 0.0
      %1075 = vmatpush2.msra.mxu0 0.0
      %1076 = vmatprep.subr.mxu0 0.0
      %1077 = vmatpush2.msra.mxu0 0.0
      %1078 = vmatprep.subr.mxu0 0.0
      %1079 = vmatpush2.msra.mxu0 0.0
      %1080 = vmatprep.subr.mxu0 0.0
      %1081 = vmatpush2.msra.mxu0 0.0
      %1082 = vmatprep.subr.mxu0 0.0
      %1083 = vmatpush2.msra.mxu0 0.0
      %1084 = vmatprep.subr.mxu0 0.0
      %1085 = vmatpush2.msra.mxu0 0.0
      %1086 = vmatprep.subr.mxu0 0.0
      %1087 = vmatpush2.msra.mxu0 0.0
      %1088 = vmatprep.subr.mxu0 0.0
      %1089 = vmatpush2.msra.mxu0 0.0
      %1090 = vmatprep.subr.mxu0 0.0
      %1091 = vmatpush2.msra.mxu0 0.0
      %1092 = vmatprep.mubr.f32.mxu0 0.0
      %1093 = vmatmul.mubr.f32.gmra.mxu0 %v1026
      %v1094 = vpop.f32.mrf.mxu0
      %v1095 = vadd.f32 0.0, %v1094
      %v1096 = vpop.f32.mrf.mxu0
      %v1097 = vadd.f32 0.0, %v1096
      %1098 = vdwg.mxu0
      %v1099 = vmax.f32 %v1095, 0.0
      %v1100 = vmax.f32 %v1097, 0.0
      %1101 = vrot.lane.b32.xlu0 %v1099, 17
      %v1102 = vpop.permute.xlu0 %1101
      %1103 = vrot.lane.b32.xlu0 %v1100, 17
      %v1104 = vpop.permute.xlu0 %1103
      %v1105 = vsel %vm382, %v1102, %v1104
      %v1106 = vsel %vm382, %v1104, %v1102
      %v1107 = vld [vmem:[%s1] sm:$0xff]
      %v1108 = vld [vmem:[%s1 + $0x8] sm:$0xff]
      %v1109 = vmul.f32 %v1106, %v1107
      %v1110 = vmul.f32 %v1105, %v1108
      %1111 = vst [vmem:[#allocation2] sm:$0xff] %v1109
      %1112 = vst [vmem:[#allocation2 + $0x8] sm:$0xff] %v1110
      %1113 = vrot.lane.b32.xlu0 %v1099, 16
      %v1114 = vpop.permute.xlu0 %1113
      %1115 = vrot.lane.b32.xlu0 %v1100, 16
      %v1116 = vpop.permute.xlu0 %1115
      %v1117 = vsel %vm407, %v1114, %v1116
      %v1118 = vsel %vm407, %v1116, %v1114
      %v1119 = vld [vmem:[%s720] sm:$0xff]
      %v1120 = vld [vmem:[%s720 + $0x8] sm:$0xff]
      %v1121 = vmul.f32 %v1118, %v1119
      %v1122 = vmul.f32 %v1117, %v1120
      %1123 = vst [vmem:[#allocation2 + $0x10] sm:$0xff] %v1121
      %1124 = vst [vmem:[#allocation2 + $0x18] sm:$0xff] %v1122
      %1125 = vrot.lane.b32.xlu0 %v1099, 15
      %v1126 = vpop.permute.xlu0 %1125
      %1127 = vrot.lane.b32.xlu0 %v1100, 15
      %v1128 = vpop.permute.xlu0 %1127
      %v1129 = vsel %vm433, %v1126, %v1128
      %v1130 = vsel %vm433, %v1128, %v1126
      %v1131 = vld [vmem:[%s733] sm:$0xff]
      %v1132 = vld [vmem:[%s733 + $0x8] sm:$0xff]
      %v1133 = vmul.f32 %v1130, %v1131
      %v1134 = vmul.f32 %v1129, %v1132
      %1135 = vst [vmem:[#allocation2 + $0x20] sm:$0xff] %v1133
      %1136 = vst [vmem:[#allocation2 + $0x28] sm:$0xff] %v1134
      %1137 = vrot.lane.b32.xlu0 %v1099, 1
      %v1138 = vpop.permute.xlu0 %1137
      %1139 = vrot.lane.b32.xlu0 %v1100, 1
      %v1140 = vpop.permute.xlu0 %1139
      %v1141 = vsel %vm459, %v1138, %v1140
      %v1142 = vsel %vm459, %v1140, %v1138
      %v1143 = vld [vmem:[%s746] sm:$0xff]
      %v1144 = vld [vmem:[%s746 + $0x8] sm:$0xff]
      %v1145 = vmul.f32 %v1142, %v1143
      %v1146 = vmul.f32 %v1141, %v1144
      %1147 = vst [vmem:[#allocation2 + $0x30] sm:$0xff] %v1145
      %1148 = vst [vmem:[#allocation2 + $0x38] sm:$0xff] %v1146
      %1149 = vst [vmem:[#allocation2 + $0x40] sm:$0xff] %v1099
      %1150 = vst [vmem:[#allocation2 + $0x48] sm:$0xff] %v1100
      %1151 = vrot.lane.b32.xlu0 %v1099, 127
      %v1152 = vpop.permute.xlu0 %1151
      %1153 = vrot.lane.b32.xlu0 %v1100, 127
      %v1154 = vpop.permute.xlu0 %1153
      %v1155 = vsel %vm489, %v1152, %v1154
      %v1156 = vsel %vm489, %v1154, %v1152
      %v1157 = vld [vmem:[%s761] sm:$0xff]
      %v1158 = vld [vmem:[%s761 + $0x8] sm:$0xff]
      %v1159 = vmul.f32 %v1155, %v1157
      %v1160 = vmul.f32 %v1156, %v1158
      %1161 = vst [vmem:[#allocation2 + $0x50] sm:$0xff] %v1159
      %1162 = vst [vmem:[#allocation2 + $0x58] sm:$0xff] %v1160
      %1163 = vrot.lane.b32.xlu0 %v1099, 113
      %v1164 = vpop.permute.xlu0 %1163
      %1165 = vrot.lane.b32.xlu0 %v1100, 113
      %v1166 = vpop.permute.xlu0 %1165
      %v1167 = vsel %vm515, %v1164, %v1166
      %v1168 = vsel %vm515, %v1166, %v1164
      %v1169 = vld [vmem:[%s774] sm:$0xff]
      %v1170 = vld [vmem:[%s774 + $0x8] sm:$0xff]
      %v1171 = vmul.f32 %v1167, %v1169
      %v1172 = vmul.f32 %v1168, %v1170
      %1173 = vst [vmem:[#allocation2 + $0x60] sm:$0xff] %v1171
      %1174 = vst [vmem:[#allocation2 + $0x68] sm:$0xff] %v1172
      %1175 = vrot.lane.b32.xlu0 %v1099, 112
      %v1176 = vpop.permute.xlu0 %1175
      %1177 = vrot.lane.b32.xlu0 %v1100, 112
      %v1178 = vpop.permute.xlu0 %1177
      %v1179 = vsel %vm541, %v1176, %v1178
      %v1180 = vsel %vm541, %v1178, %v1176
      %v1181 = vld [vmem:[%s787] sm:$0xff]
      %v1182 = vld [vmem:[%s787 + $0x8] sm:$0xff]
      %v1183 = vmul.f32 %v1179, %v1181
      %v1184 = vmul.f32 %v1180, %v1182
      %1185 = vst [vmem:[#allocation2 + $0x70] sm:$0xff] %v1183
      %1186 = vst [vmem:[#allocation2 + $0x78] sm:$0xff] %v1184
      %1187 = vrot.lane.b32.xlu0 %v1099, 111
      %v1188 = vpop.permute.xlu0 %1187
      %1189 = vrot.lane.b32.xlu0 %v1100, 111
      %v1190 = vpop.permute.xlu0 %1189
      %v1191 = vsel %vm567, %v1188, %v1190
      %v1192 = vsel %vm567, %v1190, %v1188
      %v1193 = vld [vmem:[%s800] sm:$0xff]
      %v1194 = vld [vmem:[%s800 + $0x8] sm:$0xff]
      %v1195 = vmul.f32 %v1191, %v1193
      %v1196 = vmul.f32 %v1192, %v1194
      %1197 = vst [vmem:[#allocation2 + $0x80] sm:$0xff] %v1195
      %1198 = vst [vmem:[#allocation2 + $0x88] sm:$0xff] %v1196
      %s1199 = scalar_lea.vmem %s338, 16
      %v1200 = vld [vmem:[%s1199] sm:$0xff]
      %v1201 = vld [vmem:[#allocation2] sm:$0xff]
      %v1202 = vld [vmem:[#allocation2 + $0x8] sm:$0xff]
      %v1203 = vld [vmem:[#allocation2 + $0x10] sm:$0xff]
      %v1204 = vld [vmem:[#allocation2 + $0x18] sm:$0xff]
      %v1205 = vld [vmem:[#allocation2 + $0x20] sm:$0xff]
      %v1206 = vld [vmem:[#allocation2 + $0x28] sm:$0xff]
      %v1207 = vld [vmem:[#allocation2 + $0x30] sm:$0xff]
      %v1208 = vld [vmem:[#allocation2 + $0x38] sm:$0xff]
      %v1209 = vld [vmem:[#allocation2 + $0x40] sm:$0xff]
      %v1210 = vld [vmem:[#allocation2 + $0x48] sm:$0xff]
      %v1211 = vld [vmem:[#allocation2 + $0x50] sm:$0xff]
      %v1212 = vld [vmem:[#allocation2 + $0x58] sm:$0xff]
      %v1213 = vld [vmem:[#allocation2 + $0x60] sm:$0xff]
      %v1214 = vld [vmem:[#allocation2 + $0x68] sm:$0xff]
      %v1215 = vld [vmem:[#allocation2 + $0x70] sm:$0xff]
      %v1216 = vld [vmem:[#allocation2 + $0x78] sm:$0xff]
      %v1217 = vld [vmem:[#allocation2 + $0x80] sm:$0xff]
      %v1218 = vld [vmem:[#allocation2 + $0x88] sm:$0xff]
      %v1219 = vld [vmem:[#allocation2 + $0x90] sm:$0xff]
      %v1220 = vld [vmem:[#allocation2 + $0x98] sm:$0xff]
      %v1222 = vsel %vm828, %v1200, 0
      %1224 = vmatprep.subr.mxu0 0.0
      %1225 = vmatpush1.msra.mxu0 0.0
      %1226 = vmatprep.subr.mxu0 0.0
      %1227 = vmatpush1.msra.mxu0 0.0
      %1228 = vmatprep.subr.mxu0 0.0
      %1229 = vmatpush1.msra.mxu0 0.0
      %1230 = vmatprep.subr.mxu0 0.0
      %1231 = vmatpush1.msra.mxu0 0.0
      %1232 = vmatprep.subr.mxu0 0.0
      %1233 = vmatpush1.msra.mxu0 0.0
      %1234 = vmatprep.subr.mxu0 0.0
      %1235 = vmatpush1.msra.mxu0 0.0
      %1236 = vmatprep.subr.mxu0 %v1220
      %1237 = vmatpush1.msra.mxu0 %v1219
      %1238 = vmatprep.subr.mxu0 %v1218
      %1239 = vmatpush1.msra.mxu0 %v1217
      %1240 = vmatprep.subr.mxu0 %v1216
      %1241 = vmatpush1.msra.mxu0 %v1215
      %1242 = vmatprep.subr.mxu0 %v1214
      %1243 = vmatpush1.msra.mxu0 %v1213
      %1244 = vmatprep.subr.mxu0 %v1212
      %1245 = vmatpush1.msra.mxu0 %v1211
      %1246 = vmatprep.subr.mxu0 %v1210
      %1247 = vmatpush1.msra.mxu0 %v1209
      %1248 = vmatprep.subr.mxu0 %v1208
      %1249 = vmatpush1.msra.mxu0 %v1207
      %1250 = vmatprep.subr.mxu0 %v1206
      %1251 = vmatpush1.msra.mxu0 %v1205
      %1252 = vmatprep.subr.mxu0 %v1204
      %1253 = vmatpush1.msra.mxu0 %v1203
      %1254 = vmatprep.subr.mxu0 %v1202
      %1255 = vmatpush1.msra.mxu0 %v1201
      %1256 = vmatprep.subr.mxu0 0.0
      %1257 = vmatpush2.msra.mxu0 0.0
      %1258 = vmatprep.subr.mxu0 0.0
      %1259 = vmatpush2.msra.mxu0 0.0
      %1260 = vmatprep.subr.mxu0 0.0
      %1261 = vmatpush2.msra.mxu0 0.0
      %1262 = vmatprep.subr.mxu0 0.0
      %1263 = vmatpush2.msra.mxu0 0.0
      %1264 = vmatprep.subr.mxu0 0.0
      %1265 = vmatpush2.msra.mxu0 0.0
      %1266 = vmatprep.subr.mxu0 0.0
      %1267 = vmatpush2.msra.mxu0 0.0
      %1268 = vmatprep.subr.mxu0 0.0
      %1269 = vmatpush2.msra.mxu0 0.0
      %1270 = vmatprep.subr.mxu0 0.0
      %1271 = vmatpush2.msra.mxu0 0.0
      %1272 = vmatprep.subr.mxu0 0.0
      %1273 = vmatpush2.msra.mxu0 0.0
      %1274 = vmatprep.subr.mxu0 0.0
      %1275 = vmatpush2.msra.mxu0 0.0
      %1276 = vmatprep.subr.mxu0 0.0
      %1277 = vmatpush2.msra.mxu0 0.0
      %1278 = vmatprep.subr.mxu0 0.0
      %1279 = vmatpush2.msra.mxu0 0.0
      %1280 = vmatprep.subr.mxu0 0.0
      %1281 = vmatpush2.msra.mxu0 0.0
      %1282 = vmatprep.subr.mxu0 0.0
      %1283 = vmatpush2.msra.mxu0 0.0
      %1284 = vmatprep.subr.mxu0 0.0
      %1285 = vmatpush2.msra.mxu0 0.0
      %1286 = vmatprep.subr.mxu0 0.0
      %1287 = vmatpush2.msra.mxu0 0.0
      %1288 = vmatprep.mubr.f32.mxu0 0.0
      %1289 = vmatmul.mubr.f32.gmra.mxu0 %v1222
      %v1290 = vpop.f32.mrf.mxu0
      %v1291 = vadd.f32 0.0, %v1290
      %v1292 = vpop.f32.mrf.mxu0
      %v1293 = vadd.f32 0.0, %v1292
      %1294 = vdwg.mxu0
      %v1295 = vmax.f32 %v1291, 0.0
      %v1296 = vmax.f32 %v1293, 0.0
      %1297 = vrot.lane.b32.xlu0 %v1295, 17
      %v1298 = vpop.permute.xlu0 %1297
      %1299 = vrot.lane.b32.xlu0 %v1296, 17
      %v1300 = vpop.permute.xlu0 %1299
      %v1301 = vsel %vm382, %v1298, %v1300
      %v1302 = vsel %vm382, %v1300, %v1298
      %v1303 = vld [vmem:[%s1] sm:$0xff]
      %v1304 = vld [vmem:[%s1 + $0x8] sm:$0xff]
      %v1305 = vmul.f32 %v1302, %v1303
      %v1306 = vmul.f32 %v1301, %v1304
      %1307 = vst [vmem:[#allocation2] sm:$0xff] %v1305
      %1308 = vst [vmem:[#allocation2 + $0x8] sm:$0xff] %v1306
      %1309 = vrot.lane.b32.xlu0 %v1295, 16
      %v1310 = vpop.permute.xlu0 %1309
      %1311 = vrot.lane.b32.xlu0 %v1296, 16
      %v1312 = vpop.permute.xlu0 %1311
      %v1313 = vsel %vm407, %v1310, %v1312
      %v1314 = vsel %vm407, %v1312, %v1310
      %v1315 = vld [vmem:[%s720] sm:$0xff]
      %v1316 = vld [vmem:[%s720 + $0x8] sm:$0xff]
      %v1317 = vmul.f32 %v1314, %v1315
      %v1318 = vmul.f32 %v1313, %v1316
      %1319 = vst [vmem:[#allocation2 + $0x10] sm:$0xff] %v1317
      %1320 = vst [vmem:[#allocation2 + $0x18] sm:$0xff] %v1318
      %1321 = vrot.lane.b32.xlu0 %v1295, 15
      %v1322 = vpop.permute.xlu0 %1321
      %1323 = vrot.lane.b32.xlu0 %v1296, 15
      %v1324 = vpop.permute.xlu0 %1323
      %v1325 = vsel %vm433, %v1322, %v1324
      %v1326 = vsel %vm433, %v1324, %v1322
      %v1327 = vld [vmem:[%s733] sm:$0xff]
      %v1328 = vld [vmem:[%s733 + $0x8] sm:$0xff]
      %v1329 = vmul.f32 %v1326, %v1327
      %v1330 = vmul.f32 %v1325, %v1328
      %1331 = vst [vmem:[#allocation2 + $0x20] sm:$0xff] %v1329
      %1332 = vst [vmem:[#allocation2 + $0x28] sm:$0xff] %v1330
      %1333 = vrot.lane.b32.xlu0 %v1295, 1
      %v1334 = vpop.permute.xlu0 %1333
      %1335 = vrot.lane.b32.xlu0 %v1296, 1
      %v1336 = vpop.permute.xlu0 %1335
      %v1337 = vsel %vm459, %v1334, %v1336
      %v1338 = vsel %vm459, %v1336, %v1334
      %v1339 = vld [vmem:[%s746] sm:$0xff]
      %v1340 = vld [vmem:[%s746 + $0x8] sm:$0xff]
      %v1341 = vmul.f32 %v1338, %v1339
      %v1342 = vmul.f32 %v1337, %v1340
      %1343 = vst [vmem:[#allocation2 + $0x30] sm:$0xff] %v1341
      %1344 = vst [vmem:[#allocation2 + $0x38] sm:$0xff] %v1342
      %1345 = vst [vmem:[#allocation2 + $0x40] sm:$0xff] %v1295
      %1346 = vst [vmem:[#allocation2 + $0x48] sm:$0xff] %v1296
      %1347 = vrot.lane.b32.xlu0 %v1295, 127
      %v1348 = vpop.permute.xlu0 %1347
      %1349 = vrot.lane.b32.xlu0 %v1296, 127
      %v1350 = vpop.permute.xlu0 %1349
      %v1351 = vsel %vm489, %v1348, %v1350
      %v1352 = vsel %vm489, %v1350, %v1348
      %v1353 = vld [vmem:[%s761] sm:$0xff]
      %v1354 = vld [vmem:[%s761 + $0x8] sm:$0xff]
      %v1355 = vmul.f32 %v1351, %v1353
      %v1356 = vmul.f32 %v1352, %v1354
      %1357 = vst [vmem:[#allocation2 + $0x50] sm:$0xff] %v1355
      %1358 = vst [vmem:[#allocation2 + $0x58] sm:$0xff] %v1356
      %1359 = vrot.lane.b32.xlu0 %v1295, 113
      %v1360 = vpop.permute.xlu0 %1359
      %1361 = vrot.lane.b32.xlu0 %v1296, 113
      %v1362 = vpop.permute.xlu0 %1361
      %v1363 = vsel %vm515, %v1360, %v1362
      %v1364 = vsel %vm515, %v1362, %v1360
      %v1365 = vld [vmem:[%s774] sm:$0xff]
      %v1366 = vld [vmem:[%s774 + $0x8] sm:$0xff]
      %v1367 = vmul.f32 %v1363, %v1365
      %v1368 = vmul.f32 %v1364, %v1366
      %1369 = vst [vmem:[#allocation2 + $0x60] sm:$0xff] %v1367
      %1370 = vst [vmem:[#allocation2 + $0x68] sm:$0xff] %v1368
      %1371 = vrot.lane.b32.xlu0 %v1295, 112
      %v1372 = vpop.permute.xlu0 %1371
      %1373 = vrot.lane.b32.xlu0 %v1296, 112
      %v1374 = vpop.permute.xlu0 %1373
      %v1375 = vsel %vm541, %v1372, %v1374
      %v1376 = vsel %vm541, %v1374, %v1372
      %v1377 = vld [vmem:[%s787] sm:$0xff]
      %v1378 = vld [vmem:[%s787 + $0x8] sm:$0xff]
      %v1379 = vmul.f32 %v1375, %v1377
      %v1380 = vmul.f32 %v1376, %v1378
      %1381 = vst [vmem:[#allocation2 + $0x70] sm:$0xff] %v1379
      %1382 = vst [vmem:[#allocation2 + $0x78] sm:$0xff] %v1380
      %1383 = vrot.lane.b32.xlu0 %v1295, 111
      %v1384 = vpop.permute.xlu0 %1383
      %1385 = vrot.lane.b32.xlu0 %v1296, 111
      %v1386 = vpop.permute.xlu0 %1385
      %v1387 = vsel %vm567, %v1384, %v1386
      %v1388 = vsel %vm567, %v1386, %v1384
      %v1389 = vld [vmem:[%s800] sm:$0xff]
      %v1390 = vld [vmem:[%s800 + $0x8] sm:$0xff]
      %v1391 = vmul.f32 %v1387, %v1389
      %v1392 = vmul.f32 %v1388, %v1390
      %1393 = vst [vmem:[#allocation2 + $0x80] sm:$0xff] %v1391
      %1394 = vst [vmem:[#allocation2 + $0x88] sm:$0xff] %v1392
      %s1395 = scalar_lea.vmem %s338, 24
      %v1396 = vld [vmem:[%s1395] sm:$0xff]
      %v1397 = vld [vmem:[#allocation2] sm:$0xff]
      %v1398 = vld [vmem:[#allocation2 + $0x8] sm:$0xff]
      %v1399 = vld [vmem:[#allocation2 + $0x10] sm:$0xff]
      %v1400 = vld [vmem:[#allocation2 + $0x18] sm:$0xff]
      %v1401 = vld [vmem:[#allocation2 + $0x20] sm:$0xff]
      %v1402 = vld [vmem:[#allocation2 + $0x28] sm:$0xff]
      %v1403 = vld [vmem:[#allocation2 + $0x30] sm:$0xff]
      %v1404 = vld [vmem:[#allocation2 + $0x38] sm:$0xff]
      %v1405 = vld [vmem:[#allocation2 + $0x40] sm:$0xff]
      %v1406 = vld [vmem:[#allocation2 + $0x48] sm:$0xff]
      %v1407 = vld [vmem:[#allocation2 + $0x50] sm:$0xff]
      %v1408 = vld [vmem:[#allocation2 + $0x58] sm:$0xff]
      %v1409 = vld [vmem:[#allocation2 + $0x60] sm:$0xff]
      %v1410 = vld [vmem:[#allocation2 + $0x68] sm:$0xff]
      %v1411 = vld [vmem:[#allocation2 + $0x70] sm:$0xff]
      %v1412 = vld [vmem:[#allocation2 + $0x78] sm:$0xff]
      %v1413 = vld [vmem:[#allocation2 + $0x80] sm:$0xff]
      %v1414 = vld [vmem:[#allocation2 + $0x88] sm:$0xff]
      %v1415 = vld [vmem:[#allocation2 + $0x90] sm:$0xff]
      %v1416 = vld [vmem:[#allocation2 + $0x98] sm:$0xff]
      %v1418 = vsel %vm828, %v1396, 0
      %1420 = vmatprep.subr.mxu0 0.0
      %1421 = vmatpush1.msra.mxu0 0.0
      %1422 = vmatprep.subr.mxu0 0.0
      %1423 = vmatpush1.msra.mxu0 0.0
      %1424 = vmatprep.subr.mxu0 0.0
      %1425 = vmatpush1.msra.mxu0 0.0
      %1426 = vmatprep.subr.mxu0 0.0
      %1427 = vmatpush1.msra.mxu0 0.0
      %1428 = vmatprep.subr.mxu0 0.0
      %1429 = vmatpush1.msra.mxu0 0.0
      %1430 = vmatprep.subr.mxu0 0.0
      %1431 = vmatpush1.msra.mxu0 0.0
      %1432 = vmatprep.subr.mxu0 %v1416
      %1433 = vmatpush1.msra.mxu0 %v1415
      %1434 = vmatprep.subr.mxu0 %v1414
      %1435 = vmatpush1.msra.mxu0 %v1413
      %1436 = vmatprep.subr.mxu0 %v1412
      %1437 = vmatpush1.msra.mxu0 %v1411
      %1438 = vmatprep.subr.mxu0 %v1410
      %1439 = vmatpush1.msra.mxu0 %v1409
      %1440 = vmatprep.subr.mxu0 %v1408
      %1441 = vmatpush1.msra.mxu0 %v1407
      %1442 = vmatprep.subr.mxu0 %v1406
      %1443 = vmatpush1.msra.mxu0 %v1405
      %1444 = vmatprep.subr.mxu0 %v1404
      %1445 = vmatpush1.msra.mxu0 %v1403
      %1446 = vmatprep.subr.mxu0 %v1402
      %1447 = vmatpush1.msra.mxu0 %v1401
      %1448 = vmatprep.subr.mxu0 %v1400
      %1449 = vmatpush1.msra.mxu0 %v1399
      %1450 = vmatprep.subr.mxu0 %v1398
      %1451 = vmatpush1.msra.mxu0 %v1397
      %1452 = vmatprep.subr.mxu0 0.0
      %1453 = vmatpush2.msra.mxu0 0.0
      %1454 = vmatprep.subr.mxu0 0.0
      %1455 = vmatpush2.msra.mxu0 0.0
      %1456 = vmatprep.subr.mxu0 0.0
      %1457 = vmatpush2.msra.mxu0 0.0
      %1458 = vmatprep.subr.mxu0 0.0
      %1459 = vmatpush2.msra.mxu0 0.0
      %1460 = vmatprep.subr.mxu0 0.0
      %1461 = vmatpush2.msra.mxu0 0.0
      %1462 = vmatprep.subr.mxu0 0.0
      %1463 = vmatpush2.msra.mxu0 0.0
      %1464 = vmatprep.subr.mxu0 0.0
      %1465 = vmatpush2.msra.mxu0 0.0
      %1466 = vmatprep.subr.mxu0 0.0
      %1467 = vmatpush2.msra.mxu0 0.0
      %1468 = vmatprep.subr.mxu0 0.0
      %1469 = vmatpush2.msra.mxu0 0.0
      %1470 = vmatprep.subr.mxu0 0.0
      %1471 = vmatpush2.msra.mxu0 0.0
      %1472 = vmatprep.subr.mxu0 0.0
      %1473 = vmatpush2.msra.mxu0 0.0
      %1474 = vmatprep.subr.mxu0 0.0
      %1475 = vmatpush2.msra.mxu0 0.0
      %1476 = vmatprep.subr.mxu0 0.0
      %1477 = vmatpush2.msra.mxu0 0.0
      %1478 = vmatprep.subr.mxu0 0.0
      %1479 = vmatpush2.msra.mxu0 0.0
      %1480 = vmatprep.subr.mxu0 0.0
      %1481 = vmatpush2.msra.mxu0 0.0
      %1482 = vmatprep.subr.mxu0 0.0
      %1483 = vmatpush2.msra.mxu0 0.0
      %1484 = vmatprep.mubr.f32.mxu0 0.0
      %1485 = vmatmul.mubr.f32.gmra.mxu0 %v1418
      %v1486 = vpop.f32.mrf.mxu0
      %v1487 = vadd.f32 0.0, %v1486
      %v1488 = vpop.f32.mrf.mxu0
      %v1489 = vadd.f32 0.0, %v1488
      %1490 = vdwg.mxu0
      %v1491 = vmax.f32 %v1487, 0.0
      %v1492 = vmax.f32 %v1489, 0.0
      %1493 = vrot.lane.b32.xlu0 %v1491, 17
      %v1494 = vpop.permute.xlu0 %1493
      %1495 = vrot.lane.b32.xlu0 %v1492, 17
      %v1496 = vpop.permute.xlu0 %1495
      %v1497 = vsel %vm382, %v1494, %v1496
      %v1498 = vsel %vm382, %v1496, %v1494
      %v1499 = vld [vmem:[%s1] sm:$0xff]
      %v1500 = vld [vmem:[%s1 + $0x8] sm:$0xff]
      %v1501 = vmul.f32 %v1498, %v1499
      %v1502 = vmul.f32 %v1497, %v1500
      %1503 = vst [vmem:[#allocation2] sm:$0xff] %v1501
      %1504 = vst [vmem:[#allocation2 + $0x8] sm:$0xff] %v1502
      %1505 = vrot.lane.b32.xlu0 %v1491, 16
      %v1506 = vpop.permute.xlu0 %1505
      %1507 = vrot.lane.b32.xlu0 %v1492, 16
      %v1508 = vpop.permute.xlu0 %1507
      %v1509 = vsel %vm407, %v1506, %v1508
      %v1510 = vsel %vm407, %v1508, %v1506
      %v1511 = vld [vmem:[%s720] sm:$0xff]
      %v1512 = vld [vmem:[%s720 + $0x8] sm:$0xff]
      %v1513 = vmul.f32 %v1510, %v1511
      %v1514 = vmul.f32 %v1509, %v1512
      %1515 = vst [vmem:[#allocation2 + $0x10] sm:$0xff] %v1513
      %1516 = vst [vmem:[#allocation2 + $0x18] sm:$0xff] %v1514
      %1517 = vrot.lane.b32.xlu0 %v1491, 15
      %v1518 = vpop.permute.xlu0 %1517
      %1519 = vrot.lane.b32.xlu0 %v1492, 15
      %v1520 = vpop.permute.xlu0 %1519
      %v1521 = vsel %vm433, %v1518, %v1520
      %v1522 = vsel %vm433, %v1520, %v1518
      %v1523 = vld [vmem:[%s733] sm:$0xff]
      %v1524 = vld [vmem:[%s733 + $0x8] sm:$0xff]
      %v1525 = vmul.f32 %v1522, %v1523
      %v1526 = vmul.f32 %v1521, %v1524
      %1527 = vst [vmem:[#allocation2 + $0x20] sm:$0xff] %v1525
      %1528 = vst [vmem:[#allocation2 + $0x28] sm:$0xff] %v1526
      %1529 = vrot.lane.b32.xlu0 %v1491, 1
      %v1530 = vpop.permute.xlu0 %1529
      %1531 = vrot.lane.b32.xlu0 %v1492, 1
      %v1532 = vpop.permute.xlu0 %1531
      %v1533 = vsel %vm459, %v1530, %v1532
      %v1534 = vsel %vm459, %v1532, %v1530
      %v1535 = vld [vmem:[%s746] sm:$0xff]
      %v1536 = vld [vmem:[%s746 + $0x8] sm:$0xff]
      %v1537 = vmul.f32 %v1534, %v1535
      %v1538 = vmul.f32 %v1533, %v1536
      %1539 = vst [vmem:[#allocation2 + $0x30] sm:$0xff] %v1537
      %1540 = vst [vmem:[#allocation2 + $0x38] sm:$0xff] %v1538
      %1541 = vst [vmem:[#allocation2 + $0x40] sm:$0xff] %v1491
      %1542 = vst [vmem:[#allocation2 + $0x48] sm:$0xff] %v1492
      %1543 = vrot.lane.b32.xlu0 %v1491, 127
      %v1544 = vpop.permute.xlu0 %1543
      %1545 = vrot.lane.b32.xlu0 %v1492, 127
      %v1546 = vpop.permute.xlu0 %1545
      %v1547 = vsel %vm489, %v1544, %v1546
      %v1548 = vsel %vm489, %v1546, %v1544
      %v1549 = vld [vmem:[%s761] sm:$0xff]
      %v1550 = vld [vmem:[%s761 + $0x8] sm:$0xff]
      %v1551 = vmul.f32 %v1547, %v1549
      %v1552 = vmul.f32 %v1548, %v1550
      %1553 = vst [vmem:[#allocation2 + $0x50] sm:$0xff] %v1551
      %1554 = vst [vmem:[#allocation2 + $0x58] sm:$0xff] %v1552
      %1555 = vrot.lane.b32.xlu0 %v1491, 113
      %v1556 = vpop.permute.xlu0 %1555
      %1557 = vrot.lane.b32.xlu0 %v1492, 113
      %v1558 = vpop.permute.xlu0 %1557
      %v1559 = vsel %vm515, %v1556, %v1558
      %v1560 = vsel %vm515, %v1558, %v1556
      %v1561 = vld [vmem:[%s774] sm:$0xff]
      %v1562 = vld [vmem:[%s774 + $0x8] sm:$0xff]
      %v1563 = vmul.f32 %v1559, %v1561
      %v1564 = vmul.f32 %v1560, %v1562
      %1565 = vst [vmem:[#allocation2 + $0x60] sm:$0xff] %v1563
      %1566 = vst [vmem:[#allocation2 + $0x68] sm:$0xff] %v1564
      %1567 = vrot.lane.b32.xlu0 %v1491, 112
      %v1568 = vpop.permute.xlu0 %1567
      %1569 = vrot.lane.b32.xlu0 %v1492, 112
      %v1570 = vpop.permute.xlu0 %1569
      %v1571 = vsel %vm541, %v1568, %v1570
      %v1572 = vsel %vm541, %v1570, %v1568
      %v1573 = vld [vmem:[%s787] sm:$0xff]
      %v1574 = vld [vmem:[%s787 + $0x8] sm:$0xff]
      %v1575 = vmul.f32 %v1571, %v1573
      %v1576 = vmul.f32 %v1572, %v1574
      %1577 = vst [vmem:[#allocation2 + $0x70] sm:$0xff] %v1575
      %1578 = vst [vmem:[#allocation2 + $0x78] sm:$0xff] %v1576
      %1579 = vrot.lane.b32.xlu0 %v1491, 111
      %v1580 = vpop.permute.xlu0 %1579
      %1581 = vrot.lane.b32.xlu0 %v1492, 111
      %v1582 = vpop.permute.xlu0 %1581
      %v1583 = vsel %vm567, %v1580, %v1582
      %v1584 = vsel %vm567, %v1582, %v1580
      %v1585 = vld [vmem:[%s800] sm:$0xff]
      %v1586 = vld [vmem:[%s800 + $0x8] sm:$0xff]
      %v1587 = vmul.f32 %v1583, %v1585
      %v1588 = vmul.f32 %v1584, %v1586
      %1589 = vst [vmem:[#allocation2 + $0x80] sm:$0xff] %v1587
      %1590 = vst [vmem:[#allocation2 + $0x88] sm:$0xff] %v1588
      %s1591 = scalar_lea.vmem %s338, 32
      %v1592 = vld [vmem:[%s1591] sm:$0xff]
      %v1593 = vld [vmem:[#allocation2] sm:$0xff]
      %v1594 = vld [vmem:[#allocation2 + $0x8] sm:$0xff]
      %v1595 = vld [vmem:[#allocation2 + $0x10] sm:$0xff]
      %v1596 = vld [vmem:[#allocation2 + $0x18] sm:$0xff]
      %v1597 = vld [vmem:[#allocation2 + $0x20] sm:$0xff]
      %v1598 = vld [vmem:[#allocation2 + $0x28] sm:$0xff]
      %v1599 = vld [vmem:[#allocation2 + $0x30] sm:$0xff]
      %v1600 = vld [vmem:[#allocation2 + $0x38] sm:$0xff]
      %v1601 = vld [vmem:[#allocation2 + $0x40] sm:$0xff]
      %v1602 = vld [vmem:[#allocation2 + $0x48] sm:$0xff]
      %v1603 = vld [vmem:[#allocation2 + $0x50] sm:$0xff]
      %v1604 = vld [vmem:[#allocation2 + $0x58] sm:$0xff]
      %v1605 = vld [vmem:[#allocation2 + $0x60] sm:$0xff]
      %v1606 = vld [vmem:[#allocation2 + $0x68] sm:$0xff]
      %v1607 = vld [vmem:[#allocation2 + $0x70] sm:$0xff]
      %v1608 = vld [vmem:[#allocation2 + $0x78] sm:$0xff]
      %v1609 = vld [vmem:[#allocation2 + $0x80] sm:$0xff]
      %v1610 = vld [vmem:[#allocation2 + $0x88] sm:$0xff]
      %v1611 = vld [vmem:[#allocation2 + $0x90] sm:$0xff]
      %v1612 = vld [vmem:[#allocation2 + $0x98] sm:$0xff]
      %v1614 = vsel %vm828, %v1592, 0
      %1616 = vmatprep.subr.mxu0 0.0
      %1617 = vmatpush1.msra.mxu0 0.0
      %1618 = vmatprep.subr.mxu0 0.0
      %1619 = vmatpush1.msra.mxu0 0.0
      %1620 = vmatprep.subr.mxu0 0.0
      %1621 = vmatpush1.msra.mxu0 0.0
      %1622 = vmatprep.subr.mxu0 0.0
      %1623 = vmatpush1.msra.mxu0 0.0
      %1624 = vmatprep.subr.mxu0 0.0
      %1625 = vmatpush1.msra.mxu0 0.0
      %1626 = vmatprep.subr.mxu0 0.0
      %1627 = vmatpush1.msra.mxu0 0.0
      %1628 = vmatprep.subr.mxu0 %v1612
      %1629 = vmatpush1.msra.mxu0 %v1611
      %1630 = vmatprep.subr.mxu0 %v1610
      %1631 = vmatpush1.msra.mxu0 %v1609
      %1632 = vmatprep.subr.mxu0 %v1608
      %1633 = vmatpush1.msra.mxu0 %v1607
      %1634 = vmatprep.subr.mxu0 %v1606
      %1635 = vmatpush1.msra.mxu0 %v1605
      %1636 = vmatprep.subr.mxu0 %v1604
      %1637 = vmatpush1.msra.mxu0 %v1603
      %1638 = vmatprep.subr.mxu0 %v1602
      %1639 = vmatpush1.msra.mxu0 %v1601
      %1640 = vmatprep.subr.mxu0 %v1600
      %1641 = vmatpush1.msra.mxu0 %v1599
      %1642 = vmatprep.subr.mxu0 %v1598
      %1643 = vmatpush1.msra.mxu0 %v1597
      %1644 = vmatprep.subr.mxu0 %v1596
      %1645 = vmatpush1.msra.mxu0 %v1595
      %1646 = vmatprep.subr.mxu0 %v1594
      %1647 = vmatpush1.msra.mxu0 %v1593
      %1648 = vmatprep.subr.mxu0 0.0
      %1649 = vmatpush2.msra.mxu0 0.0
      %1650 = vmatprep.subr.mxu0 0.0
      %1651 = vmatpush2.msra.mxu0 0.0
      %1652 = vmatprep.subr.mxu0 0.0
      %1653 = vmatpush2.msra.mxu0 0.0
      %1654 = vmatprep.subr.mxu0 0.0
      %1655 = vmatpush2.msra.mxu0 0.0
      %1656 = vmatprep.subr.mxu0 0.0
      %1657 = vmatpush2.msra.mxu0 0.0
      %1658 = vmatprep.subr.mxu0 0.0
      %1659 = vmatpush2.msra.mxu0 0.0
      %1660 = vmatprep.subr.mxu0 0.0
      %1661 = vmatpush2.msra.mxu0 0.0
      %1662 = vmatprep.subr.mxu0 0.0
      %1663 = vmatpush2.msra.mxu0 0.0
      %1664 = vmatprep.subr.mxu0 0.0
      %1665 = vmatpush2.msra.mxu0 0.0
      %1666 = vmatprep.subr.mxu0 0.0
      %1667 = vmatpush2.msra.mxu0 0.0
      %1668 = vmatprep.subr.mxu0 0.0
      %1669 = vmatpush2.msra.mxu0 0.0
      %1670 = vmatprep.subr.mxu0 0.0
      %1671 = vmatpush2.msra.mxu0 0.0
      %1672 = vmatprep.subr.mxu0 0.0
      %1673 = vmatpush2.msra.mxu0 0.0
      %1674 = vmatprep.subr.mxu0 0.0
      %1675 = vmatpush2.msra.mxu0 0.0
      %1676 = vmatprep.subr.mxu0 0.0
      %1677 = vmatpush2.msra.mxu0 0.0
      %1678 = vmatprep.subr.mxu0 0.0
      %1679 = vmatpush2.msra.mxu0 0.0
      %1680 = vmatprep.mubr.f32.mxu0 0.0
      %1681 = vmatmul.mubr.f32.gmra.mxu0 %v1614
      %v1682 = vpop.f32.mrf.mxu0
      %v1683 = vadd.f32 0.0, %v1682
      %v1684 = vpop.f32.mrf.mxu0
      %v1685 = vadd.f32 0.0, %v1684
      %1686 = vdwg.mxu0
      %v1687 = vmax.f32 %v1683, 0.0
      %v1688 = vmax.f32 %v1685, 0.0
      %1689 = vrot.lane.b32.xlu0 %v1687, 17
      %v1690 = vpop.permute.xlu0 %1689
      %1691 = vrot.lane.b32.xlu0 %v1688, 17
      %v1692 = vpop.permute.xlu0 %1691
      %v1693 = vsel %vm382, %v1690, %v1692
      %v1694 = vsel %vm382, %v1692, %v1690
      %v1695 = vld [vmem:[%s1] sm:$0xff]
      %v1696 = vld [vmem:[%s1 + $0x8] sm:$0xff]
      %v1697 = vmul.f32 %v1694, %v1695
      %v1698 = vmul.f32 %v1693, %v1696
      %1699 = vst [vmem:[#allocation2] sm:$0xff] %v1697
      %1700 = vst [vmem:[#allocation2 + $0x8] sm:$0xff] %v1698
      %1701 = vrot.lane.b32.xlu0 %v1687, 16
      %v1702 = vpop.permute.xlu0 %1701
      %1703 = vrot.lane.b32.xlu0 %v1688, 16
      %v1704 = vpop.permute.xlu0 %1703
      %v1705 = vsel %vm407, %v1702, %v1704
      %v1706 = vsel %vm407, %v1704, %v1702
      %v1707 = vld [vmem:[%s720] sm:$0xff]
      %v1708 = vld [vmem:[%s720 + $0x8] sm:$0xff]
      %v1709 = vmul.f32 %v1706, %v1707
      %v1710 = vmul.f32 %v1705, %v1708
      %1711 = vst [vmem:[#allocation2 + $0x10] sm:$0xff] %v1709
      %1712 = vst [vmem:[#allocation2 + $0x18] sm:$0xff] %v1710
      %1713 = vrot.lane.b32.xlu0 %v1687, 15
      %v1714 = vpop.permute.xlu0 %1713
      %1715 = vrot.lane.b32.xlu0 %v1688, 15
      %v1716 = vpop.permute.xlu0 %1715
      %v1717 = vsel %vm433, %v1714, %v1716
      %v1718 = vsel %vm433, %v1716, %v1714
      %v1719 = vld [vmem:[%s733] sm:$0xff]
      %v1720 = vld [vmem:[%s733 + $0x8] sm:$0xff]
      %v1721 = vmul.f32 %v1718, %v1719
      %v1722 = vmul.f32 %v1717, %v1720
      %1723 = vst [vmem:[#allocation2 + $0x20] sm:$0xff] %v1721
      %1724 = vst [vmem:[#allocation2 + $0x28] sm:$0xff] %v1722
      %1725 = vrot.lane.b32.xlu0 %v1687, 1
      %v1726 = vpop.permute.xlu0 %1725
      %1727 = vrot.lane.b32.xlu0 %v1688, 1
      %v1728 = vpop.permute.xlu0 %1727
      %v1729 = vsel %vm459, %v1726, %v1728
      %v1730 = vsel %vm459, %v1728, %v1726
      %v1731 = vld [vmem:[%s746] sm:$0xff]
      %v1732 = vld [vmem:[%s746 + $0x8] sm:$0xff]
      %v1733 = vmul.f32 %v1730, %v1731
      %v1734 = vmul.f32 %v1729, %v1732
      %1735 = vst [vmem:[#allocation2 + $0x30] sm:$0xff] %v1733
      %1736 = vst [vmem:[#allocation2 + $0x38] sm:$0xff] %v1734
      %1737 = vst [vmem:[#allocation2 + $0x40] sm:$0xff] %v1687
      %1738 = vst [vmem:[#allocation2 + $0x48] sm:$0xff] %v1688
      %1739 = vrot.lane.b32.xlu0 %v1687, 127
      %v1740 = vpop.permute.xlu0 %1739
      %1741 = vrot.lane.b32.xlu0 %v1688, 127
      %v1742 = vpop.permute.xlu0 %1741
      %v1743 = vsel %vm489, %v1740, %v1742
      %v1744 = vsel %vm489, %v1742, %v1740
      %v1745 = vld [vmem:[%s761] sm:$0xff]
      %v1746 = vld [vmem:[%s761 + $0x8] sm:$0xff]
      %v1747 = vmul.f32 %v1743, %v1745
      %v1748 = vmul.f32 %v1744, %v1746
      %1749 = vst [vmem:[#allocation2 + $0x50] sm:$0xff] %v1747
      %1750 = vst [vmem:[#allocation2 + $0x58] sm:$0xff] %v1748
      %1751 = vrot.lane.b32.xlu0 %v1687, 113
      %v1752 = vpop.permute.xlu0 %1751
      %1753 = vrot.lane.b32.xlu0 %v1688, 113
      %v1754 = vpop.permute.xlu0 %1753
      %v1755 = vsel %vm515, %v1752, %v1754
      %v1756 = vsel %vm515, %v1754, %v1752
      %v1757 = vld [vmem:[%s774] sm:$0xff]
      %v1758 = vld [vmem:[%s774 + $0x8] sm:$0xff]
      %v1759 = vmul.f32 %v1755, %v1757
      %v1760 = vmul.f32 %v1756, %v1758
      %1761 = vst [vmem:[#allocation2 + $0x60] sm:$0xff] %v1759
      %1762 = vst [vmem:[#allocation2 + $0x68] sm:$0xff] %v1760
      %1763 = vrot.lane.b32.xlu0 %v1687, 112
      %v1764 = vpop.permute.xlu0 %1763
      %1765 = vrot.lane.b32.xlu0 %v1688, 112
      %v1766 = vpop.permute.xlu0 %1765
      %v1767 = vsel %vm541, %v1764, %v1766
      %v1768 = vsel %vm541, %v1766, %v1764
      %v1769 = vld [vmem:[%s787] sm:$0xff]
      %v1770 = vld [vmem:[%s787 + $0x8] sm:$0xff]
      %v1771 = vmul.f32 %v1767, %v1769
      %v1772 = vmul.f32 %v1768, %v1770
      %1773 = vst [vmem:[#allocation2 + $0x70] sm:$0xff] %v1771
      %1774 = vst [vmem:[#allocation2 + $0x78] sm:$0xff] %v1772
      %1775 = vrot.lane.b32.xlu0 %v1687, 111
      %v1776 = vpop.permute.xlu0 %1775
      %1777 = vrot.lane.b32.xlu0 %v1688, 111
      %v1778 = vpop.permute.xlu0 %1777
      %v1779 = vsel %vm567, %v1776, %v1778
      %v1780 = vsel %vm567, %v1778, %v1776
      %v1781 = vld [vmem:[%s800] sm:$0xff]
      %v1782 = vld [vmem:[%s800 + $0x8] sm:$0xff]
      %v1783 = vmul.f32 %v1779, %v1781
      %v1784 = vmul.f32 %v1780, %v1782
      %1785 = vst [vmem:[#allocation2 + $0x80] sm:$0xff] %v1783
      %1786 = vst [vmem:[#allocation2 + $0x88] sm:$0xff] %v1784
      %s1787 = scalar_lea.vmem %s338, 40
      %v1788 = vld [vmem:[%s1787] sm:$0xff]
      %v1789 = vld [vmem:[#allocation2] sm:$0xff]
      %v1790 = vld [vmem:[#allocation2 + $0x8] sm:$0xff]
      %v1791 = vld [vmem:[#allocation2 + $0x10] sm:$0xff]
      %v1792 = vld [vmem:[#allocation2 + $0x18] sm:$0xff]
      %v1793 = vld [vmem:[#allocation2 + $0x20] sm:$0xff]
      %v1794 = vld [vmem:[#allocation2 + $0x28] sm:$0xff]
      %v1795 = vld [vmem:[#allocation2 + $0x30] sm:$0xff]
      %v1796 = vld [vmem:[#allocation2 + $0x38] sm:$0xff]
      %v1797 = vld [vmem:[#allocation2 + $0x40] sm:$0xff]
      %v1798 = vld [vmem:[#allocation2 + $0x48] sm:$0xff]
      %v1799 = vld [vmem:[#allocation2 + $0x50] sm:$0xff]
      %v1800 = vld [vmem:[#allocation2 + $0x58] sm:$0xff]
      %v1801 = vld [vmem:[#allocation2 + $0x60] sm:$0xff]
      %v1802 = vld [vmem:[#allocation2 + $0x68] sm:$0xff]
      %v1803 = vld [vmem:[#allocation2 + $0x70] sm:$0xff]
      %v1804 = vld [vmem:[#allocation2 + $0x78] sm:$0xff]
      %v1805 = vld [vmem:[#allocation2 + $0x80] sm:$0xff]
      %v1806 = vld [vmem:[#allocation2 + $0x88] sm:$0xff]
      %v1807 = vld [vmem:[#allocation2 + $0x90] sm:$0xff]
      %v1808 = vld [vmem:[#allocation2 + $0x98] sm:$0xff]
      %v1810 = vsel %vm828, %v1788, 0
      %1812 = vmatprep.subr.mxu0 0.0
      %1813 = vmatpush1.msra.mxu0 0.0
      %1814 = vmatprep.subr.mxu0 0.0
      %1815 = vmatpush1.msra.mxu0 0.0
      %1816 = vmatprep.subr.mxu0 0.0
      %1817 = vmatpush1.msra.mxu0 0.0
      %1818 = vmatprep.subr.mxu0 0.0
      %1819 = vmatpush1.msra.mxu0 0.0
      %1820 = vmatprep.subr.mxu0 0.0
      %1821 = vmatpush1.msra.mxu0 0.0
      %1822 = vmatprep.subr.mxu0 0.0
      %1823 = vmatpush1.msra.mxu0 0.0
      %1824 = vmatprep.subr.mxu0 %v1808
      %1825 = vmatpush1.msra.mxu0 %v1807
      %1826 = vmatprep.subr.mxu0 %v1806
      %1827 = vmatpush1.msra.mxu0 %v1805
      %1828 = vmatprep.subr.mxu0 %v1804
      %1829 = vmatpush1.msra.mxu0 %v1803
      %1830 = vmatprep.subr.mxu0 %v1802
      %1831 = vmatpush1.msra.mxu0 %v1801
      %1832 = vmatprep.subr.mxu0 %v1800
      %1833 = vmatpush1.msra.mxu0 %v1799
      %1834 = vmatprep.subr.mxu0 %v1798
      %1835 = vmatpush1.msra.mxu0 %v1797
      %1836 = vmatprep.subr.mxu0 %v1796
      %1837 = vmatpush1.msra.mxu0 %v1795
      %1838 = vmatprep.subr.mxu0 %v1794
      %1839 = vmatpush1.msra.mxu0 %v1793
      %1840 = vmatprep.subr.mxu0 %v1792
      %1841 = vmatpush1.msra.mxu0 %v1791
      %1842 = vmatprep.subr.mxu0 %v1790
      %1843 = vmatpush1.msra.mxu0 %v1789
      %1844 = vmatprep.subr.mxu0 0.0
      %1845 = vmatpush2.msra.mxu0 0.0
      %1846 = vmatprep.subr.mxu0 0.0
      %1847 = vmatpush2.msra.mxu0 0.0
      %1848 = vmatprep.subr.mxu0 0.0
      %1849 = vmatpush2.msra.mxu0 0.0
      %1850 = vmatprep.subr.mxu0 0.0
      %1851 = vmatpush2.msra.mxu0 0.0
      %1852 = vmatprep.subr.mxu0 0.0
      %1853 = vmatpush2.msra.mxu0 0.0
      %1854 = vmatprep.subr.mxu0 0.0
      %1855 = vmatpush2.msra.mxu0 0.0
      %1856 = vmatprep.subr.mxu0 0.0
      %1857 = vmatpush2.msra.mxu0 0.0
      %1858 = vmatprep.subr.mxu0 0.0
      %1859 = vmatpush2.msra.mxu0 0.0
      %1860 = vmatprep.subr.mxu0 0.0
      %1861 = vmatpush2.msra.mxu0 0.0
      %1862 = vmatprep.subr.mxu0 0.0
      %1863 = vmatpush2.msra.mxu0 0.0
      %1864 = vmatprep.subr.mxu0 0.0
      %1865 = vmatpush2.msra.mxu0 0.0
      %1866 = vmatprep.subr.mxu0 0.0
      %1867 = vmatpush2.msra.mxu0 0.0
      %1868 = vmatprep.subr.mxu0 0.0
      %1869 = vmatpush2.msra.mxu0 0.0
      %1870 = vmatprep.subr.mxu0 0.0
      %1871 = vmatpush2.msra.mxu0 0.0
      %1872 = vmatprep.subr.mxu0 0.0
      %1873 = vmatpush2.msra.mxu0 0.0
      %1874 = vmatprep.subr.mxu0 0.0
      %1875 = vmatpush2.msra.mxu0 0.0
      %1876 = vmatprep.mubr.f32.mxu0 0.0
      %1877 = vmatmul.mubr.f32.gmra.mxu0 %v1810
      %v1878 = vpop.f32.mrf.mxu0
      %v1879 = vadd.f32 0.0, %v1878
      %v1880 = vpop.f32.mrf.mxu0
      %v1881 = vadd.f32 0.0, %v1880
      %1882 = vdwg.mxu0
      %v1883 = vmax.f32 %v1879, 0.0
      %v1884 = vmax.f32 %v1881, 0.0
      %s1885 = scalar_lea.vmem %s343, 16
      %v1886 = vld [vmem:[%s1885] sm:$0xff]
      %v1887 = vld [vmem:[%s1885 + $0x8] sm:$0xff]
      %v1888 = vld [vmem:[#allocation3] sm:$0xff]
      %v1889 = vld [vmem:[#allocation3 + $0x8] sm:$0xff]
      %v1890 = vld [vmem:[#allocation3 + $0x10] sm:$0xff]
      %v1891 = vld [vmem:[#allocation3 + $0x18] sm:$0xff]
      %v1892 = vld [vmem:[#allocation3 + $0x20] sm:$0xff]
      %v1893 = vld [vmem:[#allocation3 + $0x28] sm:$0xff]
      %v1894 = vld [vmem:[#allocation3 + $0x30] sm:$0xff]
      %v1895 = vld [vmem:[#allocation3 + $0x38] sm:$0xff]
      %v1896 = vld [vmem:[#allocation3 + $0x40] sm:$0xff]
      %v1897 = vld [vmem:[#allocation3 + $0x48] sm:$0xff]
      %v1898 = vld [vmem:[#allocation3 + $0x50] sm:$0xff]
      %v1899 = vld [vmem:[#allocation3 + $0x58] sm:$0xff]
      %v1900 = vld [vmem:[#allocation3 + $0x60] sm:$0xff]
      %v1901 = vld [vmem:[#allocation3 + $0x68] sm:$0xff]
      %v1902 = vld [vmem:[#allocation3 + $0x70] sm:$0xff]
      %v1903 = vld [vmem:[#allocation3 + $0x78] sm:$0xff]
      %v1904 = vld [vmem:[#allocation3 + $0x80] sm:$0xff]
      %v1905 = vld [vmem:[#allocation3 + $0x88] sm:$0xff]
      %v1906 = vld [vmem:[#allocation3 + $0x90] sm:$0xff]
      %v1907 = vld [vmem:[#allocation3 + $0x98] sm:$0xff]
      %v1908 = vld [vmem:[#allocation3 + $0xa0] sm:$0xff]
      %v1909 = vld [vmem:[#allocation3 + $0xa8] sm:$0xff]
      %v1910 = vld [vmem:[#allocation3 + $0xb0] sm:$0xff]
      %v1911 = vld [vmem:[#allocation3 + $0xb8] sm:$0xff]
      %v1912 = vld [vmem:[#allocation3 + $0xc0] sm:$0xff]
      %v1913 = vld [vmem:[#allocation3 + $0xc8] sm:$0xff]
      %v1914 = vld [vmem:[#allocation3 + $0xd0] sm:$0xff]
      %v1915 = vld [vmem:[#allocation3 + $0xd8] sm:$0xff]
      %v1916 = vld [vmem:[#allocation3 + $0xe0] sm:$0xff]
      %v1917 = vld [vmem:[#allocation3 + $0xe8] sm:$0xff]
      %v1918 = vld [vmem:[#allocation3 + $0xf0] sm:$0xff]
      %v1919 = vld [vmem:[#allocation3 + $0xf8] sm:$0xff]
      %v1920 = vld [vmem:[#allocation3 + $0x100] sm:$0xff]
      %v1921 = vld [vmem:[#allocation3 + $0x108] sm:$0xff]
      %v1922 = vld [vmem:[#allocation3 + $0x110] sm:$0xff]
      %v1923 = vld [vmem:[#allocation3 + $0x118] sm:$0xff]
      %v1924 = vld [vmem:[#allocation3 + $0x120] sm:$0xff]
      %v1925 = vld [vmem:[#allocation3 + $0x128] sm:$0xff]
      %1926 = vrot.lane.b32.xlu0 %v1883, 17
      %v1927 = vpop.permute.xlu0 %1926
      %1928 = vrot.lane.b32.xlu0 %v1884, 17
      %v1929 = vpop.permute.xlu0 %1928
      %v1930 = vsel %vm382, %v1927, %v1929
      %v1931 = vsel %vm382, %v1929, %v1927
      %v1932 = vld [vmem:[%s1] sm:$0xff]
      %v1933 = vld [vmem:[%s1 + $0x8] sm:$0xff]
      %v1934 = vmul.f32 %v1931, %v1932
      %v1935 = vmul.f32 %v1930, %v1933
      %1936 = vst [vmem:[#allocation2] sm:$0xff] %v1934
      %1937 = vst [vmem:[#allocation2 + $0x8] sm:$0xff] %v1935
      %1938 = vrot.lane.b32.xlu0 %v1883, 16
      %v1939 = vpop.permute.xlu0 %1938
      %1940 = vrot.lane.b32.xlu0 %v1884, 16
      %v1941 = vpop.permute.xlu0 %1940
      %v1942 = vsel %vm407, %v1939, %v1941
      %v1943 = vsel %vm407, %v1941, %v1939
      %v1944 = vld [vmem:[%s720] sm:$0xff]
      %v1945 = vld [vmem:[%s720 + $0x8] sm:$0xff]
      %v1946 = vmul.f32 %v1943, %v1944
      %v1947 = vmul.f32 %v1942, %v1945
      %1948 = vst [vmem:[#allocation2 + $0x10] sm:$0xff] %v1946
      %1949 = vst [vmem:[#allocation2 + $0x18] sm:$0xff] %v1947
      %1950 = vrot.lane.b32.xlu0 %v1883, 15
      %v1951 = vpop.permute.xlu0 %1950
      %1952 = vrot.lane.b32.xlu0 %v1884, 15
      %v1953 = vpop.permute.xlu0 %1952
      %v1954 = vsel %vm433, %v1951, %v1953
      %v1955 = vsel %vm433, %v1953, %v1951
      %v1956 = vld [vmem:[%s733] sm:$0xff]
      %v1957 = vld [vmem:[%s733 + $0x8] sm:$0xff]
      %v1958 = vmul.f32 %v1955, %v1956
      %v1959 = vmul.f32 %v1954, %v1957
      %1960 = vst [vmem:[#allocation2 + $0x20] sm:$0xff] %v1958
      %1961 = vst [vmem:[#allocation2 + $0x28] sm:$0xff] %v1959
      %1962 = vrot.lane.b32.xlu0 %v1883, 1
      %v1963 = vpop.permute.xlu0 %1962
      %1964 = vrot.lane.b32.xlu0 %v1884, 1
      %v1965 = vpop.permute.xlu0 %1964
      %v1966 = vsel %vm459, %v1963, %v1965
      %v1967 = vsel %vm459, %v1965, %v1963
      %v1968 = vld [vmem:[%s746] sm:$0xff]
      %v1969 = vld [vmem:[%s746 + $0x8] sm:$0xff]
      %v1970 = vmul.f32 %v1967, %v1968
      %v1971 = vmul.f32 %v1966, %v1969
      %1972 = vst [vmem:[#allocation2 + $0x30] sm:$0xff] %v1970
      %1973 = vst [vmem:[#allocation2 + $0x38] sm:$0xff] %v1971
      %1974 = vst [vmem:[#allocation2 + $0x40] sm:$0xff] %v1883
      %1975 = vst [vmem:[#allocation2 + $0x48] sm:$0xff] %v1884
      %1976 = vrot.lane.b32.xlu0 %v1883, 127
      %v1977 = vpop.permute.xlu0 %1976
      %1978 = vrot.lane.b32.xlu0 %v1884, 127
      %v1979 = vpop.permute.xlu0 %1978
      %v1980 = vsel %vm489, %v1977, %v1979
      %v1981 = vsel %vm489, %v1979, %v1977
      %v1982 = vld [vmem:[%s761] sm:$0xff]
      %v1983 = vld [vmem:[%s761 + $0x8] sm:$0xff]
      %v1984 = vmul.f32 %v1980, %v1982
      %v1985 = vmul.f32 %v1981, %v1983
      %1986 = vst [vmem:[#allocation2 + $0x50] sm:$0xff] %v1984
      %1987 = vst [vmem:[#allocation2 + $0x58] sm:$0xff] %v1985
      %1988 = vrot.lane.b32.xlu0 %v1883, 113
      %v1989 = vpop.permute.xlu0 %1988
      %1990 = vrot.lane.b32.xlu0 %v1884, 113
      %v1991 = vpop.permute.xlu0 %1990
      %v1992 = vsel %vm515, %v1989, %v1991
      %v1993 = vsel %vm515, %v1991, %v1989
      %v1994 = vld [vmem:[%s774] sm:$0xff]
      %v1995 = vld [vmem:[%s774 + $0x8] sm:$0xff]
      %v1996 = vmul.f32 %v1992, %v1994
      %v1997 = vmul.f32 %v1993, %v1995
      %1998 = vst [vmem:[#allocation2 + $0x60] sm:$0xff] %v1996
      %1999 = vst [vmem:[#allocation2 + $0x68] sm:$0xff] %v1997
      %2000 = vrot.lane.b32.xlu0 %v1883, 112
      %v2001 = vpop.permute.xlu0 %2000
      %2002 = vrot.lane.b32.xlu0 %v1884, 112
      %v2003 = vpop.permute.xlu0 %2002
      %v2004 = vsel %vm541, %v2001, %v2003
      %v2005 = vsel %vm541, %v2003, %v2001
      %v2006 = vld [vmem:[%s787] sm:$0xff]
      %v2007 = vld [vmem:[%s787 + $0x8] sm:$0xff]
      %v2008 = vmul.f32 %v2004, %v2006
      %v2009 = vmul.f32 %v2005, %v2007
      %2010 = vst [vmem:[#allocation2 + $0x70] sm:$0xff] %v2008
      %2011 = vst [vmem:[#allocation2 + $0x78] sm:$0xff] %v2009
      %2012 = vrot.lane.b32.xlu0 %v1883, 111
      %v2013 = vpop.permute.xlu0 %2012
      %2014 = vrot.lane.b32.xlu0 %v1884, 111
      %v2015 = vpop.permute.xlu0 %2014
      %v2016 = vsel %vm567, %v2013, %v2015
      %v2017 = vsel %vm567, %v2015, %v2013
      %v2018 = vld [vmem:[%s800] sm:$0xff]
      %v2019 = vld [vmem:[%s800 + $0x8] sm:$0xff]
      %v2020 = vmul.f32 %v2016, %v2018
      %v2021 = vmul.f32 %v2017, %v2019
      %2022 = vst [vmem:[#allocation2 + $0x80] sm:$0xff] %v2020
      %2023 = vst [vmem:[#allocation2 + $0x88] sm:$0xff] %v2021
      %s2024 = scalar_lea.vmem %s338, 48
      %v2025 = vld [vmem:[%s2024] sm:$0xff]
      %v2026 = vld [vmem:[#allocation2] sm:$0xff]
      %v2027 = vld [vmem:[#allocation2 + $0x8] sm:$0xff]
      %v2028 = vld [vmem:[#allocation2 + $0x10] sm:$0xff]
      %v2029 = vld [vmem:[#allocation2 + $0x18] sm:$0xff]
      %v2030 = vld [vmem:[#allocation2 + $0x20] sm:$0xff]
      %v2031 = vld [vmem:[#allocation2 + $0x28] sm:$0xff]
      %v2032 = vld [vmem:[#allocation2 + $0x30] sm:$0xff]
      %v2033 = vld [vmem:[#allocation2 + $0x38] sm:$0xff]
      %v2034 = vld [vmem:[#allocation2 + $0x40] sm:$0xff]
      %v2035 = vld [vmem:[#allocation2 + $0x48] sm:$0xff]
      %v2036 = vld [vmem:[#allocation2 + $0x50] sm:$0xff]
      %v2037 = vld [vmem:[#allocation2 + $0x58] sm:$0xff]
      %v2038 = vld [vmem:[#allocation2 + $0x60] sm:$0xff]
      %v2039 = vld [vmem:[#allocation2 + $0x68] sm:$0xff]
      %v2040 = vld [vmem:[#allocation2 + $0x70] sm:$0xff]
      %v2041 = vld [vmem:[#allocation2 + $0x78] sm:$0xff]
      %v2042 = vld [vmem:[#allocation2 + $0x80] sm:$0xff]
      %v2043 = vld [vmem:[#allocation2 + $0x88] sm:$0xff]
      %v2044 = vld [vmem:[#allocation2 + $0x90] sm:$0xff]
      %v2045 = vld [vmem:[#allocation2 + $0x98] sm:$0xff]
      %v2047 = vsel %vm828, %v2025, 0
      %2049 = vmatprep.subr.mxu0 0.0
      %2050 = vmatpush1.msra.mxu0 0.0
      %2051 = vmatprep.subr.mxu0 0.0
      %2052 = vmatpush1.msra.mxu0 0.0
      %2053 = vmatprep.subr.mxu0 0.0
      %2054 = vmatpush1.msra.mxu0 0.0
      %2055 = vmatprep.subr.mxu0 0.0
      %2056 = vmatpush1.msra.mxu0 0.0
      %2057 = vmatprep.subr.mxu0 0.0
      %2058 = vmatpush1.msra.mxu0 0.0
      %2059 = vmatprep.subr.mxu0 0.0
      %2060 = vmatpush1.msra.mxu0 0.0
      %2061 = vmatprep.subr.mxu0 %v2045
      %2062 = vmatpush1.msra.mxu0 %v2044
      %2063 = vmatprep.subr.mxu0 %v2043
      %2064 = vmatpush1.msra.mxu0 %v2042
      %2065 = vmatprep.subr.mxu0 %v2041
      %2066 = vmatpush1.msra.mxu0 %v2040
      %2067 = vmatprep.subr.mxu0 %v2039
      %2068 = vmatpush1.msra.mxu0 %v2038
      %2069 = vmatprep.subr.mxu0 %v2037
      %2070 = vmatpush1.msra.mxu0 %v2036
      %2071 = vmatprep.subr.mxu0 %v2035
      %2072 = vmatpush1.msra.mxu0 %v2034
      %2073 = vmatprep.subr.mxu0 %v2033
      %2074 = vmatpush1.msra.mxu0 %v2032
      %2075 = vmatprep.subr.mxu0 %v2031
      %2076 = vmatpush1.msra.mxu0 %v2030
      %2077 = vmatprep.subr.mxu0 %v2029
      %2078 = vmatpush1.msra.mxu0 %v2028
      %2079 = vmatprep.subr.mxu0 %v2027
      %2080 = vmatpush1.msra.mxu0 %v2026
      %2081 = vmatprep.subr.mxu0 0.0
      %2082 = vmatpush2.msra.mxu0 0.0
      %2083 = vmatprep.subr.mxu0 0.0
      %2084 = vmatpush2.msra.mxu0 0.0
      %2085 = vmatprep.subr.mxu0 0.0
      %2086 = vmatpush2.msra.mxu0 0.0
      %2087 = vmatprep.subr.mxu0 0.0
      %2088 = vmatpush2.msra.mxu0 0.0
      %2089 = vmatprep.subr.mxu0 0.0
      %2090 = vmatpush2.msra.mxu0 0.0
      %2091 = vmatprep.subr.mxu0 0.0
      %2092 = vmatpush2.msra.mxu0 0.0
      %2093 = vmatprep.subr.mxu0 0.0
      %2094 = vmatpush2.msra.mxu0 0.0
      %2095 = vmatprep.subr.mxu0 0.0
      %2096 = vmatpush2.msra.mxu0 0.0
      %2097 = vmatprep.subr.mxu0 0.0
      %2098 = vmatpush2.msra.mxu0 0.0
      %2099 = vmatprep.subr.mxu0 0.0
      %2100 = vmatpush2.msra.mxu0 0.0
      %2101 = vmatprep.subr.mxu0 0.0
      %2102 = vmatpush2.msra.mxu0 0.0
      %2103 = vmatprep.subr.mxu0 0.0
      %2104 = vmatpush2.msra.mxu0 0.0
      %2105 = vmatprep.subr.mxu0 0.0
      %2106 = vmatpush2.msra.mxu0 0.0
      %2107 = vmatprep.subr.mxu0 0.0
      %2108 = vmatpush2.msra.mxu0 0.0
      %2109 = vmatprep.subr.mxu0 0.0
      %2110 = vmatpush2.msra.mxu0 0.0
      %2111 = vmatprep.subr.mxu0 0.0
      %2112 = vmatpush2.msra.mxu0 0.0
      %2113 = vmatprep.mubr.f32.mxu0 0.0
      %2114 = vmatmul.mubr.f32.gmra.mxu0 %v2047
      %v2115 = vpop.f32.mrf.mxu0
      %v2116 = vadd.f32 0.0, %v2115
      %v2117 = vpop.f32.mrf.mxu0
      %v2118 = vadd.f32 0.0, %v2117
      %2119 = vdwg.mxu0
      %v2121 = vsel %vm625, %v1887, 0
      %2123 = vmatprep.subr.mxu0 %v1919
      %2124 = vmatpush1.msra.mxu0 %v1918
      %2125 = vmatprep.subr.mxu0 %v1917
      %2126 = vmatpush1.msra.mxu0 %v1916
      %2127 = vmatprep.subr.mxu0 %v1915
      %2128 = vmatpush1.msra.mxu0 %v1914
      %2129 = vmatprep.subr.mxu0 %v1913
      %2130 = vmatpush1.msra.mxu0 %v1912
      %2131 = vmatprep.subr.mxu0 %v1911
      %2132 = vmatpush1.msra.mxu0 %v1910
      %2133 = vmatprep.subr.mxu0 %v1909
      %2134 = vmatpush1.msra.mxu0 %v1908
      %2135 = vmatprep.subr.mxu0 %v1907
      %2136 = vmatpush1.msra.mxu0 %v1906
      %2137 = vmatprep.subr.mxu0 %v1905
      %2138 = vmatpush1.msra.mxu0 %v1904
      %2139 = vmatprep.subr.mxu0 %v1903
      %2140 = vmatpush1.msra.mxu0 %v1902
      %2141 = vmatprep.subr.mxu0 %v1901
      %2142 = vmatpush1.msra.mxu0 %v1900
      %2143 = vmatprep.subr.mxu0 %v1899
      %2144 = vmatpush1.msra.mxu0 %v1898
      %2145 = vmatprep.subr.mxu0 %v1897
      %2146 = vmatpush1.msra.mxu0 %v1896
      %2147 = vmatprep.subr.mxu0 %v1895
      %2148 = vmatpush1.msra.mxu0 %v1894
      %2149 = vmatprep.subr.mxu0 %v1893
      %2150 = vmatpush1.msra.mxu0 %v1892
      %2151 = vmatprep.subr.mxu0 %v1891
      %2152 = vmatpush1.msra.mxu0 %v1890
      %2153 = vmatprep.subr.mxu0 %v1889
      %2154 = vmatpush1.msra.mxu0 %v1888
      %2155 = vmatprep.subr.mxu0 0.0
      %2156 = vmatpush2.msra.mxu0 0.0
      %2157 = vmatprep.subr.mxu0 0.0
      %2158 = vmatpush2.msra.mxu0 0.0
      %2159 = vmatprep.subr.mxu0 0.0
      %2160 = vmatpush2.msra.mxu0 0.0
      %2161 = vmatprep.subr.mxu0 0.0
      %2162 = vmatpush2.msra.mxu0 0.0
      %2163 = vmatprep.subr.mxu0 0.0
      %2164 = vmatpush2.msra.mxu0 0.0
      %2165 = vmatprep.subr.mxu0 0.0
      %2166 = vmatpush2.msra.mxu0 0.0
      %2167 = vmatprep.subr.mxu0 0.0
      %2168 = vmatpush2.msra.mxu0 0.0
      %2169 = vmatprep.subr.mxu0 0.0
      %2170 = vmatpush2.msra.mxu0 0.0
      %2171 = vmatprep.subr.mxu0 0.0
      %2172 = vmatpush2.msra.mxu0 0.0
      %2173 = vmatprep.subr.mxu0 0.0
      %2174 = vmatpush2.msra.mxu0 0.0
      %2175 = vmatprep.subr.mxu0 0.0
      %2176 = vmatpush2.msra.mxu0 0.0
      %2177 = vmatprep.subr.mxu0 0.0
      %2178 = vmatpush2.msra.mxu0 0.0
      %2179 = vmatprep.subr.mxu0 0.0
      %2180 = vmatpush2.msra.mxu0 0.0
      %2181 = vmatprep.subr.mxu0 %v1925
      %2182 = vmatpush2.msra.mxu0 %v1924
      %2183 = vmatprep.subr.mxu0 %v1923
      %2184 = vmatpush2.msra.mxu0 %v1922
      %2185 = vmatprep.subr.mxu0 %v1921
      %2186 = vmatpush2.msra.mxu0 %v1920
      %2187 = vmatprep.mubr.f32.mxu0 %v2121
      %2188 = vmatmul.mubr.f32.gmra.mxu0 %v1886
      %v2189 = vpop.f32.mrf.mxu0
      %v2190 = vadd.f32 %v2116, %v2189
      %v2191 = vpop.f32.mrf.mxu0
      %v2192 = vadd.f32 %v2118, %v2191
      %2193 = vdwg.mxu0
      %v2194 = vmax.f32 %v2190, 0.0
      %v2195 = vmax.f32 %v2192, 0.0
      %2196 = vrot.lane.b32.xlu0 %v2194, 17
      %v2197 = vpop.permute.xlu0 %2196
      %2198 = vrot.lane.b32.xlu0 %v2195, 17
      %v2199 = vpop.permute.xlu0 %2198
      %v2200 = vsel %vm382, %v2197, %v2199
      %v2201 = vsel %vm382, %v2199, %v2197
      %v2202 = vld [vmem:[%s1] sm:$0xff]
      %v2203 = vld [vmem:[%s1 + $0x8] sm:$0xff]
      %v2204 = vmul.f32 %v2201, %v2202
      %v2205 = vmul.f32 %v2200, %v2203
      %2206 = vst [vmem:[#allocation2] sm:$0xff] %v2204
      %2207 = vst [vmem:[#allocation2 + $0x8] sm:$0xff] %v2205
      %2208 = vrot.lane.b32.xlu0 %v2194, 16
      %v2209 = vpop.permute.xlu0 %2208
      %2210 = vrot.lane.b32.xlu0 %v2195, 16
      %v2211 = vpop.permute.xlu0 %2210
      %v2212 = vsel %vm407, %v2209, %v2211
      %v2213 = vsel %vm407, %v2211, %v2209
      %v2214 = vld [vmem:[%s720] sm:$0xff]
      %v2215 = vld [vmem:[%s720 + $0x8] sm:$0xff]
      %v2216 = vmul.f32 %v2213, %v2214
      %v2217 = vmul.f32 %v2212, %v2215
      %2218 = vst [vmem:[#allocation2 + $0x10] sm:$0xff] %v2216
      %2219 = vst [vmem:[#allocation2 + $0x18] sm:$0xff] %v2217
      %2220 = vrot.lane.b32.xlu0 %v2194, 15
      %v2221 = vpop.permute.xlu0 %2220
      %2222 = vrot.lane.b32.xlu0 %v2195, 15
      %v2223 = vpop.permute.xlu0 %2222
      %v2224 = vsel %vm433, %v2221, %v2223
      %v2225 = vsel %vm433, %v2223, %v2221
      %v2226 = vld [vmem:[%s733] sm:$0xff]
      %v2227 = vld [vmem:[%s733 + $0x8] sm:$0xff]
      %v2228 = vmul.f32 %v2225, %v2226
      %v2229 = vmul.f32 %v2224, %v2227
      %2230 = vst [vmem:[#allocation2 + $0x20] sm:$0xff] %v2228
      %2231 = vst [vmem:[#allocation2 + $0x28] sm:$0xff] %v2229
      %2232 = vrot.lane.b32.xlu0 %v2194, 1
      %v2233 = vpop.permute.xlu0 %2232
      %2234 = vrot.lane.b32.xlu0 %v2195, 1
      %v2235 = vpop.permute.xlu0 %2234
      %v2236 = vsel %vm459, %v2233, %v2235
      %v2237 = vsel %vm459, %v2235, %v2233
      %v2238 = vld [vmem:[%s746] sm:$0xff]
      %v2239 = vld [vmem:[%s746 + $0x8] sm:$0xff]
      %v2240 = vmul.f32 %v2237, %v2238
      %v2241 = vmul.f32 %v2236, %v2239
      %2242 = vst [vmem:[#allocation2 + $0x30] sm:$0xff] %v2240
      %2243 = vst [vmem:[#allocation2 + $0x38] sm:$0xff] %v2241
      %2244 = vst [vmem:[#allocation2 + $0x40] sm:$0xff] %v2194
      %2245 = vst [vmem:[#allocation2 + $0x48] sm:$0xff] %v2195
      %2246 = vrot.lane.b32.xlu0 %v2194, 127
      %v2247 = vpop.permute.xlu0 %2246
      %2248 = vrot.lane.b32.xlu0 %v2195, 127
      %v2249 = vpop.permute.xlu0 %2248
      %v2250 = vsel %vm489, %v2247, %v2249
      %v2251 = vsel %vm489, %v2249, %v2247
      %v2252 = vld [vmem:[%s761] sm:$0xff]
      %v2253 = vld [vmem:[%s761 + $0x8] sm:$0xff]
      %v2254 = vmul.f32 %v2250, %v2252
      %v2255 = vmul.f32 %v2251, %v2253
      %2256 = vst [vmem:[#allocation2 + $0x50] sm:$0xff] %v2254
      %2257 = vst [vmem:[#allocation2 + $0x58] sm:$0xff] %v2255
      %2258 = vrot.lane.b32.xlu0 %v2194, 113
      %v2259 = vpop.permute.xlu0 %2258
      %2260 = vrot.lane.b32.xlu0 %v2195, 113
      %v2261 = vpop.permute.xlu0 %2260
      %v2262 = vsel %vm515, %v2259, %v2261
      %v2263 = vsel %vm515, %v2261, %v2259
      %v2264 = vld [vmem:[%s774] sm:$0xff]
      %v2265 = vld [vmem:[%s774 + $0x8] sm:$0xff]
      %v2266 = vmul.f32 %v2262, %v2264
      %v2267 = vmul.f32 %v2263, %v2265
      %2268 = vst [vmem:[#allocation2 + $0x60] sm:$0xff] %v2266
      %2269 = vst [vmem:[#allocation2 + $0x68] sm:$0xff] %v2267
      %2270 = vrot.lane.b32.xlu0 %v2194, 112
      %v2271 = vpop.permute.xlu0 %2270
      %2272 = vrot.lane.b32.xlu0 %v2195, 112
      %v2273 = vpop.permute.xlu0 %2272
      %v2274 = vsel %vm541, %v2271, %v2273
      %v2275 = vsel %vm541, %v2273, %v2271
      %v2276 = vld [vmem:[%s787] sm:$0xff]
      %v2277 = vld [vmem:[%s787 + $0x8] sm:$0xff]
      %v2278 = vmul.f32 %v2274, %v2276
      %v2279 = vmul.f32 %v2275, %v2277
      %2280 = vst [vmem:[#allocation2 + $0x70] sm:$0xff] %v2278
      %2281 = vst [vmem:[#allocation2 + $0x78] sm:$0xff] %v2279
      %2282 = vrot.lane.b32.xlu0 %v2194, 111
      %v2283 = vpop.permute.xlu0 %2282
      %2284 = vrot.lane.b32.xlu0 %v2195, 111
      %v2285 = vpop.permute.xlu0 %2284
      %v2286 = vsel %vm567, %v2283, %v2285
      %v2287 = vsel %vm567, %v2285, %v2283
      %v2288 = vld [vmem:[%s800] sm:$0xff]
      %v2289 = vld [vmem:[%s800 + $0x8] sm:$0xff]
      %v2290 = vmul.f32 %v2286, %v2288
      %v2291 = vmul.f32 %v2287, %v2289
      %2292 = vst [vmem:[#allocation2 + $0x80] sm:$0xff] %v2290
      %2293 = vst [vmem:[#allocation2 + $0x88] sm:$0xff] %v2291
      %s2294 = scalar_lea.vmem %s338, 56
      %v2295 = vld [vmem:[%s2294] sm:$0xff]
      %v2296 = vld [vmem:[#allocation2] sm:$0xff]
      %v2297 = vld [vmem:[#allocation2 + $0x8] sm:$0xff]
      %v2298 = vld [vmem:[#allocation2 + $0x10] sm:$0xff]
      %v2299 = vld [vmem:[#allocation2 + $0x18] sm:$0xff]
      %v2300 = vld [vmem:[#allocation2 + $0x20] sm:$0xff]
      %v2301 = vld [vmem:[#allocation2 + $0x28] sm:$0xff]
      %v2302 = vld [vmem:[#allocation2 + $0x30] sm:$0xff]
      %v2303 = vld [vmem:[#allocation2 + $0x38] sm:$0xff]
      %v2304 = vld [vmem:[#allocation2 + $0x40] sm:$0xff]
      %v2305 = vld [vmem:[#allocation2 + $0x48] sm:$0xff]
      %v2306 = vld [vmem:[#allocation2 + $0x50] sm:$0xff]
      %v2307 = vld [vmem:[#allocation2 + $0x58] sm:$0xff]
      %v2308 = vld [vmem:[#allocation2 + $0x60] sm:$0xff]
      %v2309 = vld [vmem:[#allocation2 + $0x68] sm:$0xff]
      %v2310 = vld [vmem:[#allocation2 + $0x70] sm:$0xff]
      %v2311 = vld [vmem:[#allocation2 + $0x78] sm:$0xff]
      %v2312 = vld [vmem:[#allocation2 + $0x80] sm:$0xff]
      %v2313 = vld [vmem:[#allocation2 + $0x88] sm:$0xff]
      %v2314 = vld [vmem:[#allocation2 + $0x90] sm:$0xff]
      %v2315 = vld [vmem:[#allocation2 + $0x98] sm:$0xff]
      %v2317 = vsel %vm828, %v2295, 0
      %2319 = vmatprep.subr.mxu0 0.0
      %2320 = vmatpush1.msra.mxu0 0.0
      %2321 = vmatprep.subr.mxu0 0.0
      %2322 = vmatpush1.msra.mxu0 0.0
      %2323 = vmatprep.subr.mxu0 0.0
      %2324 = vmatpush1.msra.mxu0 0.0
      %2325 = vmatprep.subr.mxu0 0.0
      %2326 = vmatpush1.msra.mxu0 0.0
      %2327 = vmatprep.subr.mxu0 0.0
      %2328 = vmatpush1.msra.mxu0 0.0
      %2329 = vmatprep.subr.mxu0 0.0
      %2330 = vmatpush1.msra.mxu0 0.0
      %2331 = vmatprep.subr.mxu0 %v2315
      %2332 = vmatpush1.msra.mxu0 %v2314
      %2333 = vmatprep.subr.mxu0 %v2313
      %2334 = vmatpush1.msra.mxu0 %v2312
      %2335 = vmatprep.subr.mxu0 %v2311
      %2336 = vmatpush1.msra.mxu0 %v2310
      %2337 = vmatprep.subr.mxu0 %v2309
      %2338 = vmatpush1.msra.mxu0 %v2308
      %2339 = vmatprep.subr.mxu0 %v2307
      %2340 = vmatpush1.msra.mxu0 %v2306
      %2341 = vmatprep.subr.mxu0 %v2305
      %2342 = vmatpush1.msra.mxu0 %v2304
      %2343 = vmatprep.subr.mxu0 %v2303
      %2344 = vmatpush1.msra.mxu0 %v2302
      %2345 = vmatprep.subr.mxu0 %v2301
      %2346 = vmatpush1.msra.mxu0 %v2300
      %2347 = vmatprep.subr.mxu0 %v2299
      %2348 = vmatpush1.msra.mxu0 %v2298
      %2349 = vmatprep.subr.mxu0 %v2297
      %2350 = vmatpush1.msra.mxu0 %v2296
      %2351 = vmatprep.subr.mxu0 0.0
      %2352 = vmatpush2.msra.mxu0 0.0
      %2353 = vmatprep.subr.mxu0 0.0
      %2354 = vmatpush2.msra.mxu0 0.0
      %2355 = vmatprep.subr.mxu0 0.0
      %2356 = vmatpush2.msra.mxu0 0.0
      %2357 = vmatprep.subr.mxu0 0.0
      %2358 = vmatpush2.msra.mxu0 0.0
      %2359 = vmatprep.subr.mxu0 0.0
      %2360 = vmatpush2.msra.mxu0 0.0
      %2361 = vmatprep.subr.mxu0 0.0
      %2362 = vmatpush2.msra.mxu0 0.0
      %2363 = vmatprep.subr.mxu0 0.0
      %2364 = vmatpush2.msra.mxu0 0.0
      %2365 = vmatprep.subr.mxu0 0.0
      %2366 = vmatpush2.msra.mxu0 0.0
      %2367 = vmatprep.subr.mxu0 0.0
      %2368 = vmatpush2.msra.mxu0 0.0
      %2369 = vmatprep.subr.mxu0 0.0
      %2370 = vmatpush2.msra.mxu0 0.0
      %2371 = vmatprep.subr.mxu0 0.0
      %2372 = vmatpush2.msra.mxu0 0.0
      %2373 = vmatprep.subr.mxu0 0.0
      %2374 = vmatpush2.msra.mxu0 0.0
      %2375 = vmatprep.subr.mxu0 0.0
      %2376 = vmatpush2.msra.mxu0 0.0
      %2377 = vmatprep.subr.mxu0 0.0
      %2378 = vmatpush2.msra.mxu0 0.0
      %2379 = vmatprep.subr.mxu0 0.0
      %2380 = vmatpush2.msra.mxu0 0.0
      %2381 = vmatprep.subr.mxu0 0.0
      %2382 = vmatpush2.msra.mxu0 0.0
      %2383 = vmatprep.mubr.f32.mxu0 0.0
      %2384 = vmatmul.mubr.f32.gmra.mxu0 %v2317
      %v2385 = vpop.f32.mrf.mxu0
      %v2386 = vadd.f32 0.0, %v2385
      %v2387 = vpop.f32.mrf.mxu0
      %v2388 = vadd.f32 0.0, %v2387
      %2389 = vdwg.mxu0
      %v2390 = vmax.f32 %v2386, 0.0
      %v2391 = vmax.f32 %v2388, 0.0
      %2392 = vrot.lane.b32.xlu0 %v2390, 17
      %v2393 = vpop.permute.xlu0 %2392
      %2394 = vrot.lane.b32.xlu0 %v2391, 17
      %v2395 = vpop.permute.xlu0 %2394
      %v2396 = vsel %vm382, %v2393, %v2395
      %v2397 = vsel %vm382, %v2395, %v2393
      %v2398 = vld [vmem:[%s1] sm:$0xff]
      %v2399 = vld [vmem:[%s1 + $0x8] sm:$0xff]
      %v2400 = vmul.f32 %v2397, %v2398
      %v2401 = vmul.f32 %v2396, %v2399
      %2402 = vst [vmem:[#allocation2] sm:$0xff] %v2400
      %2403 = vst [vmem:[#allocation2 + $0x8] sm:$0xff] %v2401
      %2404 = vrot.lane.b32.xlu0 %v2390, 16
      %v2405 = vpop.permute.xlu0 %2404
      %2406 = vrot.lane.b32.xlu0 %v2391, 16
      %v2407 = vpop.permute.xlu0 %2406
      %v2408 = vsel %vm407, %v2405, %v2407
      %v2409 = vsel %vm407, %v2407, %v2405
      %v2410 = vld [vmem:[%s720] sm:$0xff]
      %v2411 = vld [vmem:[%s720 + $0x8] sm:$0xff]
      %v2412 = vmul.f32 %v2409, %v2410
      %v2413 = vmul.f32 %v2408, %v2411
      %2414 = vst [vmem:[#allocation2 + $0x10] sm:$0xff] %v2412
      %2415 = vst [vmem:[#allocation2 + $0x18] sm:$0xff] %v2413
      %2416 = vrot.lane.b32.xlu0 %v2390, 15
      %v2417 = vpop.permute.xlu0 %2416
      %2418 = vrot.lane.b32.xlu0 %v2391, 15
      %v2419 = vpop.permute.xlu0 %2418
      %v2420 = vsel %vm433, %v2417, %v2419
      %v2421 = vsel %vm433, %v2419, %v2417
      %v2422 = vld [vmem:[%s733] sm:$0xff]
      %v2423 = vld [vmem:[%s733 + $0x8] sm:$0xff]
      %v2424 = vmul.f32 %v2421, %v2422
      %v2425 = vmul.f32 %v2420, %v2423
      %2426 = vst [vmem:[#allocation2 + $0x20] sm:$0xff] %v2424
      %2427 = vst [vmem:[#allocation2 + $0x28] sm:$0xff] %v2425
      %2428 = vrot.lane.b32.xlu0 %v2390, 1
      %v2429 = vpop.permute.xlu0 %2428
      %2430 = vrot.lane.b32.xlu0 %v2391, 1
      %v2431 = vpop.permute.xlu0 %2430
      %v2432 = vsel %vm459, %v2429, %v2431
      %v2433 = vsel %vm459, %v2431, %v2429
      %v2434 = vld [vmem:[%s746] sm:$0xff]
      %v2435 = vld [vmem:[%s746 + $0x8] sm:$0xff]
      %v2436 = vmul.f32 %v2433, %v2434
      %v2437 = vmul.f32 %v2432, %v2435
      %2438 = vst [vmem:[#allocation2 + $0x30] sm:$0xff] %v2436
      %2439 = vst [vmem:[#allocation2 + $0x38] sm:$0xff] %v2437
      %2440 = vst [vmem:[#allocation2 + $0x40] sm:$0xff] %v2390
      %2441 = vst [vmem:[#allocation2 + $0x48] sm:$0xff] %v2391
      %2442 = vrot.lane.b32.xlu0 %v2390, 127
      %v2443 = vpop.permute.xlu0 %2442
      %2444 = vrot.lane.b32.xlu0 %v2391, 127
      %v2445 = vpop.permute.xlu0 %2444
      %v2446 = vsel %vm489, %v2443, %v2445
      %v2447 = vsel %vm489, %v2445, %v2443
      %v2448 = vld [vmem:[%s761] sm:$0xff]
      %v2449 = vld [vmem:[%s761 + $0x8] sm:$0xff]
      %v2450 = vmul.f32 %v2446, %v2448
      %v2451 = vmul.f32 %v2447, %v2449
      %2452 = vst [vmem:[#allocation2 + $0x50] sm:$0xff] %v2450
      %2453 = vst [vmem:[#allocation2 + $0x58] sm:$0xff] %v2451
      %2454 = vrot.lane.b32.xlu0 %v2390, 113
      %v2455 = vpop.permute.xlu0 %2454
      %2456 = vrot.lane.b32.xlu0 %v2391, 113
      %v2457 = vpop.permute.xlu0 %2456
      %v2458 = vsel %vm515, %v2455, %v2457
      %v2459 = vsel %vm515, %v2457, %v2455
      %v2460 = vld [vmem:[%s774] sm:$0xff]
      %v2461 = vld [vmem:[%s774 + $0x8] sm:$0xff]
      %v2462 = vmul.f32 %v2458, %v2460
      %v2463 = vmul.f32 %v2459, %v2461
      %2464 = vst [vmem:[#allocation2 + $0x60] sm:$0xff] %v2462
      %2465 = vst [vmem:[#allocation2 + $0x68] sm:$0xff] %v2463
      %2466 = vrot.lane.b32.xlu0 %v2390, 112
      %v2467 = vpop.permute.xlu0 %2466
      %2468 = vrot.lane.b32.xlu0 %v2391, 112
      %v2469 = vpop.permute.xlu0 %2468
      %v2470 = vsel %vm541, %v2467, %v2469
      %v2471 = vsel %vm541, %v2469, %v2467
      %v2472 = vld [vmem:[%s787] sm:$0xff]
      %v2473 = vld [vmem:[%s787 + $0x8] sm:$0xff]
      %v2474 = vmul.f32 %v2470, %v2472
      %v2475 = vmul.f32 %v2471, %v2473
      %2476 = vst [vmem:[#allocation2 + $0x70] sm:$0xff] %v2474
      %2477 = vst [vmem:[#allocation2 + $0x78] sm:$0xff] %v2475
      %2478 = vrot.lane.b32.xlu0 %v2390, 111
      %v2479 = vpop.permute.xlu0 %2478
      %2480 = vrot.lane.b32.xlu0 %v2391, 111
      %v2481 = vpop.permute.xlu0 %2480
      %v2482 = vsel %vm567, %v2479, %v2481
      %v2483 = vsel %vm567, %v2481, %v2479
      %v2484 = vld [vmem:[%s800] sm:$0xff]
      %v2485 = vld [vmem:[%s800 + $0x8] sm:$0xff]
      %v2486 = vmul.f32 %v2482, %v2484
      %v2487 = vmul.f32 %v2483, %v2485
      %2488 = vst [vmem:[#allocation2 + $0x80] sm:$0xff] %v2486
      %2489 = vst [vmem:[#allocation2 + $0x88] sm:$0xff] %v2487
      %s2490 = scalar_lea.vmem %s338, 64
      %v2491 = vld [vmem:[%s2490] sm:$0xff]
      %v2492 = vld [vmem:[#allocation2] sm:$0xff]
      %v2493 = vld [vmem:[#allocation2 + $0x8] sm:$0xff]
      %v2494 = vld [vmem:[#allocation2 + $0x10] sm:$0xff]
      %v2495 = vld [vmem:[#allocation2 + $0x18] sm:$0xff]
      %v2496 = vld [vmem:[#allocation2 + $0x20] sm:$0xff]
      %v2497 = vld [vmem:[#allocation2 + $0x28] sm:$0xff]
      %v2498 = vld [vmem:[#allocation2 + $0x30] sm:$0xff]
      %v2499 = vld [vmem:[#allocation2 + $0x38] sm:$0xff]
      %v2500 = vld [vmem:[#allocation2 + $0x40] sm:$0xff]
      %v2501 = vld [vmem:[#allocation2 + $0x48] sm:$0xff]
      %v2502 = vld [vmem:[#allocation2 + $0x50] sm:$0xff]
      %v2503 = vld [vmem:[#allocation2 + $0x58] sm:$0xff]
      %v2504 = vld [vmem:[#allocation2 + $0x60] sm:$0xff]
      %v2505 = vld [vmem:[#allocation2 + $0x68] sm:$0xff]
      %v2506 = vld [vmem:[#allocation2 + $0x70] sm:$0xff]
      %v2507 = vld [vmem:[#allocation2 + $0x78] sm:$0xff]
      %v2508 = vld [vmem:[#allocation2 + $0x80] sm:$0xff]
      %v2509 = vld [vmem:[#allocation2 + $0x88] sm:$0xff]
      %v2510 = vld [vmem:[#allocation2 + $0x90] sm:$0xff]
      %v2511 = vld [vmem:[#allocation2 + $0x98] sm:$0xff]
      %v2513 = vsel %vm828, %v2491, 0
      %2515 = vmatprep.subr.mxu0 0.0
      %2516 = vmatpush1.msra.mxu0 0.0
      %2517 = vmatprep.subr.mxu0 0.0
      %2518 = vmatpush1.msra.mxu0 0.0
      %2519 = vmatprep.subr.mxu0 0.0
      %2520 = vmatpush1.msra.mxu0 0.0
      %2521 = vmatprep.subr.mxu0 0.0
      %2522 = vmatpush1.msra.mxu0 0.0
      %2523 = vmatprep.subr.mxu0 0.0
      %2524 = vmatpush1.msra.mxu0 0.0
      %2525 = vmatprep.subr.mxu0 0.0
      %2526 = vmatpush1.msra.mxu0 0.0
      %2527 = vmatprep.subr.mxu0 %v2511
      %2528 = vmatpush1.msra.mxu0 %v2510
      %2529 = vmatprep.subr.mxu0 %v2509
      %2530 = vmatpush1.msra.mxu0 %v2508
      %2531 = vmatprep.subr.mxu0 %v2507
      %2532 = vmatpush1.msra.mxu0 %v2506
      %2533 = vmatprep.subr.mxu0 %v2505
      %2534 = vmatpush1.msra.mxu0 %v2504
      %2535 = vmatprep.subr.mxu0 %v2503
      %2536 = vmatpush1.msra.mxu0 %v2502
      %2537 = vmatprep.subr.mxu0 %v2501
      %2538 = vmatpush1.msra.mxu0 %v2500
      %2539 = vmatprep.subr.mxu0 %v2499
      %2540 = vmatpush1.msra.mxu0 %v2498
      %2541 = vmatprep.subr.mxu0 %v2497
      %2542 = vmatpush1.msra.mxu0 %v2496
      %2543 = vmatprep.subr.mxu0 %v2495
      %2544 = vmatpush1.msra.mxu0 %v2494
      %2545 = vmatprep.subr.mxu0 %v2493
      %2546 = vmatpush1.msra.mxu0 %v2492
      %2547 = vmatprep.subr.mxu0 0.0
      %2548 = vmatpush2.msra.mxu0 0.0
      %2549 = vmatprep.subr.mxu0 0.0
      %2550 = vmatpush2.msra.mxu0 0.0
      %2551 = vmatprep.subr.mxu0 0.0
      %2552 = vmatpush2.msra.mxu0 0.0
      %2553 = vmatprep.subr.mxu0 0.0
      %2554 = vmatpush2.msra.mxu0 0.0
      %2555 = vmatprep.subr.mxu0 0.0
      %2556 = vmatpush2.msra.mxu0 0.0
      %2557 = vmatprep.subr.mxu0 0.0
      %2558 = vmatpush2.msra.mxu0 0.0
      %2559 = vmatprep.subr.mxu0 0.0
      %2560 = vmatpush2.msra.mxu0 0.0
      %2561 = vmatprep.subr.mxu0 0.0
      %2562 = vmatpush2.msra.mxu0 0.0
      %2563 = vmatprep.subr.mxu0 0.0
      %2564 = vmatpush2.msra.mxu0 0.0
      %2565 = vmatprep.subr.mxu0 0.0
      %2566 = vmatpush2.msra.mxu0 0.0
      %2567 = vmatprep.subr.mxu0 0.0
      %2568 = vmatpush2.msra.mxu0 0.0
      %2569 = vmatprep.subr.mxu0 0.0
      %2570 = vmatpush2.msra.mxu0 0.0
      %2571 = vmatprep.subr.mxu0 0.0
      %2572 = vmatpush2.msra.mxu0 0.0
      %2573 = vmatprep.subr.mxu0 0.0
      %2574 = vmatpush2.msra.mxu0 0.0
      %2575 = vmatprep.subr.mxu0 0.0
      %2576 = vmatpush2.msra.mxu0 0.0
      %2577 = vmatprep.subr.mxu0 0.0
      %2578 = vmatpush2.msra.mxu0 0.0
      %2579 = vmatprep.mubr.f32.mxu0 0.0
      %2580 = vmatmul.mubr.f32.gmra.mxu0 %v2513
      %v2581 = vpop.f32.mrf.mxu0
      %v2582 = vadd.f32 0.0, %v2581
      %v2583 = vpop.f32.mrf.mxu0
      %v2584 = vadd.f32 0.0, %v2583
      %2585 = vdwg.mxu0
      %v2586 = vmax.f32 %v2582, 0.0
      %v2587 = vmax.f32 %v2584, 0.0
      %2588 = vrot.lane.b32.xlu0 %v2586, 17
      %v2589 = vpop.permute.xlu0 %2588
      %2590 = vrot.lane.b32.xlu0 %v2587, 17
      %v2591 = vpop.permute.xlu0 %2590
      %v2592 = vsel %vm382, %v2589, %v2591
      %v2593 = vsel %vm382, %v2591, %v2589
      %v2594 = vld [vmem:[%s1] sm:$0xff]
      %v2595 = vld [vmem:[%s1 + $0x8] sm:$0xff]
      %v2596 = vmul.f32 %v2593, %v2594
      %v2597 = vmul.f32 %v2592, %v2595
      %2598 = vst [vmem:[#allocation2] sm:$0xff] %v2596
      %2599 = vst [vmem:[#allocation2 + $0x8] sm:$0xff] %v2597
      %2600 = vrot.lane.b32.xlu0 %v2586, 16
      %v2601 = vpop.permute.xlu0 %2600
      %2602 = vrot.lane.b32.xlu0 %v2587, 16
      %v2603 = vpop.permute.xlu0 %2602
      %v2604 = vsel %vm407, %v2601, %v2603
      %v2605 = vsel %vm407, %v2603, %v2601
      %v2606 = vld [vmem:[%s720] sm:$0xff]
      %v2607 = vld [vmem:[%s720 + $0x8] sm:$0xff]
      %v2608 = vmul.f32 %v2605, %v2606
      %v2609 = vmul.f32 %v2604, %v2607
      %2610 = vst [vmem:[#allocation2 + $0x10] sm:$0xff] %v2608
      %2611 = vst [vmem:[#allocation2 + $0x18] sm:$0xff] %v2609
      %2612 = vrot.lane.b32.xlu0 %v2586, 15
      %v2613 = vpop.permute.xlu0 %2612
      %2614 = vrot.lane.b32.xlu0 %v2587, 15
      %v2615 = vpop.permute.xlu0 %2614
      %v2616 = vsel %vm433, %v2613, %v2615
      %v2617 = vsel %vm433, %v2615, %v2613
      %v2618 = vld [vmem:[%s733] sm:$0xff]
      %v2619 = vld [vmem:[%s733 + $0x8] sm:$0xff]
      %v2620 = vmul.f32 %v2617, %v2618
      %v2621 = vmul.f32 %v2616, %v2619
      %2622 = vst [vmem:[#allocation2 + $0x20] sm:$0xff] %v2620
      %2623 = vst [vmem:[#allocation2 + $0x28] sm:$0xff] %v2621
      %2624 = vrot.lane.b32.xlu0 %v2586, 1
      %v2625 = vpop.permute.xlu0 %2624
      %2626 = vrot.lane.b32.xlu0 %v2587, 1
      %v2627 = vpop.permute.xlu0 %2626
      %v2628 = vsel %vm459, %v2625, %v2627
      %v2629 = vsel %vm459, %v2627, %v2625
      %v2630 = vld [vmem:[%s746] sm:$0xff]
      %v2631 = vld [vmem:[%s746 + $0x8] sm:$0xff]
      %v2632 = vmul.f32 %v2629, %v2630
      %v2633 = vmul.f32 %v2628, %v2631
      %2634 = vst [vmem:[#allocation2 + $0x30] sm:$0xff] %v2632
      %2635 = vst [vmem:[#allocation2 + $0x38] sm:$0xff] %v2633
      %2636 = vst [vmem:[#allocation2 + $0x40] sm:$0xff] %v2586
      %2637 = vst [vmem:[#allocation2 + $0x48] sm:$0xff] %v2587
      %2638 = vrot.lane.b32.xlu0 %v2586, 127
      %v2639 = vpop.permute.xlu0 %2638
      %2640 = vrot.lane.b32.xlu0 %v2587, 127
      %v2641 = vpop.permute.xlu0 %2640
      %v2642 = vsel %vm489, %v2639, %v2641
      %v2643 = vsel %vm489, %v2641, %v2639
      %v2644 = vld [vmem:[%s761] sm:$0xff]
      %v2645 = vld [vmem:[%s761 + $0x8] sm:$0xff]
      %v2646 = vmul.f32 %v2642, %v2644
      %v2647 = vmul.f32 %v2643, %v2645
      %2648 = vst [vmem:[#allocation2 + $0x50] sm:$0xff] %v2646
      %2649 = vst [vmem:[#allocation2 + $0x58] sm:$0xff] %v2647
      %2650 = vrot.lane.b32.xlu0 %v2586, 113
      %v2651 = vpop.permute.xlu0 %2650
      %2652 = vrot.lane.b32.xlu0 %v2587, 113
      %v2653 = vpop.permute.xlu0 %2652
      %v2654 = vsel %vm515, %v2651, %v2653
      %v2655 = vsel %vm515, %v2653, %v2651
      %v2656 = vld [vmem:[%s774] sm:$0xff]
      %v2657 = vld [vmem:[%s774 + $0x8] sm:$0xff]
      %v2658 = vmul.f32 %v2654, %v2656
      %v2659 = vmul.f32 %v2655, %v2657
      %2660 = vst [vmem:[#allocation2 + $0x60] sm:$0xff] %v2658
      %2661 = vst [vmem:[#allocation2 + $0x68] sm:$0xff] %v2659
      %2662 = vrot.lane.b32.xlu0 %v2586, 112
      %v2663 = vpop.permute.xlu0 %2662
      %2664 = vrot.lane.b32.xlu0 %v2587, 112
      %v2665 = vpop.permute.xlu0 %2664
      %v2666 = vsel %vm541, %v2663, %v2665
      %v2667 = vsel %vm541, %v2665, %v2663
      %v2668 = vld [vmem:[%s787] sm:$0xff]
      %v2669 = vld [vmem:[%s787 + $0x8] sm:$0xff]
      %v2670 = vmul.f32 %v2666, %v2668
      %v2671 = vmul.f32 %v2667, %v2669
      %2672 = vst [vmem:[#allocation2 + $0x70] sm:$0xff] %v2670
      %2673 = vst [vmem:[#allocation2 + $0x78] sm:$0xff] %v2671
      %2674 = vrot.lane.b32.xlu0 %v2586, 111
      %v2675 = vpop.permute.xlu0 %2674
      %2676 = vrot.lane.b32.xlu0 %v2587, 111
      %v2677 = vpop.permute.xlu0 %2676
      %v2678 = vsel %vm567, %v2675, %v2677
      %v2679 = vsel %vm567, %v2677, %v2675
      %v2680 = vld [vmem:[%s800] sm:$0xff]
      %v2681 = vld [vmem:[%s800 + $0x8] sm:$0xff]
      %v2682 = vmul.f32 %v2678, %v2680
      %v2683 = vmul.f32 %v2679, %v2681
      %2684 = vst [vmem:[#allocation2 + $0x80] sm:$0xff] %v2682
      %2685 = vst [vmem:[#allocation2 + $0x88] sm:$0xff] %v2683
      %s2686 = scalar_lea.vmem %s338, 72
      %v2687 = vld [vmem:[%s2686] sm:$0xff]
      %v2688 = vld [vmem:[#allocation2] sm:$0xff]
      %v2689 = vld [vmem:[#allocation2 + $0x8] sm:$0xff]
      %v2690 = vld [vmem:[#allocation2 + $0x10] sm:$0xff]
      %v2691 = vld [vmem:[#allocation2 + $0x18] sm:$0xff]
      %v2692 = vld [vmem:[#allocation2 + $0x20] sm:$0xff]
      %v2693 = vld [vmem:[#allocation2 + $0x28] sm:$0xff]
      %v2694 = vld [vmem:[#allocation2 + $0x30] sm:$0xff]
      %v2695 = vld [vmem:[#allocation2 + $0x38] sm:$0xff]
      %v2696 = vld [vmem:[#allocation2 + $0x40] sm:$0xff]
      %v2697 = vld [vmem:[#allocation2 + $0x48] sm:$0xff]
      %v2698 = vld [vmem:[#allocation2 + $0x50] sm:$0xff]
      %v2699 = vld [vmem:[#allocation2 + $0x58] sm:$0xff]
      %v2700 = vld [vmem:[#allocation2 + $0x60] sm:$0xff]
      %v2701 = vld [vmem:[#allocation2 + $0x68] sm:$0xff]
      %v2702 = vld [vmem:[#allocation2 + $0x70] sm:$0xff]
      %v2703 = vld [vmem:[#allocation2 + $0x78] sm:$0xff]
      %v2704 = vld [vmem:[#allocation2 + $0x80] sm:$0xff]
      %v2705 = vld [vmem:[#allocation2 + $0x88] sm:$0xff]
      %v2706 = vld [vmem:[#allocation2 + $0x90] sm:$0xff]
      %v2707 = vld [vmem:[#allocation2 + $0x98] sm:$0xff]
      %v2709 = vsel %vm828, %v2687, 0
      %2711 = vmatprep.subr.mxu0 0.0
      %2712 = vmatpush1.msra.mxu0 0.0
      %2713 = vmatprep.subr.mxu0 0.0
      %2714 = vmatpush1.msra.mxu0 0.0
      %2715 = vmatprep.subr.mxu0 0.0
      %2716 = vmatpush1.msra.mxu0 0.0
      %2717 = vmatprep.subr.mxu0 0.0
      %2718 = vmatpush1.msra.mxu0 0.0
      %2719 = vmatprep.subr.mxu0 0.0
      %2720 = vmatpush1.msra.mxu0 0.0
      %2721 = vmatprep.subr.mxu0 0.0
      %2722 = vmatpush1.msra.mxu0 0.0
      %2723 = vmatprep.subr.mxu0 %v2707
      %2724 = vmatpush1.msra.mxu0 %v2706
      %2725 = vmatprep.subr.mxu0 %v2705
      %2726 = vmatpush1.msra.mxu0 %v2704
      %2727 = vmatprep.subr.mxu0 %v2703
      %2728 = vmatpush1.msra.mxu0 %v2702
      %2729 = vmatprep.subr.mxu0 %v2701
      %2730 = vmatpush1.msra.mxu0 %v2700
      %2731 = vmatprep.subr.mxu0 %v2699
      %2732 = vmatpush1.msra.mxu0 %v2698
      %2733 = vmatprep.subr.mxu0 %v2697
      %2734 = vmatpush1.msra.mxu0 %v2696
      %2735 = vmatprep.subr.mxu0 %v2695
      %2736 = vmatpush1.msra.mxu0 %v2694
      %2737 = vmatprep.subr.mxu0 %v2693
      %2738 = vmatpush1.msra.mxu0 %v2692
      %2739 = vmatprep.subr.mxu0 %v2691
      %2740 = vmatpush1.msra.mxu0 %v2690
      %2741 = vmatprep.subr.mxu0 %v2689
      %2742 = vmatpush1.msra.mxu0 %v2688
      %2743 = vmatprep.subr.mxu0 0.0
      %2744 = vmatpush2.msra.mxu0 0.0
      %2745 = vmatprep.subr.mxu0 0.0
      %2746 = vmatpush2.msra.mxu0 0.0
      %2747 = vmatprep.subr.mxu0 0.0
      %2748 = vmatpush2.msra.mxu0 0.0
      %2749 = vmatprep.subr.mxu0 0.0
      %2750 = vmatpush2.msra.mxu0 0.0
      %2751 = vmatprep.subr.mxu0 0.0
      %2752 = vmatpush2.msra.mxu0 0.0
      %2753 = vmatprep.subr.mxu0 0.0
      %2754 = vmatpush2.msra.mxu0 0.0
      %2755 = vmatprep.subr.mxu0 0.0
      %2756 = vmatpush2.msra.mxu0 0.0
      %2757 = vmatprep.subr.mxu0 0.0
      %2758 = vmatpush2.msra.mxu0 0.0
      %2759 = vmatprep.subr.mxu0 0.0
      %2760 = vmatpush2.msra.mxu0 0.0
      %2761 = vmatprep.subr.mxu0 0.0
      %2762 = vmatpush2.msra.mxu0 0.0
      %2763 = vmatprep.subr.mxu0 0.0
      %2764 = vmatpush2.msra.mxu0 0.0
      %2765 = vmatprep.subr.mxu0 0.0
      %2766 = vmatpush2.msra.mxu0 0.0
      %2767 = vmatprep.subr.mxu0 0.0
      %2768 = vmatpush2.msra.mxu0 0.0
      %2769 = vmatprep.subr.mxu0 0.0
      %2770 = vmatpush2.msra.mxu0 0.0
      %2771 = vmatprep.subr.mxu0 0.0
      %2772 = vmatpush2.msra.mxu0 0.0
      %2773 = vmatprep.subr.mxu0 0.0
      %2774 = vmatpush2.msra.mxu0 0.0
      %2775 = vmatprep.mubr.f32.mxu0 0.0
      %2776 = vmatmul.mubr.f32.gmra.mxu0 %v2709
      %v2777 = vpop.f32.mrf.mxu0
      %v2778 = vadd.f32 0.0, %v2777
      %v2779 = vpop.f32.mrf.mxu0
      %v2780 = vadd.f32 0.0, %v2779
      %2781 = vdwg.mxu0
      %v2782 = vmax.f32 %v2778, 0.0
      %v2783 = vmax.f32 %v2780, 0.0
      %2784 = vrot.lane.b32.xlu0 %v2782, 17
      %v2785 = vpop.permute.xlu0 %2784
      %2786 = vrot.lane.b32.xlu0 %v2783, 17
      %v2787 = vpop.permute.xlu0 %2786
      %v2788 = vsel %vm382, %v2785, %v2787
      %v2789 = vsel %vm382, %v2787, %v2785
      %v2790 = vld [vmem:[%s1] sm:$0xff]
      %v2791 = vld [vmem:[%s1 + $0x8] sm:$0xff]
      %v2792 = vmul.f32 %v2789, %v2790
      %v2793 = vmul.f32 %v2788, %v2791
      %2794 = vst [vmem:[#allocation2] sm:$0xff] %v2792
      %2795 = vst [vmem:[#allocation2 + $0x8] sm:$0xff] %v2793
      %2796 = vrot.lane.b32.xlu0 %v2782, 16
      %v2797 = vpop.permute.xlu0 %2796
      %2798 = vrot.lane.b32.xlu0 %v2783, 16
      %v2799 = vpop.permute.xlu0 %2798
      %v2800 = vsel %vm407, %v2797, %v2799
      %v2801 = vsel %vm407, %v2799, %v2797
      %v2802 = vld [vmem:[%s720] sm:$0xff]
      %v2803 = vld [vmem:[%s720 + $0x8] sm:$0xff]
      %v2804 = vmul.f32 %v2801, %v2802
      %v2805 = vmul.f32 %v2800, %v2803
      %2806 = vst [vmem:[#allocation2 + $0x10] sm:$0xff] %v2804
      %2807 = vst [vmem:[#allocation2 + $0x18] sm:$0xff] %v2805
      %2808 = vrot.lane.b32.xlu0 %v2782, 15
      %v2809 = vpop.permute.xlu0 %2808
      %2810 = vrot.lane.b32.xlu0 %v2783, 15
      %v2811 = vpop.permute.xlu0 %2810
      %v2812 = vsel %vm433, %v2809, %v2811
      %v2813 = vsel %vm433, %v2811, %v2809
      %v2814 = vld [vmem:[%s733] sm:$0xff]
      %v2815 = vld [vmem:[%s733 + $0x8] sm:$0xff]
      %v2816 = vmul.f32 %v2813, %v2814
      %v2817 = vmul.f32 %v2812, %v2815
      %2818 = vst [vmem:[#allocation2 + $0x20] sm:$0xff] %v2816
      %2819 = vst [vmem:[#allocation2 + $0x28] sm:$0xff] %v2817
      %2820 = vrot.lane.b32.xlu0 %v2782, 1
      %v2821 = vpop.permute.xlu0 %2820
      %2822 = vrot.lane.b32.xlu0 %v2783, 1
      %v2823 = vpop.permute.xlu0 %2822
      %v2824 = vsel %vm459, %v2821, %v2823
      %v2825 = vsel %vm459, %v2823, %v2821
      %v2826 = vld [vmem:[%s746] sm:$0xff]
      %v2827 = vld [vmem:[%s746 + $0x8] sm:$0xff]
      %v2828 = vmul.f32 %v2825, %v2826
      %v2829 = vmul.f32 %v2824, %v2827
      %2830 = vst [vmem:[#allocation2 + $0x30] sm:$0xff] %v2828
      %2831 = vst [vmem:[#allocation2 + $0x38] sm:$0xff] %v2829
      %2832 = vst [vmem:[#allocation2 + $0x40] sm:$0xff] %v2782
      %2833 = vst [vmem:[#allocation2 + $0x48] sm:$0xff] %v2783
      %2834 = vrot.lane.b32.xlu0 %v2782, 127
      %v2835 = vpop.permute.xlu0 %2834
      %2836 = vrot.lane.b32.xlu0 %v2783, 127
      %v2837 = vpop.permute.xlu0 %2836
      %v2838 = vsel %vm489, %v2835, %v2837
      %v2839 = vsel %vm489, %v2837, %v2835
      %v2840 = vld [vmem:[%s761] sm:$0xff]
      %v2841 = vld [vmem:[%s761 + $0x8] sm:$0xff]
      %v2842 = vmul.f32 %v2838, %v2840
      %v2843 = vmul.f32 %v2839, %v2841
      %2844 = vst [vmem:[#allocation2 + $0x50] sm:$0xff] %v2842
      %2845 = vst [vmem:[#allocation2 + $0x58] sm:$0xff] %v2843
      %2846 = vrot.lane.b32.xlu0 %v2782, 113
      %v2847 = vpop.permute.xlu0 %2846
      %2848 = vrot.lane.b32.xlu0 %v2783, 113
      %v2849 = vpop.permute.xlu0 %2848
      %v2850 = vsel %vm515, %v2847, %v2849
      %v2851 = vsel %vm515, %v2849, %v2847
      %v2852 = vld [vmem:[%s774] sm:$0xff]
      %v2853 = vld [vmem:[%s774 + $0x8] sm:$0xff]
      %v2854 = vmul.f32 %v2850, %v2852
      %v2855 = vmul.f32 %v2851, %v2853
      %2856 = vst [vmem:[#allocation2 + $0x60] sm:$0xff] %v2854
      %2857 = vst [vmem:[#allocation2 + $0x68] sm:$0xff] %v2855
      %2858 = vrot.lane.b32.xlu0 %v2782, 112
      %v2859 = vpop.permute.xlu0 %2858
      %2860 = vrot.lane.b32.xlu0 %v2783, 112
      %v2861 = vpop.permute.xlu0 %2860
      %v2862 = vsel %vm541, %v2859, %v2861
      %v2863 = vsel %vm541, %v2861, %v2859
      %v2864 = vld [vmem:[%s787] sm:$0xff]
      %v2865 = vld [vmem:[%s787 + $0x8] sm:$0xff]
      %v2866 = vmul.f32 %v2862, %v2864
      %v2867 = vmul.f32 %v2863, %v2865
      %2868 = vst [vmem:[#allocation2 + $0x70] sm:$0xff] %v2866
      %2869 = vst [vmem:[#allocation2 + $0x78] sm:$0xff] %v2867
      %2870 = vrot.lane.b32.xlu0 %v2782, 111
      %v2871 = vpop.permute.xlu0 %2870
      %2872 = vrot.lane.b32.xlu0 %v2783, 111
      %v2873 = vpop.permute.xlu0 %2872
      %v2874 = vsel %vm567, %v2871, %v2873
      %v2875 = vsel %vm567, %v2873, %v2871
      %v2876 = vld [vmem:[%s800] sm:$0xff]
      %v2877 = vld [vmem:[%s800 + $0x8] sm:$0xff]
      %v2878 = vmul.f32 %v2874, %v2876
      %v2879 = vmul.f32 %v2875, %v2877
      %2880 = vst [vmem:[#allocation2 + $0x80] sm:$0xff] %v2878
      %2881 = vst [vmem:[#allocation2 + $0x88] sm:$0xff] %v2879
      %s2882 = scalar_lea.vmem %s338, 80
      %v2883 = vld [vmem:[%s2882] sm:$0xff]
      %v2884 = vld [vmem:[#allocation2] sm:$0xff]
      %v2885 = vld [vmem:[#allocation2 + $0x8] sm:$0xff]
      %v2886 = vld [vmem:[#allocation2 + $0x10] sm:$0xff]
      %v2887 = vld [vmem:[#allocation2 + $0x18] sm:$0xff]
      %v2888 = vld [vmem:[#allocation2 + $0x20] sm:$0xff]
      %v2889 = vld [vmem:[#allocation2 + $0x28] sm:$0xff]
      %v2890 = vld [vmem:[#allocation2 + $0x30] sm:$0xff]
      %v2891 = vld [vmem:[#allocation2 + $0x38] sm:$0xff]
      %v2892 = vld [vmem:[#allocation2 + $0x40] sm:$0xff]
      %v2893 = vld [vmem:[#allocation2 + $0x48] sm:$0xff]
      %v2894 = vld [vmem:[#allocation2 + $0x50] sm:$0xff]
      %v2895 = vld [vmem:[#allocation2 + $0x58] sm:$0xff]
      %v2896 = vld [vmem:[#allocation2 + $0x60] sm:$0xff]
      %v2897 = vld [vmem:[#allocation2 + $0x68] sm:$0xff]
      %v2898 = vld [vmem:[#allocation2 + $0x70] sm:$0xff]
      %v2899 = vld [vmem:[#allocation2 + $0x78] sm:$0xff]
      %v2900 = vld [vmem:[#allocation2 + $0x80] sm:$0xff]
      %v2901 = vld [vmem:[#allocation2 + $0x88] sm:$0xff]
      %v2902 = vld [vmem:[#allocation2 + $0x90] sm:$0xff]
      %v2903 = vld [vmem:[#allocation2 + $0x98] sm:$0xff]
      %v2905 = vsel %vm828, %v2883, 0
      %2907 = vmatprep.subr.mxu0 0.0
      %2908 = vmatpush1.msra.mxu0 0.0
      %2909 = vmatprep.subr.mxu0 0.0
      %2910 = vmatpush1.msra.mxu0 0.0
      %2911 = vmatprep.subr.mxu0 0.0
      %2912 = vmatpush1.msra.mxu0 0.0
      %2913 = vmatprep.subr.mxu0 0.0
      %2914 = vmatpush1.msra.mxu0 0.0
      %2915 = vmatprep.subr.mxu0 0.0
      %2916 = vmatpush1.msra.mxu0 0.0
      %2917 = vmatprep.subr.mxu0 0.0
      %2918 = vmatpush1.msra.mxu0 0.0
      %2919 = vmatprep.subr.mxu0 %v2903
      %2920 = vmatpush1.msra.mxu0 %v2902
      %2921 = vmatprep.subr.mxu0 %v2901
      %2922 = vmatpush1.msra.mxu0 %v2900
      %2923 = vmatprep.subr.mxu0 %v2899
      %2924 = vmatpush1.msra.mxu0 %v2898
      %2925 = vmatprep.subr.mxu0 %v2897
      %2926 = vmatpush1.msra.mxu0 %v2896
      %2927 = vmatprep.subr.mxu0 %v2895
      %2928 = vmatpush1.msra.mxu0 %v2894
      %2929 = vmatprep.subr.mxu0 %v2893
      %2930 = vmatpush1.msra.mxu0 %v2892
      %2931 = vmatprep.subr.mxu0 %v2891
      %2932 = vmatpush1.msra.mxu0 %v2890
      %2933 = vmatprep.subr.mxu0 %v2889
      %2934 = vmatpush1.msra.mxu0 %v2888
      %2935 = vmatprep.subr.mxu0 %v2887
      %2936 = vmatpush1.msra.mxu0 %v2886
      %2937 = vmatprep.subr.mxu0 %v2885
      %2938 = vmatpush1.msra.mxu0 %v2884
      %2939 = vmatprep.subr.mxu0 0.0
      %2940 = vmatpush2.msra.mxu0 0.0
      %2941 = vmatprep.subr.mxu0 0.0
      %2942 = vmatpush2.msra.mxu0 0.0
      %2943 = vmatprep.subr.mxu0 0.0
      %2944 = vmatpush2.msra.mxu0 0.0
      %2945 = vmatprep.subr.mxu0 0.0
      %2946 = vmatpush2.msra.mxu0 0.0
      %2947 = vmatprep.subr.mxu0 0.0
      %2948 = vmatpush2.msra.mxu0 0.0
      %2949 = vmatprep.subr.mxu0 0.0
      %2950 = vmatpush2.msra.mxu0 0.0
      %2951 = vmatprep.subr.mxu0 0.0
      %2952 = vmatpush2.msra.mxu0 0.0
      %2953 = vmatprep.subr.mxu0 0.0
      %2954 = vmatpush2.msra.mxu0 0.0
      %2955 = vmatprep.subr.mxu0 0.0
      %2956 = vmatpush2.msra.mxu0 0.0
      %2957 = vmatprep.subr.mxu0 0.0
      %2958 = vmatpush2.msra.mxu0 0.0
      %2959 = vmatprep.subr.mxu0 0.0
      %2960 = vmatpush2.msra.mxu0 0.0
      %2961 = vmatprep.subr.mxu0 0.0
      %2962 = vmatpush2.msra.mxu0 0.0
      %2963 = vmatprep.subr.mxu0 0.0
      %2964 = vmatpush2.msra.mxu0 0.0
      %2965 = vmatprep.subr.mxu0 0.0
      %2966 = vmatpush2.msra.mxu0 0.0
      %2967 = vmatprep.subr.mxu0 0.0
      %2968 = vmatpush2.msra.mxu0 0.0
      %2969 = vmatprep.subr.mxu0 0.0
      %2970 = vmatpush2.msra.mxu0 0.0
      %2971 = vmatprep.mubr.f32.mxu0 0.0
      %2972 = vmatmul.mubr.f32.gmra.mxu0 %v2905
      %v2973 = vpop.f32.mrf.mxu0
      %v2974 = vadd.f32 0.0, %v2973
      %v2975 = vpop.f32.mrf.mxu0
      %v2976 = vadd.f32 0.0, %v2975
      %2977 = vdwg.mxu0
      %v2978 = vmax.f32 %v2974, 0.0
      %v2979 = vmax.f32 %v2976, 0.0
      %2980 = vrot.lane.b32.xlu0 %v2978, 17
      %v2981 = vpop.permute.xlu0 %2980
      %2982 = vrot.lane.b32.xlu0 %v2979, 17
      %v2983 = vpop.permute.xlu0 %2982
      %v2984 = vsel %vm382, %v2981, %v2983
      %v2985 = vsel %vm382, %v2983, %v2981
      %v2986 = vld [vmem:[%s1] sm:$0xff]
      %v2987 = vld [vmem:[%s1 + $0x8] sm:$0xff]
      %v2988 = vmul.f32 %v2985, %v2986
      %v2989 = vmul.f32 %v2984, %v2987
      %2990 = vst [vmem:[#allocation2] sm:$0xff] %v2988
      %2991 = vst [vmem:[#allocation2 + $0x8] sm:$0xff] %v2989
      %2992 = vrot.lane.b32.xlu0 %v2978, 16
      %v2993 = vpop.permute.xlu0 %2992
      %2994 = vrot.lane.b32.xlu0 %v2979, 16
      %v2995 = vpop.permute.xlu0 %2994
      %v2996 = vsel %vm407, %v2993, %v2995
      %v2997 = vsel %vm407, %v2995, %v2993
      %v2998 = vld [vmem:[%s720] sm:$0xff]
      %v2999 = vld [vmem:[%s720 + $0x8] sm:$0xff]
      %v3000 = vmul.f32 %v2997, %v2998
      %v3001 = vmul.f32 %v2996, %v2999
      %3002 = vst [vmem:[#allocation2 + $0x10] sm:$0xff] %v3000
      %3003 = vst [vmem:[#allocation2 + $0x18] sm:$0xff] %v3001
      %3004 = vrot.lane.b32.xlu0 %v2978, 15
      %v3005 = vpop.permute.xlu0 %3004
      %3006 = vrot.lane.b32.xlu0 %v2979, 15
      %v3007 = vpop.permute.xlu0 %3006
      %v3008 = vsel %vm433, %v3005, %v3007
      %v3009 = vsel %vm433, %v3007, %v3005
      %v3010 = vld [vmem:[%s733] sm:$0xff]
      %v3011 = vld [vmem:[%s733 + $0x8] sm:$0xff]
      %v3012 = vmul.f32 %v3009, %v3010
      %v3013 = vmul.f32 %v3008, %v3011
      %3014 = vst [vmem:[#allocation2 + $0x20] sm:$0xff] %v3012
      %3015 = vst [vmem:[#allocation2 + $0x28] sm:$0xff] %v3013
      %3016 = vrot.lane.b32.xlu0 %v2978, 1
      %v3017 = vpop.permute.xlu0 %3016
      %3018 = vrot.lane.b32.xlu0 %v2979, 1
      %v3019 = vpop.permute.xlu0 %3018
      %v3020 = vsel %vm459, %v3017, %v3019
      %v3021 = vsel %vm459, %v3019, %v3017
      %v3022 = vld [vmem:[%s746] sm:$0xff]
      %v3023 = vld [vmem:[%s746 + $0x8] sm:$0xff]
      %v3024 = vmul.f32 %v3021, %v3022
      %v3025 = vmul.f32 %v3020, %v3023
      %3026 = vst [vmem:[#allocation2 + $0x30] sm:$0xff] %v3024
      %3027 = vst [vmem:[#allocation2 + $0x38] sm:$0xff] %v3025
      %3028 = vst [vmem:[#allocation2 + $0x40] sm:$0xff] %v2978
      %3029 = vst [vmem:[#allocation2 + $0x48] sm:$0xff] %v2979
      %3030 = vrot.lane.b32.xlu0 %v2978, 127
      %v3031 = vpop.permute.xlu0 %3030
      %3032 = vrot.lane.b32.xlu0 %v2979, 127
      %v3033 = vpop.permute.xlu0 %3032
      %v3034 = vsel %vm489, %v3031, %v3033
      %v3035 = vsel %vm489, %v3033, %v3031
      %v3036 = vld [vmem:[%s761] sm:$0xff]
      %v3037 = vld [vmem:[%s761 + $0x8] sm:$0xff]
      %v3038 = vmul.f32 %v3034, %v3036
      %v3039 = vmul.f32 %v3035, %v3037
      %3040 = vst [vmem:[#allocation2 + $0x50] sm:$0xff] %v3038
      %3041 = vst [vmem:[#allocation2 + $0x58] sm:$0xff] %v3039
      %3042 = vrot.lane.b32.xlu0 %v2978, 113
      %v3043 = vpop.permute.xlu0 %3042
      %3044 = vrot.lane.b32.xlu0 %v2979, 113
      %v3045 = vpop.permute.xlu0 %3044
      %v3046 = vsel %vm515, %v3043, %v3045
      %v3047 = vsel %vm515, %v3045, %v3043
      %v3048 = vld [vmem:[%s774] sm:$0xff]
      %v3049 = vld [vmem:[%s774 + $0x8] sm:$0xff]
      %v3050 = vmul.f32 %v3046, %v3048
      %v3051 = vmul.f32 %v3047, %v3049
      %3052 = vst [vmem:[#allocation2 + $0x60] sm:$0xff] %v3050
      %3053 = vst [vmem:[#allocation2 + $0x68] sm:$0xff] %v3051
      %3054 = vrot.lane.b32.xlu0 %v2978, 112
      %v3055 = vpop.permute.xlu0 %3054
      %3056 = vrot.lane.b32.xlu0 %v2979, 112
      %v3057 = vpop.permute.xlu0 %3056
      %v3058 = vsel %vm541, %v3055, %v3057
      %v3059 = vsel %vm541, %v3057, %v3055
      %v3060 = vld [vmem:[%s787] sm:$0xff]
      %v3061 = vld [vmem:[%s787 + $0x8] sm:$0xff]
      %v3062 = vmul.f32 %v3058, %v3060
      %v3063 = vmul.f32 %v3059, %v3061
      %3064 = vst [vmem:[#allocation2 + $0x70] sm:$0xff] %v3062
      %3065 = vst [vmem:[#allocation2 + $0x78] sm:$0xff] %v3063
      %3066 = vrot.lane.b32.xlu0 %v2978, 111
      %v3067 = vpop.permute.xlu0 %3066
      %3068 = vrot.lane.b32.xlu0 %v2979, 111
      %v3069 = vpop.permute.xlu0 %3068
      %v3070 = vsel %vm567, %v3067, %v3069
      %v3071 = vsel %vm567, %v3069, %v3067
      %v3072 = vld [vmem:[%s800] sm:$0xff]
      %v3073 = vld [vmem:[%s800 + $0x8] sm:$0xff]
      %v3074 = vmul.f32 %v3070, %v3072
      %v3075 = vmul.f32 %v3071, %v3073
      %3076 = vst [vmem:[#allocation2 + $0x80] sm:$0xff] %v3074
      %3077 = vst [vmem:[#allocation2 + $0x88] sm:$0xff] %v3075
      %s3078 = scalar_lea.vmem %s338, 88
      %v3079 = vld [vmem:[%s3078] sm:$0xff]
      %v3080 = vld [vmem:[#allocation2] sm:$0xff]
      %v3081 = vld [vmem:[#allocation2 + $0x8] sm:$0xff]
      %v3082 = vld [vmem:[#allocation2 + $0x10] sm:$0xff]
      %v3083 = vld [vmem:[#allocation2 + $0x18] sm:$0xff]
      %v3084 = vld [vmem:[#allocation2 + $0x20] sm:$0xff]
      %v3085 = vld [vmem:[#allocation2 + $0x28] sm:$0xff]
      %v3086 = vld [vmem:[#allocation2 + $0x30] sm:$0xff]
      %v3087 = vld [vmem:[#allocation2 + $0x38] sm:$0xff]
      %v3088 = vld [vmem:[#allocation2 + $0x40] sm:$0xff]
      %v3089 = vld [vmem:[#allocation2 + $0x48] sm:$0xff]
      %v3090 = vld [vmem:[#allocation2 + $0x50] sm:$0xff]
      %v3091 = vld [vmem:[#allocation2 + $0x58] sm:$0xff]
      %v3092 = vld [vmem:[#allocation2 + $0x60] sm:$0xff]
      %v3093 = vld [vmem:[#allocation2 + $0x68] sm:$0xff]
      %v3094 = vld [vmem:[#allocation2 + $0x70] sm:$0xff]
      %v3095 = vld [vmem:[#allocation2 + $0x78] sm:$0xff]
      %v3096 = vld [vmem:[#allocation2 + $0x80] sm:$0xff]
      %v3097 = vld [vmem:[#allocation2 + $0x88] sm:$0xff]
      %v3098 = vld [vmem:[#allocation2 + $0x90] sm:$0xff]
      %v3099 = vld [vmem:[#allocation2 + $0x98] sm:$0xff]
      %v3101 = vsel %vm828, %v3079, 0
      %3103 = vmatprep.subr.mxu0 0.0
      %3104 = vmatpush1.msra.mxu0 0.0
      %3105 = vmatprep.subr.mxu0 0.0
      %3106 = vmatpush1.msra.mxu0 0.0
      %3107 = vmatprep.subr.mxu0 0.0
      %3108 = vmatpush1.msra.mxu0 0.0
      %3109 = vmatprep.subr.mxu0 0.0
      %3110 = vmatpush1.msra.mxu0 0.0
      %3111 = vmatprep.subr.mxu0 0.0
      %3112 = vmatpush1.msra.mxu0 0.0
      %3113 = vmatprep.subr.mxu0 0.0
      %3114 = vmatpush1.msra.mxu0 0.0
      %3115 = vmatprep.subr.mxu0 %v3099
      %3116 = vmatpush1.msra.mxu0 %v3098
      %3117 = vmatprep.subr.mxu0 %v3097
      %3118 = vmatpush1.msra.mxu0 %v3096
      %3119 = vmatprep.subr.mxu0 %v3095
      %3120 = vmatpush1.msra.mxu0 %v3094
      %3121 = vmatprep.subr.mxu0 %v3093
      %3122 = vmatpush1.msra.mxu0 %v3092
      %3123 = vmatprep.subr.mxu0 %v3091
      %3124 = vmatpush1.msra.mxu0 %v3090
      %3125 = vmatprep.subr.mxu0 %v3089
      %3126 = vmatpush1.msra.mxu0 %v3088
      %3127 = vmatprep.subr.mxu0 %v3087
      %3128 = vmatpush1.msra.mxu0 %v3086
      %3129 = vmatprep.subr.mxu0 %v3085
      %3130 = vmatpush1.msra.mxu0 %v3084
      %3131 = vmatprep.subr.mxu0 %v3083
      %3132 = vmatpush1.msra.mxu0 %v3082
      %3133 = vmatprep.subr.mxu0 %v3081
      %3134 = vmatpush1.msra.mxu0 %v3080
      %3135 = vmatprep.subr.mxu0 0.0
      %3136 = vmatpush2.msra.mxu0 0.0
      %3137 = vmatprep.subr.mxu0 0.0
      %3138 = vmatpush2.msra.mxu0 0.0
      %3139 = vmatprep.subr.mxu0 0.0
      %3140 = vmatpush2.msra.mxu0 0.0
      %3141 = vmatprep.subr.mxu0 0.0
      %3142 = vmatpush2.msra.mxu0 0.0
      %3143 = vmatprep.subr.mxu0 0.0
      %3144 = vmatpush2.msra.mxu0 0.0
      %3145 = vmatprep.subr.mxu0 0.0
      %3146 = vmatpush2.msra.mxu0 0.0
      %3147 = vmatprep.subr.mxu0 0.0
      %3148 = vmatpush2.msra.mxu0 0.0
      %3149 = vmatprep.subr.mxu0 0.0
      %3150 = vmatpush2.msra.mxu0 0.0
      %3151 = vmatprep.subr.mxu0 0.0
      %3152 = vmatpush2.msra.mxu0 0.0
      %3153 = vmatprep.subr.mxu0 0.0
      %3154 = vmatpush2.msra.mxu0 0.0
      %3155 = vmatprep.subr.mxu0 0.0
      %3156 = vmatpush2.msra.mxu0 0.0
      %3157 = vmatprep.subr.mxu0 0.0
      %3158 = vmatpush2.msra.mxu0 0.0
      %3159 = vmatprep.subr.mxu0 0.0
      %3160 = vmatpush2.msra.mxu0 0.0
      %3161 = vmatprep.subr.mxu0 0.0
      %3162 = vmatpush2.msra.mxu0 0.0
      %3163 = vmatprep.subr.mxu0 0.0
      %3164 = vmatpush2.msra.mxu0 0.0
      %3165 = vmatprep.subr.mxu0 0.0
      %3166 = vmatpush2.msra.mxu0 0.0
      %3167 = vmatprep.mubr.f32.mxu0 0.0
      %3168 = vmatmul.mubr.f32.gmra.mxu0 %v3101
      %v3169 = vpop.f32.mrf.mxu0
      %v3170 = vadd.f32 0.0, %v3169
      %v3171 = vpop.f32.mrf.mxu0
      %v3172 = vadd.f32 0.0, %v3171
      %3173 = vdwg.mxu0
      %v3174 = vmax.f32 %v3170, 0.0
      %v3175 = vmax.f32 %v3172, 0.0
      %3176 = vrot.lane.b32.xlu0 %v3174, 17
      %v3177 = vpop.permute.xlu0 %3176
      %3178 = vrot.lane.b32.xlu0 %v3175, 17
      %v3179 = vpop.permute.xlu0 %3178
      %v3180 = vsel %vm382, %v3177, %v3179
      %v3181 = vsel %vm382, %v3179, %v3177
      %v3182 = vld [vmem:[%s1] sm:$0xff]
      %v3183 = vld [vmem:[%s1 + $0x8] sm:$0xff]
      %v3184 = vmul.f32 %v3181, %v3182
      %v3185 = vmul.f32 %v3180, %v3183
      %3186 = vst [vmem:[#allocation2] sm:$0xff] %v3184
      %3187 = vst [vmem:[#allocation2 + $0x8] sm:$0xff] %v3185
      %3188 = vrot.lane.b32.xlu0 %v3174, 16
      %v3189 = vpop.permute.xlu0 %3188
      %3190 = vrot.lane.b32.xlu0 %v3175, 16
      %v3191 = vpop.permute.xlu0 %3190
      %v3192 = vsel %vm407, %v3189, %v3191
      %v3193 = vsel %vm407, %v3191, %v3189
      %v3194 = vld [vmem:[%s720] sm:$0xff]
      %v3195 = vld [vmem:[%s720 + $0x8] sm:$0xff]
      %v3196 = vmul.f32 %v3193, %v3194
      %v3197 = vmul.f32 %v3192, %v3195
      %3198 = vst [vmem:[#allocation2 + $0x10] sm:$0xff] %v3196
      %3199 = vst [vmem:[#allocation2 + $0x18] sm:$0xff] %v3197
      %3200 = vrot.lane.b32.xlu0 %v3174, 15
      %v3201 = vpop.permute.xlu0 %3200
      %3202 = vrot.lane.b32.xlu0 %v3175, 15
      %v3203 = vpop.permute.xlu0 %3202
      %v3204 = vsel %vm433, %v3201, %v3203
      %v3205 = vsel %vm433, %v3203, %v3201
      %v3206 = vld [vmem:[%s733] sm:$0xff]
      %v3207 = vld [vmem:[%s733 + $0x8] sm:$0xff]
      %v3208 = vmul.f32 %v3205, %v3206
      %v3209 = vmul.f32 %v3204, %v3207
      %3210 = vst [vmem:[#allocation2 + $0x20] sm:$0xff] %v3208
      %3211 = vst [vmem:[#allocation2 + $0x28] sm:$0xff] %v3209
      %3212 = vrot.lane.b32.xlu0 %v3174, 1
      %v3213 = vpop.permute.xlu0 %3212
      %3214 = vrot.lane.b32.xlu0 %v3175, 1
      %v3215 = vpop.permute.xlu0 %3214
      %v3216 = vsel %vm459, %v3213, %v3215
      %v3217 = vsel %vm459, %v3215, %v3213
      %v3218 = vld [vmem:[%s746] sm:$0xff]
      %v3219 = vld [vmem:[%s746 + $0x8] sm:$0xff]
      %v3220 = vmul.f32 %v3217, %v3218
      %v3221 = vmul.f32 %v3216, %v3219
      %3222 = vst [vmem:[#allocation2 + $0x30] sm:$0xff] %v3220
      %3223 = vst [vmem:[#allocation2 + $0x38] sm:$0xff] %v3221
      %3224 = vst [vmem:[#allocation2 + $0x40] sm:$0xff] %v3174
      %3225 = vst [vmem:[#allocation2 + $0x48] sm:$0xff] %v3175
      %3226 = vrot.lane.b32.xlu0 %v3174, 127
      %v3227 = vpop.permute.xlu0 %3226
      %3228 = vrot.lane.b32.xlu0 %v3175, 127
      %v3229 = vpop.permute.xlu0 %3228
      %v3230 = vsel %vm489, %v3227, %v3229
      %v3231 = vsel %vm489, %v3229, %v3227
      %v3232 = vld [vmem:[%s761] sm:$0xff]
      %v3233 = vld [vmem:[%s761 + $0x8] sm:$0xff]
      %v3234 = vmul.f32 %v3230, %v3232
      %v3235 = vmul.f32 %v3231, %v3233
      %3236 = vst [vmem:[#allocation2 + $0x50] sm:$0xff] %v3234
      %3237 = vst [vmem:[#allocation2 + $0x58] sm:$0xff] %v3235
      %3238 = vrot.lane.b32.xlu0 %v3174, 113
      %v3239 = vpop.permute.xlu0 %3238
      %3240 = vrot.lane.b32.xlu0 %v3175, 113
      %v3241 = vpop.permute.xlu0 %3240
      %v3242 = vsel %vm515, %v3239, %v3241
      %v3243 = vsel %vm515, %v3241, %v3239
      %v3244 = vld [vmem:[%s774] sm:$0xff]
      %v3245 = vld [vmem:[%s774 + $0x8] sm:$0xff]
      %v3246 = vmul.f32 %v3242, %v3244
      %v3247 = vmul.f32 %v3243, %v3245
      %3248 = vst [vmem:[#allocation2 + $0x60] sm:$0xff] %v3246
      %3249 = vst [vmem:[#allocation2 + $0x68] sm:$0xff] %v3247
      %3250 = vrot.lane.b32.xlu0 %v3174, 112
      %v3251 = vpop.permute.xlu0 %3250
      %3252 = vrot.lane.b32.xlu0 %v3175, 112
      %v3253 = vpop.permute.xlu0 %3252
      %v3254 = vsel %vm541, %v3251, %v3253
      %v3255 = vsel %vm541, %v3253, %v3251
      %v3256 = vld [vmem:[%s787] sm:$0xff]
      %v3257 = vld [vmem:[%s787 + $0x8] sm:$0xff]
      %v3258 = vmul.f32 %v3254, %v3256
      %v3259 = vmul.f32 %v3255, %v3257
      %3260 = vst [vmem:[#allocation2 + $0x70] sm:$0xff] %v3258
      %3261 = vst [vmem:[#allocation2 + $0x78] sm:$0xff] %v3259
      %3262 = vrot.lane.b32.xlu0 %v3174, 111
      %v3263 = vpop.permute.xlu0 %3262
      %3264 = vrot.lane.b32.xlu0 %v3175, 111
      %v3265 = vpop.permute.xlu0 %3264
      %v3266 = vsel %vm567, %v3263, %v3265
      %v3267 = vsel %vm567, %v3265, %v3263
      %v3268 = vld [vmem:[%s800] sm:$0xff]
      %v3269 = vld [vmem:[%s800 + $0x8] sm:$0xff]
      %v3270 = vmul.f32 %v3266, %v3268
      %v3271 = vmul.f32 %v3267, %v3269
      %3272 = vst [vmem:[#allocation2 + $0x80] sm:$0xff] %v3270
      %3273 = vst [vmem:[#allocation2 + $0x88] sm:$0xff] %v3271
      %s3274 = scalar_lea.vmem %s338, 96
      %v3275 = vld [vmem:[%s3274] sm:$0xff]
      %v3276 = vld [vmem:[#allocation2] sm:$0xff]
      %v3277 = vld [vmem:[#allocation2 + $0x8] sm:$0xff]
      %v3278 = vld [vmem:[#allocation2 + $0x10] sm:$0xff]
      %v3279 = vld [vmem:[#allocation2 + $0x18] sm:$0xff]
      %v3280 = vld [vmem:[#allocation2 + $0x20] sm:$0xff]
      %v3281 = vld [vmem:[#allocation2 + $0x28] sm:$0xff]
      %v3282 = vld [vmem:[#allocation2 + $0x30] sm:$0xff]
      %v3283 = vld [vmem:[#allocation2 + $0x38] sm:$0xff]
      %v3284 = vld [vmem:[#allocation2 + $0x40] sm:$0xff]
      %v3285 = vld [vmem:[#allocation2 + $0x48] sm:$0xff]
      %v3286 = vld [vmem:[#allocation2 + $0x50] sm:$0xff]
      %v3287 = vld [vmem:[#allocation2 + $0x58] sm:$0xff]
      %v3288 = vld [vmem:[#allocation2 + $0x60] sm:$0xff]
      %v3289 = vld [vmem:[#allocation2 + $0x68] sm:$0xff]
      %v3290 = vld [vmem:[#allocation2 + $0x70] sm:$0xff]
      %v3291 = vld [vmem:[#allocation2 + $0x78] sm:$0xff]
      %v3292 = vld [vmem:[#allocation2 + $0x80] sm:$0xff]
      %v3293 = vld [vmem:[#allocation2 + $0x88] sm:$0xff]
      %v3294 = vld [vmem:[#allocation2 + $0x90] sm:$0xff]
      %v3295 = vld [vmem:[#allocation2 + $0x98] sm:$0xff]
      %v3297 = vsel %vm828, %v3275, 0
      %3299 = vmatprep.subr.mxu0 0.0
      %3300 = vmatpush1.msra.mxu0 0.0
      %3301 = vmatprep.subr.mxu0 0.0
      %3302 = vmatpush1.msra.mxu0 0.0
      %3303 = vmatprep.subr.mxu0 0.0
      %3304 = vmatpush1.msra.mxu0 0.0
      %3305 = vmatprep.subr.mxu0 0.0
      %3306 = vmatpush1.msra.mxu0 0.0
      %3307 = vmatprep.subr.mxu0 0.0
      %3308 = vmatpush1.msra.mxu0 0.0
      %3309 = vmatprep.subr.mxu0 0.0
      %3310 = vmatpush1.msra.mxu0 0.0
      %3311 = vmatprep.subr.mxu0 %v3295
      %3312 = vmatpush1.msra.mxu0 %v3294
      %3313 = vmatprep.subr.mxu0 %v3293
      %3314 = vmatpush1.msra.mxu0 %v3292
      %3315 = vmatprep.subr.mxu0 %v3291
      %3316 = vmatpush1.msra.mxu0 %v3290
      %3317 = vmatprep.subr.mxu0 %v3289
      %3318 = vmatpush1.msra.mxu0 %v3288
      %3319 = vmatprep.subr.mxu0 %v3287
      %3320 = vmatpush1.msra.mxu0 %v3286
      %3321 = vmatprep.subr.mxu0 %v3285
      %3322 = vmatpush1.msra.mxu0 %v3284
      %3323 = vmatprep.subr.mxu0 %v3283
      %3324 = vmatpush1.msra.mxu0 %v3282
      %3325 = vmatprep.subr.mxu0 %v3281
      %3326 = vmatpush1.msra.mxu0 %v3280
      %3327 = vmatprep.subr.mxu0 %v3279
      %3328 = vmatpush1.msra.mxu0 %v3278
      %3329 = vmatprep.subr.mxu0 %v3277
      %3330 = vmatpush1.msra.mxu0 %v3276
      %3331 = vmatprep.subr.mxu0 0.0
      %3332 = vmatpush2.msra.mxu0 0.0
      %3333 = vmatprep.subr.mxu0 0.0
      %3334 = vmatpush2.msra.mxu0 0.0
      %3335 = vmatprep.subr.mxu0 0.0
      %3336 = vmatpush2.msra.mxu0 0.0
      %3337 = vmatprep.subr.mxu0 0.0
      %3338 = vmatpush2.msra.mxu0 0.0
      %3339 = vmatprep.subr.mxu0 0.0
      %3340 = vmatpush2.msra.mxu0 0.0
      %3341 = vmatprep.subr.mxu0 0.0
      %3342 = vmatpush2.msra.mxu0 0.0
      %3343 = vmatprep.subr.mxu0 0.0
      %3344 = vmatpush2.msra.mxu0 0.0
      %3345 = vmatprep.subr.mxu0 0.0
      %3346 = vmatpush2.msra.mxu0 0.0
      %3347 = vmatprep.subr.mxu0 0.0
      %3348 = vmatpush2.msra.mxu0 0.0
      %3349 = vmatprep.subr.mxu0 0.0
      %3350 = vmatpush2.msra.mxu0 0.0
      %3351 = vmatprep.subr.mxu0 0.0
      %3352 = vmatpush2.msra.mxu0 0.0
      %3353 = vmatprep.subr.mxu0 0.0
      %3354 = vmatpush2.msra.mxu0 0.0
      %3355 = vmatprep.subr.mxu0 0.0
      %3356 = vmatpush2.msra.mxu0 0.0
      %3357 = vmatprep.subr.mxu0 0.0
      %3358 = vmatpush2.msra.mxu0 0.0
      %3359 = vmatprep.subr.mxu0 0.0
      %3360 = vmatpush2.msra.mxu0 0.0
      %3361 = vmatprep.subr.mxu0 0.0
      %3362 = vmatpush2.msra.mxu0 0.0
      %3363 = vmatprep.mubr.f32.mxu0 0.0
      %3364 = vmatmul.mubr.f32.gmra.mxu0 %v3297
      %v3365 = vpop.f32.mrf.mxu0
      %v3366 = vadd.f32 0.0, %v3365
      %v3367 = vpop.f32.mrf.mxu0
      %v3368 = vadd.f32 0.0, %v3367
      %3369 = vdwg.mxu0
      %v3370 = vmax.f32 %v3366, 0.0
      %v3371 = vmax.f32 %v3368, 0.0
      %s3372 = scalar_lea.vmem %s343, 32
      %v3373 = vld [vmem:[%s3372] sm:$0xff]
      %v3374 = vld [vmem:[%s3372 + $0x8] sm:$0xff]
      %v3375 = vld [vmem:[#allocation3] sm:$0xff]
      %v3376 = vld [vmem:[#allocation3 + $0x8] sm:$0xff]
      %v3377 = vld [vmem:[#allocation3 + $0x10] sm:$0xff]
      %v3378 = vld [vmem:[#allocation3 + $0x18] sm:$0xff]
      %v3379 = vld [vmem:[#allocation3 + $0x20] sm:$0xff]
      %v3380 = vld [vmem:[#allocation3 + $0x28] sm:$0xff]
      %v3381 = vld [vmem:[#allocation3 + $0x30] sm:$0xff]
      %v3382 = vld [vmem:[#allocation3 + $0x38] sm:$0xff]
      %v3383 = vld [vmem:[#allocation3 + $0x40] sm:$0xff]
      %v3384 = vld [vmem:[#allocation3 + $0x48] sm:$0xff]
      %v3385 = vld [vmem:[#allocation3 + $0x50] sm:$0xff]
      %v3386 = vld [vmem:[#allocation3 + $0x58] sm:$0xff]
      %v3387 = vld [vmem:[#allocation3 + $0x60] sm:$0xff]
      %v3388 = vld [vmem:[#allocation3 + $0x68] sm:$0xff]
      %v3389 = vld [vmem:[#allocation3 + $0x70] sm:$0xff]
      %v3390 = vld [vmem:[#allocation3 + $0x78] sm:$0xff]
      %v3391 = vld [vmem:[#allocation3 + $0x80] sm:$0xff]
      %v3392 = vld [vmem:[#allocation3 + $0x88] sm:$0xff]
      %v3393 = vld [vmem:[#allocation3 + $0x90] sm:$0xff]
      %v3394 = vld [vmem:[#allocation3 + $0x98] sm:$0xff]
      %v3395 = vld [vmem:[#allocation3 + $0xa0] sm:$0xff]
      %v3396 = vld [vmem:[#allocation3 + $0xa8] sm:$0xff]
      %v3397 = vld [vmem:[#allocation3 + $0xb0] sm:$0xff]
      %v3398 = vld [vmem:[#allocation3 + $0xb8] sm:$0xff]
      %v3399 = vld [vmem:[#allocation3 + $0xc0] sm:$0xff]
      %v3400 = vld [vmem:[#allocation3 + $0xc8] sm:$0xff]
      %v3401 = vld [vmem:[#allocation3 + $0xd0] sm:$0xff]
      %v3402 = vld [vmem:[#allocation3 + $0xd8] sm:$0xff]
      %v3403 = vld [vmem:[#allocation3 + $0xe0] sm:$0xff]
      %v3404 = vld [vmem:[#allocation3 + $0xe8] sm:$0xff]
      %v3405 = vld [vmem:[#allocation3 + $0xf0] sm:$0xff]
      %v3406 = vld [vmem:[#allocation3 + $0xf8] sm:$0xff]
      %v3407 = vld [vmem:[#allocation3 + $0x100] sm:$0xff]
      %v3408 = vld [vmem:[#allocation3 + $0x108] sm:$0xff]
      %v3409 = vld [vmem:[#allocation3 + $0x110] sm:$0xff]
      %v3410 = vld [vmem:[#allocation3 + $0x118] sm:$0xff]
      %v3411 = vld [vmem:[#allocation3 + $0x120] sm:$0xff]
      %v3412 = vld [vmem:[#allocation3 + $0x128] sm:$0xff]
      %3413 = vrot.lane.b32.xlu0 %v3370, 17
      %v3414 = vpop.permute.xlu0 %3413
      %3415 = vrot.lane.b32.xlu0 %v3371, 17
      %v3416 = vpop.permute.xlu0 %3415
      %v3417 = vsel %vm382, %v3414, %v3416
      %v3418 = vsel %vm382, %v3416, %v3414
      %v3419 = vld [vmem:[%s1] sm:$0xff]
      %v3420 = vld [vmem:[%s1 + $0x8] sm:$0xff]
      %v3421 = vmul.f32 %v3418, %v3419
      %v3422 = vmul.f32 %v3417, %v3420
      %3423 = vst [vmem:[#allocation2] sm:$0xff] %v3421
      %3424 = vst [vmem:[#allocation2 + $0x8] sm:$0xff] %v3422
      %3425 = vrot.lane.b32.xlu0 %v3370, 16
      %v3426 = vpop.permute.xlu0 %3425
      %3427 = vrot.lane.b32.xlu0 %v3371, 16
      %v3428 = vpop.permute.xlu0 %3427
      %v3429 = vsel %vm407, %v3426, %v3428
      %v3430 = vsel %vm407, %v3428, %v3426
      %v3431 = vld [vmem:[%s720] sm:$0xff]
      %v3432 = vld [vmem:[%s720 + $0x8] sm:$0xff]
      %v3433 = vmul.f32 %v3430, %v3431
      %v3434 = vmul.f32 %v3429, %v3432
      %3435 = vst [vmem:[#allocation2 + $0x10] sm:$0xff] %v3433
      %3436 = vst [vmem:[#allocation2 + $0x18] sm:$0xff] %v3434
      %3437 = vrot.lane.b32.xlu0 %v3370, 15
      %v3438 = vpop.permute.xlu0 %3437
      %3439 = vrot.lane.b32.xlu0 %v3371, 15
      %v3440 = vpop.permute.xlu0 %3439
      %v3441 = vsel %vm433, %v3438, %v3440
      %v3442 = vsel %vm433, %v3440, %v3438
      %v3443 = vld [vmem:[%s733] sm:$0xff]
      %v3444 = vld [vmem:[%s733 + $0x8] sm:$0xff]
      %v3445 = vmul.f32 %v3442, %v3443
      %v3446 = vmul.f32 %v3441, %v3444
      %3447 = vst [vmem:[#allocation2 + $0x20] sm:$0xff] %v3445
      %3448 = vst [vmem:[#allocation2 + $0x28] sm:$0xff] %v3446
      %3449 = vrot.lane.b32.xlu0 %v3370, 1
      %v3450 = vpop.permute.xlu0 %3449
      %3451 = vrot.lane.b32.xlu0 %v3371, 1
      %v3452 = vpop.permute.xlu0 %3451
      %v3453 = vsel %vm459, %v3450, %v3452
      %v3454 = vsel %vm459, %v3452, %v3450
      %v3455 = vld [vmem:[%s746] sm:$0xff]
      %v3456 = vld [vmem:[%s746 + $0x8] sm:$0xff]
      %v3457 = vmul.f32 %v3454, %v3455
      %v3458 = vmul.f32 %v3453, %v3456
      %3459 = vst [vmem:[#allocation2 + $0x30] sm:$0xff] %v3457
      %3460 = vst [vmem:[#allocation2 + $0x38] sm:$0xff] %v3458
      %3461 = vst [vmem:[#allocation2 + $0x40] sm:$0xff] %v3370
      %3462 = vst [vmem:[#allocation2 + $0x48] sm:$0xff] %v3371
      %3463 = vrot.lane.b32.xlu0 %v3370, 127
      %v3464 = vpop.permute.xlu0 %3463
      %3465 = vrot.lane.b32.xlu0 %v3371, 127
      %v3466 = vpop.permute.xlu0 %3465
      %v3467 = vsel %vm489, %v3464, %v3466
      %v3468 = vsel %vm489, %v3466, %v3464
      %v3469 = vld [vmem:[%s761] sm:$0xff]
      %v3470 = vld [vmem:[%s761 + $0x8] sm:$0xff]
      %v3471 = vmul.f32 %v3467, %v3469
      %v3472 = vmul.f32 %v3468, %v3470
      %3473 = vst [vmem:[#allocation2 + $0x50] sm:$0xff] %v3471
      %3474 = vst [vmem:[#allocation2 + $0x58] sm:$0xff] %v3472
      %3475 = vrot.lane.b32.xlu0 %v3370, 113
      %v3476 = vpop.permute.xlu0 %3475
      %3477 = vrot.lane.b32.xlu0 %v3371, 113
      %v3478 = vpop.permute.xlu0 %3477
      %v3479 = vsel %vm515, %v3476, %v3478
      %v3480 = vsel %vm515, %v3478, %v3476
      %v3481 = vld [vmem:[%s774] sm:$0xff]
      %v3482 = vld [vmem:[%s774 + $0x8] sm:$0xff]
      %v3483 = vmul.f32 %v3479, %v3481
      %v3484 = vmul.f32 %v3480, %v3482
      %3485 = vst [vmem:[#allocation2 + $0x60] sm:$0xff] %v3483
      %3486 = vst [vmem:[#allocation2 + $0x68] sm:$0xff] %v3484
      %3487 = vrot.lane.b32.xlu0 %v3370, 112
      %v3488 = vpop.permute.xlu0 %3487
      %3489 = vrot.lane.b32.xlu0 %v3371, 112
      %v3490 = vpop.permute.xlu0 %3489
      %v3491 = vsel %vm541, %v3488, %v3490
      %v3492 = vsel %vm541, %v3490, %v3488
      %v3493 = vld [vmem:[%s787] sm:$0xff]
      %v3494 = vld [vmem:[%s787 + $0x8] sm:$0xff]
      %v3495 = vmul.f32 %v3491, %v3493
      %v3496 = vmul.f32 %v3492, %v3494
      %3497 = vst [vmem:[#allocation2 + $0x70] sm:$0xff] %v3495
      %3498 = vst [vmem:[#allocation2 + $0x78] sm:$0xff] %v3496
      %3499 = vrot.lane.b32.xlu0 %v3370, 111
      %v3500 = vpop.permute.xlu0 %3499
      %3501 = vrot.lane.b32.xlu0 %v3371, 111
      %v3502 = vpop.permute.xlu0 %3501
      %v3503 = vsel %vm567, %v3500, %v3502
      %v3504 = vsel %vm567, %v3502, %v3500
      %v3505 = vld [vmem:[%s800] sm:$0xff]
      %v3506 = vld [vmem:[%s800 + $0x8] sm:$0xff]
      %v3507 = vmul.f32 %v3503, %v3505
      %v3508 = vmul.f32 %v3504, %v3506
      %3509 = vst [vmem:[#allocation2 + $0x80] sm:$0xff] %v3507
      %3510 = vst [vmem:[#allocation2 + $0x88] sm:$0xff] %v3508
      %s3511 = scalar_lea.vmem %s338, 104
      %v3512 = vld [vmem:[%s3511] sm:$0xff]
      %v3513 = vld [vmem:[#allocation2] sm:$0xff]
      %v3514 = vld [vmem:[#allocation2 + $0x8] sm:$0xff]
      %v3515 = vld [vmem:[#allocation2 + $0x10] sm:$0xff]
      %v3516 = vld [vmem:[#allocation2 + $0x18] sm:$0xff]
      %v3517 = vld [vmem:[#allocation2 + $0x20] sm:$0xff]
      %v3518 = vld [vmem:[#allocation2 + $0x28] sm:$0xff]
      %v3519 = vld [vmem:[#allocation2 + $0x30] sm:$0xff]
      %v3520 = vld [vmem:[#allocation2 + $0x38] sm:$0xff]
      %v3521 = vld [vmem:[#allocation2 + $0x40] sm:$0xff]
      %v3522 = vld [vmem:[#allocation2 + $0x48] sm:$0xff]
      %v3523 = vld [vmem:[#allocation2 + $0x50] sm:$0xff]
      %v3524 = vld [vmem:[#allocation2 + $0x58] sm:$0xff]
      %v3525 = vld [vmem:[#allocation2 + $0x60] sm:$0xff]
      %v3526 = vld [vmem:[#allocation2 + $0x68] sm:$0xff]
      %v3527 = vld [vmem:[#allocation2 + $0x70] sm:$0xff]
      %v3528 = vld [vmem:[#allocation2 + $0x78] sm:$0xff]
      %v3529 = vld [vmem:[#allocation2 + $0x80] sm:$0xff]
      %v3530 = vld [vmem:[#allocation2 + $0x88] sm:$0xff]
      %v3531 = vld [vmem:[#allocation2 + $0x90] sm:$0xff]
      %v3532 = vld [vmem:[#allocation2 + $0x98] sm:$0xff]
      %v3534 = vsel %vm828, %v3512, 0
      %3536 = vmatprep.subr.mxu0 0.0
      %3537 = vmatpush1.msra.mxu0 0.0
      %3538 = vmatprep.subr.mxu0 0.0
      %3539 = vmatpush1.msra.mxu0 0.0
      %3540 = vmatprep.subr.mxu0 0.0
      %3541 = vmatpush1.msra.mxu0 0.0
      %3542 = vmatprep.subr.mxu0 0.0
      %3543 = vmatpush1.msra.mxu0 0.0
      %3544 = vmatprep.subr.mxu0 0.0
      %3545 = vmatpush1.msra.mxu0 0.0
      %3546 = vmatprep.subr.mxu0 0.0
      %3547 = vmatpush1.msra.mxu0 0.0
      %3548 = vmatprep.subr.mxu0 %v3532
      %3549 = vmatpush1.msra.mxu0 %v3531
      %3550 = vmatprep.subr.mxu0 %v3530
      %3551 = vmatpush1.msra.mxu0 %v3529
      %3552 = vmatprep.subr.mxu0 %v3528
      %3553 = vmatpush1.msra.mxu0 %v3527
      %3554 = vmatprep.subr.mxu0 %v3526
      %3555 = vmatpush1.msra.mxu0 %v3525
      %3556 = vmatprep.subr.mxu0 %v3524
      %3557 = vmatpush1.msra.mxu0 %v3523
      %3558 = vmatprep.subr.mxu0 %v3522
      %3559 = vmatpush1.msra.mxu0 %v3521
      %3560 = vmatprep.subr.mxu0 %v3520
      %3561 = vmatpush1.msra.mxu0 %v3519
      %3562 = vmatprep.subr.mxu0 %v3518
      %3563 = vmatpush1.msra.mxu0 %v3517
      %3564 = vmatprep.subr.mxu0 %v3516
      %3565 = vmatpush1.msra.mxu0 %v3515
      %3566 = vmatprep.subr.mxu0 %v3514
      %3567 = vmatpush1.msra.mxu0 %v3513
      %3568 = vmatprep.subr.mxu0 0.0
      %3569 = vmatpush2.msra.mxu0 0.0
      %3570 = vmatprep.subr.mxu0 0.0
      %3571 = vmatpush2.msra.mxu0 0.0
      %3572 = vmatprep.subr.mxu0 0.0
      %3573 = vmatpush2.msra.mxu0 0.0
      %3574 = vmatprep.subr.mxu0 0.0
      %3575 = vmatpush2.msra.mxu0 0.0
      %3576 = vmatprep.subr.mxu0 0.0
      %3577 = vmatpush2.msra.mxu0 0.0
      %3578 = vmatprep.subr.mxu0 0.0
      %3579 = vmatpush2.msra.mxu0 0.0
      %3580 = vmatprep.subr.mxu0 0.0
      %3581 = vmatpush2.msra.mxu0 0.0
      %3582 = vmatprep.subr.mxu0 0.0
      %3583 = vmatpush2.msra.mxu0 0.0
      %3584 = vmatprep.subr.mxu0 0.0
      %3585 = vmatpush2.msra.mxu0 0.0
      %3586 = vmatprep.subr.mxu0 0.0
      %3587 = vmatpush2.msra.mxu0 0.0
      %3588 = vmatprep.subr.mxu0 0.0
      %3589 = vmatpush2.msra.mxu0 0.0
      %3590 = vmatprep.subr.mxu0 0.0
      %3591 = vmatpush2.msra.mxu0 0.0
      %3592 = vmatprep.subr.mxu0 0.0
      %3593 = vmatpush2.msra.mxu0 0.0
      %3594 = vmatprep.subr.mxu0 0.0
      %3595 = vmatpush2.msra.mxu0 0.0
      %3596 = vmatprep.subr.mxu0 0.0
      %3597 = vmatpush2.msra.mxu0 0.0
      %3598 = vmatprep.subr.mxu0 0.0
      %3599 = vmatpush2.msra.mxu0 0.0
      %3600 = vmatprep.mubr.f32.mxu0 0.0
      %3601 = vmatmul.mubr.f32.gmra.mxu0 %v3534
      %v3602 = vpop.f32.mrf.mxu0
      %v3603 = vadd.f32 0.0, %v3602
      %v3604 = vpop.f32.mrf.mxu0
      %v3605 = vadd.f32 0.0, %v3604
      %3606 = vdwg.mxu0
      %v3608 = vsel %vm625, %v3374, 0
      %3610 = vmatprep.subr.mxu0 %v3406
      %3611 = vmatpush1.msra.mxu0 %v3405
      %3612 = vmatprep.subr.mxu0 %v3404
      %3613 = vmatpush1.msra.mxu0 %v3403
      %3614 = vmatprep.subr.mxu0 %v3402
      %3615 = vmatpush1.msra.mxu0 %v3401
      %3616 = vmatprep.subr.mxu0 %v3400
      %3617 = vmatpush1.msra.mxu0 %v3399
      %3618 = vmatprep.subr.mxu0 %v3398
      %3619 = vmatpush1.msra.mxu0 %v3397
      %3620 = vmatprep.subr.mxu0 %v3396
      %3621 = vmatpush1.msra.mxu0 %v3395
      %3622 = vmatprep.subr.mxu0 %v3394
      %3623 = vmatpush1.msra.mxu0 %v3393
      %3624 = vmatprep.subr.mxu0 %v3392
      %3625 = vmatpush1.msra.mxu0 %v3391
      %3626 = vmatprep.subr.mxu0 %v3390
      %3627 = vmatpush1.msra.mxu0 %v3389
      %3628 = vmatprep.subr.mxu0 %v3388
      %3629 = vmatpush1.msra.mxu0 %v3387
      %3630 = vmatprep.subr.mxu0 %v3386
      %3631 = vmatpush1.msra.mxu0 %v3385
      %3632 = vmatprep.subr.mxu0 %v3384
      %3633 = vmatpush1.msra.mxu0 %v3383
      %3634 = vmatprep.subr.mxu0 %v3382
      %3635 = vmatpush1.msra.mxu0 %v3381
      %3636 = vmatprep.subr.mxu0 %v3380
      %3637 = vmatpush1.msra.mxu0 %v3379
      %3638 = vmatprep.subr.mxu0 %v3378
      %3639 = vmatpush1.msra.mxu0 %v3377
      %3640 = vmatprep.subr.mxu0 %v3376
      %3641 = vmatpush1.msra.mxu0 %v3375
      %3642 = vmatprep.subr.mxu0 0.0
      %3643 = vmatpush2.msra.mxu0 0.0
      %3644 = vmatprep.subr.mxu0 0.0
      %3645 = vmatpush2.msra.mxu0 0.0
      %3646 = vmatprep.subr.mxu0 0.0
      %3647 = vmatpush2.msra.mxu0 0.0
      %3648 = vmatprep.subr.mxu0 0.0
      %3649 = vmatpush2.msra.mxu0 0.0
      %3650 = vmatprep.subr.mxu0 0.0
      %3651 = vmatpush2.msra.mxu0 0.0
      %3652 = vmatprep.subr.mxu0 0.0
      %3653 = vmatpush2.msra.mxu0 0.0
      %3654 = vmatprep.subr.mxu0 0.0
      %3655 = vmatpush2.msra.mxu0 0.0
      %3656 = vmatprep.subr.mxu0 0.0
      %3657 = vmatpush2.msra.mxu0 0.0
      %3658 = vmatprep.subr.mxu0 0.0
      %3659 = vmatpush2.msra.mxu0 0.0
      %3660 = vmatprep.subr.mxu0 0.0
      %3661 = vmatpush2.msra.mxu0 0.0
      %3662 = vmatprep.subr.mxu0 0.0
      %3663 = vmatpush2.msra.mxu0 0.0
      %3664 = vmatprep.subr.mxu0 0.0
      %3665 = vmatpush2.msra.mxu0 0.0
      %3666 = vmatprep.subr.mxu0 0.0
      %3667 = vmatpush2.msra.mxu0 0.0
      %3668 = vmatprep.subr.mxu0 %v3412
      %3669 = vmatpush2.msra.mxu0 %v3411
      %3670 = vmatprep.subr.mxu0 %v3410
      %3671 = vmatpush2.msra.mxu0 %v3409
      %3672 = vmatprep.subr.mxu0 %v3408
      %3673 = vmatpush2.msra.mxu0 %v3407
      %3674 = vmatprep.mubr.f32.mxu0 %v3608
      %3675 = vmatmul.mubr.f32.gmra.mxu0 %v3373
      %v3676 = vpop.f32.mrf.mxu0
      %v3677 = vadd.f32 %v3603, %v3676
      %v3678 = vpop.f32.mrf.mxu0
      %v3679 = vadd.f32 %v3605, %v3678
      %3680 = vdwg.mxu0
      %v3681 = vmax.f32 %v3677, 0.0
      %v3682 = vmax.f32 %v3679, 0.0
      %3683 = vrot.lane.b32.xlu0 %v3681, 17
      %v3684 = vpop.permute.xlu0 %3683
      %3685 = vrot.lane.b32.xlu0 %v3682, 17
      %v3686 = vpop.permute.xlu0 %3685
      %v3687 = vsel %vm382, %v3684, %v3686
      %v3688 = vsel %vm382, %v3686, %v3684
      %v3689 = vld [vmem:[%s1] sm:$0xff]
      %v3690 = vld [vmem:[%s1 + $0x8] sm:$0xff]
      %v3691 = vmul.f32 %v3688, %v3689
      %v3692 = vmul.f32 %v3687, %v3690
      %3693 = vst [vmem:[#allocation2] sm:$0xff] %v3691
      %3694 = vst [vmem:[#allocation2 + $0x8] sm:$0xff] %v3692
      %3695 = vrot.lane.b32.xlu0 %v3681, 16
      %v3696 = vpop.permute.xlu0 %3695
      %3697 = vrot.lane.b32.xlu0 %v3682, 16
      %v3698 = vpop.permute.xlu0 %3697
      %v3699 = vsel %vm407, %v3696, %v3698
      %v3700 = vsel %vm407, %v3698, %v3696
      %v3701 = vld [vmem:[%s720] sm:$0xff]
      %v3702 = vld [vmem:[%s720 + $0x8] sm:$0xff]
      %v3703 = vmul.f32 %v3700, %v3701
      %v3704 = vmul.f32 %v3699, %v3702
      %3705 = vst [vmem:[#allocation2 + $0x10] sm:$0xff] %v3703
      %3706 = vst [vmem:[#allocation2 + $0x18] sm:$0xff] %v3704
      %3707 = vrot.lane.b32.xlu0 %v3681, 15
      %v3708 = vpop.permute.xlu0 %3707
      %3709 = vrot.lane.b32.xlu0 %v3682, 15
      %v3710 = vpop.permute.xlu0 %3709
      %v3711 = vsel %vm433, %v3708, %v3710
      %v3712 = vsel %vm433, %v3710, %v3708
      %v3713 = vld [vmem:[%s733] sm:$0xff]
      %v3714 = vld [vmem:[%s733 + $0x8] sm:$0xff]
      %v3715 = vmul.f32 %v3712, %v3713
      %v3716 = vmul.f32 %v3711, %v3714
      %3717 = vst [vmem:[#allocation2 + $0x20] sm:$0xff] %v3715
      %3718 = vst [vmem:[#allocation2 + $0x28] sm:$0xff] %v3716
      %3719 = vrot.lane.b32.xlu0 %v3681, 1
      %v3720 = vpop.permute.xlu0 %3719
      %3721 = vrot.lane.b32.xlu0 %v3682, 1
      %v3722 = vpop.permute.xlu0 %3721
      %v3723 = vsel %vm459, %v3720, %v3722
      %v3724 = vsel %vm459, %v3722, %v3720
      %v3725 = vld [vmem:[%s746] sm:$0xff]
      %v3726 = vld [vmem:[%s746 + $0x8] sm:$0xff]
      %v3727 = vmul.f32 %v3724, %v3725
      %v3728 = vmul.f32 %v3723, %v3726
      %3729 = vst [vmem:[#allocation2 + $0x30] sm:$0xff] %v3727
      %3730 = vst [vmem:[#allocation2 + $0x38] sm:$0xff] %v3728
      %3731 = vst [vmem:[#allocation2 + $0x40] sm:$0xff] %v3681
      %3732 = vst [vmem:[#allocation2 + $0x48] sm:$0xff] %v3682
      %3733 = vrot.lane.b32.xlu0 %v3681, 127
      %v3734 = vpop.permute.xlu0 %3733
      %3735 = vrot.lane.b32.xlu0 %v3682, 127
      %v3736 = vpop.permute.xlu0 %3735
      %v3737 = vsel %vm489, %v3734, %v3736
      %v3738 = vsel %vm489, %v3736, %v3734
      %v3739 = vld [vmem:[%s761] sm:$0xff]
      %v3740 = vld [vmem:[%s761 + $0x8] sm:$0xff]
      %v3741 = vmul.f32 %v3737, %v3739
      %v3742 = vmul.f32 %v3738, %v3740
      %3743 = vst [vmem:[#allocation2 + $0x50] sm:$0xff] %v3741
      %3744 = vst [vmem:[#allocation2 + $0x58] sm:$0xff] %v3742
      %3745 = vrot.lane.b32.xlu0 %v3681, 113
      %v3746 = vpop.permute.xlu0 %3745
      %3747 = vrot.lane.b32.xlu0 %v3682, 113
      %v3748 = vpop.permute.xlu0 %3747
      %v3749 = vsel %vm515, %v3746, %v3748
      %v3750 = vsel %vm515, %v3748, %v3746
      %v3751 = vld [vmem:[%s774] sm:$0xff]
      %v3752 = vld [vmem:[%s774 + $0x8] sm:$0xff]
      %v3753 = vmul.f32 %v3749, %v3751
      %v3754 = vmul.f32 %v3750, %v3752
      %3755 = vst [vmem:[#allocation2 + $0x60] sm:$0xff] %v3753
      %3756 = vst [vmem:[#allocation2 + $0x68] sm:$0xff] %v3754
      %3757 = vrot.lane.b32.xlu0 %v3681, 112
      %v3758 = vpop.permute.xlu0 %3757
      %3759 = vrot.lane.b32.xlu0 %v3682, 112
      %v3760 = vpop.permute.xlu0 %3759
      %v3761 = vsel %vm541, %v3758, %v3760
      %v3762 = vsel %vm541, %v3760, %v3758
      %v3763 = vld [vmem:[%s787] sm:$0xff]
      %v3764 = vld [vmem:[%s787 + $0x8] sm:$0xff]
      %v3765 = vmul.f32 %v3761, %v3763
      %v3766 = vmul.f32 %v3762, %v3764
      %3767 = vst [vmem:[#allocation2 + $0x70] sm:$0xff] %v3765
      %3768 = vst [vmem:[#allocation2 + $0x78] sm:$0xff] %v3766
      %3769 = vrot.lane.b32.xlu0 %v3681, 111
      %v3770 = vpop.permute.xlu0 %3769
      %3771 = vrot.lane.b32.xlu0 %v3682, 111
      %v3772 = vpop.permute.xlu0 %3771
      %v3773 = vsel %vm567, %v3770, %v3772
      %v3774 = vsel %vm567, %v3772, %v3770
      %v3775 = vld [vmem:[%s800] sm:$0xff]
      %v3776 = vld [vmem:[%s800 + $0x8] sm:$0xff]
      %v3777 = vmul.f32 %v3773, %v3775
      %v3778 = vmul.f32 %v3774, %v3776
      %3779 = vst [vmem:[#allocation2 + $0x80] sm:$0xff] %v3777
      %3780 = vst [vmem:[#allocation2 + $0x88] sm:$0xff] %v3778
      %s3781 = scalar_lea.vmem %s338, 112
      %v3782 = vld [vmem:[%s3781] sm:$0xff]
      %v3783 = vld [vmem:[#allocation2] sm:$0xff]
      %v3784 = vld [vmem:[#allocation2 + $0x8] sm:$0xff]
      %v3785 = vld [vmem:[#allocation2 + $0x10] sm:$0xff]
      %v3786 = vld [vmem:[#allocation2 + $0x18] sm:$0xff]
      %v3787 = vld [vmem:[#allocation2 + $0x20] sm:$0xff]
      %v3788 = vld [vmem:[#allocation2 + $0x28] sm:$0xff]
      %v3789 = vld [vmem:[#allocation2 + $0x30] sm:$0xff]
      %v3790 = vld [vmem:[#allocation2 + $0x38] sm:$0xff]
      %v3791 = vld [vmem:[#allocation2 + $0x40] sm:$0xff]
      %v3792 = vld [vmem:[#allocation2 + $0x48] sm:$0xff]
      %v3793 = vld [vmem:[#allocation2 + $0x50] sm:$0xff]
      %v3794 = vld [vmem:[#allocation2 + $0x58] sm:$0xff]
      %v3795 = vld [vmem:[#allocation2 + $0x60] sm:$0xff]
      %v3796 = vld [vmem:[#allocation2 + $0x68] sm:$0xff]
      %v3797 = vld [vmem:[#allocation2 + $0x70] sm:$0xff]
      %v3798 = vld [vmem:[#allocation2 + $0x78] sm:$0xff]
      %v3799 = vld [vmem:[#allocation2 + $0x80] sm:$0xff]
      %v3800 = vld [vmem:[#allocation2 + $0x88] sm:$0xff]
      %v3801 = vld [vmem:[#allocation2 + $0x90] sm:$0xff]
      %v3802 = vld [vmem:[#allocation2 + $0x98] sm:$0xff]
      %v3804 = vsel %vm828, %v3782, 0
      %3806 = vmatprep.subr.mxu0 0.0
      %3807 = vmatpush1.msra.mxu0 0.0
      %3808 = vmatprep.subr.mxu0 0.0
      %3809 = vmatpush1.msra.mxu0 0.0
      %3810 = vmatprep.subr.mxu0 0.0
      %3811 = vmatpush1.msra.mxu0 0.0
      %3812 = vmatprep.subr.mxu0 0.0
      %3813 = vmatpush1.msra.mxu0 0.0
      %3814 = vmatprep.subr.mxu0 0.0
      %3815 = vmatpush1.msra.mxu0 0.0
      %3816 = vmatprep.subr.mxu0 0.0
      %3817 = vmatpush1.msra.mxu0 0.0
      %3818 = vmatprep.subr.mxu0 %v3802
      %3819 = vmatpush1.msra.mxu0 %v3801
      %3820 = vmatprep.subr.mxu0 %v3800
      %3821 = vmatpush1.msra.mxu0 %v3799
      %3822 = vmatprep.subr.mxu0 %v3798
      %3823 = vmatpush1.msra.mxu0 %v3797
      %3824 = vmatprep.subr.mxu0 %v3796
      %3825 = vmatpush1.msra.mxu0 %v3795
      %3826 = vmatprep.subr.mxu0 %v3794
      %3827 = vmatpush1.msra.mxu0 %v3793
      %3828 = vmatprep.subr.mxu0 %v3792
      %3829 = vmatpush1.msra.mxu0 %v3791
      %3830 = vmatprep.subr.mxu0 %v3790
      %3831 = vmatpush1.msra.mxu0 %v3789
      %3832 = vmatprep.subr.mxu0 %v3788
      %3833 = vmatpush1.msra.mxu0 %v3787
      %3834 = vmatprep.subr.mxu0 %v3786
      %3835 = vmatpush1.msra.mxu0 %v3785
      %3836 = vmatprep.subr.mxu0 %v3784
      %3837 = vmatpush1.msra.mxu0 %v3783
      %3838 = vmatprep.subr.mxu0 0.0
      %3839 = vmatpush2.msra.mxu0 0.0
      %3840 = vmatprep.subr.mxu0 0.0
      %3841 = vmatpush2.msra.mxu0 0.0
      %3842 = vmatprep.subr.mxu0 0.0
      %3843 = vmatpush2.msra.mxu0 0.0
      %3844 = vmatprep.subr.mxu0 0.0
      %3845 = vmatpush2.msra.mxu0 0.0
      %3846 = vmatprep.subr.mxu0 0.0
      %3847 = vmatpush2.msra.mxu0 0.0
      %3848 = vmatprep.subr.mxu0 0.0
      %3849 = vmatpush2.msra.mxu0 0.0
      %3850 = vmatprep.subr.mxu0 0.0
      %3851 = vmatpush2.msra.mxu0 0.0
      %3852 = vmatprep.subr.mxu0 0.0
      %3853 = vmatpush2.msra.mxu0 0.0
      %3854 = vmatprep.subr.mxu0 0.0
      %3855 = vmatpush2.msra.mxu0 0.0
      %3856 = vmatprep.subr.mxu0 0.0
      %3857 = vmatpush2.msra.mxu0 0.0
      %3858 = vmatprep.subr.mxu0 0.0
      %3859 = vmatpush2.msra.mxu0 0.0
      %3860 = vmatprep.subr.mxu0 0.0
      %3861 = vmatpush2.msra.mxu0 0.0
      %3862 = vmatprep.subr.mxu0 0.0
      %3863 = vmatpush2.msra.mxu0 0.0
      %3864 = vmatprep.subr.mxu0 0.0
      %3865 = vmatpush2.msra.mxu0 0.0
      %3866 = vmatprep.subr.mxu0 0.0
      %3867 = vmatpush2.msra.mxu0 0.0
      %3868 = vmatprep.subr.mxu0 0.0
      %3869 = vmatpush2.msra.mxu0 0.0
      %3870 = vmatprep.mubr.f32.mxu0 0.0
      %3871 = vmatmul.mubr.f32.gmra.mxu0 %v3804
      %v3872 = vpop.f32.mrf.mxu0
      %v3873 = vadd.f32 0.0, %v3872
      %v3874 = vpop.f32.mrf.mxu0
      %v3875 = vadd.f32 0.0, %v3874
      %3876 = vdwg.mxu0
      %v3877 = vmax.f32 %v3873, 0.0
      %v3878 = vmax.f32 %v3875, 0.0
      %3879 = vrot.lane.b32.xlu0 %v3877, 17
      %v3880 = vpop.permute.xlu0 %3879
      %3881 = vrot.lane.b32.xlu0 %v3878, 17
      %v3882 = vpop.permute.xlu0 %3881
      %v3883 = vsel %vm382, %v3880, %v3882
      %v3884 = vsel %vm382, %v3882, %v3880
      %v3885 = vld [vmem:[%s1] sm:$0xff]
      %v3886 = vld [vmem:[%s1 + $0x8] sm:$0xff]
      %v3887 = vmul.f32 %v3884, %v3885
      %v3888 = vmul.f32 %v3883, %v3886
      %3889 = vst [vmem:[#allocation2] sm:$0xff] %v3887
      %3890 = vst [vmem:[#allocation2 + $0x8] sm:$0xff] %v3888
      %3891 = vrot.lane.b32.xlu0 %v3877, 16
      %v3892 = vpop.permute.xlu0 %3891
      %3893 = vrot.lane.b32.xlu0 %v3878, 16
      %v3894 = vpop.permute.xlu0 %3893
      %v3895 = vsel %vm407, %v3892, %v3894
      %v3896 = vsel %vm407, %v3894, %v3892
      %v3897 = vld [vmem:[%s720] sm:$0xff]
      %v3898 = vld [vmem:[%s720 + $0x8] sm:$0xff]
      %v3899 = vmul.f32 %v3896, %v3897
      %v3900 = vmul.f32 %v3895, %v3898
      %3901 = vst [vmem:[#allocation2 + $0x10] sm:$0xff] %v3899
      %3902 = vst [vmem:[#allocation2 + $0x18] sm:$0xff] %v3900
      %3903 = vrot.lane.b32.xlu0 %v3877, 15
      %v3904 = vpop.permute.xlu0 %3903
      %3905 = vrot.lane.b32.xlu0 %v3878, 15
      %v3906 = vpop.permute.xlu0 %3905
      %v3907 = vsel %vm433, %v3904, %v3906
      %v3908 = vsel %vm433, %v3906, %v3904
      %v3909 = vld [vmem:[%s733] sm:$0xff]
      %v3910 = vld [vmem:[%s733 + $0x8] sm:$0xff]
      %v3911 = vmul.f32 %v3908, %v3909
      %v3912 = vmul.f32 %v3907, %v3910
      %3913 = vst [vmem:[#allocation2 + $0x20] sm:$0xff] %v3911
      %3914 = vst [vmem:[#allocation2 + $0x28] sm:$0xff] %v3912
      %3915 = vrot.lane.b32.xlu0 %v3877, 1
      %v3916 = vpop.permute.xlu0 %3915
      %3917 = vrot.lane.b32.xlu0 %v3878, 1
      %v3918 = vpop.permute.xlu0 %3917
      %v3919 = vsel %vm459, %v3916, %v3918
      %v3920 = vsel %vm459, %v3918, %v3916
      %v3921 = vld [vmem:[%s746] sm:$0xff]
      %v3922 = vld [vmem:[%s746 + $0x8] sm:$0xff]
      %v3923 = vmul.f32 %v3920, %v3921
      %v3924 = vmul.f32 %v3919, %v3922
      %3925 = vst [vmem:[#allocation2 + $0x30] sm:$0xff] %v3923
      %3926 = vst [vmem:[#allocation2 + $0x38] sm:$0xff] %v3924
      %3927 = vst [vmem:[#allocation2 + $0x40] sm:$0xff] %v3877
      %3928 = vst [vmem:[#allocation2 + $0x48] sm:$0xff] %v3878
      %3929 = vrot.lane.b32.xlu0 %v3877, 127
      %v3930 = vpop.permute.xlu0 %3929
      %3931 = vrot.lane.b32.xlu0 %v3878, 127
      %v3932 = vpop.permute.xlu0 %3931
      %v3933 = vsel %vm489, %v3930, %v3932
      %v3934 = vsel %vm489, %v3932, %v3930
      %v3935 = vld [vmem:[%s761] sm:$0xff]
      %v3936 = vld [vmem:[%s761 + $0x8] sm:$0xff]
      %v3937 = vmul.f32 %v3933, %v3935
      %v3938 = vmul.f32 %v3934, %v3936
      %3939 = vst [vmem:[#allocation2 + $0x50] sm:$0xff] %v3937
      %3940 = vst [vmem:[#allocation2 + $0x58] sm:$0xff] %v3938
      %3941 = vrot.lane.b32.xlu0 %v3877, 113
      %v3942 = vpop.permute.xlu0 %3941
      %3943 = vrot.lane.b32.xlu0 %v3878, 113
      %v3944 = vpop.permute.xlu0 %3943
      %v3945 = vsel %vm515, %v3942, %v3944
      %v3946 = vsel %vm515, %v3944, %v3942
      %v3947 = vld [vmem:[%s774] sm:$0xff]
      %v3948 = vld [vmem:[%s774 + $0x8] sm:$0xff]
      %v3949 = vmul.f32 %v3945, %v3947
      %v3950 = vmul.f32 %v3946, %v3948
      %3951 = vst [vmem:[#allocation2 + $0x60] sm:$0xff] %v3949
      %3952 = vst [vmem:[#allocation2 + $0x68] sm:$0xff] %v3950
      %3953 = vrot.lane.b32.xlu0 %v3877, 112
      %v3954 = vpop.permute.xlu0 %3953
      %3955 = vrot.lane.b32.xlu0 %v3878, 112
      %v3956 = vpop.permute.xlu0 %3955
      %v3957 = vsel %vm541, %v3954, %v3956
      %v3958 = vsel %vm541, %v3956, %v3954
      %v3959 = vld [vmem:[%s787] sm:$0xff]
      %v3960 = vld [vmem:[%s787 + $0x8] sm:$0xff]
      %v3961 = vmul.f32 %v3957, %v3959
      %v3962 = vmul.f32 %v3958, %v3960
      %3963 = vst [vmem:[#allocation2 + $0x70] sm:$0xff] %v3961
      %3964 = vst [vmem:[#allocation2 + $0x78] sm:$0xff] %v3962
      %3965 = vrot.lane.b32.xlu0 %v3877, 111
      %v3966 = vpop.permute.xlu0 %3965
      %3967 = vrot.lane.b32.xlu0 %v3878, 111
      %v3968 = vpop.permute.xlu0 %3967
      %v3969 = vsel %vm567, %v3966, %v3968
      %v3970 = vsel %vm567, %v3968, %v3966
      %v3971 = vld [vmem:[%s800] sm:$0xff]
      %v3972 = vld [vmem:[%s800 + $0x8] sm:$0xff]
      %v3973 = vmul.f32 %v3969, %v3971
      %v3974 = vmul.f32 %v3970, %v3972
      %3975 = vst [vmem:[#allocation2 + $0x80] sm:$0xff] %v3973
      %3976 = vst [vmem:[#allocation2 + $0x88] sm:$0xff] %v3974
      %s3977 = scalar_lea.vmem %s338, 120
      %v3978 = vld [vmem:[%s3977] sm:$0xff]
      %v3979 = vld [vmem:[#allocation2] sm:$0xff]
      %v3980 = vld [vmem:[#allocation2 + $0x8] sm:$0xff]
      %v3981 = vld [vmem:[#allocation2 + $0x10] sm:$0xff]
      %v3982 = vld [vmem:[#allocation2 + $0x18] sm:$0xff]
      %v3983 = vld [vmem:[#allocation2 + $0x20] sm:$0xff]
      %v3984 = vld [vmem:[#allocation2 + $0x28] sm:$0xff]
      %v3985 = vld [vmem:[#allocation2 + $0x30] sm:$0xff]
      %v3986 = vld [vmem:[#allocation2 + $0x38] sm:$0xff]
      %v3987 = vld [vmem:[#allocation2 + $0x40] sm:$0xff]
      %v3988 = vld [vmem:[#allocation2 + $0x48] sm:$0xff]
      %v3989 = vld [vmem:[#allocation2 + $0x50] sm:$0xff]
      %v3990 = vld [vmem:[#allocation2 + $0x58] sm:$0xff]
      %v3991 = vld [vmem:[#allocation2 + $0x60] sm:$0xff]
      %v3992 = vld [vmem:[#allocation2 + $0x68] sm:$0xff]
      %v3993 = vld [vmem:[#allocation2 + $0x70] sm:$0xff]
      %v3994 = vld [vmem:[#allocation2 + $0x78] sm:$0xff]
      %v3995 = vld [vmem:[#allocation2 + $0x80] sm:$0xff]
      %v3996 = vld [vmem:[#allocation2 + $0x88] sm:$0xff]
      %v3997 = vld [vmem:[#allocation2 + $0x90] sm:$0xff]
      %v3998 = vld [vmem:[#allocation2 + $0x98] sm:$0xff]
      %v4000 = vsel %vm828, %v3978, 0
      %4002 = vmatprep.subr.mxu0 0.0
      %4003 = vmatpush1.msra.mxu0 0.0
      %4004 = vmatprep.subr.mxu0 0.0
      %4005 = vmatpush1.msra.mxu0 0.0
      %4006 = vmatprep.subr.mxu0 0.0
      %4007 = vmatpush1.msra.mxu0 0.0
      %4008 = vmatprep.subr.mxu0 0.0
      %4009 = vmatpush1.msra.mxu0 0.0
      %4010 = vmatprep.subr.mxu0 0.0
      %4011 = vmatpush1.msra.mxu0 0.0
      %4012 = vmatprep.subr.mxu0 0.0
      %4013 = vmatpush1.msra.mxu0 0.0
      %4014 = vmatprep.subr.mxu0 %v3998
      %4015 = vmatpush1.msra.mxu0 %v3997
      %4016 = vmatprep.subr.mxu0 %v3996
      %4017 = vmatpush1.msra.mxu0 %v3995
      %4018 = vmatprep.subr.mxu0 %v3994
      %4019 = vmatpush1.msra.mxu0 %v3993
      %4020 = vmatprep.subr.mxu0 %v3992
      %4021 = vmatpush1.msra.mxu0 %v3991
      %4022 = vmatprep.subr.mxu0 %v3990
      %4023 = vmatpush1.msra.mxu0 %v3989
      %4024 = vmatprep.subr.mxu0 %v3988
      %4025 = vmatpush1.msra.mxu0 %v3987
      %4026 = vmatprep.subr.mxu0 %v3986
      %4027 = vmatpush1.msra.mxu0 %v3985
      %4028 = vmatprep.subr.mxu0 %v3984
      %4029 = vmatpush1.msra.mxu0 %v3983
      %4030 = vmatprep.subr.mxu0 %v3982
      %4031 = vmatpush1.msra.mxu0 %v3981
      %4032 = vmatprep.subr.mxu0 %v3980
      %4033 = vmatpush1.msra.mxu0 %v3979
      %4034 = vmatprep.subr.mxu0 0.0
      %4035 = vmatpush2.msra.mxu0 0.0
      %4036 = vmatprep.subr.mxu0 0.0
      %4037 = vmatpush2.msra.mxu0 0.0
      %4038 = vmatprep.subr.mxu0 0.0
      %4039 = vmatpush2.msra.mxu0 0.0
      %4040 = vmatprep.subr.mxu0 0.0
      %4041 = vmatpush2.msra.mxu0 0.0
      %4042 = vmatprep.subr.mxu0 0.0
      %4043 = vmatpush2.msra.mxu0 0.0
      %4044 = vmatprep.subr.mxu0 0.0
      %4045 = vmatpush2.msra.mxu0 0.0
      %4046 = vmatprep.subr.mxu0 0.0
      %4047 = vmatpush2.msra.mxu0 0.0
      %4048 = vmatprep.subr.mxu0 0.0
      %4049 = vmatpush2.msra.mxu0 0.0
      %4050 = vmatprep.subr.mxu0 0.0
      %4051 = vmatpush2.msra.mxu0 0.0
      %4052 = vmatprep.subr.mxu0 0.0
      %4053 = vmatpush2.msra.mxu0 0.0
      %4054 = vmatprep.subr.mxu0 0.0
      %4055 = vmatpush2.msra.mxu0 0.0
      %4056 = vmatprep.subr.mxu0 0.0
      %4057 = vmatpush2.msra.mxu0 0.0
      %4058 = vmatprep.subr.mxu0 0.0
      %4059 = vmatpush2.msra.mxu0 0.0
      %4060 = vmatprep.subr.mxu0 0.0
      %4061 = vmatpush2.msra.mxu0 0.0
      %4062 = vmatprep.subr.mxu0 0.0
      %4063 = vmatpush2.msra.mxu0 0.0
      %4064 = vmatprep.subr.mxu0 0.0
      %4065 = vmatpush2.msra.mxu0 0.0
      %4066 = vmatprep.mubr.f32.mxu0 0.0
      %4067 = vmatmul.mubr.f32.gmra.mxu0 %v4000
      %v4068 = vpop.f32.mrf.mxu0
      %v4069 = vadd.f32 0.0, %v4068
      %v4070 = vpop.f32.mrf.mxu0
      %v4071 = vadd.f32 0.0, %v4070
      %4072 = vdwg.mxu0
      %v4073 = vmax.f32 %v4069, 0.0
      %v4074 = vmax.f32 %v4071, 0.0
      %4075 = vrot.lane.b32.xlu0 %v4073, 17
      %v4076 = vpop.permute.xlu0 %4075
      %4077 = vrot.lane.b32.xlu0 %v4074, 17
      %v4078 = vpop.permute.xlu0 %4077
      %v4079 = vsel %vm382, %v4076, %v4078
      %v4080 = vsel %vm382, %v4078, %v4076
      %v4081 = vld [vmem:[%s1] sm:$0xff]
      %v4082 = vld [vmem:[%s1 + $0x8] sm:$0xff]
      %v4083 = vmul.f32 %v4080, %v4081
      %v4084 = vmul.f32 %v4079, %v4082
      %4085 = vst [vmem:[#allocation2] sm:$0xff] %v4083
      %4086 = vst [vmem:[#allocation2 + $0x8] sm:$0xff] %v4084
      %4087 = vrot.lane.b32.xlu0 %v4073, 16
      %v4088 = vpop.permute.xlu0 %4087
      %4089 = vrot.lane.b32.xlu0 %v4074, 16
      %v4090 = vpop.permute.xlu0 %4089
      %v4091 = vsel %vm407, %v4088, %v4090
      %v4092 = vsel %vm407, %v4090, %v4088
      %v4093 = vld [vmem:[%s720] sm:$0xff]
      %v4094 = vld [vmem:[%s720 + $0x8] sm:$0xff]
      %v4095 = vmul.f32 %v4092, %v4093
      %v4096 = vmul.f32 %v4091, %v4094
      %4097 = vst [vmem:[#allocation2 + $0x10] sm:$0xff] %v4095
      %4098 = vst [vmem:[#allocation2 + $0x18] sm:$0xff] %v4096
      %4099 = vrot.lane.b32.xlu0 %v4073, 15
      %v4100 = vpop.permute.xlu0 %4099
      %4101 = vrot.lane.b32.xlu0 %v4074, 15
      %v4102 = vpop.permute.xlu0 %4101
      %v4103 = vsel %vm433, %v4100, %v4102
      %v4104 = vsel %vm433, %v4102, %v4100
      %v4105 = vld [vmem:[%s733] sm:$0xff]
      %v4106 = vld [vmem:[%s733 + $0x8] sm:$0xff]
      %v4107 = vmul.f32 %v4104, %v4105
      %v4108 = vmul.f32 %v4103, %v4106
      %4109 = vst [vmem:[#allocation2 + $0x20] sm:$0xff] %v4107
      %4110 = vst [vmem:[#allocation2 + $0x28] sm:$0xff] %v4108
      %4111 = vrot.lane.b32.xlu0 %v4073, 1
      %v4112 = vpop.permute.xlu0 %4111
      %4113 = vrot.lane.b32.xlu0 %v4074, 1
      %v4114 = vpop.permute.xlu0 %4113
      %v4115 = vsel %vm459, %v4112, %v4114
      %v4116 = vsel %vm459, %v4114, %v4112
      %v4117 = vld [vmem:[%s746] sm:$0xff]
      %v4118 = vld [vmem:[%s746 + $0x8] sm:$0xff]
      %v4119 = vmul.f32 %v4116, %v4117
      %v4120 = vmul.f32 %v4115, %v4118
      %4121 = vst [vmem:[#allocation2 + $0x30] sm:$0xff] %v4119
      %4122 = vst [vmem:[#allocation2 + $0x38] sm:$0xff] %v4120
      %4123 = vst [vmem:[#allocation2 + $0x40] sm:$0xff] %v4073
      %4124 = vst [vmem:[#allocation2 + $0x48] sm:$0xff] %v4074
      %4125 = vrot.lane.b32.xlu0 %v4073, 127
      %v4126 = vpop.permute.xlu0 %4125
      %4127 = vrot.lane.b32.xlu0 %v4074, 127
      %v4128 = vpop.permute.xlu0 %4127
      %v4129 = vsel %vm489, %v4126, %v4128
      %v4130 = vsel %vm489, %v4128, %v4126
      %v4131 = vld [vmem:[%s761] sm:$0xff]
      %v4132 = vld [vmem:[%s761 + $0x8] sm:$0xff]
      %v4133 = vmul.f32 %v4129, %v4131
      %v4134 = vmul.f32 %v4130, %v4132
      %4135 = vst [vmem:[#allocation2 + $0x50] sm:$0xff] %v4133
      %4136 = vst [vmem:[#allocation2 + $0x58] sm:$0xff] %v4134
      %4137 = vrot.lane.b32.xlu0 %v4073, 113
      %v4138 = vpop.permute.xlu0 %4137
      %4139 = vrot.lane.b32.xlu0 %v4074, 113
      %v4140 = vpop.permute.xlu0 %4139
      %v4141 = vsel %vm515, %v4138, %v4140
      %v4142 = vsel %vm515, %v4140, %v4138
      %v4143 = vld [vmem:[%s774] sm:$0xff]
      %v4144 = vld [vmem:[%s774 + $0x8] sm:$0xff]
      %v4145 = vmul.f32 %v4141, %v4143
      %v4146 = vmul.f32 %v4142, %v4144
      %4147 = vst [vmem:[#allocation2 + $0x60] sm:$0xff] %v4145
      %4148 = vst [vmem:[#allocation2 + $0x68] sm:$0xff] %v4146
      %4149 = vrot.lane.b32.xlu0 %v4073, 112
      %v4150 = vpop.permute.xlu0 %4149
      %4151 = vrot.lane.b32.xlu0 %v4074, 112
      %v4152 = vpop.permute.xlu0 %4151
      %v4153 = vsel %vm541, %v4150, %v4152
      %v4154 = vsel %vm541, %v4152, %v4150
      %v4155 = vld [vmem:[%s787] sm:$0xff]
      %v4156 = vld [vmem:[%s787 + $0x8] sm:$0xff]
      %v4157 = vmul.f32 %v4153, %v4155
      %v4158 = vmul.f32 %v4154, %v4156
      %4159 = vst [vmem:[#allocation2 + $0x70] sm:$0xff] %v4157
      %4160 = vst [vmem:[#allocation2 + $0x78] sm:$0xff] %v4158
      %4161 = vrot.lane.b32.xlu0 %v4073, 111
      %v4162 = vpop.permute.xlu0 %4161
      %4163 = vrot.lane.b32.xlu0 %v4074, 111
      %v4164 = vpop.permute.xlu0 %4163
      %v4165 = vsel %vm567, %v4162, %v4164
      %v4166 = vsel %vm567, %v4164, %v4162
      %v4167 = vld [vmem:[%s800] sm:$0xff]
      %v4168 = vld [vmem:[%s800 + $0x8] sm:$0xff]
      %v4169 = vmul.f32 %v4165, %v4167
      %v4170 = vmul.f32 %v4166, %v4168
      %4171 = vst [vmem:[#allocation2 + $0x80] sm:$0xff] %v4169
      %4172 = vst [vmem:[#allocation2 + $0x88] sm:$0xff] %v4170
      %s4173 = scalar_lea.vmem %s338, 128
      %v4174 = vld [vmem:[%s4173] sm:$0xff]
      %v4175 = vld [vmem:[#allocation2] sm:$0xff]
      %v4176 = vld [vmem:[#allocation2 + $0x8] sm:$0xff]
      %v4177 = vld [vmem:[#allocation2 + $0x10] sm:$0xff]
      %v4178 = vld [vmem:[#allocation2 + $0x18] sm:$0xff]
      %v4179 = vld [vmem:[#allocation2 + $0x20] sm:$0xff]
      %v4180 = vld [vmem:[#allocation2 + $0x28] sm:$0xff]
      %v4181 = vld [vmem:[#allocation2 + $0x30] sm:$0xff]
      %v4182 = vld [vmem:[#allocation2 + $0x38] sm:$0xff]
      %v4183 = vld [vmem:[#allocation2 + $0x40] sm:$0xff]
      %v4184 = vld [vmem:[#allocation2 + $0x48] sm:$0xff]
      %v4185 = vld [vmem:[#allocation2 + $0x50] sm:$0xff]
      %v4186 = vld [vmem:[#allocation2 + $0x58] sm:$0xff]
      %v4187 = vld [vmem:[#allocation2 + $0x60] sm:$0xff]
      %v4188 = vld [vmem:[#allocation2 + $0x68] sm:$0xff]
      %v4189 = vld [vmem:[#allocation2 + $0x70] sm:$0xff]
      %v4190 = vld [vmem:[#allocation2 + $0x78] sm:$0xff]
      %v4191 = vld [vmem:[#allocation2 + $0x80] sm:$0xff]
      %v4192 = vld [vmem:[#allocation2 + $0x88] sm:$0xff]
      %v4193 = vld [vmem:[#allocation2 + $0x90] sm:$0xff]
      %v4194 = vld [vmem:[#allocation2 + $0x98] sm:$0xff]
      %v4196 = vsel %vm828, %v4174, 0
      %4198 = vmatprep.subr.mxu0 0.0
      %4199 = vmatpush1.msra.mxu0 0.0
      %4200 = vmatprep.subr.mxu0 0.0
      %4201 = vmatpush1.msra.mxu0 0.0
      %4202 = vmatprep.subr.mxu0 0.0
      %4203 = vmatpush1.msra.mxu0 0.0
      %4204 = vmatprep.subr.mxu0 0.0
      %4205 = vmatpush1.msra.mxu0 0.0
      %4206 = vmatprep.subr.mxu0 0.0
      %4207 = vmatpush1.msra.mxu0 0.0
      %4208 = vmatprep.subr.mxu0 0.0
      %4209 = vmatpush1.msra.mxu0 0.0
      %4210 = vmatprep.subr.mxu0 %v4194
      %4211 = vmatpush1.msra.mxu0 %v4193
      %4212 = vmatprep.subr.mxu0 %v4192
      %4213 = vmatpush1.msra.mxu0 %v4191
      %4214 = vmatprep.subr.mxu0 %v4190
      %4215 = vmatpush1.msra.mxu0 %v4189
      %4216 = vmatprep.subr.mxu0 %v4188
      %4217 = vmatpush1.msra.mxu0 %v4187
      %4218 = vmatprep.subr.mxu0 %v4186
      %4219 = vmatpush1.msra.mxu0 %v4185
      %4220 = vmatprep.subr.mxu0 %v4184
      %4221 = vmatpush1.msra.mxu0 %v4183
      %4222 = vmatprep.subr.mxu0 %v4182
      %4223 = vmatpush1.msra.mxu0 %v4181
      %4224 = vmatprep.subr.mxu0 %v4180
      %4225 = vmatpush1.msra.mxu0 %v4179
      %4226 = vmatprep.subr.mxu0 %v4178
      %4227 = vmatpush1.msra.mxu0 %v4177
      %4228 = vmatprep.subr.mxu0 %v4176
      %4229 = vmatpush1.msra.mxu0 %v4175
      %4230 = vmatprep.subr.mxu0 0.0
      %4231 = vmatpush2.msra.mxu0 0.0
      %4232 = vmatprep.subr.mxu0 0.0
      %4233 = vmatpush2.msra.mxu0 0.0
      %4234 = vmatprep.subr.mxu0 0.0
      %4235 = vmatpush2.msra.mxu0 0.0
      %4236 = vmatprep.subr.mxu0 0.0
      %4237 = vmatpush2.msra.mxu0 0.0
      %4238 = vmatprep.subr.mxu0 0.0
      %4239 = vmatpush2.msra.mxu0 0.0
      %4240 = vmatprep.subr.mxu0 0.0
      %4241 = vmatpush2.msra.mxu0 0.0
      %4242 = vmatprep.subr.mxu0 0.0
      %4243 = vmatpush2.msra.mxu0 0.0
      %4244 = vmatprep.subr.mxu0 0.0
      %4245 = vmatpush2.msra.mxu0 0.0
      %4246 = vmatprep.subr.mxu0 0.0
      %4247 = vmatpush2.msra.mxu0 0.0
      %4248 = vmatprep.subr.mxu0 0.0
      %4249 = vmatpush2.msra.mxu0 0.0
      %4250 = vmatprep.subr.mxu0 0.0
      %4251 = vmatpush2.msra.mxu0 0.0
      %4252 = vmatprep.subr.mxu0 0.0
      %4253 = vmatpush2.msra.mxu0 0.0
      %4254 = vmatprep.subr.mxu0 0.0
      %4255 = vmatpush2.msra.mxu0 0.0
      %4256 = vmatprep.subr.mxu0 0.0
      %4257 = vmatpush2.msra.mxu0 0.0
      %4258 = vmatprep.subr.mxu0 0.0
      %4259 = vmatpush2.msra.mxu0 0.0
      %4260 = vmatprep.subr.mxu0 0.0
      %4261 = vmatpush2.msra.mxu0 0.0
      %4262 = vmatprep.mubr.f32.mxu0 0.0
      %4263 = vmatmul.mubr.f32.gmra.mxu0 %v4196
      %v4264 = vpop.f32.mrf.mxu0
      %v4265 = vadd.f32 0.0, %v4264
      %v4266 = vpop.f32.mrf.mxu0
      %v4267 = vadd.f32 0.0, %v4266
      %4268 = vdwg.mxu0
      %v4269 = vmax.f32 %v4265, 0.0
      %v4270 = vmax.f32 %v4267, 0.0
      %4271 = vrot.lane.b32.xlu0 %v4269, 17
      %v4272 = vpop.permute.xlu0 %4271
      %4273 = vrot.lane.b32.xlu0 %v4270, 17
      %v4274 = vpop.permute.xlu0 %4273
      %v4275 = vsel %vm382, %v4272, %v4274
      %v4276 = vsel %vm382, %v4274, %v4272
      %v4277 = vld [vmem:[%s1] sm:$0xff]
      %v4278 = vld [vmem:[%s1 + $0x8] sm:$0xff]
      %v4279 = vmul.f32 %v4276, %v4277
      %v4280 = vmul.f32 %v4275, %v4278
      %4281 = vst [vmem:[#allocation2] sm:$0xff] %v4279
      %4282 = vst [vmem:[#allocation2 + $0x8] sm:$0xff] %v4280
      %4283 = vrot.lane.b32.xlu0 %v4269, 16
      %v4284 = vpop.permute.xlu0 %4283
      %4285 = vrot.lane.b32.xlu0 %v4270, 16
      %v4286 = vpop.permute.xlu0 %4285
      %v4287 = vsel %vm407, %v4284, %v4286
      %v4288 = vsel %vm407, %v4286, %v4284
      %v4289 = vld [vmem:[%s720] sm:$0xff]
      %v4290 = vld [vmem:[%s720 + $0x8] sm:$0xff]
      %v4291 = vmul.f32 %v4288, %v4289
      %v4292 = vmul.f32 %v4287, %v4290
      %4293 = vst [vmem:[#allocation2 + $0x10] sm:$0xff] %v4291
      %4294 = vst [vmem:[#allocation2 + $0x18] sm:$0xff] %v4292
      %4295 = vrot.lane.b32.xlu0 %v4269, 15
      %v4296 = vpop.permute.xlu0 %4295
      %4297 = vrot.lane.b32.xlu0 %v4270, 15
      %v4298 = vpop.permute.xlu0 %4297
      %v4299 = vsel %vm433, %v4296, %v4298
      %v4300 = vsel %vm433, %v4298, %v4296
      %v4301 = vld [vmem:[%s733] sm:$0xff]
      %v4302 = vld [vmem:[%s733 + $0x8] sm:$0xff]
      %v4303 = vmul.f32 %v4300, %v4301
      %v4304 = vmul.f32 %v4299, %v4302
      %4305 = vst [vmem:[#allocation2 + $0x20] sm:$0xff] %v4303
      %4306 = vst [vmem:[#allocation2 + $0x28] sm:$0xff] %v4304
      %4307 = vrot.lane.b32.xlu0 %v4269, 1
      %v4308 = vpop.permute.xlu0 %4307
      %4309 = vrot.lane.b32.xlu0 %v4270, 1
      %v4310 = vpop.permute.xlu0 %4309
      %v4311 = vsel %vm459, %v4308, %v4310
      %v4312 = vsel %vm459, %v4310, %v4308
      %v4313 = vld [vmem:[%s746] sm:$0xff]
      %v4314 = vld [vmem:[%s746 + $0x8] sm:$0xff]
      %v4315 = vmul.f32 %v4312, %v4313
      %v4316 = vmul.f32 %v4311, %v4314
      %4317 = vst [vmem:[#allocation2 + $0x30] sm:$0xff] %v4315
      %4318 = vst [vmem:[#allocation2 + $0x38] sm:$0xff] %v4316
      %4319 = vst [vmem:[#allocation2 + $0x40] sm:$0xff] %v4269
      %4320 = vst [vmem:[#allocation2 + $0x48] sm:$0xff] %v4270
      %4321 = vrot.lane.b32.xlu0 %v4269, 127
      %v4322 = vpop.permute.xlu0 %4321
      %4323 = vrot.lane.b32.xlu0 %v4270, 127
      %v4324 = vpop.permute.xlu0 %4323
      %v4325 = vsel %vm489, %v4322, %v4324
      %v4326 = vsel %vm489, %v4324, %v4322
      %v4327 = vld [vmem:[%s761] sm:$0xff]
      %v4328 = vld [vmem:[%s761 + $0x8] sm:$0xff]
      %v4329 = vmul.f32 %v4325, %v4327
      %v4330 = vmul.f32 %v4326, %v4328
      %4331 = vst [vmem:[#allocation2 + $0x50] sm:$0xff] %v4329
      %4332 = vst [vmem:[#allocation2 + $0x58] sm:$0xff] %v4330
      %4333 = vrot.lane.b32.xlu0 %v4269, 113
      %v4334 = vpop.permute.xlu0 %4333
      %4335 = vrot.lane.b32.xlu0 %v4270, 113
      %v4336 = vpop.permute.xlu0 %4335
      %v4337 = vsel %vm515, %v4334, %v4336
      %v4338 = vsel %vm515, %v4336, %v4334
      %v4339 = vld [vmem:[%s774] sm:$0xff]
      %v4340 = vld [vmem:[%s774 + $0x8] sm:$0xff]
      %v4341 = vmul.f32 %v4337, %v4339
      %v4342 = vmul.f32 %v4338, %v4340
      %4343 = vst [vmem:[#allocation2 + $0x60] sm:$0xff] %v4341
      %4344 = vst [vmem:[#allocation2 + $0x68] sm:$0xff] %v4342
      %4345 = vrot.lane.b32.xlu0 %v4269, 112
      %v4346 = vpop.permute.xlu0 %4345
      %4347 = vrot.lane.b32.xlu0 %v4270, 112
      %v4348 = vpop.permute.xlu0 %4347
      %v4349 = vsel %vm541, %v4346, %v4348
      %v4350 = vsel %vm541, %v4348, %v4346
      %v4351 = vld [vmem:[%s787] sm:$0xff]
      %v4352 = vld [vmem:[%s787 + $0x8] sm:$0xff]
      %v4353 = vmul.f32 %v4349, %v4351
      %v4354 = vmul.f32 %v4350, %v4352
      %4355 = vst [vmem:[#allocation2 + $0x70] sm:$0xff] %v4353
      %4356 = vst [vmem:[#allocation2 + $0x78] sm:$0xff] %v4354
      %4357 = vrot.lane.b32.xlu0 %v4269, 111
      %v4358 = vpop.permute.xlu0 %4357
      %4359 = vrot.lane.b32.xlu0 %v4270, 111
      %v4360 = vpop.permute.xlu0 %4359
      %v4361 = vsel %vm567, %v4358, %v4360
      %v4362 = vsel %vm567, %v4360, %v4358
      %v4363 = vld [vmem:[%s800] sm:$0xff]
      %v4364 = vld [vmem:[%s800 + $0x8] sm:$0xff]
      %v4365 = vmul.f32 %v4361, %v4363
      %v4366 = vmul.f32 %v4362, %v4364
      %4367 = vst [vmem:[#allocation2 + $0x80] sm:$0xff] %v4365
      %4368 = vst [vmem:[#allocation2 + $0x88] sm:$0xff] %v4366
      %s4369 = scalar_lea.vmem %s338, 136
      %v4370 = vld [vmem:[%s4369] sm:$0xff]
      %v4371 = vld [vmem:[#allocation2] sm:$0xff]
      %v4372 = vld [vmem:[#allocation2 + $0x8] sm:$0xff]
      %v4373 = vld [vmem:[#allocation2 + $0x10] sm:$0xff]
      %v4374 = vld [vmem:[#allocation2 + $0x18] sm:$0xff]
      %v4375 = vld [vmem:[#allocation2 + $0x20] sm:$0xff]
      %v4376 = vld [vmem:[#allocation2 + $0x28] sm:$0xff]
      %v4377 = vld [vmem:[#allocation2 + $0x30] sm:$0xff]
      %v4378 = vld [vmem:[#allocation2 + $0x38] sm:$0xff]
      %v4379 = vld [vmem:[#allocation2 + $0x40] sm:$0xff]
      %v4380 = vld [vmem:[#allocation2 + $0x48] sm:$0xff]
      %v4381 = vld [vmem:[#allocation2 + $0x50] sm:$0xff]
      %v4382 = vld [vmem:[#allocation2 + $0x58] sm:$0xff]
      %v4383 = vld [vmem:[#allocation2 + $0x60] sm:$0xff]
      %v4384 = vld [vmem:[#allocation2 + $0x68] sm:$0xff]
      %v4385 = vld [vmem:[#allocation2 + $0x70] sm:$0xff]
      %v4386 = vld [vmem:[#allocation2 + $0x78] sm:$0xff]
      %v4387 = vld [vmem:[#allocation2 + $0x80] sm:$0xff]
      %v4388 = vld [vmem:[#allocation2 + $0x88] sm:$0xff]
      %v4389 = vld [vmem:[#allocation2 + $0x90] sm:$0xff]
      %v4390 = vld [vmem:[#allocation2 + $0x98] sm:$0xff]
      %v4392 = vsel %vm828, %v4370, 0
      %4394 = vmatprep.subr.mxu0 0.0
      %4395 = vmatpush1.msra.mxu0 0.0
      %4396 = vmatprep.subr.mxu0 0.0
      %4397 = vmatpush1.msra.mxu0 0.0
      %4398 = vmatprep.subr.mxu0 0.0
      %4399 = vmatpush1.msra.mxu0 0.0
      %4400 = vmatprep.subr.mxu0 0.0
      %4401 = vmatpush1.msra.mxu0 0.0
      %4402 = vmatprep.subr.mxu0 0.0
      %4403 = vmatpush1.msra.mxu0 0.0
      %4404 = vmatprep.subr.mxu0 0.0
      %4405 = vmatpush1.msra.mxu0 0.0
      %4406 = vmatprep.subr.mxu0 %v4390
      %4407 = vmatpush1.msra.mxu0 %v4389
      %4408 = vmatprep.subr.mxu0 %v4388
      %4409 = vmatpush1.msra.mxu0 %v4387
      %4410 = vmatprep.subr.mxu0 %v4386
      %4411 = vmatpush1.msra.mxu0 %v4385
      %4412 = vmatprep.subr.mxu0 %v4384
      %4413 = vmatpush1.msra.mxu0 %v4383
      %4414 = vmatprep.subr.mxu0 %v4382
      %4415 = vmatpush1.msra.mxu0 %v4381
      %4416 = vmatprep.subr.mxu0 %v4380
      %4417 = vmatpush1.msra.mxu0 %v4379
      %4418 = vmatprep.subr.mxu0 %v4378
      %4419 = vmatpush1.msra.mxu0 %v4377
      %4420 = vmatprep.subr.mxu0 %v4376
      %4421 = vmatpush1.msra.mxu0 %v4375
      %4422 = vmatprep.subr.mxu0 %v4374
      %4423 = vmatpush1.msra.mxu0 %v4373
      %4424 = vmatprep.subr.mxu0 %v4372
      %4425 = vmatpush1.msra.mxu0 %v4371
      %4426 = vmatprep.subr.mxu0 0.0
      %4427 = vmatpush2.msra.mxu0 0.0
      %4428 = vmatprep.subr.mxu0 0.0
      %4429 = vmatpush2.msra.mxu0 0.0
      %4430 = vmatprep.subr.mxu0 0.0
      %4431 = vmatpush2.msra.mxu0 0.0
      %4432 = vmatprep.subr.mxu0 0.0
      %4433 = vmatpush2.msra.mxu0 0.0
      %4434 = vmatprep.subr.mxu0 0.0
      %4435 = vmatpush2.msra.mxu0 0.0
      %4436 = vmatprep.subr.mxu0 0.0
      %4437 = vmatpush2.msra.mxu0 0.0
      %4438 = vmatprep.subr.mxu0 0.0
      %4439 = vmatpush2.msra.mxu0 0.0
      %4440 = vmatprep.subr.mxu0 0.0
      %4441 = vmatpush2.msra.mxu0 0.0
      %4442 = vmatprep.subr.mxu0 0.0
      %4443 = vmatpush2.msra.mxu0 0.0
      %4444 = vmatprep.subr.mxu0 0.0
      %4445 = vmatpush2.msra.mxu0 0.0
      %4446 = vmatprep.subr.mxu0 0.0
      %4447 = vmatpush2.msra.mxu0 0.0
      %4448 = vmatprep.subr.mxu0 0.0
      %4449 = vmatpush2.msra.mxu0 0.0
      %4450 = vmatprep.subr.mxu0 0.0
      %4451 = vmatpush2.msra.mxu0 0.0
      %4452 = vmatprep.subr.mxu0 0.0
      %4453 = vmatpush2.msra.mxu0 0.0
      %4454 = vmatprep.subr.mxu0 0.0
      %4455 = vmatpush2.msra.mxu0 0.0
      %4456 = vmatprep.subr.mxu0 0.0
      %4457 = vmatpush2.msra.mxu0 0.0
      %4458 = vmatprep.mubr.f32.mxu0 0.0
      %4459 = vmatmul.mubr.f32.gmra.mxu0 %v4392
      %v4460 = vpop.f32.mrf.mxu0
      %v4461 = vadd.f32 0.0, %v4460
      %v4462 = vpop.f32.mrf.mxu0
      %v4463 = vadd.f32 0.0, %v4462
      %4464 = vdwg.mxu0
      %v4465 = vmax.f32 %v4461, 0.0
      %v4466 = vmax.f32 %v4463, 0.0
      %4467 = vrot.lane.b32.xlu0 %v4465, 17
      %v4468 = vpop.permute.xlu0 %4467
      %4469 = vrot.lane.b32.xlu0 %v4466, 17
      %v4470 = vpop.permute.xlu0 %4469
      %v4471 = vsel %vm382, %v4468, %v4470
      %v4472 = vsel %vm382, %v4470, %v4468
      %v4473 = vld [vmem:[%s1] sm:$0xff]
      %v4474 = vld [vmem:[%s1 + $0x8] sm:$0xff]
      %v4475 = vmul.f32 %v4472, %v4473
      %v4476 = vmul.f32 %v4471, %v4474
      %4477 = vst [vmem:[#allocation2] sm:$0xff] %v4475
      %4478 = vst [vmem:[#allocation2 + $0x8] sm:$0xff] %v4476
      %4479 = vrot.lane.b32.xlu0 %v4465, 16
      %v4480 = vpop.permute.xlu0 %4479
      %4481 = vrot.lane.b32.xlu0 %v4466, 16
      %v4482 = vpop.permute.xlu0 %4481
      %v4483 = vsel %vm407, %v4480, %v4482
      %v4484 = vsel %vm407, %v4482, %v4480
      %v4485 = vld [vmem:[%s720] sm:$0xff]
      %v4486 = vld [vmem:[%s720 + $0x8] sm:$0xff]
      %v4487 = vmul.f32 %v4484, %v4485
      %v4488 = vmul.f32 %v4483, %v4486
      %4489 = vst [vmem:[#allocation2 + $0x10] sm:$0xff] %v4487
      %4490 = vst [vmem:[#allocation2 + $0x18] sm:$0xff] %v4488
      %4491 = vrot.lane.b32.xlu0 %v4465, 15
      %v4492 = vpop.permute.xlu0 %4491
      %4493 = vrot.lane.b32.xlu0 %v4466, 15
      %v4494 = vpop.permute.xlu0 %4493
      %v4495 = vsel %vm433, %v4492, %v4494
      %v4496 = vsel %vm433, %v4494, %v4492
      %v4497 = vld [vmem:[%s733] sm:$0xff]
      %v4498 = vld [vmem:[%s733 + $0x8] sm:$0xff]
      %v4499 = vmul.f32 %v4496, %v4497
      %v4500 = vmul.f32 %v4495, %v4498
      %4501 = vst [vmem:[#allocation2 + $0x20] sm:$0xff] %v4499
      %4502 = vst [vmem:[#allocation2 + $0x28] sm:$0xff] %v4500
      %4503 = vrot.lane.b32.xlu0 %v4465, 1
      %v4504 = vpop.permute.xlu0 %4503
      %4505 = vrot.lane.b32.xlu0 %v4466, 1
      %v4506 = vpop.permute.xlu0 %4505
      %v4507 = vsel %vm459, %v4504, %v4506
      %v4508 = vsel %vm459, %v4506, %v4504
      %v4509 = vld [vmem:[%s746] sm:$0xff]
      %v4510 = vld [vmem:[%s746 + $0x8] sm:$0xff]
      %v4511 = vmul.f32 %v4508, %v4509
      %v4512 = vmul.f32 %v4507, %v4510
      %4513 = vst [vmem:[#allocation2 + $0x30] sm:$0xff] %v4511
      %4514 = vst [vmem:[#allocation2 + $0x38] sm:$0xff] %v4512
      %4515 = vst [vmem:[#allocation2 + $0x40] sm:$0xff] %v4465
      %4516 = vst [vmem:[#allocation2 + $0x48] sm:$0xff] %v4466
      %4517 = vrot.lane.b32.xlu0 %v4465, 127
      %v4518 = vpop.permute.xlu0 %4517
      %4519 = vrot.lane.b32.xlu0 %v4466, 127
      %v4520 = vpop.permute.xlu0 %4519
      %v4521 = vsel %vm489, %v4518, %v4520
      %v4522 = vsel %vm489, %v4520, %v4518
      %v4523 = vld [vmem:[%s761] sm:$0xff]
      %v4524 = vld [vmem:[%s761 + $0x8] sm:$0xff]
      %v4525 = vmul.f32 %v4521, %v4523
      %v4526 = vmul.f32 %v4522, %v4524
      %4527 = vst [vmem:[#allocation2 + $0x50] sm:$0xff] %v4525
      %4528 = vst [vmem:[#allocation2 + $0x58] sm:$0xff] %v4526
      %4529 = vrot.lane.b32.xlu0 %v4465, 113
      %v4530 = vpop.permute.xlu0 %4529
      %4531 = vrot.lane.b32.xlu0 %v4466, 113
      %v4532 = vpop.permute.xlu0 %4531
      %v4533 = vsel %vm515, %v4530, %v4532
      %v4534 = vsel %vm515, %v4532, %v4530
      %v4535 = vld [vmem:[%s774] sm:$0xff]
      %v4536 = vld [vmem:[%s774 + $0x8] sm:$0xff]
      %v4537 = vmul.f32 %v4533, %v4535
      %v4538 = vmul.f32 %v4534, %v4536
      %4539 = vst [vmem:[#allocation2 + $0x60] sm:$0xff] %v4537
      %4540 = vst [vmem:[#allocation2 + $0x68] sm:$0xff] %v4538
      %4541 = vrot.lane.b32.xlu0 %v4465, 112
      %v4542 = vpop.permute.xlu0 %4541
      %4543 = vrot.lane.b32.xlu0 %v4466, 112
      %v4544 = vpop.permute.xlu0 %4543
      %v4545 = vsel %vm541, %v4542, %v4544
      %v4546 = vsel %vm541, %v4544, %v4542
      %v4547 = vld [vmem:[%s787] sm:$0xff]
      %v4548 = vld [vmem:[%s787 + $0x8] sm:$0xff]
      %v4549 = vmul.f32 %v4545, %v4547
      %v4550 = vmul.f32 %v4546, %v4548
      %4551 = vst [vmem:[#allocation2 + $0x70] sm:$0xff] %v4549
      %4552 = vst [vmem:[#allocation2 + $0x78] sm:$0xff] %v4550
      %4553 = vrot.lane.b32.xlu0 %v4465, 111
      %v4554 = vpop.permute.xlu0 %4553
      %4555 = vrot.lane.b32.xlu0 %v4466, 111
      %v4556 = vpop.permute.xlu0 %4555
      %v4557 = vsel %vm567, %v4554, %v4556
      %v4558 = vsel %vm567, %v4556, %v4554
      %v4559 = vld [vmem:[%s800] sm:$0xff]
      %v4560 = vld [vmem:[%s800 + $0x8] sm:$0xff]
      %v4561 = vmul.f32 %v4557, %v4559
      %v4562 = vmul.f32 %v4558, %v4560
      %4563 = vst [vmem:[#allocation2 + $0x80] sm:$0xff] %v4561
      %4564 = vst [vmem:[#allocation2 + $0x88] sm:$0xff] %v4562
      %s4565 = scalar_lea.vmem %s338, 144
      %v4566 = vld [vmem:[%s4565] sm:$0xff]
      %v4567 = vld [vmem:[#allocation2] sm:$0xff]
      %v4568 = vld [vmem:[#allocation2 + $0x8] sm:$0xff]
      %v4569 = vld [vmem:[#allocation2 + $0x10] sm:$0xff]
      %v4570 = vld [vmem:[#allocation2 + $0x18] sm:$0xff]
      %v4571 = vld [vmem:[#allocation2 + $0x20] sm:$0xff]
      %v4572 = vld [vmem:[#allocation2 + $0x28] sm:$0xff]
      %v4573 = vld [vmem:[#allocation2 + $0x30] sm:$0xff]
      %v4574 = vld [vmem:[#allocation2 + $0x38] sm:$0xff]
      %v4575 = vld [vmem:[#allocation2 + $0x40] sm:$0xff]
      %v4576 = vld [vmem:[#allocation2 + $0x48] sm:$0xff]
      %v4577 = vld [vmem:[#allocation2 + $0x50] sm:$0xff]
      %v4578 = vld [vmem:[#allocation2 + $0x58] sm:$0xff]
      %v4579 = vld [vmem:[#allocation2 + $0x60] sm:$0xff]
      %v4580 = vld [vmem:[#allocation2 + $0x68] sm:$0xff]
      %v4581 = vld [vmem:[#allocation2 + $0x70] sm:$0xff]
      %v4582 = vld [vmem:[#allocation2 + $0x78] sm:$0xff]
      %v4583 = vld [vmem:[#allocation2 + $0x80] sm:$0xff]
      %v4584 = vld [vmem:[#allocation2 + $0x88] sm:$0xff]
      %v4585 = vld [vmem:[#allocation2 + $0x90] sm:$0xff]
      %v4586 = vld [vmem:[#allocation2 + $0x98] sm:$0xff]
      %v4588 = vsel %vm828, %v4566, 0
      %4590 = vmatprep.subr.mxu0 0.0
      %4591 = vmatpush1.msra.mxu0 0.0
      %4592 = vmatprep.subr.mxu0 0.0
      %4593 = vmatpush1.msra.mxu0 0.0
      %4594 = vmatprep.subr.mxu0 0.0
      %4595 = vmatpush1.msra.mxu0 0.0
      %4596 = vmatprep.subr.mxu0 0.0
      %4597 = vmatpush1.msra.mxu0 0.0
      %4598 = vmatprep.subr.mxu0 0.0
      %4599 = vmatpush1.msra.mxu0 0.0
      %4600 = vmatprep.subr.mxu0 0.0
      %4601 = vmatpush1.msra.mxu0 0.0
      %4602 = vmatprep.subr.mxu0 %v4586
      %4603 = vmatpush1.msra.mxu0 %v4585
      %4604 = vmatprep.subr.mxu0 %v4584
      %4605 = vmatpush1.msra.mxu0 %v4583
      %4606 = vmatprep.subr.mxu0 %v4582
      %4607 = vmatpush1.msra.mxu0 %v4581
      %4608 = vmatprep.subr.mxu0 %v4580
      %4609 = vmatpush1.msra.mxu0 %v4579
      %4610 = vmatprep.subr.mxu0 %v4578
      %4611 = vmatpush1.msra.mxu0 %v4577
      %4612 = vmatprep.subr.mxu0 %v4576
      %4613 = vmatpush1.msra.mxu0 %v4575
      %4614 = vmatprep.subr.mxu0 %v4574
      %4615 = vmatpush1.msra.mxu0 %v4573
      %4616 = vmatprep.subr.mxu0 %v4572
      %4617 = vmatpush1.msra.mxu0 %v4571
      %4618 = vmatprep.subr.mxu0 %v4570
      %4619 = vmatpush1.msra.mxu0 %v4569
      %4620 = vmatprep.subr.mxu0 %v4568
      %4621 = vmatpush1.msra.mxu0 %v4567
      %4622 = vmatprep.subr.mxu0 0.0
      %4623 = vmatpush2.msra.mxu0 0.0
      %4624 = vmatprep.subr.mxu0 0.0
      %4625 = vmatpush2.msra.mxu0 0.0
      %4626 = vmatprep.subr.mxu0 0.0
      %4627 = vmatpush2.msra.mxu0 0.0
      %4628 = vmatprep.subr.mxu0 0.0
      %4629 = vmatpush2.msra.mxu0 0.0
      %4630 = vmatprep.subr.mxu0 0.0
      %4631 = vmatpush2.msra.mxu0 0.0
      %4632 = vmatprep.subr.mxu0 0.0
      %4633 = vmatpush2.msra.mxu0 0.0
      %4634 = vmatprep.subr.mxu0 0.0
      %4635 = vmatpush2.msra.mxu0 0.0
      %4636 = vmatprep.subr.mxu0 0.0
      %4637 = vmatpush2.msra.mxu0 0.0
      %4638 = vmatprep.subr.mxu0 0.0
      %4639 = vmatpush2.msra.mxu0 0.0
      %4640 = vmatprep.subr.mxu0 0.0
      %4641 = vmatpush2.msra.mxu0 0.0
      %4642 = vmatprep.subr.mxu0 0.0
      %4643 = vmatpush2.msra.mxu0 0.0
      %4644 = vmatprep.subr.mxu0 0.0
      %4645 = vmatpush2.msra.mxu0 0.0
      %4646 = vmatprep.subr.mxu0 0.0
      %4647 = vmatpush2.msra.mxu0 0.0
      %4648 = vmatprep.subr.mxu0 0.0
      %4649 = vmatpush2.msra.mxu0 0.0
      %4650 = vmatprep.subr.mxu0 0.0
      %4651 = vmatpush2.msra.mxu0 0.0
      %4652 = vmatprep.subr.mxu0 0.0
      %4653 = vmatpush2.msra.mxu0 0.0
      %4654 = vmatprep.mubr.f32.mxu0 0.0
      %4655 = vmatmul.mubr.f32.gmra.mxu0 %v4588
      %v4656 = vpop.f32.mrf.mxu0
      %v4657 = vadd.f32 0.0, %v4656
      %v4658 = vpop.f32.mrf.mxu0
      %v4659 = vadd.f32 0.0, %v4658
      %4660 = vdwg.mxu0
      %v4661 = vmax.f32 %v4657, 0.0
      %v4662 = vmax.f32 %v4659, 0.0
      %4663 = vrot.lane.b32.xlu0 %v4661, 17
      %v4664 = vpop.permute.xlu0 %4663
      %4665 = vrot.lane.b32.xlu0 %v4662, 17
      %v4666 = vpop.permute.xlu0 %4665
      %v4667 = vsel %vm382, %v4664, %v4666
      %v4668 = vsel %vm382, %v4666, %v4664
      %v4669 = vld [vmem:[%s1] sm:$0xff]
      %v4670 = vld [vmem:[%s1 + $0x8] sm:$0xff]
      %v4671 = vmul.f32 %v4668, %v4669
      %v4672 = vmul.f32 %v4667, %v4670
      %4673 = vst [vmem:[#allocation2] sm:$0xff] %v4671
      %4674 = vst [vmem:[#allocation2 + $0x8] sm:$0xff] %v4672
      %4675 = vrot.lane.b32.xlu0 %v4661, 16
      %v4676 = vpop.permute.xlu0 %4675
      %4677 = vrot.lane.b32.xlu0 %v4662, 16
      %v4678 = vpop.permute.xlu0 %4677
      %v4679 = vsel %vm407, %v4676, %v4678
      %v4680 = vsel %vm407, %v4678, %v4676
      %v4681 = vld [vmem:[%s720] sm:$0xff]
      %v4682 = vld [vmem:[%s720 + $0x8] sm:$0xff]
      %v4683 = vmul.f32 %v4680, %v4681
      %v4684 = vmul.f32 %v4679, %v4682
      %4685 = vst [vmem:[#allocation2 + $0x10] sm:$0xff] %v4683
      %4686 = vst [vmem:[#allocation2 + $0x18] sm:$0xff] %v4684
      %4687 = vrot.lane.b32.xlu0 %v4661, 15
      %v4688 = vpop.permute.xlu0 %4687
      %4689 = vrot.lane.b32.xlu0 %v4662, 15
      %v4690 = vpop.permute.xlu0 %4689
      %v4691 = vsel %vm433, %v4688, %v4690
      %v4692 = vsel %vm433, %v4690, %v4688
      %v4693 = vld [vmem:[%s733] sm:$0xff]
      %v4694 = vld [vmem:[%s733 + $0x8] sm:$0xff]
      %v4695 = vmul.f32 %v4692, %v4693
      %v4696 = vmul.f32 %v4691, %v4694
      %4697 = vst [vmem:[#allocation2 + $0x20] sm:$0xff] %v4695
      %4698 = vst [vmem:[#allocation2 + $0x28] sm:$0xff] %v4696
      %4699 = vrot.lane.b32.xlu0 %v4661, 1
      %v4700 = vpop.permute.xlu0 %4699
      %4701 = vrot.lane.b32.xlu0 %v4662, 1
      %v4702 = vpop.permute.xlu0 %4701
      %v4703 = vsel %vm459, %v4700, %v4702
      %v4704 = vsel %vm459, %v4702, %v4700
      %v4705 = vld [vmem:[%s746] sm:$0xff]
      %v4706 = vld [vmem:[%s746 + $0x8] sm:$0xff]
      %v4707 = vmul.f32 %v4704, %v4705
      %v4708 = vmul.f32 %v4703, %v4706
      %4709 = vst [vmem:[#allocation2 + $0x30] sm:$0xff] %v4707
      %4710 = vst [vmem:[#allocation2 + $0x38] sm:$0xff] %v4708
      %4711 = vst [vmem:[#allocation2 + $0x40] sm:$0xff] %v4661
      %4712 = vst [vmem:[#allocation2 + $0x48] sm:$0xff] %v4662
      %4713 = vrot.lane.b32.xlu0 %v4661, 127
      %v4714 = vpop.permute.xlu0 %4713
      %4715 = vrot.lane.b32.xlu0 %v4662, 127
      %v4716 = vpop.permute.xlu0 %4715
      %v4717 = vsel %vm489, %v4714, %v4716
      %v4718 = vsel %vm489, %v4716, %v4714
      %v4719 = vld [vmem:[%s761] sm:$0xff]
      %v4720 = vld [vmem:[%s761 + $0x8] sm:$0xff]
      %v4721 = vmul.f32 %v4717, %v4719
      %v4722 = vmul.f32 %v4718, %v4720
      %4723 = vst [vmem:[#allocation2 + $0x50] sm:$0xff] %v4721
      %4724 = vst [vmem:[#allocation2 + $0x58] sm:$0xff] %v4722
      %4725 = vrot.lane.b32.xlu0 %v4661, 113
      %v4726 = vpop.permute.xlu0 %4725
      %4727 = vrot.lane.b32.xlu0 %v4662, 113
      %v4728 = vpop.permute.xlu0 %4727
      %v4729 = vsel %vm515, %v4726, %v4728
      %v4730 = vsel %vm515, %v4728, %v4726
      %v4731 = vld [vmem:[%s774] sm:$0xff]
      %v4732 = vld [vmem:[%s774 + $0x8] sm:$0xff]
      %v4733 = vmul.f32 %v4729, %v4731
      %v4734 = vmul.f32 %v4730, %v4732
      %4735 = vst [vmem:[#allocation2 + $0x60] sm:$0xff] %v4733
      %4736 = vst [vmem:[#allocation2 + $0x68] sm:$0xff] %v4734
      %4737 = vrot.lane.b32.xlu0 %v4661, 112
      %v4738 = vpop.permute.xlu0 %4737
      %4739 = vrot.lane.b32.xlu0 %v4662, 112
      %v4740 = vpop.permute.xlu0 %4739
      %v4741 = vsel %vm541, %v4738, %v4740
      %v4742 = vsel %vm541, %v4740, %v4738
      %v4743 = vld [vmem:[%s787] sm:$0xff]
      %v4744 = vld [vmem:[%s787 + $0x8] sm:$0xff]
      %v4745 = vmul.f32 %v4741, %v4743
      %v4746 = vmul.f32 %v4742, %v4744
      %4747 = vst [vmem:[#allocation2 + $0x70] sm:$0xff] %v4745
      %4748 = vst [vmem:[#allocation2 + $0x78] sm:$0xff] %v4746
      %4749 = vrot.lane.b32.xlu0 %v4661, 111
      %v4750 = vpop.permute.xlu0 %4749
      %4751 = vrot.lane.b32.xlu0 %v4662, 111
      %v4752 = vpop.permute.xlu0 %4751
      %v4753 = vsel %vm567, %v4750, %v4752
      %v4754 = vsel %vm567, %v4752, %v4750
      %v4755 = vld [vmem:[%s800] sm:$0xff]
      %v4756 = vld [vmem:[%s800 + $0x8] sm:$0xff]
      %v4757 = vmul.f32 %v4753, %v4755
      %v4758 = vmul.f32 %v4754, %v4756
      %4759 = vst [vmem:[#allocation2 + $0x80] sm:$0xff] %v4757
      %4760 = vst [vmem:[#allocation2 + $0x88] sm:$0xff] %v4758
      %s4761 = scalar_lea.vmem %s338, 152
      %v4762 = vld [vmem:[%s4761] sm:$0xff]
      %v4763 = vld [vmem:[#allocation2] sm:$0xff]
      %v4764 = vld [vmem:[#allocation2 + $0x8] sm:$0xff]
      %v4765 = vld [vmem:[#allocation2 + $0x10] sm:$0xff]
      %v4766 = vld [vmem:[#allocation2 + $0x18] sm:$0xff]
      %v4767 = vld [vmem:[#allocation2 + $0x20] sm:$0xff]
      %v4768 = vld [vmem:[#allocation2 + $0x28] sm:$0xff]
      %v4769 = vld [vmem:[#allocation2 + $0x30] sm:$0xff]
      %v4770 = vld [vmem:[#allocation2 + $0x38] sm:$0xff]
      %v4771 = vld [vmem:[#allocation2 + $0x40] sm:$0xff]
      %v4772 = vld [vmem:[#allocation2 + $0x48] sm:$0xff]
      %v4773 = vld [vmem:[#allocation2 + $0x50] sm:$0xff]
      %v4774 = vld [vmem:[#allocation2 + $0x58] sm:$0xff]
      %v4775 = vld [vmem:[#allocation2 + $0x60] sm:$0xff]
      %v4776 = vld [vmem:[#allocation2 + $0x68] sm:$0xff]
      %v4777 = vld [vmem:[#allocation2 + $0x70] sm:$0xff]
      %v4778 = vld [vmem:[#allocation2 + $0x78] sm:$0xff]
      %v4779 = vld [vmem:[#allocation2 + $0x80] sm:$0xff]
      %v4780 = vld [vmem:[#allocation2 + $0x88] sm:$0xff]
      %v4781 = vld [vmem:[#allocation2 + $0x90] sm:$0xff]
      %v4782 = vld [vmem:[#allocation2 + $0x98] sm:$0xff]
      %v4784 = vsel %vm828, %v4762, 0
      %4786 = vmatprep.subr.mxu0 0.0
      %4787 = vmatpush1.msra.mxu0 0.0
      %4788 = vmatprep.subr.mxu0 0.0
      %4789 = vmatpush1.msra.mxu0 0.0
      %4790 = vmatprep.subr.mxu0 0.0
      %4791 = vmatpush1.msra.mxu0 0.0
      %4792 = vmatprep.subr.mxu0 0.0
      %4793 = vmatpush1.msra.mxu0 0.0
      %4794 = vmatprep.subr.mxu0 0.0
      %4795 = vmatpush1.msra.mxu0 0.0
      %4796 = vmatprep.subr.mxu0 0.0
      %4797 = vmatpush1.msra.mxu0 0.0
      %4798 = vmatprep.subr.mxu0 %v4782
      %4799 = vmatpush1.msra.mxu0 %v4781
      %4800 = vmatprep.subr.mxu0 %v4780
      %4801 = vmatpush1.msra.mxu0 %v4779
      %4802 = vmatprep.subr.mxu0 %v4778
      %4803 = vmatpush1.msra.mxu0 %v4777
      %4804 = vmatprep.subr.mxu0 %v4776
      %4805 = vmatpush1.msra.mxu0 %v4775
      %4806 = vmatprep.subr.mxu0 %v4774
      %4807 = vmatpush1.msra.mxu0 %v4773
      %4808 = vmatprep.subr.mxu0 %v4772
      %4809 = vmatpush1.msra.mxu0 %v4771
      %4810 = vmatprep.subr.mxu0 %v4770
      %4811 = vmatpush1.msra.mxu0 %v4769
      %4812 = vmatprep.subr.mxu0 %v4768
      %4813 = vmatpush1.msra.mxu0 %v4767
      %4814 = vmatprep.subr.mxu0 %v4766
      %4815 = vmatpush1.msra.mxu0 %v4765
      %4816 = vmatprep.subr.mxu0 %v4764
      %4817 = vmatpush1.msra.mxu0 %v4763
      %4818 = vmatprep.subr.mxu0 0.0
      %4819 = vmatpush2.msra.mxu0 0.0
      %4820 = vmatprep.subr.mxu0 0.0
      %4821 = vmatpush2.msra.mxu0 0.0
      %4822 = vmatprep.subr.mxu0 0.0
      %4823 = vmatpush2.msra.mxu0 0.0
      %4824 = vmatprep.subr.mxu0 0.0
      %4825 = vmatpush2.msra.mxu0 0.0
      %4826 = vmatprep.subr.mxu0 0.0
      %4827 = vmatpush2.msra.mxu0 0.0
      %4828 = vmatprep.subr.mxu0 0.0
      %4829 = vmatpush2.msra.mxu0 0.0
      %4830 = vmatprep.subr.mxu0 0.0
      %4831 = vmatpush2.msra.mxu0 0.0
      %4832 = vmatprep.subr.mxu0 0.0
      %4833 = vmatpush2.msra.mxu0 0.0
      %4834 = vmatprep.subr.mxu0 0.0
      %4835 = vmatpush2.msra.mxu0 0.0
      %4836 = vmatprep.subr.mxu0 0.0
      %4837 = vmatpush2.msra.mxu0 0.0
      %4838 = vmatprep.subr.mxu0 0.0
      %4839 = vmatpush2.msra.mxu0 0.0
      %4840 = vmatprep.subr.mxu0 0.0
      %4841 = vmatpush2.msra.mxu0 0.0
      %4842 = vmatprep.subr.mxu0 0.0
      %4843 = vmatpush2.msra.mxu0 0.0
      %4844 = vmatprep.subr.mxu0 0.0
      %4845 = vmatpush2.msra.mxu0 0.0
      %4846 = vmatprep.subr.mxu0 0.0
      %4847 = vmatpush2.msra.mxu0 0.0
      %4848 = vmatprep.subr.mxu0 0.0
      %4849 = vmatpush2.msra.mxu0 0.0
      %4850 = vmatprep.mubr.f32.mxu0 0.0
      %4851 = vmatmul.mubr.f32.gmra.mxu0 %v4784
      %v4852 = vpop.f32.mrf.mxu0
      %v4853 = vadd.f32 0.0, %v4852
      %v4854 = vpop.f32.mrf.mxu0
      %v4855 = vadd.f32 0.0, %v4854
      %4856 = vdwg.mxu0
      %v4857 = vmax.f32 %v4853, 0.0
      %v4858 = vmax.f32 %v4855, 0.0
      %v4859 = vld [vmem:[%s348] sm:$0xff]
      %v4860 = vld [vmem:[%s348 + $0x8] sm:$0x7]
      %v4861 = vld [vmem:[%s353] sm:$0xff]
      %v4862 = vld [vmem:[%s353 + $0x8] sm:$0x7]
      %v4863 = vld [vmem:[%s333] sm:$0xff]
      %v4864 = vld [vmem:[%s333 + $0x8] sm:$0xff]
      %v4865 = vld [vmem:[%s333 + $0x10] sm:$0xff]
      %v4866 = vld [vmem:[%s333 + $0x18] sm:$0xff]
      %vm4867 = vcmask 130048
      %v4869 = vsel %vm4867, %v4861, 0
      %v4872 = vsel %vm4867, %v4862, 0
      %4874 = vmatprep.subr.mxu0 0.0
      %4875 = vmatpush1.msra.mxu0 0.0
      %4876 = vmatprep.subr.mxu0 0.0
      %4877 = vmatpush1.msra.mxu0 0.0
      %4878 = vmatprep.subr.mxu0 0.0
      %4879 = vmatpush1.msra.mxu0 0.0
      %4880 = vmatprep.subr.mxu0 0.0
      %4881 = vmatpush1.msra.mxu0 0.0
      %4882 = vmatprep.subr.mxu0 0.0
      %4883 = vmatpush1.msra.mxu0 0.0
      %4884 = vmatprep.subr.mxu0 0.0
      %4885 = vmatpush1.msra.mxu0 0.0
      %4886 = vmatprep.subr.mxu0 0.0
      %4887 = vmatpush1.msra.mxu0 0.0
      %4888 = vmatprep.subr.mxu0 0.0
      %4889 = vmatpush1.msra.mxu0 0.0
      %4890 = vmatprep.subr.mxu0 0.0
      %4891 = vmatpush1.msra.mxu0 0.0
      %4892 = vmatprep.subr.mxu0 0.0
      %4893 = vmatpush1.msra.mxu0 0.0
      %4894 = vmatprep.subr.mxu0 0.0
      %4895 = vmatpush1.msra.mxu0 0.0
      %4896 = vmatprep.subr.mxu0 0.0
      %4897 = vmatpush1.msra.mxu0 0.0
      %4898 = vmatprep.subr.mxu0 0.0
      %4899 = vmatpush1.msra.mxu0 0.0
      %4900 = vmatprep.subr.mxu0 0.0
      %4901 = vmatpush1.msra.mxu0 0.0
      %4902 = vmatprep.subr.mxu0 %v4866
      %4903 = vmatpush1.msra.mxu0 %v4865
      %4904 = vmatprep.subr.mxu0 %v4864
      %4905 = vmatpush1.msra.mxu0 %v4863
      %4906 = vmatprep.subr.mxu0 0.0
      %4907 = vmatpush2.msra.mxu0 0.0
      %4908 = vmatprep.subr.mxu0 0.0
      %4909 = vmatpush2.msra.mxu0 0.0
      %4910 = vmatprep.subr.mxu0 0.0
      %4911 = vmatpush2.msra.mxu0 0.0
      %4912 = vmatprep.subr.mxu0 0.0
      %4913 = vmatpush2.msra.mxu0 0.0
      %4914 = vmatprep.subr.mxu0 0.0
      %4915 = vmatpush2.msra.mxu0 0.0
      %4916 = vmatprep.subr.mxu0 0.0
      %4917 = vmatpush2.msra.mxu0 0.0
      %4918 = vmatprep.subr.mxu0 0.0
      %4919 = vmatpush2.msra.mxu0 0.0
      %4920 = vmatprep.subr.mxu0 0.0
      %4921 = vmatpush2.msra.mxu0 0.0
      %4922 = vmatprep.subr.mxu0 0.0
      %4923 = vmatpush2.msra.mxu0 0.0
      %4924 = vmatprep.subr.mxu0 0.0
      %4925 = vmatpush2.msra.mxu0 0.0
      %4926 = vmatprep.subr.mxu0 0.0
      %4927 = vmatpush2.msra.mxu0 0.0
      %4928 = vmatprep.subr.mxu0 0.0
      %4929 = vmatpush2.msra.mxu0 0.0
      %4930 = vmatprep.subr.mxu0 0.0
      %4931 = vmatpush2.msra.mxu0 0.0
      %4932 = vmatprep.subr.mxu0 0.0
      %4933 = vmatpush2.msra.mxu0 0.0
      %4934 = vmatprep.subr.mxu0 0.0
      %4935 = vmatpush2.msra.mxu0 0.0
      %4936 = vmatprep.subr.mxu0 0.0
      %4937 = vmatpush2.msra.mxu0 0.0
      %4938 = vmatprep.mubr.f32.mxu0 0.0
      %4939 = vmatmul.mubr.f32.gmra.mxu0 %v4869
      %v4940 = vpop.f32.mrf.mxu0
      %v4941 = vadd.f32 0.0, %v4940
      %v4942 = vpop.f32.mrf.mxu0
      %v4943 = vadd.f32 0.0, %v4942
      %4944 = vmatprep.mubr.f32.mxu0 0.0
      %4945 = vmatmul.mubr.f32.gmra.mxu0 %v4872
      %v4946 = vpop.f32.mrf.mxu0
      %v4947 = vadd.f32 0.0, %v4946
      %v4948 = vpop.f32.mrf.mxu0
      %v4949 = vadd.f32 0.0, %v4948
      %4950 = vdwg.mxu0
      %vm4951 = vcmask 64512
      %v4953 = vsel %vm4951, %v4859, 0
      %v4956 = vsel %vm4951, %v4860, 0
      %4958 = vmatprep.subr.mxu0 0.0
      %4959 = vmatpush1.msra.mxu0 0.0
      %4960 = vmatprep.subr.mxu0 0.0
      %4961 = vmatpush1.msra.mxu0 0.0
      %4962 = vmatprep.subr.mxu0 0.0
      %4963 = vmatpush1.msra.mxu0 0.0
      %4964 = vmatprep.subr.mxu0 0.0
      %4965 = vmatpush1.msra.mxu0 0.0
      %4966 = vmatprep.subr.mxu0 0.0
      %4967 = vmatpush1.msra.mxu0 0.0
      %4968 = vmatprep.subr.mxu0 0.0
      %4969 = vmatpush1.msra.mxu0 0.0
      %4970 = vmatprep.subr.mxu0 0.0
      %4971 = vmatpush1.msra.mxu0 0.0
      %4972 = vmatprep.subr.mxu0 0.0
      %4973 = vmatpush1.msra.mxu0 0.0
      %4974 = vmatprep.subr.mxu0 0.0
      %4975 = vmatpush1.msra.mxu0 0.0
      %4976 = vmatprep.subr.mxu0 0.0
      %4977 = vmatpush1.msra.mxu0 0.0
      %4978 = vmatprep.subr.mxu0 0.0
      %4979 = vmatpush1.msra.mxu0 0.0
      %4980 = vmatprep.subr.mxu0 0.0
      %4981 = vmatpush1.msra.mxu0 0.0
      %4982 = vmatprep.subr.mxu0 0.0
      %4983 = vmatpush1.msra.mxu0 0.0
      %4984 = vmatprep.subr.mxu0 0.0
      %4985 = vmatpush1.msra.mxu0 0.0
      %4986 = vmatprep.subr.mxu0 0.0
      %4987 = vmatpush1.msra.mxu0 0.0
      %4988 = vmatprep.subr.mxu0 %v4858
      %4989 = vmatpush1.msra.mxu0 %v4857
      %4990 = vmatprep.subr.mxu0 0.0
      %4991 = vmatpush2.msra.mxu0 0.0
      %4992 = vmatprep.subr.mxu0 0.0
      %4993 = vmatpush2.msra.mxu0 0.0
      %4994 = vmatprep.subr.mxu0 0.0
      %4995 = vmatpush2.msra.mxu0 0.0
      %4996 = vmatprep.subr.mxu0 0.0
      %4997 = vmatpush2.msra.mxu0 0.0
      %4998 = vmatprep.subr.mxu0 0.0
      %4999 = vmatpush2.msra.mxu0 0.0
      %5000 = vmatprep.subr.mxu0 0.0
      %5001 = vmatpush2.msra.mxu0 0.0
      %5002 = vmatprep.subr.mxu0 0.0
      %5003 = vmatpush2.msra.mxu0 0.0
      %5004 = vmatprep.subr.mxu0 0.0
      %5005 = vmatpush2.msra.mxu0 0.0
      %5006 = vmatprep.subr.mxu0 0.0
      %5007 = vmatpush2.msra.mxu0 0.0
      %5008 = vmatprep.subr.mxu0 0.0
      %5009 = vmatpush2.msra.mxu0 0.0
      %5010 = vmatprep.subr.mxu0 0.0
      %5011 = vmatpush2.msra.mxu0 0.0
      %5012 = vmatprep.subr.mxu0 0.0
      %5013 = vmatpush2.msra.mxu0 0.0
      %5014 = vmatprep.subr.mxu0 0.0
      %5015 = vmatpush2.msra.mxu0 0.0
      %5016 = vmatprep.subr.mxu0 0.0
      %5017 = vmatpush2.msra.mxu0 0.0
      %5018 = vmatprep.subr.mxu0 0.0
      %5019 = vmatpush2.msra.mxu0 0.0
      %5020 = vmatprep.subr.mxu0 0.0
      %5021 = vmatpush2.msra.mxu0 0.0
      %5022 = vmatprep.mubr.f32.mxu0 0.0
      %5023 = vmatmul.mubr.f32.gmra.mxu0 %v4953
      %v5024 = vpop.f32.mrf.mxu0
      %v5025 = vadd.f32 %v4941, %v5024
      %v5026 = vpop.f32.mrf.mxu0
      %v5027 = vadd.f32 %v4943, %v5026
      %5028 = vmatprep.mubr.f32.mxu0 0.0
      %5029 = vmatmul.mubr.f32.gmra.mxu0 %v4956
      %v5030 = vpop.f32.mrf.mxu0
      %v5031 = vadd.f32 %v4947, %v5030
      %v5032 = vpop.f32.mrf.mxu0
      %v5033 = vadd.f32 %v4949, %v5032
      %5034 = vdwg.mxu0
      %5035 = vst [vmem:[%s358] sm:$0xff] %v5025
      %5036 = vst [vmem:[%s358 + $0x8] sm:$0xff] %v5027
      %5037 = vst [vmem:[%s358 + $0x10] sm:$0x7] %v5031
      %5038 = vst [vmem:[%s358 + $0x18] sm:$0x7] %v5033
      %p5039 = scmp.lt.s32.totalorder %s18, 1
      %s5040 = scalar_select %p5039, %s18, 1
      %s5041 = smul.addr %s5040, 4
      %s5042 = smul.addr %s5041, 8
      %s5043 = scalar_lea.vmem %s7, %s5042
      // Predicated region
      $region49: #{small_predictor_forward.1} parent=47 // pred_check
        %p5044 = pneg %p208
      $region50: #{small_predictor_forward.1} parent=47 // pred_check_branch
        %5046 = sbr.rel (%p5044) target = $region52
      $region51: #{small_predictor_forward.1} parent=47 // pred_region
        _
      $region52: #{small_predictor_forward.1} parent=47 // pred_fallthru
        _
    $region48: #{small_predictor_forward.1} parent=5 // pred_fallthru
      _
    %p5047 = scmp.le.s32.totalorder 2, %s13
    // Predicated region
    $region53: #{small_predictor_forward.1} parent=5 // pred_check
      %p5048 = pneg %p5047
    $region54: #{small_predictor_forward.1} parent=5 // pred_check_branch
      %5050 = sbr.rel (%p5048) target = $region56
    $region55: #{small_predictor_forward.1} parent=5 // pred_region
      %s5051 = ssub.s32 %s13, 2
      // Predicated region
      $region57: #{small_predictor_forward.1} parent=55 // pred_check
        %p5052 = pneg %p214
      $region58: #{small_predictor_forward.1} parent=55 // pred_check_branch
        %5054 = sbr.rel (%p5052) target = $region60
      $region59: #{small_predictor_forward.1} parent=55 // pred_region
        %p5055 = scmp.lt.s32.totalorder %s19, 1
        %s5056 = scalar_select %p5055, %s19, 1
        %s5057 = smul.addr %s5056, 4
        %s5058 = smul.addr %s5057, 8
        %s5059 = scalar_lea.vmem %s7, %s5058
      $region60: #{small_predictor_forward.1} parent=55 // pred_fallthru
        _
    $region56: #{small_predictor_forward.1} parent=5 // pred_fallthru
      _
  $region6: #{small_predictor_forward.1} parent=0 // loop_footer
    %s17 = sadd.s32 1, %s13
  $region7: #{small_predictor_forward.1} parent=0 // loop_footer_branch
    %12 = sbr.rel target = $region3
  $region8: #{small_predictor_forward.1} parent=0 // loop_exit
    _

</llo_original>
